<compile_context>
chip_gen: v6e
topology: v6e:2x2x1
jax: 0.10.0
libtpu: 0.0.40
codegen_flags: <defaults>
</compile_context>

<pallas_src>
import jax
import jax.numpy as jnp
from jax import lax
from jax.experimental import pallas as pl
from jax.experimental.pallas import tpu as pltpu

IN_H = 28
IN_W = 28
C_OUT = 16
POOL_H = IN_H // 2                # 14
POOL_W = IN_W // 2                # 14
HIDDEN = 128
FLAT = C_OUT * POOL_H * POOL_W    # 3136
KROWS = 3 * (IN_W + 2)            # 90: three padded input rows per output row
HALF = C_OUT * POOL_W             # 224: one w-parity half of the conv columns
CONV_COLS = 2 * HALF              # 448: columns = (w%2)*224 + c*14 + w//2

_HIGH = lax.Precision.HIGHEST


# ---------------- fused kernel: conv (as matmul) + ReLU + 2x2 pool + MLP ----------
def fused_forward_kernel(r_ref, m_ref, bt_ref, w1r_ref, b1_ref, w2_ref, b2_ref,
                         w3_ref, b3_ref, o_ref):
    # r_ref  : (28, TB, 90)   im2col'd padded input, r[h, n, dy*30+j] = xpad[n, h+dy, j]
    # m_ref  : (90, 448)      conv weights as matmul; col = (w%2)*224 + c*14 + w//2
    # bt_ref : (1, 448)       conv bias broadcast over columns
    # w1r_ref: (14, 224, 128) fc1 weight permuted to [h2, c*14+w2, out]
    # w2/w3  : (128,128), (128,out);  b*: (1, .)
    # o_ref  : (TB, out)
    tb = r_ref.shape[1]
    mmat = m_ref[...]
    btab = bt_ref[...]
    acc = jnp.zeros((tb, HIDDEN), jnp.float32)
    for h2 in range(POOL_H):                                   # unrolled, 14 steps
        ce = jnp.dot(r_ref[2 * h2], mmat,
                     preferred_element_type=jnp.float32) + btab        # conv row 2*h2
        co = jnp.dot(r_ref[2 * h2 + 1], mmat,
                     preferred_element_type=jnp.float32) + btab        # conv row 2*h2+1
        hp = jnp.maximum(jnp.maximum(ce, co), 0.0)             # ReLU + H-direction pool
        pooled = jnp.maximum(hp[:, :HALF], hp[:, HALF:])       # W-direction pool (TB, 224)
        acc = acc + jnp.dot(pooled, w1r_ref[h2],
                            preferred_element_type=jnp.float32)        # fc1 partial sum
    h1 = jnp.maximum(acc + b1_ref[...], 0.0)
    h2a = jnp.maximum(jnp.dot(h1, w2_ref[...],
                              preferred_element_type=jnp.float32) + b2_ref[...], 0.0)
    o_ref[...] = jnp.dot(h2a, w3_ref[...],
                         preferred_element_type=jnp.float32) + b3_ref[...]


# ---------------- wrapper-side parameter transforms (cheap, once per call) --------
def _conv_as_matmul_weights(convw, convb):
    # M[dy*30 + j, p*224 + c*14 + w2] = convw[c, dy, j - (2*w2 + p)] when the tap is valid
    dy = jnp.arange(3)[:, None, None, None]
    j = jnp.arange(IN_W + 2)[None, :, None, None]
    c = jnp.arange(C_OUT)[None, None, :, None]
    w = jnp.arange(IN_W)[None, None, None, :]
    dx = j - w
    valid = (dx >= 0) & (dx <= 2)
    taps = convw[c, dy, jnp.clip(dx, 0, 2)]                    # (3, 30, 16, 28)
    m = jnp.where(valid, taps, 0.0)
    m = m.reshape(3, IN_W + 2, C_OUT, POOL_W, 2)               # split w -> (w2, parity)
    m = jnp.transpose(m, (0, 1, 4, 2, 3))                      # (dy, j, p, c, w2)
    m = m.reshape(KROWS, CONV_COLS).astype(jnp.float32)
    btab = jnp.broadcast_to(convb[None, :, None], (2, C_OUT, POOL_W))
    btab = btab.reshape(1, CONV_COLS).astype(jnp.float32)
    return m, btab


def _permute_fc1(w1):
    # w1 rows are indexed c*196 + h2*14 + w2 (PyTorch NCHW flatten); regroup by h2.
    w1r = w1.reshape(C_OUT, POOL_H, POOL_W, HIDDEN)
    w1r = jnp.transpose(w1r, (1, 0, 2, 3))                     # (h2, c, w2, out)
    return w1r.reshape(POOL_H, HALF, HIDDEN).astype(jnp.float32)


# ---------------- forward ----------------------------------------------------------
@jax.jit
def neural_net_forward(x, params):
    """x: (N, 1, 28, 28) float32 NCHW.  Returns (N, out_size)."""
    convw, convb, w1, b1, w2, b2, w3, b3 = params
    n = x.shape[0]
    out_size = w3.shape[1]

    # batch tile: multiple of 8, capped so double-buffered tiles fit every TPU gen
    tb = min(64, ((n + 7) // 8) * 8)
    n_pad = ((n + tb - 1) // tb) * tb

    # pad batch + spatial (conv padding = 1), drop the single input channel
    xp = jnp.pad(x[:, 0].astype(jnp.float32),
                 ((0, n_pad - n), (1, 1), (1, 1)))             # (n_pad, 30, 30)
    # im2col along H only: r[h, n, dy*30 + j] = xpad[n, h + dy, j]
    r = jnp.concatenate([xp[:, d:d + IN_H, :] for d in range(3)], axis=-1)
    r = jnp.transpose(r, (1, 0, 2))                            # (28, n_pad, 90)

    m, btab = _conv_as_matmul_weights(convw, convb)
    w1r = _permute_fc1(w1)

    const2 = lambda i: (0, 0)
    const3 = lambda i: (0, 0, 0)

    out = pl.pallas_call(
        fused_forward_kernel,
        out_shape=jax.ShapeDtypeStruct((n_pad, out_size), jnp.float32),
        grid=(n_pad // tb,),
        in_specs=[
            pl.BlockSpec((2 * POOL_H, tb, KROWS), lambda i: (0, i, 0)),   # im2col input
            pl.BlockSpec((KROWS, CONV_COLS), const2),                     # conv matrix
            pl.BlockSpec((1, CONV_COLS), const2),                         # conv bias
            pl.BlockSpec((POOL_H, HALF, HIDDEN), const3),                 # fc1 (permuted)
            pl.BlockSpec((1, HIDDEN), const2),                            # b1
            pl.BlockSpec((HIDDEN, HIDDEN), const2),                       # w2
            pl.BlockSpec((1, HIDDEN), const2),                            # b2
            pl.BlockSpec((HIDDEN, out_size), const2),                     # w3
            pl.BlockSpec((1, out_size), const2),                          # b3
        ],
        out_specs=pl.BlockSpec((tb, out_size), lambda i: (i, 0)),
        compiler_params=pltpu.CompilerParams(
            dimension_semantics=("parallel",),
            vmem_limit_bytes=32 * 1024 * 1024),
    )(r, m, btab, w1r,
      b1.reshape(1, HIDDEN).astype(jnp.float32),
      w2.astype(jnp.float32),
      b2.reshape(1, HIDDEN).astype(jnp.float32),
      w3.astype(jnp.float32),
      b3.reshape(1, out_size).astype(jnp.float32))
    return out[:n]


# ---------------- deterministic parameter init (PyTorch-style U(-1/sqrt(fan_in))) --
def init_params(key, out_size):
    ks = jax.random.split(key, 8)

    def u(k, shape, fan_in):
        b = 1.0 / (fan_in ** 0.5)
        return jax.random.uniform(k, shape, jnp.float32, -b, b)

    convw = u(ks[0], (C_OUT, 3, 3), 9.0)          # Conv2d(1, 16, 3) weight (C_in=1 squeezed)
    convb = u(ks[1], (C_OUT,), 9.0)
    w1 = u(ks[2], (FLAT, HIDDEN), float(FLAT))    # stored as (in, out); y = x @ w + b
    b1 = u(ks[3], (HIDDEN,), float(FLAT))
    w2 = u(ks[4], (HIDDEN, HIDDEN), float(HIDDEN))
    b2 = u(ks[5], (HIDDEN,), float(HIDDEN))
    w3 = u(ks[6], (HIDDEN, out_size), float(HIDDEN))
    b3 = u(ks[7], (out_size,), float(HIDDEN))
    return (convw, convb, w1, b1, w2, b2, w3, b3)


# ---------------- plain-JAX reference (mirrors the PyTorch forward) ----------------
def reference_forward(x, params):
    convw, convb, w1, b1, w2, b2, w3, b3 = params
    y = lax.conv_general_dilated(x, convw[:, None, :, :], (1, 1), ((1, 1), (1, 1)),
                                 dimension_numbers=("NCHW", "OIHW", "NCHW"),
                                 precision=_HIGH)
    y = jnp.maximum(y + convb[None, :, None, None], 0.0)
    y = lax.reduce_window(y, -jnp.inf, lax.max, (1, 1, 2, 2), (1, 1, 2, 2), "VALID")
    f = y.reshape(y.shape[0], -1)
    h = jnp.maximum(jnp.dot(f, w1, precision=_HIGH) + b1, 0.0)
    h = jnp.maximum(jnp.dot(h, w2, precision=_HIGH) + b2, 0.0)
    return jnp.dot(h, w3, precision=_HIGH) + b3


if __name__ == "__main__":
    key = jax.random.PRNGKey(0)
    k_x, k_p = jax.random.split(key)
    n, out_size = 2, 10
    x = jax.random.normal(k_x, (n, 1, IN_H, IN_W), jnp.float32)   # NCHW (MNIST-like 28x28)
    params = init_params(k_p, out_size)

    y = neural_net_forward(x, params)
    y = jax.block_until_ready(y)

    ref = reference_forward(x, params)
    assert y.shape == (n, out_size)
    assert bool(jnp.all(jnp.isfinite(y)))
    assert bool(jnp.allclose(y, ref, atol=2e-2, rtol=2e-2)), (
        "max abs diff = %g" % float(jnp.max(jnp.abs(y - ref))))
    print("KERNEL_OK")
</pallas_src>

<mosaic_0001>
module attributes {stable_mosaic.version = 11 : i64} {
  func.func @fused_forward_kernel(%arg0: i32, %arg1: memref<28x8x90xf32, #tpu.memory_space<vmem>>, %arg2: memref<90x448xf32, #tpu.memory_space<vmem>>, %arg3: memref<1x448xf32, #tpu.memory_space<vmem>>, %arg4: memref<14x224x128xf32, #tpu.memory_space<vmem>>, %arg5: memref<1x128xf32, #tpu.memory_space<vmem>>, %arg6: memref<128x128xf32, #tpu.memory_space<vmem>>, %arg7: memref<1x128xf32, #tpu.memory_space<vmem>>, %arg8: memref<128x10xf32, #tpu.memory_space<vmem>>, %arg9: memref<1x10xf32, #tpu.memory_space<vmem>>, %arg10: memref<8x10xf32, #tpu.memory_space<vmem>>) attributes {dimension_semantics = [#tpu.dimension_semantics<parallel>], iteration_bounds = array<i64: 1>, scalar_prefetch = 0 : i64, scratch_operands = 0 : i64, tpu.core_type = #tpu.core_type<tc>, window_params = [{transform_indices = @transform_0, window_bounds = array<i64: 28, 8, 90>}, {pipeline_mode = #tpu.pipeline_mode<synchronous>, transform_indices = @transform_1, window_bounds = array<i64: 90, 448>}, {pipeline_mode = #tpu.pipeline_mode<synchronous>, transform_indices = @transform_2, window_bounds = array<i64: 1, 448>}, {pipeline_mode = #tpu.pipeline_mode<synchronous>, transform_indices = @transform_3, window_bounds = array<i64: 14, 224, 128>}, {pipeline_mode = #tpu.pipeline_mode<synchronous>, transform_indices = @transform_4, window_bounds = array<i64: 1, 128>}, {pipeline_mode = #tpu.pipeline_mode<synchronous>, transform_indices = @transform_5, window_bounds = array<i64: 128, 128>}, {pipeline_mode = #tpu.pipeline_mode<synchronous>, transform_indices = @transform_6, window_bounds = array<i64: 1, 128>}, {pipeline_mode = #tpu.pipeline_mode<synchronous>, transform_indices = @transform_7, window_bounds = array<i64: 128, 10>}, {pipeline_mode = #tpu.pipeline_mode<synchronous>, transform_indices = @transform_8, window_bounds = array<i64: 1, 10>}, {transform_indices = @transform_9, window_bounds = array<i64: 8, 10>}]} {
    %c0 = arith.constant 0 : index
    %c0_0 = arith.constant 0 : index
    %0 = vector.load %arg2[%c0, %c0_0] : memref<90x448xf32, #tpu.memory_space<vmem>>, vector<90x448xf32>
    %c0_1 = arith.constant 0 : index
    %c0_2 = arith.constant 0 : index
    %1 = vector.load %arg3[%c0_1, %c0_2] : memref<1x448xf32, #tpu.memory_space<vmem>>, vector<1x448xf32>
    %cst = arith.constant 0.000000e+00 : f32
    %2 = vector.broadcast %cst : f32 to vector<8x128xf32>
    %c0_3 = arith.constant 0 : index
    %c0_4 = arith.constant 0 : index
    %c0_5 = arith.constant 0 : index
    %3 = vector.load %arg1[%c0_3, %c0_4, %c0_5] : memref<28x8x90xf32, #tpu.memory_space<vmem>>, vector<1x8x90xf32>
    %4 = vector.shape_cast %3 : vector<1x8x90xf32> to vector<8x90xf32>
    %cst_6 = arith.constant dense<0.000000e+00> : vector<8x448xf32>
    %5 = tpu.matmul %4, %0, %cst_6 {dimension_numbers = #tpu.dot_dimension_numbers<[1], [0], [0], [1], [0, 0, 1, 1], [], []>} : vector<8x90xf32>, vector<90x448xf32>, vector<8x448xf32> -> vector<8x448xf32>
    %6 = vector.broadcast %1 : vector<1x448xf32> to vector<8x448xf32>
    %7 = arith.addf %5, %6 : vector<8x448xf32>
    %c1 = arith.constant 1 : index
    %c0_7 = arith.constant 0 : index
    %c0_8 = arith.constant 0 : index
    %8 = vector.load %arg1[%c1, %c0_7, %c0_8] : memref<28x8x90xf32, #tpu.memory_space<vmem>>, vector<1x8x90xf32>
    %9 = vector.shape_cast %8 : vector<1x8x90xf32> to vector<8x90xf32>
    %cst_9 = arith.constant dense<0.000000e+00> : vector<8x448xf32>
    %10 = tpu.matmul %9, %0, %cst_9 {dimension_numbers = #tpu.dot_dimension_numbers<[1], [0], [0], [1], [0, 0, 1, 1], [], []>} : vector<8x90xf32>, vector<90x448xf32>, vector<8x448xf32> -> vector<8x448xf32>
    %11 = vector.broadcast %1 : vector<1x448xf32> to vector<8x448xf32>
    %12 = arith.addf %10, %11 : vector<8x448xf32>
    %13 = arith.maximumf %7, %12 : vector<8x448xf32>
    %cst_10 = arith.constant 0.000000e+00 : f32
    %14 = vector.broadcast %cst_10 : f32 to vector<8x448xf32>
    %15 = arith.maximumf %13, %14 : vector<8x448xf32>
    %16 = vector.extract_strided_slice %15 {offsets = [0, 0], sizes = [8, 224], strides = [1, 1]} : vector<8x448xf32> to vector<8x224xf32>
    %17 = vector.extract_strided_slice %15 {offsets = [0, 224], sizes = [8, 224], strides = [1, 1]} : vector<8x448xf32> to vector<8x224xf32>
    %18 = arith.maximumf %16, %17 : vector<8x224xf32>
    %c0_11 = arith.constant 0 : index
    %c0_12 = arith.constant 0 : index
    %c0_13 = arith.constant 0 : index
    %19 = vector.load %arg4[%c0_11, %c0_12, %c0_13] : memref<14x224x128xf32, #tpu.memory_space<vmem>>, vector<1x224x128xf32>
    %20 = vector.shape_cast %19 : vector<1x224x128xf32> to vector<224x128xf32>
    %cst_14 = arith.constant dense<0.000000e+00> : vector<8x128xf32>
    %21 = tpu.matmul %18, %20, %cst_14 {dimension_numbers = #tpu.dot_dimension_numbers<[1], [0], [0], [1], [0, 0, 1, 1], [], []>} : vector<8x224xf32>, vector<224x128xf32>, vector<8x128xf32> -> vector<8x128xf32>
    %22 = arith.addf %2, %21 : vector<8x128xf32>
    %c2 = arith.constant 2 : index
    %c0_15 = arith.constant 0 : index
    %c0_16 = arith.constant 0 : index
    %23 = vector.load %arg1[%c2, %c0_15, %c0_16] : memref<28x8x90xf32, #tpu.memory_space<vmem>>, vector<1x8x90xf32>
    %24 = vector.shape_cast %23 : vector<1x8x90xf32> to vector<8x90xf32>
    %cst_17 = arith.constant dense<0.000000e+00> : vector<8x448xf32>
    %25 = tpu.matmul %24, %0, %cst_17 {dimension_numbers = #tpu.dot_dimension_numbers<[1], [0], [0], [1], [0, 0, 1, 1], [], []>} : vector<8x90xf32>, vector<90x448xf32>, vector<8x448xf32> -> vector<8x448xf32>
    %26 = vector.broadcast %1 : vector<1x448xf32> to vector<8x448xf32>
    %27 = arith.addf %25, %26 : vector<8x448xf32>
    %c3 = arith.constant 3 : index
    %c0_18 = arith.constant 0 : index
    %c0_19 = arith.constant 0 : index
    %28 = vector.load %arg1[%c3, %c0_18, %c0_19] : memref<28x8x90xf32, #tpu.memory_space<vmem>>, vector<1x8x90xf32>
    %29 = vector.shape_cast %28 : vector<1x8x90xf32> to vector<8x90xf32>
    %cst_20 = arith.constant dense<0.000000e+00> : vector<8x448xf32>
    %30 = tpu.matmul %29, %0, %cst_20 {dimension_numbers = #tpu.dot_dimension_numbers<[1], [0], [0], [1], [0, 0, 1, 1], [], []>} : vector<8x90xf32>, vector<90x448xf32>, vector<8x448xf32> -> vector<8x448xf32>
    %31 = vector.broadcast %1 : vector<1x448xf32> to vector<8x448xf32>
    %32 = arith.addf %30, %31 : vector<8x448xf32>
    %33 = arith.maximumf %27, %32 : vector<8x448xf32>
    %cst_21 = arith.constant 0.000000e+00 : f32
    %34 = vector.broadcast %cst_21 : f32 to vector<8x448xf32>
    %35 = arith.maximumf %33, %34 : vector<8x448xf32>
    %36 = vector.extract_strided_slice %35 {offsets = [0, 0], sizes = [8, 224], strides = [1, 1]} : vector<8x448xf32> to vector<8x224xf32>
    %37 = vector.extract_strided_slice %35 {offsets = [0, 224], sizes = [8, 224], strides = [1, 1]} : vector<8x448xf32> to vector<8x224xf32>
    %38 = arith.maximumf %36, %37 : vector<8x224xf32>
    %c1_22 = arith.constant 1 : index
    %c0_23 = arith.constant 0 : index
    %c0_24 = arith.constant 0 : index
    %39 = vector.load %arg4[%c1_22, %c0_23, %c0_24] : memref<14x224x128xf32, #tpu.memory_space<vmem>>, vector<1x224x128xf32>
    %40 = vector.shape_cast %39 : vector<1x224x128xf32> to vector<224x128xf32>
    %cst_25 = arith.constant dense<0.000000e+00> : vector<8x128xf32>
    %41 = tpu.matmul %38, %40, %cst_25 {dimension_numbers = #tpu.dot_dimension_numbers<[1], [0], [0], [1], [0, 0, 1, 1], [], []>} : vector<8x224xf32>, vector<224x128xf32>, vector<8x128xf32> -> vector<8x128xf32>
    %42 = arith.addf %22, %41 : vector<8x128xf32>
    %c4 = arith.constant 4 : index
    %c0_26 = arith.constant 0 : index
    %c0_27 = arith.constant 0 : index
    %43 = vector.load %arg1[%c4, %c0_26, %c0_27] : memref<28x8x90xf32, #tpu.memory_space<vmem>>, vector<1x8x90xf32>
    %44 = vector.shape_cast %43 : vector<1x8x90xf32> to vector<8x90xf32>
    %cst_28 = arith.constant dense<0.000000e+00> : vector<8x448xf32>
    %45 = tpu.matmul %44, %0, %cst_28 {dimension_numbers = #tpu.dot_dimension_numbers<[1], [0], [0], [1], [0, 0, 1, 1], [], []>} : vector<8x90xf32>, vector<90x448xf32>, vector<8x448xf32> -> vector<8x448xf32>
    %46 = vector.broadcast %1 : vector<1x448xf32> to vector<8x448xf32>
    %47 = arith.addf %45, %46 : vector<8x448xf32>
    %c5 = arith.constant 5 : index
    %c0_29 = arith.constant 0 : index
    %c0_30 = arith.constant 0 : index
    %48 = vector.load %arg1[%c5, %c0_29, %c0_30] : memref<28x8x90xf32, #tpu.memory_space<vmem>>, vector<1x8x90xf32>
    %49 = vector.shape_cast %48 : vector<1x8x90xf32> to vector<8x90xf32>
    %cst_31 = arith.constant dense<0.000000e+00> : vector<8x448xf32>
    %50 = tpu.matmul %49, %0, %cst_31 {dimension_numbers = #tpu.dot_dimension_numbers<[1], [0], [0], [1], [0, 0, 1, 1], [], []>} : vector<8x90xf32>, vector<90x448xf32>, vector<8x448xf32> -> vector<8x448xf32>
    %51 = vector.broadcast %1 : vector<1x448xf32> to vector<8x448xf32>
    %52 = arith.addf %50, %51 : vector<8x448xf32>
    %53 = arith.maximumf %47, %52 : vector<8x448xf32>
    %cst_32 = arith.constant 0.000000e+00 : f32
    %54 = vector.broadcast %cst_32 : f32 to vector<8x448xf32>
    %55 = arith.maximumf %53, %54 : vector<8x448xf32>
    %56 = vector.extract_strided_slice %55 {offsets = [0, 0], sizes = [8, 224], strides = [1, 1]} : vector<8x448xf32> to vector<8x224xf32>
    %57 = vector.extract_strided_slice %55 {offsets = [0, 224], sizes = [8, 224], strides = [1, 1]} : vector<8x448xf32> to vector<8x224xf32>
    %58 = arith.maximumf %56, %57 : vector<8x224xf32>
    %c2_33 = arith.constant 2 : index
    %c0_34 = arith.constant 0 : index
    %c0_35 = arith.constant 0 : index
    %59 = vector.load %arg4[%c2_33, %c0_34, %c0_35] : memref<14x224x128xf32, #tpu.memory_space<vmem>>, vector<1x224x128xf32>
    %60 = vector.shape_cast %59 : vector<1x224x128xf32> to vector<224x128xf32>
    %cst_36 = arith.constant dense<0.000000e+00> : vector<8x128xf32>
    %61 = tpu.matmul %58, %60, %cst_36 {dimension_numbers = #tpu.dot_dimension_numbers<[1], [0], [0], [1], [0, 0, 1, 1], [], []>} : vector<8x224xf32>, vector<224x128xf32>, vector<8x128xf32> -> vector<8x128xf32>
    %62 = arith.addf %42, %61 : vector<8x128xf32>
    %c6 = arith.constant 6 : index
    %c0_37 = arith.constant 0 : index
    %c0_38 = arith.constant 0 : index
    %63 = vector.load %arg1[%c6, %c0_37, %c0_38] : memref<28x8x90xf32, #tpu.memory_space<vmem>>, vector<1x8x90xf32>
    %64 = vector.shape_cast %63 : vector<1x8x90xf32> to vector<8x90xf32>
    %cst_39 = arith.constant dense<0.000000e+00> : vector<8x448xf32>
    %65 = tpu.matmul %64, %0, %cst_39 {dimension_numbers = #tpu.dot_dimension_numbers<[1], [0], [0], [1], [0, 0, 1, 1], [], []>} : vector<8x90xf32>, vector<90x448xf32>, vector<8x448xf32> -> vector<8x448xf32>
    %66 = vector.broadcast %1 : vector<1x448xf32> to vector<8x448xf32>
    %67 = arith.addf %65, %66 : vector<8x448xf32>
    %c7 = arith.constant 7 : index
    %c0_40 = arith.constant 0 : index
    %c0_41 = arith.constant 0 : index
    %68 = vector.load %arg1[%c7, %c0_40, %c0_41] : memref<28x8x90xf32, #tpu.memory_space<vmem>>, vector<1x8x90xf32>
    %69 = vector.shape_cast %68 : vector<1x8x90xf32> to vector<8x90xf32>
    %cst_42 = arith.constant dense<0.000000e+00> : vector<8x448xf32>
    %70 = tpu.matmul %69, %0, %cst_42 {dimension_numbers = #tpu.dot_dimension_numbers<[1], [0], [0], [1], [0, 0, 1, 1], [], []>} : vector<8x90xf32>, vector<90x448xf32>, vector<8x448xf32> -> vector<8x448xf32>
    %71 = vector.broadcast %1 : vector<1x448xf32> to vector<8x448xf32>
    %72 = arith.addf %70, %71 : vector<8x448xf32>
    %73 = arith.maximumf %67, %72 : vector<8x448xf32>
    %cst_43 = arith.constant 0.000000e+00 : f32
    %74 = vector.broadcast %cst_43 : f32 to vector<8x448xf32>
    %75 = arith.maximumf %73, %74 : vector<8x448xf32>
    %76 = vector.extract_strided_slice %75 {offsets = [0, 0], sizes = [8, 224], strides = [1, 1]} : vector<8x448xf32> to vector<8x224xf32>
    %77 = vector.extract_strided_slice %75 {offsets = [0, 224], sizes = [8, 224], strides = [1, 1]} : vector<8x448xf32> to vector<8x224xf32>
    %78 = arith.maximumf %76, %77 : vector<8x224xf32>
    %c3_44 = arith.constant 3 : index
    %c0_45 = arith.constant 0 : index
    %c0_46 = arith.constant 0 : index
    %79 = vector.load %arg4[%c3_44, %c0_45, %c0_46] : memref<14x224x128xf32, #tpu.memory_space<vmem>>, vector<1x224x128xf32>
    %80 = vector.shape_cast %79 : vector<1x224x128xf32> to vector<224x128xf32>
    %cst_47 = arith.constant dense<0.000000e+00> : vector<8x128xf32>
    %81 = tpu.matmul %78, %80, %cst_47 {dimension_numbers = #tpu.dot_dimension_numbers<[1], [0], [0], [1], [0, 0, 1, 1], [], []>} : vector<8x224xf32>, vector<224x128xf32>, vector<8x128xf32> -> vector<8x128xf32>
    %82 = arith.addf %62, %81 : vector<8x128xf32>
    %c8 = arith.constant 8 : index
    %c0_48 = arith.constant 0 : index
    %c0_49 = arith.constant 0 : index
    %83 = vector.load %arg1[%c8, %c0_48, %c0_49] : memref<28x8x90xf32, #tpu.memory_space<vmem>>, vector<1x8x90xf32>
    %84 = vector.shape_cast %83 : vector<1x8x90xf32> to vector<8x90xf32>
    %cst_50 = arith.constant dense<0.000000e+00> : vector<8x448xf32>
    %85 = tpu.matmul %84, %0, %cst_50 {dimension_numbers = #tpu.dot_dimension_numbers<[1], [0], [0], [1], [0, 0, 1, 1], [], []>} : vector<8x90xf32>, vector<90x448xf32>, vector<8x448xf32> -> vector<8x448xf32>
    %86 = vector.broadcast %1 : vector<1x448xf32> to vector<8x448xf32>
    %87 = arith.addf %85, %86 : vector<8x448xf32>
    %c9 = arith.constant 9 : index
    %c0_51 = arith.constant 0 : index
    %c0_52 = arith.constant 0 : index
    %88 = vector.load %arg1[%c9, %c0_51, %c0_52] : memref<28x8x90xf32, #tpu.memory_space<vmem>>, vector<1x8x90xf32>
    %89 = vector.shape_cast %88 : vector<1x8x90xf32> to vector<8x90xf32>
    %cst_53 = arith.constant dense<0.000000e+00> : vector<8x448xf32>
    %90 = tpu.matmul %89, %0, %cst_53 {dimension_numbers = #tpu.dot_dimension_numbers<[1], [0], [0], [1], [0, 0, 1, 1], [], []>} : vector<8x90xf32>, vector<90x448xf32>, vector<8x448xf32> -> vector<8x448xf32>
    %91 = vector.broadcast %1 : vector<1x448xf32> to vector<8x448xf32>
    %92 = arith.addf %90, %91 : vector<8x448xf32>
    %93 = arith.maximumf %87, %92 : vector<8x448xf32>
    %cst_54 = arith.constant 0.000000e+00 : f32
    %94 = vector.broadcast %cst_54 : f32 to vector<8x448xf32>
    %95 = arith.maximumf %93, %94 : vector<8x448xf32>
    %96 = vector.extract_strided_slice %95 {offsets = [0, 0], sizes = [8, 224], strides = [1, 1]} : vector<8x448xf32> to vector<8x224xf32>
    %97 = vector.extract_strided_slice %95 {offsets = [0, 224], sizes = [8, 224], strides = [1, 1]} : vector<8x448xf32> to vector<8x224xf32>
    %98 = arith.maximumf %96, %97 : vector<8x224xf32>
    %c4_55 = arith.constant 4 : index
    %c0_56 = arith.constant 0 : index
    %c0_57 = arith.constant 0 : index
    %99 = vector.load %arg4[%c4_55, %c0_56, %c0_57] : memref<14x224x128xf32, #tpu.memory_space<vmem>>, vector<1x224x128xf32>
    %100 = vector.shape_cast %99 : vector<1x224x128xf32> to vector<224x128xf32>
    %cst_58 = arith.constant dense<0.000000e+00> : vector<8x128xf32>
    %101 = tpu.matmul %98, %100, %cst_58 {dimension_numbers = #tpu.dot_dimension_numbers<[1], [0], [0], [1], [0, 0, 1, 1], [], []>} : vector<8x224xf32>, vector<224x128xf32>, vector<8x128xf32> -> vector<8x128xf32>
    %102 = arith.addf %82, %101 : vector<8x128xf32>
    %c10 = arith.constant 10 : index
    %c0_59 = arith.constant 0 : index
    %c0_60 = arith.constant 0 : index
    %103 = vector.load %arg1[%c10, %c0_59, %c0_60] : memref<28x8x90xf32, #tpu.memory_space<vmem>>, vector<1x8x90xf32>
    %104 = vector.shape_cast %103 : vector<1x8x90xf32> to vector<8x90xf32>
    %cst_61 = arith.constant dense<0.000000e+00> : vector<8x448xf32>
    %105 = tpu.matmul %104, %0, %cst_61 {dimension_numbers = #tpu.dot_dimension_numbers<[1], [0], [0], [1], [0, 0, 1, 1], [], []>} : vector<8x90xf32>, vector<90x448xf32>, vector<8x448xf32> -> vector<8x448xf32>
    %106 = vector.broadcast %1 : vector<1x448xf32> to vector<8x448xf32>
    %107 = arith.addf %105, %106 : vector<8x448xf32>
    %c11 = arith.constant 11 : index
    %c0_62 = arith.constant 0 : index
    %c0_63 = arith.constant 0 : index
    %108 = vector.load %arg1[%c11, %c0_62, %c0_63] : memref<28x8x90xf32, #tpu.memory_space<vmem>>, vector<1x8x90xf32>
    %109 = vector.shape_cast %108 : vector<1x8x90xf32> to vector<8x90xf32>
    %cst_64 = arith.constant dense<0.000000e+00> : vector<8x448xf32>
    %110 = tpu.matmul %109, %0, %cst_64 {dimension_numbers = #tpu.dot_dimension_numbers<[1], [0], [0], [1], [0, 0, 1, 1], [], []>} : vector<8x90xf32>, vector<90x448xf32>, vector<8x448xf32> -> vector<8x448xf32>
    %111 = vector.broadcast %1 : vector<1x448xf32> to vector<8x448xf32>
    %112 = arith.addf %110, %111 : vector<8x448xf32>
    %113 = arith.maximumf %107, %112 : vector<8x448xf32>
    %cst_65 = arith.constant 0.000000e+00 : f32
    %114 = vector.broadcast %cst_65 : f32 to vector<8x448xf32>
    %115 = arith.maximumf %113, %114 : vector<8x448xf32>
    %116 = vector.extract_strided_slice %115 {offsets = [0, 0], sizes = [8, 224], strides = [1, 1]} : vector<8x448xf32> to vector<8x224xf32>
    %117 = vector.extract_strided_slice %115 {offsets = [0, 224], sizes = [8, 224], strides = [1, 1]} : vector<8x448xf32> to vector<8x224xf32>
    %118 = arith.maximumf %116, %117 : vector<8x224xf32>
    %c5_66 = arith.constant 5 : index
    %c0_67 = arith.constant 0 : index
    %c0_68 = arith.constant 0 : index
    %119 = vector.load %arg4[%c5_66, %c0_67, %c0_68] : memref<14x224x128xf32, #tpu.memory_space<vmem>>, vector<1x224x128xf32>
    %120 = vector.shape_cast %119 : vector<1x224x128xf32> to vector<224x128xf32>
    %cst_69 = arith.constant dense<0.000000e+00> : vector<8x128xf32>
    %121 = tpu.matmul %118, %120, %cst_69 {dimension_numbers = #tpu.dot_dimension_numbers<[1], [0], [0], [1], [0, 0, 1, 1], [], []>} : vector<8x224xf32>, vector<224x128xf32>, vector<8x128xf32> -> vector<8x128xf32>
    %122 = arith.addf %102, %121 : vector<8x128xf32>
    %c12 = arith.constant 12 : index
    %c0_70 = arith.constant 0 : index
    %c0_71 = arith.constant 0 : index
    %123 = vector.load %arg1[%c12, %c0_70, %c0_71] : memref<28x8x90xf32, #tpu.memory_space<vmem>>, vector<1x8x90xf32>
    %124 = vector.shape_cast %123 : vector<1x8x90xf32> to vector<8x90xf32>
    %cst_72 = arith.constant dense<0.000000e+00> : vector<8x448xf32>
    %125 = tpu.matmul %124, %0, %cst_72 {dimension_numbers = #tpu.dot_dimension_numbers<[1], [0], [0], [1], [0, 0, 1, 1], [], []>} : vector<8x90xf32>, vector<90x448xf32>, vector<8x448xf32> -> vector<8x448xf32>
    %126 = vector.broadcast %1 : vector<1x448xf32> to vector<8x448xf32>
    %127 = arith.addf %125, %126 : vector<8x448xf32>
    %c13 = arith.constant 13 : index
    %c0_73 = arith.constant 0 : index
    %c0_74 = arith.constant 0 : index
    %128 = vector.load %arg1[%c13, %c0_73, %c0_74] : memref<28x8x90xf32, #tpu.memory_space<vmem>>, vector<1x8x90xf32>
    %129 = vector.shape_cast %128 : vector<1x8x90xf32> to vector<8x90xf32>
    %cst_75 = arith.constant dense<0.000000e+00> : vector<8x448xf32>
    %130 = tpu.matmul %129, %0, %cst_75 {dimension_numbers = #tpu.dot_dimension_numbers<[1], [0], [0], [1], [0, 0, 1, 1], [], []>} : vector<8x90xf32>, vector<90x448xf32>, vector<8x448xf32> -> vector<8x448xf32>
    %131 = vector.broadcast %1 : vector<1x448xf32> to vector<8x448xf32>
    %132 = arith.addf %130, %131 : vector<8x448xf32>
    %133 = arith.maximumf %127, %132 : vector<8x448xf32>
    %cst_76 = arith.constant 0.000000e+00 : f32
    %134 = vector.broadcast %cst_76 : f32 to vector<8x448xf32>
    %135 = arith.maximumf %133, %134 : vector<8x448xf32>
    %136 = vector.extract_strided_slice %135 {offsets = [0, 0], sizes = [8, 224], strides = [1, 1]} : vector<8x448xf32> to vector<8x224xf32>
    %137 = vector.extract_strided_slice %135 {offsets = [0, 224], sizes = [8, 224], strides = [1, 1]} : vector<8x448xf32> to vector<8x224xf32>
    %138 = arith.maximumf %136, %137 : vector<8x224xf32>
    %c6_77 = arith.constant 6 : index
    %c0_78 = arith.constant 0 : index
    %c0_79 = arith.constant 0 : index
    %139 = vector.load %arg4[%c6_77, %c0_78, %c0_79] : memref<14x224x128xf32, #tpu.memory_space<vmem>>, vector<1x224x128xf32>
    %140 = vector.shape_cast %139 : vector<1x224x128xf32> to vector<224x128xf32>
    %cst_80 = arith.constant dense<0.000000e+00> : vector<8x128xf32>
    %141 = tpu.matmul %138, %140, %cst_80 {dimension_numbers = #tpu.dot_dimension_numbers<[1], [0], [0], [1], [0, 0, 1, 1], [], []>} : vector<8x224xf32>, vector<224x128xf32>, vector<8x128xf32> -> vector<8x128xf32>
    %142 = arith.addf %122, %141 : vector<8x128xf32>
    %c14 = arith.constant 14 : index
    %c0_81 = arith.constant 0 : index
    %c0_82 = arith.constant 0 : index
    %143 = vector.load %arg1[%c14, %c0_81, %c0_82] : memref<28x8x90xf32, #tpu.memory_space<vmem>>, vector<1x8x90xf32>
    %144 = vector.shape_cast %143 : vector<1x8x90xf32> to vector<8x90xf32>
    %cst_83 = arith.constant dense<0.000000e+00> : vector<8x448xf32>
    %145 = tpu.matmul %144, %0, %cst_83 {dimension_numbers = #tpu.dot_dimension_numbers<[1], [0], [0], [1], [0, 0, 1, 1], [], []>} : vector<8x90xf32>, vector<90x448xf32>, vector<8x448xf32> -> vector<8x448xf32>
    %146 = vector.broadcast %1 : vector<1x448xf32> to vector<8x448xf32>
    %147 = arith.addf %145, %146 : vector<8x448xf32>
    %c15 = arith.constant 15 : index
    %c0_84 = arith.constant 0 : index
    %c0_85 = arith.constant 0 : index
    %148 = vector.load %arg1[%c15, %c0_84, %c0_85] : memref<28x8x90xf32, #tpu.memory_space<vmem>>, vector<1x8x90xf32>
    %149 = vector.shape_cast %148 : vector<1x8x90xf32> to vector<8x90xf32>
    %cst_86 = arith.constant dense<0.000000e+00> : vector<8x448xf32>
    %150 = tpu.matmul %149, %0, %cst_86 {dimension_numbers = #tpu.dot_dimension_numbers<[1], [0], [0], [1], [0, 0, 1, 1], [], []>} : vector<8x90xf32>, vector<90x448xf32>, vector<8x448xf32> -> vector<8x448xf32>
    %151 = vector.broadcast %1 : vector<1x448xf32> to vector<8x448xf32>
    %152 = arith.addf %150, %151 : vector<8x448xf32>
    %153 = arith.maximumf %147, %152 : vector<8x448xf32>
    %cst_87 = arith.constant 0.000000e+00 : f32
    %154 = vector.broadcast %cst_87 : f32 to vector<8x448xf32>
    %155 = arith.maximumf %153, %154 : vector<8x448xf32>
    %156 = vector.extract_strided_slice %155 {offsets = [0, 0], sizes = [8, 224], strides = [1, 1]} : vector<8x448xf32> to vector<8x224xf32>
    %157 = vector.extract_strided_slice %155 {offsets = [0, 224], sizes = [8, 224], strides = [1, 1]} : vector<8x448xf32> to vector<8x224xf32>
    %158 = arith.maximumf %156, %157 : vector<8x224xf32>
    %c7_88 = arith.constant 7 : index
    %c0_89 = arith.constant 0 : index
    %c0_90 = arith.constant 0 : index
    %159 = vector.load %arg4[%c7_88, %c0_89, %c0_90] : memref<14x224x128xf32, #tpu.memory_space<vmem>>, vector<1x224x128xf32>
    %160 = vector.shape_cast %159 : vector<1x224x128xf32> to vector<224x128xf32>
    %cst_91 = arith.constant dense<0.000000e+00> : vector<8x128xf32>
    %161 = tpu.matmul %158, %160, %cst_91 {dimension_numbers = #tpu.dot_dimension_numbers<[1], [0], [0], [1], [0, 0, 1, 1], [], []>} : vector<8x224xf32>, vector<224x128xf32>, vector<8x128xf32> -> vector<8x128xf32>
    %162 = arith.addf %142, %161 : vector<8x128xf32>
    %c16 = arith.constant 16 : index
    %c0_92 = arith.constant 0 : index
    %c0_93 = arith.constant 0 : index
    %163 = vector.load %arg1[%c16, %c0_92, %c0_93] : memref<28x8x90xf32, #tpu.memory_space<vmem>>, vector<1x8x90xf32>
    %164 = vector.shape_cast %163 : vector<1x8x90xf32> to vector<8x90xf32>
    %cst_94 = arith.constant dense<0.000000e+00> : vector<8x448xf32>
    %165 = tpu.matmul %164, %0, %cst_94 {dimension_numbers = #tpu.dot_dimension_numbers<[1], [0], [0], [1], [0, 0, 1, 1], [], []>} : vector<8x90xf32>, vector<90x448xf32>, vector<8x448xf32> -> vector<8x448xf32>
    %166 = vector.broadcast %1 : vector<1x448xf32> to vector<8x448xf32>
    %167 = arith.addf %165, %166 : vector<8x448xf32>
    %c17 = arith.constant 17 : index
    %c0_95 = arith.constant 0 : index
    %c0_96 = arith.constant 0 : index
    %168 = vector.load %arg1[%c17, %c0_95, %c0_96] : memref<28x8x90xf32, #tpu.memory_space<vmem>>, vector<1x8x90xf32>
    %169 = vector.shape_cast %168 : vector<1x8x90xf32> to vector<8x90xf32>
    %cst_97 = arith.constant dense<0.000000e+00> : vector<8x448xf32>
    %170 = tpu.matmul %169, %0, %cst_97 {dimension_numbers = #tpu.dot_dimension_numbers<[1], [0], [0], [1], [0, 0, 1, 1], [], []>} : vector<8x90xf32>, vector<90x448xf32>, vector<8x448xf32> -> vector<8x448xf32>
    %171 = vector.broadcast %1 : vector<1x448xf32> to vector<8x448xf32>
    %172 = arith.addf %170, %171 : vector<8x448xf32>
    %173 = arith.maximumf %167, %172 : vector<8x448xf32>
    %cst_98 = arith.constant 0.000000e+00 : f32
    %174 = vector.broadcast %cst_98 : f32 to vector<8x448xf32>
    %175 = arith.maximumf %173, %174 : vector<8x448xf32>
    %176 = vector.extract_strided_slice %175 {offsets = [0, 0], sizes = [8, 224], strides = [1, 1]} : vector<8x448xf32> to vector<8x224xf32>
    %177 = vector.extract_strided_slice %175 {offsets = [0, 224], sizes = [8, 224], strides = [1, 1]} : vector<8x448xf32> to vector<8x224xf32>
    %178 = arith.maximumf %176, %177 : vector<8x224xf32>
    %c8_99 = arith.constant 8 : index
    %c0_100 = arith.constant 0 : index
    %c0_101 = arith.constant 0 : index
    %179 = vector.load %arg4[%c8_99, %c0_100, %c0_101] : memref<14x224x128xf32, #tpu.memory_space<vmem>>, vector<1x224x128xf32>
    %180 = vector.shape_cast %179 : vector<1x224x128xf32> to vector<224x128xf32>
    %cst_102 = arith.constant dense<0.000000e+00> : vector<8x128xf32>
    %181 = tpu.matmul %178, %180, %cst_102 {dimension_numbers = #tpu.dot_dimension_numbers<[1], [0], [0], [1], [0, 0, 1, 1], [], []>} : vector<8x224xf32>, vector<224x128xf32>, vector<8x128xf32> -> vector<8x128xf32>
    %182 = arith.addf %162, %181 : vector<8x128xf32>
    %c18 = arith.constant 18 : index
    %c0_103 = arith.constant 0 : index
    %c0_104 = arith.constant 0 : index
    %183 = vector.load %arg1[%c18, %c0_103, %c0_104] : memref<28x8x90xf32, #tpu.memory_space<vmem>>, vector<1x8x90xf32>
    %184 = vector.shape_cast %183 : vector<1x8x90xf32> to vector<8x90xf32>
    %cst_105 = arith.constant dense<0.000000e+00> : vector<8x448xf32>
    %185 = tpu.matmul %184, %0, %cst_105 {dimension_numbers = #tpu.dot_dimension_numbers<[1], [0], [0], [1], [0, 0, 1, 1], [], []>} : vector<8x90xf32>, vector<90x448xf32>, vector<8x448xf32> -> vector<8x448xf32>
    %186 = vector.broadcast %1 : vector<1x448xf32> to vector<8x448xf32>
    %187 = arith.addf %185, %186 : vector<8x448xf32>
    %c19 = arith.constant 19 : index
    %c0_106 = arith.constant 0 : index
    %c0_107 = arith.constant 0 : index
    %188 = vector.load %arg1[%c19, %c0_106, %c0_107] : memref<28x8x90xf32, #tpu.memory_space<vmem>>, vector<1x8x90xf32>
    %189 = vector.shape_cast %188 : vector<1x8x90xf32> to vector<8x90xf32>
    %cst_108 = arith.constant dense<0.000000e+00> : vector<8x448xf32>
    %190 = tpu.matmul %189, %0, %cst_108 {dimension_numbers = #tpu.dot_dimension_numbers<[1], [0], [0], [1], [0, 0, 1, 1], [], []>} : vector<8x90xf32>, vector<90x448xf32>, vector<8x448xf32> -> vector<8x448xf32>
    %191 = vector.broadcast %1 : vector<1x448xf32> to vector<8x448xf32>
    %192 = arith.addf %190, %191 : vector<8x448xf32>
    %193 = arith.maximumf %187, %192 : vector<8x448xf32>
    %cst_109 = arith.constant 0.000000e+00 : f32
    %194 = vector.broadcast %cst_109 : f32 to vector<8x448xf32>
    %195 = arith.maximumf %193, %194 : vector<8x448xf32>
    %196 = vector.extract_strided_slice %195 {offsets = [0, 0], sizes = [8, 224], strides = [1, 1]} : vector<8x448xf32> to vector<8x224xf32>
    %197 = vector.extract_strided_slice %195 {offsets = [0, 224], sizes = [8, 224], strides = [1, 1]} : vector<8x448xf32> to vector<8x224xf32>
    %198 = arith.maximumf %196, %197 : vector<8x224xf32>
    %c9_110 = arith.constant 9 : index
    %c0_111 = arith.constant 0 : index
    %c0_112 = arith.constant 0 : index
    %199 = vector.load %arg4[%c9_110, %c0_111, %c0_112] : memref<14x224x128xf32, #tpu.memory_space<vmem>>, vector<1x224x128xf32>
    %200 = vector.shape_cast %199 : vector<1x224x128xf32> to vector<224x128xf32>
    %cst_113 = arith.constant dense<0.000000e+00> : vector<8x128xf32>
    %201 = tpu.matmul %198, %200, %cst_113 {dimension_numbers = #tpu.dot_dimension_numbers<[1], [0], [0], [1], [0, 0, 1, 1], [], []>} : vector<8x224xf32>, vector<224x128xf32>, vector<8x128xf32> -> vector<8x128xf32>
    %202 = arith.addf %182, %201 : vector<8x128xf32>
    %c20 = arith.constant 20 : index
    %c0_114 = arith.constant 0 : index
    %c0_115 = arith.constant 0 : index
    %203 = vector.load %arg1[%c20, %c0_114, %c0_115] : memref<28x8x90xf32, #tpu.memory_space<vmem>>, vector<1x8x90xf32>
    %204 = vector.shape_cast %203 : vector<1x8x90xf32> to vector<8x90xf32>
    %cst_116 = arith.constant dense<0.000000e+00> : vector<8x448xf32>
    %205 = tpu.matmul %204, %0, %cst_116 {dimension_numbers = #tpu.dot_dimension_numbers<[1], [0], [0], [1], [0, 0, 1, 1], [], []>} : vector<8x90xf32>, vector<90x448xf32>, vector<8x448xf32> -> vector<8x448xf32>
    %206 = vector.broadcast %1 : vector<1x448xf32> to vector<8x448xf32>
    %207 = arith.addf %205, %206 : vector<8x448xf32>
    %c21 = arith.constant 21 : index
    %c0_117 = arith.constant 0 : index
    %c0_118 = arith.constant 0 : index
    %208 = vector.load %arg1[%c21, %c0_117, %c0_118] : memref<28x8x90xf32, #tpu.memory_space<vmem>>, vector<1x8x90xf32>
    %209 = vector.shape_cast %208 : vector<1x8x90xf32> to vector<8x90xf32>
    %cst_119 = arith.constant dense<0.000000e+00> : vector<8x448xf32>
    %210 = tpu.matmul %209, %0, %cst_119 {dimension_numbers = #tpu.dot_dimension_numbers<[1], [0], [0], [1], [0, 0, 1, 1], [], []>} : vector<8x90xf32>, vector<90x448xf32>, vector<8x448xf32> -> vector<8x448xf32>
    %211 = vector.broadcast %1 : vector<1x448xf32> to vector<8x448xf32>
    %212 = arith.addf %210, %211 : vector<8x448xf32>
    %213 = arith.maximumf %207, %212 : vector<8x448xf32>
    %cst_120 = arith.constant 0.000000e+00 : f32
    %214 = vector.broadcast %cst_120 : f32 to vector<8x448xf32>
    %215 = arith.maximumf %213, %214 : vector<8x448xf32>
    %216 = vector.extract_strided_slice %215 {offsets = [0, 0], sizes = [8, 224], strides = [1, 1]} : vector<8x448xf32> to vector<8x224xf32>
    %217 = vector.extract_strided_slice %215 {offsets = [0, 224], sizes = [8, 224], strides = [1, 1]} : vector<8x448xf32> to vector<8x224xf32>
    %218 = arith.maximumf %216, %217 : vector<8x224xf32>
    %c10_121 = arith.constant 10 : index
    %c0_122 = arith.constant 0 : index
    %c0_123 = arith.constant 0 : index
    %219 = vector.load %arg4[%c10_121, %c0_122, %c0_123] : memref<14x224x128xf32, #tpu.memory_space<vmem>>, vector<1x224x128xf32>
    %220 = vector.shape_cast %219 : vector<1x224x128xf32> to vector<224x128xf32>
    %cst_124 = arith.constant dense<0.000000e+00> : vector<8x128xf32>
    %221 = tpu.matmul %218, %220, %cst_124 {dimension_numbers = #tpu.dot_dimension_numbers<[1], [0], [0], [1], [0, 0, 1, 1], [], []>} : vector<8x224xf32>, vector<224x128xf32>, vector<8x128xf32> -> vector<8x128xf32>
    %222 = arith.addf %202, %221 : vector<8x128xf32>
    %c22 = arith.constant 22 : index
    %c0_125 = arith.constant 0 : index
    %c0_126 = arith.constant 0 : index
    %223 = vector.load %arg1[%c22, %c0_125, %c0_126] : memref<28x8x90xf32, #tpu.memory_space<vmem>>, vector<1x8x90xf32>
    %224 = vector.shape_cast %223 : vector<1x8x90xf32> to vector<8x90xf32>
    %cst_127 = arith.constant dense<0.000000e+00> : vector<8x448xf32>
    %225 = tpu.matmul %224, %0, %cst_127 {dimension_numbers = #tpu.dot_dimension_numbers<[1], [0], [0], [1], [0, 0, 1, 1], [], []>} : vector<8x90xf32>, vector<90x448xf32>, vector<8x448xf32> -> vector<8x448xf32>
    %226 = vector.broadcast %1 : vector<1x448xf32> to vector<8x448xf32>
    %227 = arith.addf %225, %226 : vector<8x448xf32>
    %c23 = arith.constant 23 : index
    %c0_128 = arith.constant 0 : index
    %c0_129 = arith.constant 0 : index
    %228 = vector.load %arg1[%c23, %c0_128, %c0_129] : memref<28x8x90xf32, #tpu.memory_space<vmem>>, vector<1x8x90xf32>
    %229 = vector.shape_cast %228 : vector<1x8x90xf32> to vector<8x90xf32>
    %cst_130 = arith.constant dense<0.000000e+00> : vector<8x448xf32>
    %230 = tpu.matmul %229, %0, %cst_130 {dimension_numbers = #tpu.dot_dimension_numbers<[1], [0], [0], [1], [0, 0, 1, 1], [], []>} : vector<8x90xf32>, vector<90x448xf32>, vector<8x448xf32> -> vector<8x448xf32>
    %231 = vector.broadcast %1 : vector<1x448xf32> to vector<8x448xf32>
    %232 = arith.addf %230, %231 : vector<8x448xf32>
    %233 = arith.maximumf %227, %232 : vector<8x448xf32>
    %cst_131 = arith.constant 0.000000e+00 : f32
    %234 = vector.broadcast %cst_131 : f32 to vector<8x448xf32>
    %235 = arith.maximumf %233, %234 : vector<8x448xf32>
    %236 = vector.extract_strided_slice %235 {offsets = [0, 0], sizes = [8, 224], strides = [1, 1]} : vector<8x448xf32> to vector<8x224xf32>
    %237 = vector.extract_strided_slice %235 {offsets = [0, 224], sizes = [8, 224], strides = [1, 1]} : vector<8x448xf32> to vector<8x224xf32>
    %238 = arith.maximumf %236, %237 : vector<8x224xf32>
    %c11_132 = arith.constant 11 : index
    %c0_133 = arith.constant 0 : index
    %c0_134 = arith.constant 0 : index
    %239 = vector.load %arg4[%c11_132, %c0_133, %c0_134] : memref<14x224x128xf32, #tpu.memory_space<vmem>>, vector<1x224x128xf32>
    %240 = vector.shape_cast %239 : vector<1x224x128xf32> to vector<224x128xf32>
    %cst_135 = arith.constant dense<0.000000e+00> : vector<8x128xf32>
    %241 = tpu.matmul %238, %240, %cst_135 {dimension_numbers = #tpu.dot_dimension_numbers<[1], [0], [0], [1], [0, 0, 1, 1], [], []>} : vector<8x224xf32>, vector<224x128xf32>, vector<8x128xf32> -> vector<8x128xf32>
    %242 = arith.addf %222, %241 : vector<8x128xf32>
    %c24 = arith.constant 24 : index
    %c0_136 = arith.constant 0 : index
    %c0_137 = arith.constant 0 : index
    %243 = vector.load %arg1[%c24, %c0_136, %c0_137] : memref<28x8x90xf32, #tpu.memory_space<vmem>>, vector<1x8x90xf32>
    %244 = vector.shape_cast %243 : vector<1x8x90xf32> to vector<8x90xf32>
    %cst_138 = arith.constant dense<0.000000e+00> : vector<8x448xf32>
    %245 = tpu.matmul %244, %0, %cst_138 {dimension_numbers = #tpu.dot_dimension_numbers<[1], [0], [0], [1], [0, 0, 1, 1], [], []>} : vector<8x90xf32>, vector<90x448xf32>, vector<8x448xf32> -> vector<8x448xf32>
    %246 = vector.broadcast %1 : vector<1x448xf32> to vector<8x448xf32>
    %247 = arith.addf %245, %246 : vector<8x448xf32>
    %c25 = arith.constant 25 : index
    %c0_139 = arith.constant 0 : index
    %c0_140 = arith.constant 0 : index
    %248 = vector.load %arg1[%c25, %c0_139, %c0_140] : memref<28x8x90xf32, #tpu.memory_space<vmem>>, vector<1x8x90xf32>
    %249 = vector.shape_cast %248 : vector<1x8x90xf32> to vector<8x90xf32>
    %cst_141 = arith.constant dense<0.000000e+00> : vector<8x448xf32>
    %250 = tpu.matmul %249, %0, %cst_141 {dimension_numbers = #tpu.dot_dimension_numbers<[1], [0], [0], [1], [0, 0, 1, 1], [], []>} : vector<8x90xf32>, vector<90x448xf32>, vector<8x448xf32> -> vector<8x448xf32>
    %251 = vector.broadcast %1 : vector<1x448xf32> to vector<8x448xf32>
    %252 = arith.addf %250, %251 : vector<8x448xf32>
    %253 = arith.maximumf %247, %252 : vector<8x448xf32>
    %cst_142 = arith.constant 0.000000e+00 : f32
    %254 = vector.broadcast %cst_142 : f32 to vector<8x448xf32>
    %255 = arith.maximumf %253, %254 : vector<8x448xf32>
    %256 = vector.extract_strided_slice %255 {offsets = [0, 0], sizes = [8, 224], strides = [1, 1]} : vector<8x448xf32> to vector<8x224xf32>
    %257 = vector.extract_strided_slice %255 {offsets = [0, 224], sizes = [8, 224], strides = [1, 1]} : vector<8x448xf32> to vector<8x224xf32>
    %258 = arith.maximumf %256, %257 : vector<8x224xf32>
    %c12_143 = arith.constant 12 : index
    %c0_144 = arith.constant 0 : index
    %c0_145 = arith.constant 0 : index
    %259 = vector.load %arg4[%c12_143, %c0_144, %c0_145] : memref<14x224x128xf32, #tpu.memory_space<vmem>>, vector<1x224x128xf32>
    %260 = vector.shape_cast %259 : vector<1x224x128xf32> to vector<224x128xf32>
    %cst_146 = arith.constant dense<0.000000e+00> : vector<8x128xf32>
    %261 = tpu.matmul %258, %260, %cst_146 {dimension_numbers = #tpu.dot_dimension_numbers<[1], [0], [0], [1], [0, 0, 1, 1], [], []>} : vector<8x224xf32>, vector<224x128xf32>, vector<8x128xf32> -> vector<8x128xf32>
    %262 = arith.addf %242, %261 : vector<8x128xf32>
    %c26 = arith.constant 26 : index
    %c0_147 = arith.constant 0 : index
    %c0_148 = arith.constant 0 : index
    %263 = vector.load %arg1[%c26, %c0_147, %c0_148] : memref<28x8x90xf32, #tpu.memory_space<vmem>>, vector<1x8x90xf32>
    %264 = vector.shape_cast %263 : vector<1x8x90xf32> to vector<8x90xf32>
    %cst_149 = arith.constant dense<0.000000e+00> : vector<8x448xf32>
    %265 = tpu.matmul %264, %0, %cst_149 {dimension_numbers = #tpu.dot_dimension_numbers<[1], [0], [0], [1], [0, 0, 1, 1], [], []>} : vector<8x90xf32>, vector<90x448xf32>, vector<8x448xf32> -> vector<8x448xf32>
    %266 = vector.broadcast %1 : vector<1x448xf32> to vector<8x448xf32>
    %267 = arith.addf %265, %266 : vector<8x448xf32>
    %c27 = arith.constant 27 : index
    %c0_150 = arith.constant 0 : index
    %c0_151 = arith.constant 0 : index
    %268 = vector.load %arg1[%c27, %c0_150, %c0_151] : memref<28x8x90xf32, #tpu.memory_space<vmem>>, vector<1x8x90xf32>
    %269 = vector.shape_cast %268 : vector<1x8x90xf32> to vector<8x90xf32>
    %cst_152 = arith.constant dense<0.000000e+00> : vector<8x448xf32>
    %270 = tpu.matmul %269, %0, %cst_152 {dimension_numbers = #tpu.dot_dimension_numbers<[1], [0], [0], [1], [0, 0, 1, 1], [], []>} : vector<8x90xf32>, vector<90x448xf32>, vector<8x448xf32> -> vector<8x448xf32>
    %271 = vector.broadcast %1 : vector<1x448xf32> to vector<8x448xf32>
    %272 = arith.addf %270, %271 : vector<8x448xf32>
    %273 = arith.maximumf %267, %272 : vector<8x448xf32>
    %cst_153 = arith.constant 0.000000e+00 : f32
    %274 = vector.broadcast %cst_153 : f32 to vector<8x448xf32>
    %275 = arith.maximumf %273, %274 : vector<8x448xf32>
    %276 = vector.extract_strided_slice %275 {offsets = [0, 0], sizes = [8, 224], strides = [1, 1]} : vector<8x448xf32> to vector<8x224xf32>
    %277 = vector.extract_strided_slice %275 {offsets = [0, 224], sizes = [8, 224], strides = [1, 1]} : vector<8x448xf32> to vector<8x224xf32>
    %278 = arith.maximumf %276, %277 : vector<8x224xf32>
    %c13_154 = arith.constant 13 : index
    %c0_155 = arith.constant 0 : index
    %c0_156 = arith.constant 0 : index
    %279 = vector.load %arg4[%c13_154, %c0_155, %c0_156] : memref<14x224x128xf32, #tpu.memory_space<vmem>>, vector<1x224x128xf32>
    %280 = vector.shape_cast %279 : vector<1x224x128xf32> to vector<224x128xf32>
    %cst_157 = arith.constant dense<0.000000e+00> : vector<8x128xf32>
    %281 = tpu.matmul %278, %280, %cst_157 {dimension_numbers = #tpu.dot_dimension_numbers<[1], [0], [0], [1], [0, 0, 1, 1], [], []>} : vector<8x224xf32>, vector<224x128xf32>, vector<8x128xf32> -> vector<8x128xf32>
    %282 = arith.addf %262, %281 : vector<8x128xf32>
    %c0_158 = arith.constant 0 : index
    %c0_159 = arith.constant 0 : index
    %283 = vector.load %arg5[%c0_158, %c0_159] : memref<1x128xf32, #tpu.memory_space<vmem>>, vector<1x128xf32>
    %284 = vector.broadcast %283 : vector<1x128xf32> to vector<8x128xf32>
    %285 = arith.addf %282, %284 : vector<8x128xf32>
    %cst_160 = arith.constant 0.000000e+00 : f32
    %286 = vector.broadcast %cst_160 : f32 to vector<8x128xf32>
    %287 = arith.maximumf %285, %286 : vector<8x128xf32>
    %c0_161 = arith.constant 0 : index
    %c0_162 = arith.constant 0 : index
    %288 = vector.load %arg6[%c0_161, %c0_162] : memref<128x128xf32, #tpu.memory_space<vmem>>, vector<128x128xf32>
    %cst_163 = arith.constant dense<0.000000e+00> : vector<8x128xf32>
    %289 = tpu.matmul %287, %288, %cst_163 {dimension_numbers = #tpu.dot_dimension_numbers<[1], [0], [0], [1], [0, 0, 1, 1], [], []>} : vector<8x128xf32>, vector<128x128xf32>, vector<8x128xf32> -> vector<8x128xf32>
    %c0_164 = arith.constant 0 : index
    %c0_165 = arith.constant 0 : index
    %290 = vector.load %arg7[%c0_164, %c0_165] : memref<1x128xf32, #tpu.memory_space<vmem>>, vector<1x128xf32>
    %291 = vector.broadcast %290 : vector<1x128xf32> to vector<8x128xf32>
    %292 = arith.addf %289, %291 : vector<8x128xf32>
    %cst_166 = arith.constant 0.000000e+00 : f32
    %293 = vector.broadcast %cst_166 : f32 to vector<8x128xf32>
    %294 = arith.maximumf %292, %293 : vector<8x128xf32>
    %c0_167 = arith.constant 0 : index
    %c0_168 = arith.constant 0 : index
    %295 = vector.load %arg8[%c0_167, %c0_168] : memref<128x10xf32, #tpu.memory_space<vmem>>, vector<128x10xf32>
    %cst_169 = arith.constant dense<0.000000e+00> : vector<8x10xf32>
    %296 = tpu.matmul %294, %295, %cst_169 {dimension_numbers = #tpu.dot_dimension_numbers<[1], [0], [0], [1], [0, 0, 1, 1], [], []>} : vector<8x128xf32>, vector<128x10xf32>, vector<8x10xf32> -> vector<8x10xf32>
    %c0_170 = arith.constant 0 : index
    %c0_171 = arith.constant 0 : index
    %297 = vector.load %arg9[%c0_170, %c0_171] : memref<1x10xf32, #tpu.memory_space<vmem>>, vector<1x10xf32>
    %298 = vector.broadcast %297 : vector<1x10xf32> to vector<8x10xf32>
    %299 = arith.addf %296, %298 : vector<8x10xf32>
    %c0_172 = arith.constant 0 : index
    %c0_173 = arith.constant 0 : index
    %300 = vector.load %arg10[%c0_172, %c0_173] : memref<8x10xf32, #tpu.memory_space<vmem>>, vector<8x10xf32>
    tpu.vector_store %arg10[%c0_172, %c0_173], %299 {strides = array<i32>} : memref<8x10xf32, #tpu.memory_space<vmem>>, vector<8x10xf32>,
    return
  }
  func.func @transform_0(%arg0: i32) -> (i32, i32, i32) {
    %c0_i32 = arith.constant 0 : i32
    %c0_i32_0 = arith.constant 0 : i32
    %c0_i32_1 = arith.constant 0 : i32
    return %c0_i32, %arg0, %c0_i32_0 : i32, i32, i32
  }
  func.func @transform_1(%arg0: i32) -> (i32, i32) {
    %c0_i32 = arith.constant 0 : i32
    %c0_i32_0 = arith.constant 0 : i32
    %c0_i32_1 = arith.constant 0 : i32
    return %c0_i32, %c0_i32_0 : i32, i32
  }
  func.func @transform_2(%arg0: i32) -> (i32, i32) {
    %c0_i32 = arith.constant 0 : i32
    %c0_i32_0 = arith.constant 0 : i32
    %c0_i32_1 = arith.constant 0 : i32
    return %c0_i32, %c0_i32_0 : i32, i32
  }
  func.func @transform_3(%arg0: i32) -> (i32, i32, i32) {
    %c0_i32 = arith.constant 0 : i32
    %c0_i32_0 = arith.constant 0 : i32
    %c0_i32_1 = arith.constant 0 : i32
    %c0_i32_2 = arith.constant 0 : i32
    return %c0_i32, %c0_i32_0, %c0_i32_1 : i32, i32, i32
  }
  func.func @transform_4(%arg0: i32) -> (i32, i32) {
    %c0_i32 = arith.constant 0 : i32
    %c0_i32_0 = arith.constant 0 : i32
    %c0_i32_1 = arith.constant 0 : i32
    return %c0_i32, %c0_i32_0 : i32, i32
  }
  func.func @transform_5(%arg0: i32) -> (i32, i32) {
    %c0_i32 = arith.constant 0 : i32
    %c0_i32_0 = arith.constant 0 : i32
    %c0_i32_1 = arith.constant 0 : i32
    return %c0_i32, %c0_i32_0 : i32, i32
  }
  func.func @transform_6(%arg0: i32) -> (i32, i32) {
    %c0_i32 = arith.constant 0 : i32
    %c0_i32_0 = arith.constant 0 : i32
    %c0_i32_1 = arith.constant 0 : i32
    return %c0_i32, %c0_i32_0 : i32, i32
  }
  func.func @transform_7(%arg0: i32) -> (i32, i32) {
    %c0_i32 = arith.constant 0 : i32
    %c0_i32_0 = arith.constant 0 : i32
    %c0_i32_1 = arith.constant 0 : i32
    return %c0_i32, %c0_i32_0 : i32, i32
  }
  func.func @transform_8(%arg0: i32) -> (i32, i32) {
    %c0_i32 = arith.constant 0 : i32
    %c0_i32_0 = arith.constant 0 : i32
    %c0_i32_1 = arith.constant 0 : i32
    return %c0_i32, %c0_i32_0 : i32, i32
  }
  func.func @transform_9(%arg0: i32) -> (i32, i32) {
    %c0_i32 = arith.constant 0 : i32
    %c0_i32_0 = arith.constant 0 : i32
    return %arg0, %c0_i32 : i32, i32
  }
}

</mosaic_0001>

<llo_original>
// kernel: neural_net_forward.1
$region0: #{neural_net_forward.1}
  #allocation0 [shape = 'u32[]', space=smem, size = 0x4, offset = 0x4, fixed_abs, tag = 'smem constant byte address 0x4 - core index']
  #allocation1 [shape = 'u32[144,128]{1,0:T(1,128)}', space=vmem, size = 0x12000, scoped, tag = 'internal scratch']
  %s0 = inlined_call_operand.vmem [shape: f32[28,8,90], index: 0, kind: input, shape index: {}]
  %s1 = inlined_call_operand.vmem [shape: f32[90,448], index: 1, kind: input, shape index: {}]
  %s2 = inlined_call_operand.vmem [shape: f32[1,448], index: 2, kind: input, shape index: {}]
  %s3 = inlined_call_operand.vmem [shape: f32[14,224,128], index: 3, kind: input, shape index: {}]
  %s4 = inlined_call_operand.vmem [shape: f32[1,128], index: 4, kind: input, shape index: {}]
  %s5 = inlined_call_operand.vmem [shape: f32[128,128], index: 5, kind: input, shape index: {}]
  %s6 = inlined_call_operand.vmem [shape: f32[1,128], index: 6, kind: input, shape index: {}]
  %s7 = inlined_call_operand.vmem [shape: f32[128,10], index: 7, kind: input, shape index: {}]
  %s8 = inlined_call_operand.vmem [shape: f32[1,10], index: 8, kind: input, shape index: {}]
  %s9 = inlined_call_operand.vmem [shape: f32[8,10], index: 9, kind: output, shape index: {}]
  %s10 = sld [smem:[#allocation0]]
  $region46: #{neural_net_forward.1} parent=0
    _
  %s12 = ssub.s32 1, %s10
  %s13 = scalar_select 0, %s12, %s10
  // Predicated region
  $region2: #{neural_net_forward.1} parent=0 // pred_check
    _
  $region3: #{neural_net_forward.1} parent=0 // pred_check_branch
    %15 = sbr.rel (0) target = $region5
  $region4: #{neural_net_forward.1} parent=0 // pred_region
    _
  $region5: #{neural_net_forward.1} parent=0 // pred_fallthru
    _
  // Predicated region
  $region6: #{neural_net_forward.1} parent=0 // pred_check
    _
  $region7: #{neural_net_forward.1} parent=0 // pred_check_branch
    %17 = sbr.rel (0) target = $region9
  $region8: #{neural_net_forward.1} parent=0 // pred_region
    _
  $region9: #{neural_net_forward.1} parent=0 // pred_fallthru
    _
  // Predicated region
  $region10: #{neural_net_forward.1} parent=0 // pred_check
    _
  $region11: #{neural_net_forward.1} parent=0 // pred_check_branch
    %19 = sbr.rel (0) target = $region13
  $region12: #{neural_net_forward.1} parent=0 // pred_region
    _
  $region13: #{neural_net_forward.1} parent=0 // pred_fallthru
    _
  // Predicated region
  $region14: #{neural_net_forward.1} parent=0 // pred_check
    _
  $region15: #{neural_net_forward.1} parent=0 // pred_check_branch
    %21 = sbr.rel (0) target = $region17
  $region16: #{neural_net_forward.1} parent=0 // pred_region
    _
  $region17: #{neural_net_forward.1} parent=0 // pred_fallthru
    _
  // Predicated region
  $region18: #{neural_net_forward.1} parent=0 // pred_check
    _
  $region19: #{neural_net_forward.1} parent=0 // pred_check_branch
    %23 = sbr.rel (0) target = $region21
  $region20: #{neural_net_forward.1} parent=0 // pred_region
    _
  $region21: #{neural_net_forward.1} parent=0 // pred_fallthru
    _
  // Predicated region
  $region22: #{neural_net_forward.1} parent=0 // pred_check
    _
  $region23: #{neural_net_forward.1} parent=0 // pred_check_branch
    %25 = sbr.rel (0) target = $region25
  $region24: #{neural_net_forward.1} parent=0 // pred_region
    _
  $region25: #{neural_net_forward.1} parent=0 // pred_fallthru
    _
  // Predicated region
  $region26: #{neural_net_forward.1} parent=0 // pred_check
    _
  $region27: #{neural_net_forward.1} parent=0 // pred_check_branch
    %27 = sbr.rel (0) target = $region29
  $region28: #{neural_net_forward.1} parent=0 // pred_region
    _
  $region29: #{neural_net_forward.1} parent=0 // pred_fallthru
    _
  // Predicated region
  $region30: #{neural_net_forward.1} parent=0 // pred_check
    _
  $region31: #{neural_net_forward.1} parent=0 // pred_check_branch
    %29 = sbr.rel (0) target = $region33
  $region32: #{neural_net_forward.1} parent=0 // pred_region
    _
  $region33: #{neural_net_forward.1} parent=0 // pred_fallthru
    _
  // Predicated region
  $region34: #{neural_net_forward.1} parent=0 // pred_check
    _
  $region35: #{neural_net_forward.1} parent=0 // pred_check_branch
    %31 = sbr.rel (0) target = $region37
  $region36: #{neural_net_forward.1} parent=0 // pred_region
    _
  $region37: #{neural_net_forward.1} parent=0 // pred_fallthru
    _
  %v32 = vld [vmem:[%s1] sm:$0xff]
  %v33 = vld [vmem:[%s1 + $0x8] sm:$0xff]
  %v34 = vld [vmem:[%s1 + $0x10] sm:$0xff]
  %v35 = vld [vmem:[%s1 + $0x18] sm:$0xff]
  %v36 = vld [vmem:[%s1 + $0x20] sm:$0xff]
  %v37 = vld [vmem:[%s1 + $0x28] sm:$0xff]
  %v38 = vld [vmem:[%s1 + $0x30] sm:$0xff]
  %v39 = vld [vmem:[%s1 + $0x38] sm:$0xff]
  %v40 = vld [vmem:[%s1 + $0x40] sm:$0xff]
  %v41 = vld [vmem:[%s1 + $0x48] sm:$0xff]
  %v42 = vld [vmem:[%s1 + $0x50] sm:$0xff]
  %v43 = vld [vmem:[%s1 + $0x58] sm:$0xff]
  %v44 = vld [vmem:[%s1 + $0x60] sm:$0xff]
  %v45 = vld [vmem:[%s1 + $0x68] sm:$0xff]
  %v46 = vld [vmem:[%s1 + $0x70] sm:$0xff]
  %v47 = vld [vmem:[%s1 + $0x78] sm:$0xff]
  %v48 = vld [vmem:[%s1 + $0x80] sm:$0xff]
  %v49 = vld [vmem:[%s1 + $0x88] sm:$0xff]
  %v50 = vld [vmem:[%s1 + $0x90] sm:$0xff]
  %v51 = vld [vmem:[%s1 + $0x98] sm:$0xff]
  %v52 = vld [vmem:[%s1 + $0xa0] sm:$0xff]
  %v53 = vld [vmem:[%s1 + $0xa8] sm:$0xff]
  %v54 = vld [vmem:[%s1 + $0xb0] sm:$0xff]
  %v55 = vld [vmem:[%s1 + $0xb8] sm:$0xff]
  %v56 = vld [vmem:[%s1 + $0xc0] sm:$0xff]
  %v57 = vld [vmem:[%s1 + $0xc8] sm:$0xff]
  %v58 = vld [vmem:[%s1 + $0xd0] sm:$0xff]
  %v59 = vld [vmem:[%s1 + $0xd8] sm:$0xff]
  %v60 = vld [vmem:[%s1 + $0xe0] sm:$0xff]
  %v61 = vld [vmem:[%s1 + $0xe8] sm:$0xff]
  %v62 = vld [vmem:[%s1 + $0xf0] sm:$0xff]
  %v63 = vld [vmem:[%s1 + $0xf8] sm:$0xff]
  %v64 = vld [vmem:[%s1 + $0x100] sm:$0xff]
  %v65 = vld [vmem:[%s1 + $0x108] sm:$0xff]
  %v66 = vld [vmem:[%s1 + $0x110] sm:$0xff]
  %v67 = vld [vmem:[%s1 + $0x118] sm:$0xff]
  %v68 = vld [vmem:[%s1 + $0x120] sm:$0xff]
  %v69 = vld [vmem:[%s1 + $0x128] sm:$0xff]
  %v70 = vld [vmem:[%s1 + $0x130] sm:$0xff]
  %v71 = vld [vmem:[%s1 + $0x138] sm:$0xff]
  %v72 = vld [vmem:[%s1 + $0x140] sm:$0xff]
  %v73 = vld [vmem:[%s1 + $0x148] sm:$0xff]
  %v74 = vld [vmem:[%s1 + $0x150] sm:$0xff]
  %v75 = vld [vmem:[%s1 + $0x158] sm:$0xff]
  %v76 = vld [vmem:[%s1 + $0x160] sm:$0x3]
  %v77 = vld [vmem:[%s1 + $0x168] sm:$0x3]
  %v78 = vld [vmem:[%s1 + $0x170] sm:$0x3]
  %v79 = vld [vmem:[%s1 + $0x178] sm:$0x3]
  %v80 = vld [vmem:[%s2] sm:$0xf]
  %v81 = vld [vmem:[%s0] sm:$0xff]
  %v83 = vlaneseq
  %v84 = vshrl.u32 %v83, 7
  %v85 = vsub.s32 0, %v84
  %v86 = vrot.slane %v80, %v85
  %v87 = vlaneseq
  %v88 = vshrl.u32 %v87, 7
  %v89 = vsub.s32 1, %v88
  %v90 = vrot.slane %v80, %v89
  %v91 = vlaneseq
  %v92 = vshrl.u32 %v91, 7
  %v93 = vsub.s32 2, %v92
  %v94 = vrot.slane %v80, %v93
  %v95 = vlaneseq
  %v96 = vshrl.u32 %v95, 7
  %v97 = vsub.s32 3, %v96
  %v98 = vrot.slane %v80, %v97
  %vm103 = vcmask 736256
  %v105 = vsel %vm103, %v81, 0
  %vm107 = vcmask 1041408
  %v109 = vsel %vm107, %v76, 0
  %v112 = vsel %vm107, %v77, 0
  %v115 = vsel %vm107, %v78, 0
  %v118 = vsel %vm107, %v79, 0
  %120 = vmatprep.subr.mxu0 0.0
  %121 = vmatpush1.msra.mxu0 0.0
  %122 = vmatprep.subr.mxu0 0.0
  %123 = vmatpush1.msra.mxu0 0.0
  %124 = vmatprep.subr.mxu0 0.0
  %125 = vmatpush1.msra.mxu0 0.0
  %126 = vmatprep.subr.mxu0 0.0
  %127 = vmatpush1.msra.mxu0 0.0
  %128 = vmatprep.subr.mxu0 %v112
  %129 = vmatpush1.msra.mxu0 %v109
  %130 = vmatprep.subr.mxu0 %v73
  %131 = vmatpush1.msra.mxu0 %v72
  %132 = vmatprep.subr.mxu0 %v69
  %133 = vmatpush1.msra.mxu0 %v68
  %134 = vmatprep.subr.mxu0 %v65
  %135 = vmatpush1.msra.mxu0 %v64
  %136 = vmatprep.subr.mxu0 %v61
  %137 = vmatpush1.msra.mxu0 %v60
  %138 = vmatprep.subr.mxu0 %v57
  %139 = vmatpush1.msra.mxu0 %v56
  %140 = vmatprep.subr.mxu0 %v53
  %141 = vmatpush1.msra.mxu0 %v52
  %142 = vmatprep.subr.mxu0 %v49
  %143 = vmatpush1.msra.mxu0 %v48
  %144 = vmatprep.subr.mxu0 %v45
  %145 = vmatpush1.msra.mxu0 %v44
  %146 = vmatprep.subr.mxu0 %v41
  %147 = vmatpush1.msra.mxu0 %v40
  %148 = vmatprep.subr.mxu0 %v37
  %149 = vmatpush1.msra.mxu0 %v36
  %150 = vmatprep.subr.mxu0 %v33
  %151 = vmatpush1.msra.mxu0 %v32
  %152 = vmatprep.subr.mxu0 0.0
  %153 = vmatpush2.msra.mxu0 0.0
  %154 = vmatprep.subr.mxu0 0.0
  %155 = vmatpush2.msra.mxu0 0.0
  %156 = vmatprep.subr.mxu0 0.0
  %157 = vmatpush2.msra.mxu0 0.0
  %158 = vmatprep.subr.mxu0 0.0
  %159 = vmatpush2.msra.mxu0 0.0
  %160 = vmatprep.subr.mxu0 0.0
  %161 = vmatpush2.msra.mxu0 0.0
  %162 = vmatprep.subr.mxu0 0.0
  %163 = vmatpush2.msra.mxu0 0.0
  %164 = vmatprep.subr.mxu0 0.0
  %165 = vmatpush2.msra.mxu0 0.0
  %166 = vmatprep.subr.mxu0 0.0
  %167 = vmatpush2.msra.mxu0 0.0
  %168 = vmatprep.subr.mxu0 0.0
  %169 = vmatpush2.msra.mxu0 0.0
  %170 = vmatprep.subr.mxu0 0.0
  %171 = vmatpush2.msra.mxu0 0.0
  %172 = vmatprep.subr.mxu0 0.0
  %173 = vmatpush2.msra.mxu0 0.0
  %174 = vmatprep.subr.mxu0 0.0
  %175 = vmatpush2.msra.mxu0 0.0
  %176 = vmatprep.subr.mxu0 0.0
  %177 = vmatpush2.msra.mxu0 0.0
  %178 = vmatprep.subr.mxu0 0.0
  %179 = vmatpush2.msra.mxu0 0.0
  %180 = vmatprep.subr.mxu0 0.0
  %181 = vmatpush2.msra.mxu0 0.0
  %182 = vmatprep.subr.mxu0 0.0
  %183 = vmatpush2.msra.mxu0 0.0
  %184 = vmatprep.mubr.f32.mxu0 0.0
  %185 = vmatmul.mubr.f32.gmra.mxu0 %v105
  %v186 = vpop.f32.mrf.mxu0
  %v187 = vadd.f32 %v86, %v186
  %v188 = vpop.f32.mrf.mxu0
  %v189 = vadd.f32 %v90, %v188
  %190 = vdwg.mxu0
  %191 = vmatprep.subr.mxu0 0.0
  %192 = vmatpush1.msra.mxu0 0.0
  %193 = vmatprep.subr.mxu0 0.0
  %194 = vmatpush1.msra.mxu0 0.0
  %195 = vmatprep.subr.mxu0 0.0
  %196 = vmatpush1.msra.mxu0 0.0
  %197 = vmatprep.subr.mxu0 0.0
  %198 = vmatpush1.msra.mxu0 0.0
  %199 = vmatprep.subr.mxu0 %v118
  %200 = vmatpush1.msra.mxu0 %v115
  %201 = vmatprep.subr.mxu0 %v75
  %202 = vmatpush1.msra.mxu0 %v74
  %203 = vmatprep.subr.mxu0 %v71
  %204 = vmatpush1.msra.mxu0 %v70
  %205 = vmatprep.subr.mxu0 %v67
  %206 = vmatpush1.msra.mxu0 %v66
  %207 = vmatprep.subr.mxu0 %v63
  %208 = vmatpush1.msra.mxu0 %v62
  %209 = vmatprep.subr.mxu0 %v59
  %210 = vmatpush1.msra.mxu0 %v58
  %211 = vmatprep.subr.mxu0 %v55
  %212 = vmatpush1.msra.mxu0 %v54
  %213 = vmatprep.subr.mxu0 %v51
  %214 = vmatpush1.msra.mxu0 %v50
  %215 = vmatprep.subr.mxu0 %v47
  %216 = vmatpush1.msra.mxu0 %v46
  %217 = vmatprep.subr.mxu0 %v43
  %218 = vmatpush1.msra.mxu0 %v42
  %219 = vmatprep.subr.mxu0 %v39
  %220 = vmatpush1.msra.mxu0 %v38
  %221 = vmatprep.subr.mxu0 %v35
  %222 = vmatpush1.msra.mxu0 %v34
  %223 = vmatprep.subr.mxu0 0.0
  %224 = vmatpush2.msra.mxu0 0.0
  %225 = vmatprep.subr.mxu0 0.0
  %226 = vmatpush2.msra.mxu0 0.0
  %227 = vmatprep.subr.mxu0 0.0
  %228 = vmatpush2.msra.mxu0 0.0
  %229 = vmatprep.subr.mxu0 0.0
  %230 = vmatpush2.msra.mxu0 0.0
  %231 = vmatprep.subr.mxu0 0.0
  %232 = vmatpush2.msra.mxu0 0.0
  %233 = vmatprep.subr.mxu0 0.0
  %234 = vmatpush2.msra.mxu0 0.0
  %235 = vmatprep.subr.mxu0 0.0
  %236 = vmatpush2.msra.mxu0 0.0
  %237 = vmatprep.subr.mxu0 0.0
  %238 = vmatpush2.msra.mxu0 0.0
  %239 = vmatprep.subr.mxu0 0.0
  %240 = vmatpush2.msra.mxu0 0.0
  %241 = vmatprep.subr.mxu0 0.0
  %242 = vmatpush2.msra.mxu0 0.0
  %243 = vmatprep.subr.mxu0 0.0
  %244 = vmatpush2.msra.mxu0 0.0
  %245 = vmatprep.subr.mxu0 0.0
  %246 = vmatpush2.msra.mxu0 0.0
  %247 = vmatprep.subr.mxu0 0.0
  %248 = vmatpush2.msra.mxu0 0.0
  %249 = vmatprep.subr.mxu0 0.0
  %250 = vmatpush2.msra.mxu0 0.0
  %251 = vmatprep.subr.mxu0 0.0
  %252 = vmatpush2.msra.mxu0 0.0
  %253 = vmatprep.subr.mxu0 0.0
  %254 = vmatpush2.msra.mxu0 0.0
  %255 = vmatprep.mubr.f32.mxu0 0.0
  %256 = vmatmul.mubr.f32.gmra.mxu0 %v105
  %v257 = vpop.f32.mrf.mxu0
  %v258 = vadd.f32 %v94, %v257
  %v259 = vpop.f32.mrf.mxu0
  %v260 = vadd.f32 %v98, %v259
  %261 = vdwg.mxu0
  %s262 = scalar_lea.vmem %s0, 8
  %v263 = vld [vmem:[%s262] sm:$0xff]
  %v265 = vsel %vm103, %v263, 0
  %267 = vmatprep.subr.mxu0 0.0
  %268 = vmatpush1.msra.mxu0 0.0
  %269 = vmatprep.subr.mxu0 0.0
  %270 = vmatpush1.msra.mxu0 0.0
  %271 = vmatprep.subr.mxu0 0.0
  %272 = vmatpush1.msra.mxu0 0.0
  %273 = vmatprep.subr.mxu0 0.0
  %274 = vmatpush1.msra.mxu0 0.0
  %275 = vmatprep.subr.mxu0 %v112
  %276 = vmatpush1.msra.mxu0 %v109
  %277 = vmatprep.subr.mxu0 %v73
  %278 = vmatpush1.msra.mxu0 %v72
  %279 = vmatprep.subr.mxu0 %v69
  %280 = vmatpush1.msra.mxu0 %v68
  %281 = vmatprep.subr.mxu0 %v65
  %282 = vmatpush1.msra.mxu0 %v64
  %283 = vmatprep.subr.mxu0 %v61
  %284 = vmatpush1.msra.mxu0 %v60
  %285 = vmatprep.subr.mxu0 %v57
  %286 = vmatpush1.msra.mxu0 %v56
  %287 = vmatprep.subr.mxu0 %v53
  %288 = vmatpush1.msra.mxu0 %v52
  %289 = vmatprep.subr.mxu0 %v49
  %290 = vmatpush1.msra.mxu0 %v48
  %291 = vmatprep.subr.mxu0 %v45
  %292 = vmatpush1.msra.mxu0 %v44
  %293 = vmatprep.subr.mxu0 %v41
  %294 = vmatpush1.msra.mxu0 %v40
  %295 = vmatprep.subr.mxu0 %v37
  %296 = vmatpush1.msra.mxu0 %v36
  %297 = vmatprep.subr.mxu0 %v33
  %298 = vmatpush1.msra.mxu0 %v32
  %299 = vmatprep.subr.mxu0 0.0
  %300 = vmatpush2.msra.mxu0 0.0
  %301 = vmatprep.subr.mxu0 0.0
  %302 = vmatpush2.msra.mxu0 0.0
  %303 = vmatprep.subr.mxu0 0.0
  %304 = vmatpush2.msra.mxu0 0.0
  %305 = vmatprep.subr.mxu0 0.0
  %306 = vmatpush2.msra.mxu0 0.0
  %307 = vmatprep.subr.mxu0 0.0
  %308 = vmatpush2.msra.mxu0 0.0
  %309 = vmatprep.subr.mxu0 0.0
  %310 = vmatpush2.msra.mxu0 0.0
  %311 = vmatprep.subr.mxu0 0.0
  %312 = vmatpush2.msra.mxu0 0.0
  %313 = vmatprep.subr.mxu0 0.0
  %314 = vmatpush2.msra.mxu0 0.0
  %315 = vmatprep.subr.mxu0 0.0
  %316 = vmatpush2.msra.mxu0 0.0
  %317 = vmatprep.subr.mxu0 0.0
  %318 = vmatpush2.msra.mxu0 0.0
  %319 = vmatprep.subr.mxu0 0.0
  %320 = vmatpush2.msra.mxu0 0.0
  %321 = vmatprep.subr.mxu0 0.0
  %322 = vmatpush2.msra.mxu0 0.0
  %323 = vmatprep.subr.mxu0 0.0
  %324 = vmatpush2.msra.mxu0 0.0
  %325 = vmatprep.subr.mxu0 0.0
  %326 = vmatpush2.msra.mxu0 0.0
  %327 = vmatprep.subr.mxu0 0.0
  %328 = vmatpush2.msra.mxu0 0.0
  %329 = vmatprep.subr.mxu0 0.0
  %330 = vmatpush2.msra.mxu0 0.0
  %331 = vmatprep.mubr.f32.mxu0 0.0
  %332 = vmatmul.mubr.f32.gmra.mxu0 %v265
  %v333 = vpop.f32.mrf.mxu0
  %v334 = vadd.f32 %v86, %v333
  %v335 = vpop.f32.mrf.mxu0
  %v336 = vadd.f32 %v90, %v335
  %337 = vdwg.mxu0
  %338 = vmatprep.subr.mxu0 0.0
  %339 = vmatpush1.msra.mxu0 0.0
  %340 = vmatprep.subr.mxu0 0.0
  %341 = vmatpush1.msra.mxu0 0.0
  %342 = vmatprep.subr.mxu0 0.0
  %343 = vmatpush1.msra.mxu0 0.0
  %344 = vmatprep.subr.mxu0 0.0
  %345 = vmatpush1.msra.mxu0 0.0
  %346 = vmatprep.subr.mxu0 %v118
  %347 = vmatpush1.msra.mxu0 %v115
  %348 = vmatprep.subr.mxu0 %v75
  %349 = vmatpush1.msra.mxu0 %v74
  %350 = vmatprep.subr.mxu0 %v71
  %351 = vmatpush1.msra.mxu0 %v70
  %352 = vmatprep.subr.mxu0 %v67
  %353 = vmatpush1.msra.mxu0 %v66
  %354 = vmatprep.subr.mxu0 %v63
  %355 = vmatpush1.msra.mxu0 %v62
  %356 = vmatprep.subr.mxu0 %v59
  %357 = vmatpush1.msra.mxu0 %v58
  %358 = vmatprep.subr.mxu0 %v55
  %359 = vmatpush1.msra.mxu0 %v54
  %360 = vmatprep.subr.mxu0 %v51
  %361 = vmatpush1.msra.mxu0 %v50
  %362 = vmatprep.subr.mxu0 %v47
  %363 = vmatpush1.msra.mxu0 %v46
  %364 = vmatprep.subr.mxu0 %v43
  %365 = vmatpush1.msra.mxu0 %v42
  %366 = vmatprep.subr.mxu0 %v39
  %367 = vmatpush1.msra.mxu0 %v38
  %368 = vmatprep.subr.mxu0 %v35
  %369 = vmatpush1.msra.mxu0 %v34
  %370 = vmatprep.subr.mxu0 0.0
  %371 = vmatpush2.msra.mxu0 0.0
  %372 = vmatprep.subr.mxu0 0.0
  %373 = vmatpush2.msra.mxu0 0.0
  %374 = vmatprep.subr.mxu0 0.0
  %375 = vmatpush2.msra.mxu0 0.0
  %376 = vmatprep.subr.mxu0 0.0
  %377 = vmatpush2.msra.mxu0 0.0
  %378 = vmatprep.subr.mxu0 0.0
  %379 = vmatpush2.msra.mxu0 0.0
  %380 = vmatprep.subr.mxu0 0.0
  %381 = vmatpush2.msra.mxu0 0.0
  %382 = vmatprep.subr.mxu0 0.0
  %383 = vmatpush2.msra.mxu0 0.0
  %384 = vmatprep.subr.mxu0 0.0
  %385 = vmatpush2.msra.mxu0 0.0
  %386 = vmatprep.subr.mxu0 0.0
  %387 = vmatpush2.msra.mxu0 0.0
  %388 = vmatprep.subr.mxu0 0.0
  %389 = vmatpush2.msra.mxu0 0.0
  %390 = vmatprep.subr.mxu0 0.0
  %391 = vmatpush2.msra.mxu0 0.0
  %392 = vmatprep.subr.mxu0 0.0
  %393 = vmatpush2.msra.mxu0 0.0
  %394 = vmatprep.subr.mxu0 0.0
  %395 = vmatpush2.msra.mxu0 0.0
  %396 = vmatprep.subr.mxu0 0.0
  %397 = vmatpush2.msra.mxu0 0.0
  %398 = vmatprep.subr.mxu0 0.0
  %399 = vmatpush2.msra.mxu0 0.0
  %400 = vmatprep.subr.mxu0 0.0
  %401 = vmatpush2.msra.mxu0 0.0
  %402 = vmatprep.mubr.f32.mxu0 0.0
  %403 = vmatmul.mubr.f32.gmra.mxu0 %v265
  %v404 = vpop.f32.mrf.mxu0
  %v405 = vadd.f32 %v94, %v404
  %v406 = vpop.f32.mrf.mxu0
  %v407 = vadd.f32 %v98, %v406
  %408 = vdwg.mxu0
  %v409 = vmax.f32 %v187, %v334
  %v410 = vmax.f32 %v189, %v336
  %v411 = vmax.f32 %v258, %v405
  %v412 = vmax.f32 %v260, %v407
  %v413 = vmax.f32 %v409, 0.0
  %v414 = vmax.f32 %v410, 0.0
  %v415 = vmax.f32 %v411, 0.0
  %v416 = vmax.f32 %v412, 0.0
  %420 = vrot.lane.b32.xlu0 %v414, 32
  %v421 = vpop.permute.xlu0 %420
  %422 = vrot.lane.b32.xlu0 %v415, 32
  %v423 = vpop.permute.xlu0 %422
  %424 = vrot.lane.b32.xlu0 %v416, 32
  %v425 = vpop.permute.xlu0 %424
  %vm426 = vcmask 261120
  %v427 = vsel %vm426, %v421, %v423
  %v428 = vsel %vm426, %v423, %v425
  %v431 = vmax.f32 %v413, %v427
  %v432 = vmax.f32 %v414, %v428
  %v433 = vld [vmem:[%s3] sm:$0xff]
  %v434 = vld [vmem:[%s3 + $0x8] sm:$0xff]
  %v435 = vld [vmem:[%s3 + $0x10] sm:$0xff]
  %v436 = vld [vmem:[%s3 + $0x18] sm:$0xff]
  %v437 = vld [vmem:[%s3 + $0x20] sm:$0xff]
  %v438 = vld [vmem:[%s3 + $0x28] sm:$0xff]
  %v439 = vld [vmem:[%s3 + $0x30] sm:$0xff]
  %v440 = vld [vmem:[%s3 + $0x38] sm:$0xff]
  %v441 = vld [vmem:[%s3 + $0x40] sm:$0xff]
  %v442 = vld [vmem:[%s3 + $0x48] sm:$0xff]
  %v443 = vld [vmem:[%s3 + $0x50] sm:$0xff]
  %v444 = vld [vmem:[%s3 + $0x58] sm:$0xff]
  %v445 = vld [vmem:[%s3 + $0x60] sm:$0xff]
  %v446 = vld [vmem:[%s3 + $0x68] sm:$0xff]
  %v447 = vld [vmem:[%s3 + $0x70] sm:$0xff]
  %v448 = vld [vmem:[%s3 + $0x78] sm:$0xff]
  %v449 = vld [vmem:[%s3 + $0x80] sm:$0xff]
  %v450 = vld [vmem:[%s3 + $0x88] sm:$0xff]
  %v451 = vld [vmem:[%s3 + $0x90] sm:$0xff]
  %v452 = vld [vmem:[%s3 + $0x98] sm:$0xff]
  %v453 = vld [vmem:[%s3 + $0xa0] sm:$0xff]
  %v454 = vld [vmem:[%s3 + $0xa8] sm:$0xff]
  %v455 = vld [vmem:[%s3 + $0xb0] sm:$0xff]
  %v456 = vld [vmem:[%s3 + $0xb8] sm:$0xff]
  %v457 = vld [vmem:[%s3 + $0xc0] sm:$0xff]
  %v458 = vld [vmem:[%s3 + $0xc8] sm:$0xff]
  %v459 = vld [vmem:[%s3 + $0xd0] sm:$0xff]
  %v460 = vld [vmem:[%s3 + $0xd8] sm:$0xff]
  %s461 = scalar_lea.vmem %s0, 16
  %v462 = vld [vmem:[%s461] sm:$0xff]
  %v464 = vsel %vm103, %v462, 0
  %466 = vmatprep.subr.mxu0 0.0
  %467 = vmatpush1.msra.mxu0 0.0
  %468 = vmatprep.subr.mxu0 0.0
  %469 = vmatpush1.msra.mxu0 0.0
  %470 = vmatprep.subr.mxu0 0.0
  %471 = vmatpush1.msra.mxu0 0.0
  %472 = vmatprep.subr.mxu0 0.0
  %473 = vmatpush1.msra.mxu0 0.0
  %474 = vmatprep.subr.mxu0 %v112
  %475 = vmatpush1.msra.mxu0 %v109
  %476 = vmatprep.subr.mxu0 %v73
  %477 = vmatpush1.msra.mxu0 %v72
  %478 = vmatprep.subr.mxu0 %v69
  %479 = vmatpush1.msra.mxu0 %v68
  %480 = vmatprep.subr.mxu0 %v65
  %481 = vmatpush1.msra.mxu0 %v64
  %482 = vmatprep.subr.mxu0 %v61
  %483 = vmatpush1.msra.mxu0 %v60
  %484 = vmatprep.subr.mxu0 %v57
  %485 = vmatpush1.msra.mxu0 %v56
  %486 = vmatprep.subr.mxu0 %v53
  %487 = vmatpush1.msra.mxu0 %v52
  %488 = vmatprep.subr.mxu0 %v49
  %489 = vmatpush1.msra.mxu0 %v48
  %490 = vmatprep.subr.mxu0 %v45
  %491 = vmatpush1.msra.mxu0 %v44
  %492 = vmatprep.subr.mxu0 %v41
  %493 = vmatpush1.msra.mxu0 %v40
  %494 = vmatprep.subr.mxu0 %v37
  %495 = vmatpush1.msra.mxu0 %v36
  %496 = vmatprep.subr.mxu0 %v33
  %497 = vmatpush1.msra.mxu0 %v32
  %498 = vmatprep.subr.mxu0 0.0
  %499 = vmatpush2.msra.mxu0 0.0
  %500 = vmatprep.subr.mxu0 0.0
  %501 = vmatpush2.msra.mxu0 0.0
  %502 = vmatprep.subr.mxu0 0.0
  %503 = vmatpush2.msra.mxu0 0.0
  %504 = vmatprep.subr.mxu0 0.0
  %505 = vmatpush2.msra.mxu0 0.0
  %506 = vmatprep.subr.mxu0 0.0
  %507 = vmatpush2.msra.mxu0 0.0
  %508 = vmatprep.subr.mxu0 0.0
  %509 = vmatpush2.msra.mxu0 0.0
  %510 = vmatprep.subr.mxu0 0.0
  %511 = vmatpush2.msra.mxu0 0.0
  %512 = vmatprep.subr.mxu0 0.0
  %513 = vmatpush2.msra.mxu0 0.0
  %514 = vmatprep.subr.mxu0 0.0
  %515 = vmatpush2.msra.mxu0 0.0
  %516 = vmatprep.subr.mxu0 0.0
  %517 = vmatpush2.msra.mxu0 0.0
  %518 = vmatprep.subr.mxu0 0.0
  %519 = vmatpush2.msra.mxu0 0.0
  %520 = vmatprep.subr.mxu0 0.0
  %521 = vmatpush2.msra.mxu0 0.0
  %522 = vmatprep.subr.mxu0 0.0
  %523 = vmatpush2.msra.mxu0 0.0
  %524 = vmatprep.subr.mxu0 0.0
  %525 = vmatpush2.msra.mxu0 0.0
  %526 = vmatprep.subr.mxu0 0.0
  %527 = vmatpush2.msra.mxu0 0.0
  %528 = vmatprep.subr.mxu0 0.0
  %529 = vmatpush2.msra.mxu0 0.0
  %530 = vmatprep.mubr.f32.mxu0 0.0
  %531 = vmatmul.mubr.f32.gmra.mxu0 %v464
  %v532 = vpop.f32.mrf.mxu0
  %v533 = vadd.f32 %v86, %v532
  %v534 = vpop.f32.mrf.mxu0
  %v535 = vadd.f32 %v90, %v534
  %536 = vdwg.mxu0
  %537 = vmatprep.subr.mxu0 0.0
  %538 = vmatpush1.msra.mxu0 0.0
  %539 = vmatprep.subr.mxu0 0.0
  %540 = vmatpush1.msra.mxu0 0.0
  %541 = vmatprep.subr.mxu0 0.0
  %542 = vmatpush1.msra.mxu0 0.0
  %543 = vmatprep.subr.mxu0 0.0
  %544 = vmatpush1.msra.mxu0 0.0
  %545 = vmatprep.subr.mxu0 %v118
  %546 = vmatpush1.msra.mxu0 %v115
  %547 = vmatprep.subr.mxu0 %v75
  %548 = vmatpush1.msra.mxu0 %v74
  %549 = vmatprep.subr.mxu0 %v71
  %550 = vmatpush1.msra.mxu0 %v70
  %551 = vmatprep.subr.mxu0 %v67
  %552 = vmatpush1.msra.mxu0 %v66
  %553 = vmatprep.subr.mxu0 %v63
  %554 = vmatpush1.msra.mxu0 %v62
  %555 = vmatprep.subr.mxu0 %v59
  %556 = vmatpush1.msra.mxu0 %v58
  %557 = vmatprep.subr.mxu0 %v55
  %558 = vmatpush1.msra.mxu0 %v54
  %559 = vmatprep.subr.mxu0 %v51
  %560 = vmatpush1.msra.mxu0 %v50
  %561 = vmatprep.subr.mxu0 %v47
  %562 = vmatpush1.msra.mxu0 %v46
  %563 = vmatprep.subr.mxu0 %v43
  %564 = vmatpush1.msra.mxu0 %v42
  %565 = vmatprep.subr.mxu0 %v39
  %566 = vmatpush1.msra.mxu0 %v38
  %567 = vmatprep.subr.mxu0 %v35
  %568 = vmatpush1.msra.mxu0 %v34
  %569 = vmatprep.subr.mxu0 0.0
  %570 = vmatpush2.msra.mxu0 0.0
  %571 = vmatprep.subr.mxu0 0.0
  %572 = vmatpush2.msra.mxu0 0.0
  %573 = vmatprep.subr.mxu0 0.0
  %574 = vmatpush2.msra.mxu0 0.0
  %575 = vmatprep.subr.mxu0 0.0
  %576 = vmatpush2.msra.mxu0 0.0
  %577 = vmatprep.subr.mxu0 0.0
  %578 = vmatpush2.msra.mxu0 0.0
  %579 = vmatprep.subr.mxu0 0.0
  %580 = vmatpush2.msra.mxu0 0.0
  %581 = vmatprep.subr.mxu0 0.0
  %582 = vmatpush2.msra.mxu0 0.0
  %583 = vmatprep.subr.mxu0 0.0
  %584 = vmatpush2.msra.mxu0 0.0
  %585 = vmatprep.subr.mxu0 0.0
  %586 = vmatpush2.msra.mxu0 0.0
  %587 = vmatprep.subr.mxu0 0.0
  %588 = vmatpush2.msra.mxu0 0.0
  %589 = vmatprep.subr.mxu0 0.0
  %590 = vmatpush2.msra.mxu0 0.0
  %591 = vmatprep.subr.mxu0 0.0
  %592 = vmatpush2.msra.mxu0 0.0
  %593 = vmatprep.subr.mxu0 0.0
  %594 = vmatpush2.msra.mxu0 0.0
  %595 = vmatprep.subr.mxu0 0.0
  %596 = vmatpush2.msra.mxu0 0.0
  %597 = vmatprep.subr.mxu0 0.0
  %598 = vmatpush2.msra.mxu0 0.0
  %599 = vmatprep.subr.mxu0 0.0
  %600 = vmatpush2.msra.mxu0 0.0
  %601 = vmatprep.mubr.f32.mxu0 0.0
  %602 = vmatmul.mubr.f32.gmra.mxu0 %v464
  %v603 = vpop.f32.mrf.mxu0
  %v604 = vadd.f32 %v94, %v603
  %v605 = vpop.f32.mrf.mxu0
  %v606 = vadd.f32 %v98, %v605
  %607 = vdwg.mxu0
  %s608 = scalar_lea.vmem %s0, 24
  %v609 = vld [vmem:[%s608] sm:$0xff]
  %v611 = vsel %vm103, %v609, 0
  %613 = vmatprep.subr.mxu0 0.0
  %614 = vmatpush1.msra.mxu0 0.0
  %615 = vmatprep.subr.mxu0 0.0
  %616 = vmatpush1.msra.mxu0 0.0
  %617 = vmatprep.subr.mxu0 0.0
  %618 = vmatpush1.msra.mxu0 0.0
  %619 = vmatprep.subr.mxu0 0.0
  %620 = vmatpush1.msra.mxu0 0.0
  %621 = vmatprep.subr.mxu0 %v112
  %622 = vmatpush1.msra.mxu0 %v109
  %623 = vmatprep.subr.mxu0 %v73
  %624 = vmatpush1.msra.mxu0 %v72
  %625 = vmatprep.subr.mxu0 %v69
  %626 = vmatpush1.msra.mxu0 %v68
  %627 = vmatprep.subr.mxu0 %v65
  %628 = vmatpush1.msra.mxu0 %v64
  %629 = vmatprep.subr.mxu0 %v61
  %630 = vmatpush1.msra.mxu0 %v60
  %631 = vmatprep.subr.mxu0 %v57
  %632 = vmatpush1.msra.mxu0 %v56
  %633 = vmatprep.subr.mxu0 %v53
  %634 = vmatpush1.msra.mxu0 %v52
  %635 = vmatprep.subr.mxu0 %v49
  %636 = vmatpush1.msra.mxu0 %v48
  %637 = vmatprep.subr.mxu0 %v45
  %638 = vmatpush1.msra.mxu0 %v44
  %639 = vmatprep.subr.mxu0 %v41
  %640 = vmatpush1.msra.mxu0 %v40
  %641 = vmatprep.subr.mxu0 %v37
  %642 = vmatpush1.msra.mxu0 %v36
  %643 = vmatprep.subr.mxu0 %v33
  %644 = vmatpush1.msra.mxu0 %v32
  %645 = vmatprep.subr.mxu0 0.0
  %646 = vmatpush2.msra.mxu0 0.0
  %647 = vmatprep.subr.mxu0 0.0
  %648 = vmatpush2.msra.mxu0 0.0
  %649 = vmatprep.subr.mxu0 0.0
  %650 = vmatpush2.msra.mxu0 0.0
  %651 = vmatprep.subr.mxu0 0.0
  %652 = vmatpush2.msra.mxu0 0.0
  %653 = vmatprep.subr.mxu0 0.0
  %654 = vmatpush2.msra.mxu0 0.0
  %655 = vmatprep.subr.mxu0 0.0
  %656 = vmatpush2.msra.mxu0 0.0
  %657 = vmatprep.subr.mxu0 0.0
  %658 = vmatpush2.msra.mxu0 0.0
  %659 = vmatprep.subr.mxu0 0.0
  %660 = vmatpush2.msra.mxu0 0.0
  %661 = vmatprep.subr.mxu0 0.0
  %662 = vmatpush2.msra.mxu0 0.0
  %663 = vmatprep.subr.mxu0 0.0
  %664 = vmatpush2.msra.mxu0 0.0
  %665 = vmatprep.subr.mxu0 0.0
  %666 = vmatpush2.msra.mxu0 0.0
  %667 = vmatprep.subr.mxu0 0.0
  %668 = vmatpush2.msra.mxu0 0.0
  %669 = vmatprep.subr.mxu0 0.0
  %670 = vmatpush2.msra.mxu0 0.0
  %671 = vmatprep.subr.mxu0 0.0
  %672 = vmatpush2.msra.mxu0 0.0
  %673 = vmatprep.subr.mxu0 0.0
  %674 = vmatpush2.msra.mxu0 0.0
  %675 = vmatprep.subr.mxu0 0.0
  %676 = vmatpush2.msra.mxu0 0.0
  %677 = vmatprep.mubr.f32.mxu0 0.0
  %678 = vmatmul.mubr.f32.gmra.mxu0 %v611
  %v679 = vpop.f32.mrf.mxu0
  %v680 = vadd.f32 %v86, %v679
  %v681 = vpop.f32.mrf.mxu0
  %v682 = vadd.f32 %v90, %v681
  %683 = vdwg.mxu0
  %684 = vmatprep.subr.mxu0 0.0
  %685 = vmatpush1.msra.mxu0 0.0
  %686 = vmatprep.subr.mxu0 0.0
  %687 = vmatpush1.msra.mxu0 0.0
  %688 = vmatprep.subr.mxu0 0.0
  %689 = vmatpush1.msra.mxu0 0.0
  %690 = vmatprep.subr.mxu0 0.0
  %691 = vmatpush1.msra.mxu0 0.0
  %692 = vmatprep.subr.mxu0 %v118
  %693 = vmatpush1.msra.mxu0 %v115
  %694 = vmatprep.subr.mxu0 %v75
  %695 = vmatpush1.msra.mxu0 %v74
  %696 = vmatprep.subr.mxu0 %v71
  %697 = vmatpush1.msra.mxu0 %v70
  %698 = vmatprep.subr.mxu0 %v67
  %699 = vmatpush1.msra.mxu0 %v66
  %700 = vmatprep.subr.mxu0 %v63
  %701 = vmatpush1.msra.mxu0 %v62
  %702 = vmatprep.subr.mxu0 %v59
  %703 = vmatpush1.msra.mxu0 %v58
  %704 = vmatprep.subr.mxu0 %v55
  %705 = vmatpush1.msra.mxu0 %v54
  %706 = vmatprep.subr.mxu0 %v51
  %707 = vmatpush1.msra.mxu0 %v50
  %708 = vmatprep.subr.mxu0 %v47
  %709 = vmatpush1.msra.mxu0 %v46
  %710 = vmatprep.subr.mxu0 %v43
  %711 = vmatpush1.msra.mxu0 %v42
  %712 = vmatprep.subr.mxu0 %v39
  %713 = vmatpush1.msra.mxu0 %v38
  %714 = vmatprep.subr.mxu0 %v35
  %715 = vmatpush1.msra.mxu0 %v34
  %716 = vmatprep.subr.mxu0 0.0
  %717 = vmatpush2.msra.mxu0 0.0
  %718 = vmatprep.subr.mxu0 0.0
  %719 = vmatpush2.msra.mxu0 0.0
  %720 = vmatprep.subr.mxu0 0.0
  %721 = vmatpush2.msra.mxu0 0.0
  %722 = vmatprep.subr.mxu0 0.0
  %723 = vmatpush2.msra.mxu0 0.0
  %724 = vmatprep.subr.mxu0 0.0
  %725 = vmatpush2.msra.mxu0 0.0
  %726 = vmatprep.subr.mxu0 0.0
  %727 = vmatpush2.msra.mxu0 0.0
  %728 = vmatprep.subr.mxu0 0.0
  %729 = vmatpush2.msra.mxu0 0.0
  %730 = vmatprep.subr.mxu0 0.0
  %731 = vmatpush2.msra.mxu0 0.0
  %732 = vmatprep.subr.mxu0 0.0
  %733 = vmatpush2.msra.mxu0 0.0
  %734 = vmatprep.subr.mxu0 0.0
  %735 = vmatpush2.msra.mxu0 0.0
  %736 = vmatprep.subr.mxu0 0.0
  %737 = vmatpush2.msra.mxu0 0.0
  %738 = vmatprep.subr.mxu0 0.0
  %739 = vmatpush2.msra.mxu0 0.0
  %740 = vmatprep.subr.mxu0 0.0
  %741 = vmatpush2.msra.mxu0 0.0
  %742 = vmatprep.subr.mxu0 0.0
  %743 = vmatpush2.msra.mxu0 0.0
  %744 = vmatprep.subr.mxu0 0.0
  %745 = vmatpush2.msra.mxu0 0.0
  %746 = vmatprep.subr.mxu0 0.0
  %747 = vmatpush2.msra.mxu0 0.0
  %748 = vmatprep.mubr.f32.mxu0 0.0
  %749 = vmatmul.mubr.f32.gmra.mxu0 %v611
  %v750 = vpop.f32.mrf.mxu0
  %v751 = vadd.f32 %v94, %v750
  %v752 = vpop.f32.mrf.mxu0
  %v753 = vadd.f32 %v98, %v752
  %754 = vdwg.mxu0
  %v755 = vmax.f32 %v533, %v680
  %v756 = vmax.f32 %v535, %v682
  %v757 = vmax.f32 %v604, %v751
  %v758 = vmax.f32 %v606, %v753
  %v759 = vmax.f32 %v755, 0.0
  %v760 = vmax.f32 %v756, 0.0
  %v761 = vmax.f32 %v757, 0.0
  %v762 = vmax.f32 %v758, 0.0
  %766 = vrot.lane.b32.xlu0 %v760, 32
  %v767 = vpop.permute.xlu0 %766
  %768 = vrot.lane.b32.xlu0 %v761, 32
  %v769 = vpop.permute.xlu0 %768
  %770 = vrot.lane.b32.xlu0 %v762, 32
  %v771 = vpop.permute.xlu0 %770
  %v772 = vsel %vm426, %v767, %v769
  %v773 = vsel %vm426, %v769, %v771
  %v776 = vmax.f32 %v759, %v772
  %v777 = vmax.f32 %v760, %v773
  %s778 = scalar_lea.vmem %s3, 224
  %v779 = vld [vmem:[%s778] sm:$0xff]
  %v780 = vld [vmem:[%s778 + $0x8] sm:$0xff]
  %v781 = vld [vmem:[%s778 + $0x10] sm:$0xff]
  %v782 = vld [vmem:[%s778 + $0x18] sm:$0xff]
  %v783 = vld [vmem:[%s778 + $0x20] sm:$0xff]
  %v784 = vld [vmem:[%s778 + $0x28] sm:$0xff]
  %v785 = vld [vmem:[%s778 + $0x30] sm:$0xff]
  %v786 = vld [vmem:[%s778 + $0x38] sm:$0xff]
  %v787 = vld [vmem:[%s778 + $0x40] sm:$0xff]
  %v788 = vld [vmem:[%s778 + $0x48] sm:$0xff]
  %v789 = vld [vmem:[%s778 + $0x50] sm:$0xff]
  %v790 = vld [vmem:[%s778 + $0x58] sm:$0xff]
  %v791 = vld [vmem:[%s778 + $0x60] sm:$0xff]
  %v792 = vld [vmem:[%s778 + $0x68] sm:$0xff]
  %v793 = vld [vmem:[%s778 + $0x70] sm:$0xff]
  %v794 = vld [vmem:[%s778 + $0x78] sm:$0xff]
  %v795 = vld [vmem:[%s778 + $0x80] sm:$0xff]
  %v796 = vld [vmem:[%s778 + $0x88] sm:$0xff]
  %v797 = vld [vmem:[%s778 + $0x90] sm:$0xff]
  %v798 = vld [vmem:[%s778 + $0x98] sm:$0xff]
  %v799 = vld [vmem:[%s778 + $0xa0] sm:$0xff]
  %v800 = vld [vmem:[%s778 + $0xa8] sm:$0xff]
  %v801 = vld [vmem:[%s778 + $0xb0] sm:$0xff]
  %v802 = vld [vmem:[%s778 + $0xb8] sm:$0xff]
  %v803 = vld [vmem:[%s778 + $0xc0] sm:$0xff]
  %v804 = vld [vmem:[%s778 + $0xc8] sm:$0xff]
  %v805 = vld [vmem:[%s778 + $0xd0] sm:$0xff]
  %v806 = vld [vmem:[%s778 + $0xd8] sm:$0xff]
  %vm807 = vcmask 785408
  %v809 = vsel %vm807, %v777, 0
  %811 = vmatprep.subr.mxu0 0.0
  %812 = vmatpush1.msra.mxu0 %v794
  %813 = vmatprep.subr.mxu0 0.0
  %814 = vmatpush1.msra.mxu0 %v793
  %815 = vmatprep.subr.mxu0 0.0
  %816 = vmatpush1.msra.mxu0 %v792
  %817 = vmatprep.subr.mxu0 0.0
  %818 = vmatpush1.msra.mxu0 %v791
  %819 = vmatprep.subr.mxu0 0.0
  %820 = vmatpush1.msra.mxu0 %v790
  %821 = vmatprep.subr.mxu0 0.0
  %822 = vmatpush1.msra.mxu0 %v789
  %823 = vmatprep.subr.mxu0 0.0
  %824 = vmatpush1.msra.mxu0 %v788
  %825 = vmatprep.subr.mxu0 0.0
  %826 = vmatpush1.msra.mxu0 %v787
  %827 = vmatprep.subr.mxu0 0.0
  %828 = vmatpush1.msra.mxu0 %v786
  %829 = vmatprep.subr.mxu0 0.0
  %830 = vmatpush1.msra.mxu0 %v785
  %831 = vmatprep.subr.mxu0 0.0
  %832 = vmatpush1.msra.mxu0 %v784
  %833 = vmatprep.subr.mxu0 0.0
  %834 = vmatpush1.msra.mxu0 %v783
  %835 = vmatprep.subr.mxu0 0.0
  %836 = vmatpush1.msra.mxu0 %v782
  %837 = vmatprep.subr.mxu0 0.0
  %838 = vmatpush1.msra.mxu0 %v781
  %839 = vmatprep.subr.mxu0 0.0
  %840 = vmatpush1.msra.mxu0 %v780
  %841 = vmatprep.subr.mxu0 0.0
  %842 = vmatpush1.msra.mxu0 %v779
  %843 = vmatprep.subr.mxu0 0.0
  %844 = vmatpush2.msra.mxu0 0.0
  %845 = vmatprep.subr.mxu0 0.0
  %846 = vmatpush2.msra.mxu0 0.0
  %847 = vmatprep.subr.mxu0 0.0
  %848 = vmatpush2.msra.mxu0 0.0
  %849 = vmatprep.subr.mxu0 0.0
  %850 = vmatpush2.msra.mxu0 0.0
  %851 = vmatprep.subr.mxu0 0.0
  %852 = vmatpush2.msra.mxu0 %v806
  %853 = vmatprep.subr.mxu0 0.0
  %854 = vmatpush2.msra.mxu0 %v805
  %855 = vmatprep.subr.mxu0 0.0
  %856 = vmatpush2.msra.mxu0 %v804
  %857 = vmatprep.subr.mxu0 0.0
  %858 = vmatpush2.msra.mxu0 %v803
  %859 = vmatprep.subr.mxu0 0.0
  %860 = vmatpush2.msra.mxu0 %v802
  %861 = vmatprep.subr.mxu0 0.0
  %862 = vmatpush2.msra.mxu0 %v801
  %863 = vmatprep.subr.mxu0 0.0
  %864 = vmatpush2.msra.mxu0 %v800
  %865 = vmatprep.subr.mxu0 0.0
  %866 = vmatpush2.msra.mxu0 %v799
  %867 = vmatprep.subr.mxu0 0.0
  %868 = vmatpush2.msra.mxu0 %v798
  %869 = vmatprep.subr.mxu0 0.0
  %870 = vmatpush2.msra.mxu0 %v797
  %871 = vmatprep.subr.mxu0 0.0
  %872 = vmatpush2.msra.mxu0 %v796
  %873 = vmatprep.subr.mxu0 0.0
  %874 = vmatpush2.msra.mxu0 %v795
  %875 = vmatprep.mubr.f32.mxu0 %v809
  %876 = vmatmul.mubr.f32.gmra.mxu0 %v776
  %v877 = vpop.f32.mrf.mxu0
  %v878 = vadd.f32 0.0, %v877
  %v879 = vpop.f32.mrf.mxu0
  %880 = vdwg.mxu0
  %v882 = vsel %vm807, %v432, 0
  %884 = vmatprep.subr.mxu0 0.0
  %885 = vmatpush1.msra.mxu0 %v448
  %886 = vmatprep.subr.mxu0 0.0
  %887 = vmatpush1.msra.mxu0 %v447
  %888 = vmatprep.subr.mxu0 0.0
  %889 = vmatpush1.msra.mxu0 %v446
  %890 = vmatprep.subr.mxu0 0.0
  %891 = vmatpush1.msra.mxu0 %v445
  %892 = vmatprep.subr.mxu0 0.0
  %893 = vmatpush1.msra.mxu0 %v444
  %894 = vmatprep.subr.mxu0 0.0
  %895 = vmatpush1.msra.mxu0 %v443
  %896 = vmatprep.subr.mxu0 0.0
  %897 = vmatpush1.msra.mxu0 %v442
  %898 = vmatprep.subr.mxu0 0.0
  %899 = vmatpush1.msra.mxu0 %v441
  %900 = vmatprep.subr.mxu0 0.0
  %901 = vmatpush1.msra.mxu0 %v440
  %902 = vmatprep.subr.mxu0 0.0
  %903 = vmatpush1.msra.mxu0 %v439
  %904 = vmatprep.subr.mxu0 0.0
  %905 = vmatpush1.msra.mxu0 %v438
  %906 = vmatprep.subr.mxu0 0.0
  %907 = vmatpush1.msra.mxu0 %v437
  %908 = vmatprep.subr.mxu0 0.0
  %909 = vmatpush1.msra.mxu0 %v436
  %910 = vmatprep.subr.mxu0 0.0
  %911 = vmatpush1.msra.mxu0 %v435
  %912 = vmatprep.subr.mxu0 0.0
  %913 = vmatpush1.msra.mxu0 %v434
  %914 = vmatprep.subr.mxu0 0.0
  %915 = vmatpush1.msra.mxu0 %v433
  %916 = vmatprep.subr.mxu0 0.0
  %917 = vmatpush2.msra.mxu0 0.0
  %918 = vmatprep.subr.mxu0 0.0
  %919 = vmatpush2.msra.mxu0 0.0
  %920 = vmatprep.subr.mxu0 0.0
  %921 = vmatpush2.msra.mxu0 0.0
  %922 = vmatprep.subr.mxu0 0.0
  %923 = vmatpush2.msra.mxu0 0.0
  %924 = vmatprep.subr.mxu0 0.0
  %925 = vmatpush2.msra.mxu0 %v460
  %926 = vmatprep.subr.mxu0 0.0
  %927 = vmatpush2.msra.mxu0 %v459
  %928 = vmatprep.subr.mxu0 0.0
  %929 = vmatpush2.msra.mxu0 %v458
  %930 = vmatprep.subr.mxu0 0.0
  %931 = vmatpush2.msra.mxu0 %v457
  %932 = vmatprep.subr.mxu0 0.0
  %933 = vmatpush2.msra.mxu0 %v456
  %934 = vmatprep.subr.mxu0 0.0
  %935 = vmatpush2.msra.mxu0 %v455
  %936 = vmatprep.subr.mxu0 0.0
  %937 = vmatpush2.msra.mxu0 %v454
  %938 = vmatprep.subr.mxu0 0.0
  %939 = vmatpush2.msra.mxu0 %v453
  %940 = vmatprep.subr.mxu0 0.0
  %941 = vmatpush2.msra.mxu0 %v452
  %942 = vmatprep.subr.mxu0 0.0
  %943 = vmatpush2.msra.mxu0 %v451
  %944 = vmatprep.subr.mxu0 0.0
  %945 = vmatpush2.msra.mxu0 %v450
  %946 = vmatprep.subr.mxu0 0.0
  %947 = vmatpush2.msra.mxu0 %v449
  %948 = vmatprep.mubr.f32.mxu0 %v882
  %949 = vmatmul.mubr.f32.gmra.mxu0 %v431
  %v950 = vpop.f32.mrf.mxu0
  %v951 = vadd.f32 %v878, %v950
  %v952 = vpop.f32.mrf.mxu0
  %953 = vdwg.mxu0
  %s954 = scalar_lea.vmem %s0, 32
  %v955 = vld [vmem:[%s954] sm:$0xff]
  %v957 = vsel %vm103, %v955, 0
  %959 = vmatprep.subr.mxu0 0.0
  %960 = vmatpush1.msra.mxu0 0.0
  %961 = vmatprep.subr.mxu0 0.0
  %962 = vmatpush1.msra.mxu0 0.0
  %963 = vmatprep.subr.mxu0 0.0
  %964 = vmatpush1.msra.mxu0 0.0
  %965 = vmatprep.subr.mxu0 0.0
  %966 = vmatpush1.msra.mxu0 0.0
  %967 = vmatprep.subr.mxu0 %v112
  %968 = vmatpush1.msra.mxu0 %v109
  %969 = vmatprep.subr.mxu0 %v73
  %970 = vmatpush1.msra.mxu0 %v72
  %971 = vmatprep.subr.mxu0 %v69
  %972 = vmatpush1.msra.mxu0 %v68
  %973 = vmatprep.subr.mxu0 %v65
  %974 = vmatpush1.msra.mxu0 %v64
  %975 = vmatprep.subr.mxu0 %v61
  %976 = vmatpush1.msra.mxu0 %v60
  %977 = vmatprep.subr.mxu0 %v57
  %978 = vmatpush1.msra.mxu0 %v56
  %979 = vmatprep.subr.mxu0 %v53
  %980 = vmatpush1.msra.mxu0 %v52
  %981 = vmatprep.subr.mxu0 %v49
  %982 = vmatpush1.msra.mxu0 %v48
  %983 = vmatprep.subr.mxu0 %v45
  %984 = vmatpush1.msra.mxu0 %v44
  %985 = vmatprep.subr.mxu0 %v41
  %986 = vmatpush1.msra.mxu0 %v40
  %987 = vmatprep.subr.mxu0 %v37
  %988 = vmatpush1.msra.mxu0 %v36
  %989 = vmatprep.subr.mxu0 %v33
  %990 = vmatpush1.msra.mxu0 %v32
  %991 = vmatprep.subr.mxu0 0.0
  %992 = vmatpush2.msra.mxu0 0.0
  %993 = vmatprep.subr.mxu0 0.0
  %994 = vmatpush2.msra.mxu0 0.0
  %995 = vmatprep.subr.mxu0 0.0
  %996 = vmatpush2.msra.mxu0 0.0
  %997 = vmatprep.subr.mxu0 0.0
  %998 = vmatpush2.msra.mxu0 0.0
  %999 = vmatprep.subr.mxu0 0.0
  %1000 = vmatpush2.msra.mxu0 0.0
  %1001 = vmatprep.subr.mxu0 0.0
  %1002 = vmatpush2.msra.mxu0 0.0
  %1003 = vmatprep.subr.mxu0 0.0
  %1004 = vmatpush2.msra.mxu0 0.0
  %1005 = vmatprep.subr.mxu0 0.0
  %1006 = vmatpush2.msra.mxu0 0.0
  %1007 = vmatprep.subr.mxu0 0.0
  %1008 = vmatpush2.msra.mxu0 0.0
  %1009 = vmatprep.subr.mxu0 0.0
  %1010 = vmatpush2.msra.mxu0 0.0
  %1011 = vmatprep.subr.mxu0 0.0
  %1012 = vmatpush2.msra.mxu0 0.0
  %1013 = vmatprep.subr.mxu0 0.0
  %1014 = vmatpush2.msra.mxu0 0.0
  %1015 = vmatprep.subr.mxu0 0.0
  %1016 = vmatpush2.msra.mxu0 0.0
  %1017 = vmatprep.subr.mxu0 0.0
  %1018 = vmatpush2.msra.mxu0 0.0
  %1019 = vmatprep.subr.mxu0 0.0
  %1020 = vmatpush2.msra.mxu0 0.0
  %1021 = vmatprep.subr.mxu0 0.0
  %1022 = vmatpush2.msra.mxu0 0.0
  %1023 = vmatprep.mubr.f32.mxu0 0.0
  %1024 = vmatmul.mubr.f32.gmra.mxu0 %v957
  %v1025 = vpop.f32.mrf.mxu0
  %v1026 = vadd.f32 %v86, %v1025
  %v1027 = vpop.f32.mrf.mxu0
  %v1028 = vadd.f32 %v90, %v1027
  %1029 = vdwg.mxu0
  %1030 = vmatprep.subr.mxu0 0.0
  %1031 = vmatpush1.msra.mxu0 0.0
  %1032 = vmatprep.subr.mxu0 0.0
  %1033 = vmatpush1.msra.mxu0 0.0
  %1034 = vmatprep.subr.mxu0 0.0
  %1035 = vmatpush1.msra.mxu0 0.0
  %1036 = vmatprep.subr.mxu0 0.0
  %1037 = vmatpush1.msra.mxu0 0.0
  %1038 = vmatprep.subr.mxu0 %v118
  %1039 = vmatpush1.msra.mxu0 %v115
  %1040 = vmatprep.subr.mxu0 %v75
  %1041 = vmatpush1.msra.mxu0 %v74
  %1042 = vmatprep.subr.mxu0 %v71
  %1043 = vmatpush1.msra.mxu0 %v70
  %1044 = vmatprep.subr.mxu0 %v67
  %1045 = vmatpush1.msra.mxu0 %v66
  %1046 = vmatprep.subr.mxu0 %v63
  %1047 = vmatpush1.msra.mxu0 %v62
  %1048 = vmatprep.subr.mxu0 %v59
  %1049 = vmatpush1.msra.mxu0 %v58
  %1050 = vmatprep.subr.mxu0 %v55
  %1051 = vmatpush1.msra.mxu0 %v54
  %1052 = vmatprep.subr.mxu0 %v51
  %1053 = vmatpush1.msra.mxu0 %v50
  %1054 = vmatprep.subr.mxu0 %v47
  %1055 = vmatpush1.msra.mxu0 %v46
  %1056 = vmatprep.subr.mxu0 %v43
  %1057 = vmatpush1.msra.mxu0 %v42
  %1058 = vmatprep.subr.mxu0 %v39
  %1059 = vmatpush1.msra.mxu0 %v38
  %1060 = vmatprep.subr.mxu0 %v35
  %1061 = vmatpush1.msra.mxu0 %v34
  %1062 = vmatprep.subr.mxu0 0.0
  %1063 = vmatpush2.msra.mxu0 0.0
  %1064 = vmatprep.subr.mxu0 0.0
  %1065 = vmatpush2.msra.mxu0 0.0
  %1066 = vmatprep.subr.mxu0 0.0
  %1067 = vmatpush2.msra.mxu0 0.0
  %1068 = vmatprep.subr.mxu0 0.0
  %1069 = vmatpush2.msra.mxu0 0.0
  %1070 = vmatprep.subr.mxu0 0.0
  %1071 = vmatpush2.msra.mxu0 0.0
  %1072 = vmatprep.subr.mxu0 0.0
  %1073 = vmatpush2.msra.mxu0 0.0
  %1074 = vmatprep.subr.mxu0 0.0
  %1075 = vmatpush2.msra.mxu0 0.0
  %1076 = vmatprep.subr.mxu0 0.0
  %1077 = vmatpush2.msra.mxu0 0.0
  %1078 = vmatprep.subr.mxu0 0.0
  %1079 = vmatpush2.msra.mxu0 0.0
  %1080 = vmatprep.subr.mxu0 0.0
  %1081 = vmatpush2.msra.mxu0 0.0
  %1082 = vmatprep.subr.mxu0 0.0
  %1083 = vmatpush2.msra.mxu0 0.0
  %1084 = vmatprep.subr.mxu0 0.0
  %1085 = vmatpush2.msra.mxu0 0.0
  %1086 = vmatprep.subr.mxu0 0.0
  %1087 = vmatpush2.msra.mxu0 0.0
  %1088 = vmatprep.subr.mxu0 0.0
  %1089 = vmatpush2.msra.mxu0 0.0
  %1090 = vmatprep.subr.mxu0 0.0
  %1091 = vmatpush2.msra.mxu0 0.0
  %1092 = vmatprep.subr.mxu0 0.0
  %1093 = vmatpush2.msra.mxu0 0.0
  %1094 = vmatprep.mubr.f32.mxu0 0.0
  %1095 = vmatmul.mubr.f32.gmra.mxu0 %v957
  %v1096 = vpop.f32.mrf.mxu0
  %v1097 = vadd.f32 %v94, %v1096
  %v1098 = vpop.f32.mrf.mxu0
  %v1099 = vadd.f32 %v98, %v1098
  %1100 = vdwg.mxu0
  %s1101 = scalar_lea.vmem %s0, 40
  %v1102 = vld [vmem:[%s1101] sm:$0xff]
  %v1104 = vsel %vm103, %v1102, 0
  %1106 = vmatprep.subr.mxu0 0.0
  %1107 = vmatpush1.msra.mxu0 0.0
  %1108 = vmatprep.subr.mxu0 0.0
  %1109 = vmatpush1.msra.mxu0 0.0
  %1110 = vmatprep.subr.mxu0 0.0
  %1111 = vmatpush1.msra.mxu0 0.0
  %1112 = vmatprep.subr.mxu0 0.0
  %1113 = vmatpush1.msra.mxu0 0.0
  %1114 = vmatprep.subr.mxu0 %v112
  %1115 = vmatpush1.msra.mxu0 %v109
  %1116 = vmatprep.subr.mxu0 %v73
  %1117 = vmatpush1.msra.mxu0 %v72
  %1118 = vmatprep.subr.mxu0 %v69
  %1119 = vmatpush1.msra.mxu0 %v68
  %1120 = vmatprep.subr.mxu0 %v65
  %1121 = vmatpush1.msra.mxu0 %v64
  %1122 = vmatprep.subr.mxu0 %v61
  %1123 = vmatpush1.msra.mxu0 %v60
  %1124 = vmatprep.subr.mxu0 %v57
  %1125 = vmatpush1.msra.mxu0 %v56
  %1126 = vmatprep.subr.mxu0 %v53
  %1127 = vmatpush1.msra.mxu0 %v52
  %1128 = vmatprep.subr.mxu0 %v49
  %1129 = vmatpush1.msra.mxu0 %v48
  %1130 = vmatprep.subr.mxu0 %v45
  %1131 = vmatpush1.msra.mxu0 %v44
  %1132 = vmatprep.subr.mxu0 %v41
  %1133 = vmatpush1.msra.mxu0 %v40
  %1134 = vmatprep.subr.mxu0 %v37
  %1135 = vmatpush1.msra.mxu0 %v36
  %1136 = vmatprep.subr.mxu0 %v33
  %1137 = vmatpush1.msra.mxu0 %v32
  %1138 = vmatprep.subr.mxu0 0.0
  %1139 = vmatpush2.msra.mxu0 0.0
  %1140 = vmatprep.subr.mxu0 0.0
  %1141 = vmatpush2.msra.mxu0 0.0
  %1142 = vmatprep.subr.mxu0 0.0
  %1143 = vmatpush2.msra.mxu0 0.0
  %1144 = vmatprep.subr.mxu0 0.0
  %1145 = vmatpush2.msra.mxu0 0.0
  %1146 = vmatprep.subr.mxu0 0.0
  %1147 = vmatpush2.msra.mxu0 0.0
  %1148 = vmatprep.subr.mxu0 0.0
  %1149 = vmatpush2.msra.mxu0 0.0
  %1150 = vmatprep.subr.mxu0 0.0
  %1151 = vmatpush2.msra.mxu0 0.0
  %1152 = vmatprep.subr.mxu0 0.0
  %1153 = vmatpush2.msra.mxu0 0.0
  %1154 = vmatprep.subr.mxu0 0.0
  %1155 = vmatpush2.msra.mxu0 0.0
  %1156 = vmatprep.subr.mxu0 0.0
  %1157 = vmatpush2.msra.mxu0 0.0
  %1158 = vmatprep.subr.mxu0 0.0
  %1159 = vmatpush2.msra.mxu0 0.0
  %1160 = vmatprep.subr.mxu0 0.0
  %1161 = vmatpush2.msra.mxu0 0.0
  %1162 = vmatprep.subr.mxu0 0.0
  %1163 = vmatpush2.msra.mxu0 0.0
  %1164 = vmatprep.subr.mxu0 0.0
  %1165 = vmatpush2.msra.mxu0 0.0
  %1166 = vmatprep.subr.mxu0 0.0
  %1167 = vmatpush2.msra.mxu0 0.0
  %1168 = vmatprep.subr.mxu0 0.0
  %1169 = vmatpush2.msra.mxu0 0.0
  %1170 = vmatprep.mubr.f32.mxu0 0.0
  %1171 = vmatmul.mubr.f32.gmra.mxu0 %v1104
  %v1172 = vpop.f32.mrf.mxu0
  %v1173 = vadd.f32 %v86, %v1172
  %v1174 = vpop.f32.mrf.mxu0
  %v1175 = vadd.f32 %v90, %v1174
  %1176 = vdwg.mxu0
  %1177 = vmatprep.subr.mxu0 0.0
  %1178 = vmatpush1.msra.mxu0 0.0
  %1179 = vmatprep.subr.mxu0 0.0
  %1180 = vmatpush1.msra.mxu0 0.0
  %1181 = vmatprep.subr.mxu0 0.0
  %1182 = vmatpush1.msra.mxu0 0.0
  %1183 = vmatprep.subr.mxu0 0.0
  %1184 = vmatpush1.msra.mxu0 0.0
  %1185 = vmatprep.subr.mxu0 %v118
  %1186 = vmatpush1.msra.mxu0 %v115
  %1187 = vmatprep.subr.mxu0 %v75
  %1188 = vmatpush1.msra.mxu0 %v74
  %1189 = vmatprep.subr.mxu0 %v71
  %1190 = vmatpush1.msra.mxu0 %v70
  %1191 = vmatprep.subr.mxu0 %v67
  %1192 = vmatpush1.msra.mxu0 %v66
  %1193 = vmatprep.subr.mxu0 %v63
  %1194 = vmatpush1.msra.mxu0 %v62
  %1195 = vmatprep.subr.mxu0 %v59
  %1196 = vmatpush1.msra.mxu0 %v58
  %1197 = vmatprep.subr.mxu0 %v55
  %1198 = vmatpush1.msra.mxu0 %v54
  %1199 = vmatprep.subr.mxu0 %v51
  %1200 = vmatpush1.msra.mxu0 %v50
  %1201 = vmatprep.subr.mxu0 %v47
  %1202 = vmatpush1.msra.mxu0 %v46
  %1203 = vmatprep.subr.mxu0 %v43
  %1204 = vmatpush1.msra.mxu0 %v42
  %1205 = vmatprep.subr.mxu0 %v39
  %1206 = vmatpush1.msra.mxu0 %v38
  %1207 = vmatprep.subr.mxu0 %v35
  %1208 = vmatpush1.msra.mxu0 %v34
  %1209 = vmatprep.subr.mxu0 0.0
  %1210 = vmatpush2.msra.mxu0 0.0
  %1211 = vmatprep.subr.mxu0 0.0
  %1212 = vmatpush2.msra.mxu0 0.0
  %1213 = vmatprep.subr.mxu0 0.0
  %1214 = vmatpush2.msra.mxu0 0.0
  %1215 = vmatprep.subr.mxu0 0.0
  %1216 = vmatpush2.msra.mxu0 0.0
  %1217 = vmatprep.subr.mxu0 0.0
  %1218 = vmatpush2.msra.mxu0 0.0
  %1219 = vmatprep.subr.mxu0 0.0
  %1220 = vmatpush2.msra.mxu0 0.0
  %1221 = vmatprep.subr.mxu0 0.0
  %1222 = vmatpush2.msra.mxu0 0.0
  %1223 = vmatprep.subr.mxu0 0.0
  %1224 = vmatpush2.msra.mxu0 0.0
  %1225 = vmatprep.subr.mxu0 0.0
  %1226 = vmatpush2.msra.mxu0 0.0
  %1227 = vmatprep.subr.mxu0 0.0
  %1228 = vmatpush2.msra.mxu0 0.0
  %1229 = vmatprep.subr.mxu0 0.0
  %1230 = vmatpush2.msra.mxu0 0.0
  %1231 = vmatprep.subr.mxu0 0.0
  %1232 = vmatpush2.msra.mxu0 0.0
  %1233 = vmatprep.subr.mxu0 0.0
  %1234 = vmatpush2.msra.mxu0 0.0
  %1235 = vmatprep.subr.mxu0 0.0
  %1236 = vmatpush2.msra.mxu0 0.0
  %1237 = vmatprep.subr.mxu0 0.0
  %1238 = vmatpush2.msra.mxu0 0.0
  %1239 = vmatprep.subr.mxu0 0.0
  %1240 = vmatpush2.msra.mxu0 0.0
  %1241 = vmatprep.mubr.f32.mxu0 0.0
  %1242 = vmatmul.mubr.f32.gmra.mxu0 %v1104
  %v1243 = vpop.f32.mrf.mxu0
  %v1244 = vadd.f32 %v94, %v1243
  %v1245 = vpop.f32.mrf.mxu0
  %v1246 = vadd.f32 %v98, %v1245
  %1247 = vdwg.mxu0
  %v1248 = vmax.f32 %v1026, %v1173
  %v1249 = vmax.f32 %v1028, %v1175
  %v1250 = vmax.f32 %v1097, %v1244
  %v1251 = vmax.f32 %v1099, %v1246
  %v1252 = vmax.f32 %v1248, 0.0
  %v1253 = vmax.f32 %v1249, 0.0
  %v1254 = vmax.f32 %v1250, 0.0
  %v1255 = vmax.f32 %v1251, 0.0
  %1259 = vrot.lane.b32.xlu0 %v1253, 32
  %v1260 = vpop.permute.xlu0 %1259
  %1261 = vrot.lane.b32.xlu0 %v1254, 32
  %v1262 = vpop.permute.xlu0 %1261
  %1263 = vrot.lane.b32.xlu0 %v1255, 32
  %v1264 = vpop.permute.xlu0 %1263
  %v1265 = vsel %vm426, %v1260, %v1262
  %v1266 = vsel %vm426, %v1262, %v1264
  %v1269 = vmax.f32 %v1252, %v1265
  %v1270 = vmax.f32 %v1253, %v1266
  %s1271 = scalar_lea.vmem %s3, 448
  %v1272 = vld [vmem:[%s1271] sm:$0xff]
  %v1273 = vld [vmem:[%s1271 + $0x8] sm:$0xff]
  %v1274 = vld [vmem:[%s1271 + $0x10] sm:$0xff]
  %v1275 = vld [vmem:[%s1271 + $0x18] sm:$0xff]
  %v1276 = vld [vmem:[%s1271 + $0x20] sm:$0xff]
  %v1277 = vld [vmem:[%s1271 + $0x28] sm:$0xff]
  %v1278 = vld [vmem:[%s1271 + $0x30] sm:$0xff]
  %v1279 = vld [vmem:[%s1271 + $0x38] sm:$0xff]
  %v1280 = vld [vmem:[%s1271 + $0x40] sm:$0xff]
  %v1281 = vld [vmem:[%s1271 + $0x48] sm:$0xff]
  %v1282 = vld [vmem:[%s1271 + $0x50] sm:$0xff]
  %v1283 = vld [vmem:[%s1271 + $0x58] sm:$0xff]
  %v1284 = vld [vmem:[%s1271 + $0x60] sm:$0xff]
  %v1285 = vld [vmem:[%s1271 + $0x68] sm:$0xff]
  %v1286 = vld [vmem:[%s1271 + $0x70] sm:$0xff]
  %v1287 = vld [vmem:[%s1271 + $0x78] sm:$0xff]
  %v1288 = vld [vmem:[%s1271 + $0x80] sm:$0xff]
  %v1289 = vld [vmem:[%s1271 + $0x88] sm:$0xff]
  %v1290 = vld [vmem:[%s1271 + $0x90] sm:$0xff]
  %v1291 = vld [vmem:[%s1271 + $0x98] sm:$0xff]
  %v1292 = vld [vmem:[%s1271 + $0xa0] sm:$0xff]
  %v1293 = vld [vmem:[%s1271 + $0xa8] sm:$0xff]
  %v1294 = vld [vmem:[%s1271 + $0xb0] sm:$0xff]
  %v1295 = vld [vmem:[%s1271 + $0xb8] sm:$0xff]
  %v1296 = vld [vmem:[%s1271 + $0xc0] sm:$0xff]
  %v1297 = vld [vmem:[%s1271 + $0xc8] sm:$0xff]
  %v1298 = vld [vmem:[%s1271 + $0xd0] sm:$0xff]
  %v1299 = vld [vmem:[%s1271 + $0xd8] sm:$0xff]
  %v1301 = vsel %vm807, %v1270, 0
  %1303 = vmatprep.subr.mxu0 0.0
  %1304 = vmatpush1.msra.mxu0 %v1287
  %1305 = vmatprep.subr.mxu0 0.0
  %1306 = vmatpush1.msra.mxu0 %v1286
  %1307 = vmatprep.subr.mxu0 0.0
  %1308 = vmatpush1.msra.mxu0 %v1285
  %1309 = vmatprep.subr.mxu0 0.0
  %1310 = vmatpush1.msra.mxu0 %v1284
  %1311 = vmatprep.subr.mxu0 0.0
  %1312 = vmatpush1.msra.mxu0 %v1283
  %1313 = vmatprep.subr.mxu0 0.0
  %1314 = vmatpush1.msra.mxu0 %v1282
  %1315 = vmatprep.subr.mxu0 0.0
  %1316 = vmatpush1.msra.mxu0 %v1281
  %1317 = vmatprep.subr.mxu0 0.0
  %1318 = vmatpush1.msra.mxu0 %v1280
  %1319 = vmatprep.subr.mxu0 0.0
  %1320 = vmatpush1.msra.mxu0 %v1279
  %1321 = vmatprep.subr.mxu0 0.0
  %1322 = vmatpush1.msra.mxu0 %v1278
  %1323 = vmatprep.subr.mxu0 0.0
  %1324 = vmatpush1.msra.mxu0 %v1277
  %1325 = vmatprep.subr.mxu0 0.0
  %1326 = vmatpush1.msra.mxu0 %v1276
  %1327 = vmatprep.subr.mxu0 0.0
  %1328 = vmatpush1.msra.mxu0 %v1275
  %1329 = vmatprep.subr.mxu0 0.0
  %1330 = vmatpush1.msra.mxu0 %v1274
  %1331 = vmatprep.subr.mxu0 0.0
  %1332 = vmatpush1.msra.mxu0 %v1273
  %1333 = vmatprep.subr.mxu0 0.0
  %1334 = vmatpush1.msra.mxu0 %v1272
  %1335 = vmatprep.subr.mxu0 0.0
  %1336 = vmatpush2.msra.mxu0 0.0
  %1337 = vmatprep.subr.mxu0 0.0
  %1338 = vmatpush2.msra.mxu0 0.0
  %1339 = vmatprep.subr.mxu0 0.0
  %1340 = vmatpush2.msra.mxu0 0.0
  %1341 = vmatprep.subr.mxu0 0.0
  %1342 = vmatpush2.msra.mxu0 0.0
  %1343 = vmatprep.subr.mxu0 0.0
  %1344 = vmatpush2.msra.mxu0 %v1299
  %1345 = vmatprep.subr.mxu0 0.0
  %1346 = vmatpush2.msra.mxu0 %v1298
  %1347 = vmatprep.subr.mxu0 0.0
  %1348 = vmatpush2.msra.mxu0 %v1297
  %1349 = vmatprep.subr.mxu0 0.0
  %1350 = vmatpush2.msra.mxu0 %v1296
  %1351 = vmatprep.subr.mxu0 0.0
  %1352 = vmatpush2.msra.mxu0 %v1295
  %1353 = vmatprep.subr.mxu0 0.0
  %1354 = vmatpush2.msra.mxu0 %v1294
  %1355 = vmatprep.subr.mxu0 0.0
  %1356 = vmatpush2.msra.mxu0 %v1293
  %1357 = vmatprep.subr.mxu0 0.0
  %1358 = vmatpush2.msra.mxu0 %v1292
  %1359 = vmatprep.subr.mxu0 0.0
  %1360 = vmatpush2.msra.mxu0 %v1291
  %1361 = vmatprep.subr.mxu0 0.0
  %1362 = vmatpush2.msra.mxu0 %v1290
  %1363 = vmatprep.subr.mxu0 0.0
  %1364 = vmatpush2.msra.mxu0 %v1289
  %1365 = vmatprep.subr.mxu0 0.0
  %1366 = vmatpush2.msra.mxu0 %v1288
  %1367 = vmatprep.mubr.f32.mxu0 %v1301
  %1368 = vmatmul.mubr.f32.gmra.mxu0 %v1269
  %v1369 = vpop.f32.mrf.mxu0
  %v1370 = vadd.f32 0.0, %v1369
  %v1371 = vpop.f32.mrf.mxu0
  %1372 = vdwg.mxu0
  %v1373 = vadd.f32 %v951, %v1370
  %s1374 = scalar_lea.vmem %s0, 48
  %v1375 = vld [vmem:[%s1374] sm:$0xff]
  %v1377 = vsel %vm103, %v1375, 0
  %1379 = vmatprep.subr.mxu0 0.0
  %1380 = vmatpush1.msra.mxu0 0.0
  %1381 = vmatprep.subr.mxu0 0.0
  %1382 = vmatpush1.msra.mxu0 0.0
  %1383 = vmatprep.subr.mxu0 0.0
  %1384 = vmatpush1.msra.mxu0 0.0
  %1385 = vmatprep.subr.mxu0 0.0
  %1386 = vmatpush1.msra.mxu0 0.0
  %1387 = vmatprep.subr.mxu0 %v112
  %1388 = vmatpush1.msra.mxu0 %v109
  %1389 = vmatprep.subr.mxu0 %v73
  %1390 = vmatpush1.msra.mxu0 %v72
  %1391 = vmatprep.subr.mxu0 %v69
  %1392 = vmatpush1.msra.mxu0 %v68
  %1393 = vmatprep.subr.mxu0 %v65
  %1394 = vmatpush1.msra.mxu0 %v64
  %1395 = vmatprep.subr.mxu0 %v61
  %1396 = vmatpush1.msra.mxu0 %v60
  %1397 = vmatprep.subr.mxu0 %v57
  %1398 = vmatpush1.msra.mxu0 %v56
  %1399 = vmatprep.subr.mxu0 %v53
  %1400 = vmatpush1.msra.mxu0 %v52
  %1401 = vmatprep.subr.mxu0 %v49
  %1402 = vmatpush1.msra.mxu0 %v48
  %1403 = vmatprep.subr.mxu0 %v45
  %1404 = vmatpush1.msra.mxu0 %v44
  %1405 = vmatprep.subr.mxu0 %v41
  %1406 = vmatpush1.msra.mxu0 %v40
  %1407 = vmatprep.subr.mxu0 %v37
  %1408 = vmatpush1.msra.mxu0 %v36
  %1409 = vmatprep.subr.mxu0 %v33
  %1410 = vmatpush1.msra.mxu0 %v32
  %1411 = vmatprep.subr.mxu0 0.0
  %1412 = vmatpush2.msra.mxu0 0.0
  %1413 = vmatprep.subr.mxu0 0.0
  %1414 = vmatpush2.msra.mxu0 0.0
  %1415 = vmatprep.subr.mxu0 0.0
  %1416 = vmatpush2.msra.mxu0 0.0
  %1417 = vmatprep.subr.mxu0 0.0
  %1418 = vmatpush2.msra.mxu0 0.0
  %1419 = vmatprep.subr.mxu0 0.0
  %1420 = vmatpush2.msra.mxu0 0.0
  %1421 = vmatprep.subr.mxu0 0.0
  %1422 = vmatpush2.msra.mxu0 0.0
  %1423 = vmatprep.subr.mxu0 0.0
  %1424 = vmatpush2.msra.mxu0 0.0
  %1425 = vmatprep.subr.mxu0 0.0
  %1426 = vmatpush2.msra.mxu0 0.0
  %1427 = vmatprep.subr.mxu0 0.0
  %1428 = vmatpush2.msra.mxu0 0.0
  %1429 = vmatprep.subr.mxu0 0.0
  %1430 = vmatpush2.msra.mxu0 0.0
  %1431 = vmatprep.subr.mxu0 0.0
  %1432 = vmatpush2.msra.mxu0 0.0
  %1433 = vmatprep.subr.mxu0 0.0
  %1434 = vmatpush2.msra.mxu0 0.0
  %1435 = vmatprep.subr.mxu0 0.0
  %1436 = vmatpush2.msra.mxu0 0.0
  %1437 = vmatprep.subr.mxu0 0.0
  %1438 = vmatpush2.msra.mxu0 0.0
  %1439 = vmatprep.subr.mxu0 0.0
  %1440 = vmatpush2.msra.mxu0 0.0
  %1441 = vmatprep.subr.mxu0 0.0
  %1442 = vmatpush2.msra.mxu0 0.0
  %1443 = vmatprep.mubr.f32.mxu0 0.0
  %1444 = vmatmul.mubr.f32.gmra.mxu0 %v1377
  %v1445 = vpop.f32.mrf.mxu0
  %v1446 = vadd.f32 %v86, %v1445
  %v1447 = vpop.f32.mrf.mxu0
  %v1448 = vadd.f32 %v90, %v1447
  %1449 = vdwg.mxu0
  %1450 = vmatprep.subr.mxu0 0.0
  %1451 = vmatpush1.msra.mxu0 0.0
  %1452 = vmatprep.subr.mxu0 0.0
  %1453 = vmatpush1.msra.mxu0 0.0
  %1454 = vmatprep.subr.mxu0 0.0
  %1455 = vmatpush1.msra.mxu0 0.0
  %1456 = vmatprep.subr.mxu0 0.0
  %1457 = vmatpush1.msra.mxu0 0.0
  %1458 = vmatprep.subr.mxu0 %v118
  %1459 = vmatpush1.msra.mxu0 %v115
  %1460 = vmatprep.subr.mxu0 %v75
  %1461 = vmatpush1.msra.mxu0 %v74
  %1462 = vmatprep.subr.mxu0 %v71
  %1463 = vmatpush1.msra.mxu0 %v70
  %1464 = vmatprep.subr.mxu0 %v67
  %1465 = vmatpush1.msra.mxu0 %v66
  %1466 = vmatprep.subr.mxu0 %v63
  %1467 = vmatpush1.msra.mxu0 %v62
  %1468 = vmatprep.subr.mxu0 %v59
  %1469 = vmatpush1.msra.mxu0 %v58
  %1470 = vmatprep.subr.mxu0 %v55
  %1471 = vmatpush1.msra.mxu0 %v54
  %1472 = vmatprep.subr.mxu0 %v51
  %1473 = vmatpush1.msra.mxu0 %v50
  %1474 = vmatprep.subr.mxu0 %v47
  %1475 = vmatpush1.msra.mxu0 %v46
  %1476 = vmatprep.subr.mxu0 %v43
  %1477 = vmatpush1.msra.mxu0 %v42
  %1478 = vmatprep.subr.mxu0 %v39
  %1479 = vmatpush1.msra.mxu0 %v38
  %1480 = vmatprep.subr.mxu0 %v35
  %1481 = vmatpush1.msra.mxu0 %v34
  %1482 = vmatprep.subr.mxu0 0.0
  %1483 = vmatpush2.msra.mxu0 0.0
  %1484 = vmatprep.subr.mxu0 0.0
  %1485 = vmatpush2.msra.mxu0 0.0
  %1486 = vmatprep.subr.mxu0 0.0
  %1487 = vmatpush2.msra.mxu0 0.0
  %1488 = vmatprep.subr.mxu0 0.0
  %1489 = vmatpush2.msra.mxu0 0.0
  %1490 = vmatprep.subr.mxu0 0.0
  %1491 = vmatpush2.msra.mxu0 0.0
  %1492 = vmatprep.subr.mxu0 0.0
  %1493 = vmatpush2.msra.mxu0 0.0
  %1494 = vmatprep.subr.mxu0 0.0
  %1495 = vmatpush2.msra.mxu0 0.0
  %1496 = vmatprep.subr.mxu0 0.0
  %1497 = vmatpush2.msra.mxu0 0.0
  %1498 = vmatprep.subr.mxu0 0.0
  %1499 = vmatpush2.msra.mxu0 0.0
  %1500 = vmatprep.subr.mxu0 0.0
  %1501 = vmatpush2.msra.mxu0 0.0
  %1502 = vmatprep.subr.mxu0 0.0
  %1503 = vmatpush2.msra.mxu0 0.0
  %1504 = vmatprep.subr.mxu0 0.0
  %1505 = vmatpush2.msra.mxu0 0.0
  %1506 = vmatprep.subr.mxu0 0.0
  %1507 = vmatpush2.msra.mxu0 0.0
  %1508 = vmatprep.subr.mxu0 0.0
  %1509 = vmatpush2.msra.mxu0 0.0
  %1510 = vmatprep.subr.mxu0 0.0
  %1511 = vmatpush2.msra.mxu0 0.0
  %1512 = vmatprep.subr.mxu0 0.0
  %1513 = vmatpush2.msra.mxu0 0.0
  %1514 = vmatprep.mubr.f32.mxu0 0.0
  %1515 = vmatmul.mubr.f32.gmra.mxu0 %v1377
  %v1516 = vpop.f32.mrf.mxu0
  %v1517 = vadd.f32 %v94, %v1516
  %v1518 = vpop.f32.mrf.mxu0
  %v1519 = vadd.f32 %v98, %v1518
  %1520 = vdwg.mxu0
  %s1521 = scalar_lea.vmem %s0, 56
  %v1522 = vld [vmem:[%s1521] sm:$0xff]
  %v1524 = vsel %vm103, %v1522, 0
  %1526 = vmatprep.subr.mxu0 0.0
  %1527 = vmatpush1.msra.mxu0 0.0
  %1528 = vmatprep.subr.mxu0 0.0
  %1529 = vmatpush1.msra.mxu0 0.0
  %1530 = vmatprep.subr.mxu0 0.0
  %1531 = vmatpush1.msra.mxu0 0.0
  %1532 = vmatprep.subr.mxu0 0.0
  %1533 = vmatpush1.msra.mxu0 0.0
  %1534 = vmatprep.subr.mxu0 %v112
  %1535 = vmatpush1.msra.mxu0 %v109
  %1536 = vmatprep.subr.mxu0 %v73
  %1537 = vmatpush1.msra.mxu0 %v72
  %1538 = vmatprep.subr.mxu0 %v69
  %1539 = vmatpush1.msra.mxu0 %v68
  %1540 = vmatprep.subr.mxu0 %v65
  %1541 = vmatpush1.msra.mxu0 %v64
  %1542 = vmatprep.subr.mxu0 %v61
  %1543 = vmatpush1.msra.mxu0 %v60
  %1544 = vmatprep.subr.mxu0 %v57
  %1545 = vmatpush1.msra.mxu0 %v56
  %1546 = vmatprep.subr.mxu0 %v53
  %1547 = vmatpush1.msra.mxu0 %v52
  %1548 = vmatprep.subr.mxu0 %v49
  %1549 = vmatpush1.msra.mxu0 %v48
  %1550 = vmatprep.subr.mxu0 %v45
  %1551 = vmatpush1.msra.mxu0 %v44
  %1552 = vmatprep.subr.mxu0 %v41
  %1553 = vmatpush1.msra.mxu0 %v40
  %1554 = vmatprep.subr.mxu0 %v37
  %1555 = vmatpush1.msra.mxu0 %v36
  %1556 = vmatprep.subr.mxu0 %v33
  %1557 = vmatpush1.msra.mxu0 %v32
  %1558 = vmatprep.subr.mxu0 0.0
  %1559 = vmatpush2.msra.mxu0 0.0
  %1560 = vmatprep.subr.mxu0 0.0
  %1561 = vmatpush2.msra.mxu0 0.0
  %1562 = vmatprep.subr.mxu0 0.0
  %1563 = vmatpush2.msra.mxu0 0.0
  %1564 = vmatprep.subr.mxu0 0.0
  %1565 = vmatpush2.msra.mxu0 0.0
  %1566 = vmatprep.subr.mxu0 0.0
  %1567 = vmatpush2.msra.mxu0 0.0
  %1568 = vmatprep.subr.mxu0 0.0
  %1569 = vmatpush2.msra.mxu0 0.0
  %1570 = vmatprep.subr.mxu0 0.0
  %1571 = vmatpush2.msra.mxu0 0.0
  %1572 = vmatprep.subr.mxu0 0.0
  %1573 = vmatpush2.msra.mxu0 0.0
  %1574 = vmatprep.subr.mxu0 0.0
  %1575 = vmatpush2.msra.mxu0 0.0
  %1576 = vmatprep.subr.mxu0 0.0
  %1577 = vmatpush2.msra.mxu0 0.0
  %1578 = vmatprep.subr.mxu0 0.0
  %1579 = vmatpush2.msra.mxu0 0.0
  %1580 = vmatprep.subr.mxu0 0.0
  %1581 = vmatpush2.msra.mxu0 0.0
  %1582 = vmatprep.subr.mxu0 0.0
  %1583 = vmatpush2.msra.mxu0 0.0
  %1584 = vmatprep.subr.mxu0 0.0
  %1585 = vmatpush2.msra.mxu0 0.0
  %1586 = vmatprep.subr.mxu0 0.0
  %1587 = vmatpush2.msra.mxu0 0.0
  %1588 = vmatprep.subr.mxu0 0.0
  %1589 = vmatpush2.msra.mxu0 0.0
  %1590 = vmatprep.mubr.f32.mxu0 0.0
  %1591 = vmatmul.mubr.f32.gmra.mxu0 %v1524
  %v1592 = vpop.f32.mrf.mxu0
  %v1593 = vadd.f32 %v86, %v1592
  %v1594 = vpop.f32.mrf.mxu0
  %v1595 = vadd.f32 %v90, %v1594
  %1596 = vdwg.mxu0
  %1597 = vmatprep.subr.mxu0 0.0
  %1598 = vmatpush1.msra.mxu0 0.0
  %1599 = vmatprep.subr.mxu0 0.0
  %1600 = vmatpush1.msra.mxu0 0.0
  %1601 = vmatprep.subr.mxu0 0.0
  %1602 = vmatpush1.msra.mxu0 0.0
  %1603 = vmatprep.subr.mxu0 0.0
  %1604 = vmatpush1.msra.mxu0 0.0
  %1605 = vmatprep.subr.mxu0 %v118
  %1606 = vmatpush1.msra.mxu0 %v115
  %1607 = vmatprep.subr.mxu0 %v75
  %1608 = vmatpush1.msra.mxu0 %v74
  %1609 = vmatprep.subr.mxu0 %v71
  %1610 = vmatpush1.msra.mxu0 %v70
  %1611 = vmatprep.subr.mxu0 %v67
  %1612 = vmatpush1.msra.mxu0 %v66
  %1613 = vmatprep.subr.mxu0 %v63
  %1614 = vmatpush1.msra.mxu0 %v62
  %1615 = vmatprep.subr.mxu0 %v59
  %1616 = vmatpush1.msra.mxu0 %v58
  %1617 = vmatprep.subr.mxu0 %v55
  %1618 = vmatpush1.msra.mxu0 %v54
  %1619 = vmatprep.subr.mxu0 %v51
  %1620 = vmatpush1.msra.mxu0 %v50
  %1621 = vmatprep.subr.mxu0 %v47
  %1622 = vmatpush1.msra.mxu0 %v46
  %1623 = vmatprep.subr.mxu0 %v43
  %1624 = vmatpush1.msra.mxu0 %v42
  %1625 = vmatprep.subr.mxu0 %v39
  %1626 = vmatpush1.msra.mxu0 %v38
  %1627 = vmatprep.subr.mxu0 %v35
  %1628 = vmatpush1.msra.mxu0 %v34
  %1629 = vmatprep.subr.mxu0 0.0
  %1630 = vmatpush2.msra.mxu0 0.0
  %1631 = vmatprep.subr.mxu0 0.0
  %1632 = vmatpush2.msra.mxu0 0.0
  %1633 = vmatprep.subr.mxu0 0.0
  %1634 = vmatpush2.msra.mxu0 0.0
  %1635 = vmatprep.subr.mxu0 0.0
  %1636 = vmatpush2.msra.mxu0 0.0
  %1637 = vmatprep.subr.mxu0 0.0
  %1638 = vmatpush2.msra.mxu0 0.0
  %1639 = vmatprep.subr.mxu0 0.0
  %1640 = vmatpush2.msra.mxu0 0.0
  %1641 = vmatprep.subr.mxu0 0.0
  %1642 = vmatpush2.msra.mxu0 0.0
  %1643 = vmatprep.subr.mxu0 0.0
  %1644 = vmatpush2.msra.mxu0 0.0
  %1645 = vmatprep.subr.mxu0 0.0
  %1646 = vmatpush2.msra.mxu0 0.0
  %1647 = vmatprep.subr.mxu0 0.0
  %1648 = vmatpush2.msra.mxu0 0.0
  %1649 = vmatprep.subr.mxu0 0.0
  %1650 = vmatpush2.msra.mxu0 0.0
  %1651 = vmatprep.subr.mxu0 0.0
  %1652 = vmatpush2.msra.mxu0 0.0
  %1653 = vmatprep.subr.mxu0 0.0
  %1654 = vmatpush2.msra.mxu0 0.0
  %1655 = vmatprep.subr.mxu0 0.0
  %1656 = vmatpush2.msra.mxu0 0.0
  %1657 = vmatprep.subr.mxu0 0.0
  %1658 = vmatpush2.msra.mxu0 0.0
  %1659 = vmatprep.subr.mxu0 0.0
  %1660 = vmatpush2.msra.mxu0 0.0
  %1661 = vmatprep.mubr.f32.mxu0 0.0
  %1662 = vmatmul.mubr.f32.gmra.mxu0 %v1524
  %v1663 = vpop.f32.mrf.mxu0
  %v1664 = vadd.f32 %v94, %v1663
  %v1665 = vpop.f32.mrf.mxu0
  %v1666 = vadd.f32 %v98, %v1665
  %1667 = vdwg.mxu0
  %v1668 = vmax.f32 %v1446, %v1593
  %v1669 = vmax.f32 %v1448, %v1595
  %v1670 = vmax.f32 %v1517, %v1664
  %v1671 = vmax.f32 %v1519, %v1666
  %v1672 = vmax.f32 %v1668, 0.0
  %v1673 = vmax.f32 %v1669, 0.0
  %v1674 = vmax.f32 %v1670, 0.0
  %v1675 = vmax.f32 %v1671, 0.0
  %1679 = vrot.lane.b32.xlu0 %v1673, 32
  %v1680 = vpop.permute.xlu0 %1679
  %1681 = vrot.lane.b32.xlu0 %v1674, 32
  %v1682 = vpop.permute.xlu0 %1681
  %1683 = vrot.lane.b32.xlu0 %v1675, 32
  %v1684 = vpop.permute.xlu0 %1683
  %v1685 = vsel %vm426, %v1680, %v1682
  %v1686 = vsel %vm426, %v1682, %v1684
  %v1689 = vmax.f32 %v1672, %v1685
  %v1690 = vmax.f32 %v1673, %v1686
  %s1691 = scalar_lea.vmem %s3, 672
  %v1692 = vld [vmem:[%s1691] sm:$0xff]
  %v1693 = vld [vmem:[%s1691 + $0x8] sm:$0xff]
  %v1694 = vld [vmem:[%s1691 + $0x10] sm:$0xff]
  %v1695 = vld [vmem:[%s1691 + $0x18] sm:$0xff]
  %v1696 = vld [vmem:[%s1691 + $0x20] sm:$0xff]
  %v1697 = vld [vmem:[%s1691 + $0x28] sm:$0xff]
  %v1698 = vld [vmem:[%s1691 + $0x30] sm:$0xff]
  %v1699 = vld [vmem:[%s1691 + $0x38] sm:$0xff]
  %v1700 = vld [vmem:[%s1691 + $0x40] sm:$0xff]
  %v1701 = vld [vmem:[%s1691 + $0x48] sm:$0xff]
  %v1702 = vld [vmem:[%s1691 + $0x50] sm:$0xff]
  %v1703 = vld [vmem:[%s1691 + $0x58] sm:$0xff]
  %v1704 = vld [vmem:[%s1691 + $0x60] sm:$0xff]
  %v1705 = vld [vmem:[%s1691 + $0x68] sm:$0xff]
  %v1706 = vld [vmem:[%s1691 + $0x70] sm:$0xff]
  %v1707 = vld [vmem:[%s1691 + $0x78] sm:$0xff]
  %v1708 = vld [vmem:[%s1691 + $0x80] sm:$0xff]
  %v1709 = vld [vmem:[%s1691 + $0x88] sm:$0xff]
  %v1710 = vld [vmem:[%s1691 + $0x90] sm:$0xff]
  %v1711 = vld [vmem:[%s1691 + $0x98] sm:$0xff]
  %v1712 = vld [vmem:[%s1691 + $0xa0] sm:$0xff]
  %v1713 = vld [vmem:[%s1691 + $0xa8] sm:$0xff]
  %v1714 = vld [vmem:[%s1691 + $0xb0] sm:$0xff]
  %v1715 = vld [vmem:[%s1691 + $0xb8] sm:$0xff]
  %v1716 = vld [vmem:[%s1691 + $0xc0] sm:$0xff]
  %v1717 = vld [vmem:[%s1691 + $0xc8] sm:$0xff]
  %v1718 = vld [vmem:[%s1691 + $0xd0] sm:$0xff]
  %v1719 = vld [vmem:[%s1691 + $0xd8] sm:$0xff]
  %v1721 = vsel %vm807, %v1690, 0
  %1723 = vmatprep.subr.mxu0 0.0
  %1724 = vmatpush1.msra.mxu0 %v1707
  %1725 = vmatprep.subr.mxu0 0.0
  %1726 = vmatpush1.msra.mxu0 %v1706
  %1727 = vmatprep.subr.mxu0 0.0
  %1728 = vmatpush1.msra.mxu0 %v1705
  %1729 = vmatprep.subr.mxu0 0.0
  %1730 = vmatpush1.msra.mxu0 %v1704
  %1731 = vmatprep.subr.mxu0 0.0
  %1732 = vmatpush1.msra.mxu0 %v1703
  %1733 = vmatprep.subr.mxu0 0.0
  %1734 = vmatpush1.msra.mxu0 %v1702
  %1735 = vmatprep.subr.mxu0 0.0
  %1736 = vmatpush1.msra.mxu0 %v1701
  %1737 = vmatprep.subr.mxu0 0.0
  %1738 = vmatpush1.msra.mxu0 %v1700
  %1739 = vmatprep.subr.mxu0 0.0
  %1740 = vmatpush1.msra.mxu0 %v1699
  %1741 = vmatprep.subr.mxu0 0.0
  %1742 = vmatpush1.msra.mxu0 %v1698
  %1743 = vmatprep.subr.mxu0 0.0
  %1744 = vmatpush1.msra.mxu0 %v1697
  %1745 = vmatprep.subr.mxu0 0.0
  %1746 = vmatpush1.msra.mxu0 %v1696
  %1747 = vmatprep.subr.mxu0 0.0
  %1748 = vmatpush1.msra.mxu0 %v1695
  %1749 = vmatprep.subr.mxu0 0.0
  %1750 = vmatpush1.msra.mxu0 %v1694
  %1751 = vmatprep.subr.mxu0 0.0
  %1752 = vmatpush1.msra.mxu0 %v1693
  %1753 = vmatprep.subr.mxu0 0.0
  %1754 = vmatpush1.msra.mxu0 %v1692
  %1755 = vmatprep.subr.mxu0 0.0
  %1756 = vmatpush2.msra.mxu0 0.0
  %1757 = vmatprep.subr.mxu0 0.0
  %1758 = vmatpush2.msra.mxu0 0.0
  %1759 = vmatprep.subr.mxu0 0.0
  %1760 = vmatpush2.msra.mxu0 0.0
  %1761 = vmatprep.subr.mxu0 0.0
  %1762 = vmatpush2.msra.mxu0 0.0
  %1763 = vmatprep.subr.mxu0 0.0
  %1764 = vmatpush2.msra.mxu0 %v1719
  %1765 = vmatprep.subr.mxu0 0.0
  %1766 = vmatpush2.msra.mxu0 %v1718
  %1767 = vmatprep.subr.mxu0 0.0
  %1768 = vmatpush2.msra.mxu0 %v1717
  %1769 = vmatprep.subr.mxu0 0.0
  %1770 = vmatpush2.msra.mxu0 %v1716
  %1771 = vmatprep.subr.mxu0 0.0
  %1772 = vmatpush2.msra.mxu0 %v1715
  %1773 = vmatprep.subr.mxu0 0.0
  %1774 = vmatpush2.msra.mxu0 %v1714
  %1775 = vmatprep.subr.mxu0 0.0
  %1776 = vmatpush2.msra.mxu0 %v1713
  %1777 = vmatprep.subr.mxu0 0.0
  %1778 = vmatpush2.msra.mxu0 %v1712
  %1779 = vmatprep.subr.mxu0 0.0
  %1780 = vmatpush2.msra.mxu0 %v1711
  %1781 = vmatprep.subr.mxu0 0.0
  %1782 = vmatpush2.msra.mxu0 %v1710
  %1783 = vmatprep.subr.mxu0 0.0
  %1784 = vmatpush2.msra.mxu0 %v1709
  %1785 = vmatprep.subr.mxu0 0.0
  %1786 = vmatpush2.msra.mxu0 %v1708
  %1787 = vmatprep.mubr.f32.mxu0 %v1721
  %1788 = vmatmul.mubr.f32.gmra.mxu0 %v1689
  %v1789 = vpop.f32.mrf.mxu0
  %v1790 = vadd.f32 0.0, %v1789
  %v1791 = vpop.f32.mrf.mxu0
  %1792 = vdwg.mxu0
  %v1793 = vadd.f32 %v1373, %v1790
  %s1794 = scalar_lea.vmem %s0, 64
  %v1795 = vld [vmem:[%s1794] sm:$0xff]
  %v1797 = vsel %vm103, %v1795, 0
  %1799 = vmatprep.subr.mxu0 0.0
  %1800 = vmatpush1.msra.mxu0 0.0
  %1801 = vmatprep.subr.mxu0 0.0
  %1802 = vmatpush1.msra.mxu0 0.0
  %1803 = vmatprep.subr.mxu0 0.0
  %1804 = vmatpush1.msra.mxu0 0.0
  %1805 = vmatprep.subr.mxu0 0.0
  %1806 = vmatpush1.msra.mxu0 0.0
  %1807 = vmatprep.subr.mxu0 %v112
  %1808 = vmatpush1.msra.mxu0 %v109
  %1809 = vmatprep.subr.mxu0 %v73
  %1810 = vmatpush1.msra.mxu0 %v72
  %1811 = vmatprep.subr.mxu0 %v69
  %1812 = vmatpush1.msra.mxu0 %v68
  %1813 = vmatprep.subr.mxu0 %v65
  %1814 = vmatpush1.msra.mxu0 %v64
  %1815 = vmatprep.subr.mxu0 %v61
  %1816 = vmatpush1.msra.mxu0 %v60
  %1817 = vmatprep.subr.mxu0 %v57
  %1818 = vmatpush1.msra.mxu0 %v56
  %1819 = vmatprep.subr.mxu0 %v53
  %1820 = vmatpush1.msra.mxu0 %v52
  %1821 = vmatprep.subr.mxu0 %v49
  %1822 = vmatpush1.msra.mxu0 %v48
  %1823 = vmatprep.subr.mxu0 %v45
  %1824 = vmatpush1.msra.mxu0 %v44
  %1825 = vmatprep.subr.mxu0 %v41
  %1826 = vmatpush1.msra.mxu0 %v40
  %1827 = vmatprep.subr.mxu0 %v37
  %1828 = vmatpush1.msra.mxu0 %v36
  %1829 = vmatprep.subr.mxu0 %v33
  %1830 = vmatpush1.msra.mxu0 %v32
  %1831 = vmatprep.subr.mxu0 0.0
  %1832 = vmatpush2.msra.mxu0 0.0
  %1833 = vmatprep.subr.mxu0 0.0
  %1834 = vmatpush2.msra.mxu0 0.0
  %1835 = vmatprep.subr.mxu0 0.0
  %1836 = vmatpush2.msra.mxu0 0.0
  %1837 = vmatprep.subr.mxu0 0.0
  %1838 = vmatpush2.msra.mxu0 0.0
  %1839 = vmatprep.subr.mxu0 0.0
  %1840 = vmatpush2.msra.mxu0 0.0
  %1841 = vmatprep.subr.mxu0 0.0
  %1842 = vmatpush2.msra.mxu0 0.0
  %1843 = vmatprep.subr.mxu0 0.0
  %1844 = vmatpush2.msra.mxu0 0.0
  %1845 = vmatprep.subr.mxu0 0.0
  %1846 = vmatpush2.msra.mxu0 0.0
  %1847 = vmatprep.subr.mxu0 0.0
  %1848 = vmatpush2.msra.mxu0 0.0
  %1849 = vmatprep.subr.mxu0 0.0
  %1850 = vmatpush2.msra.mxu0 0.0
  %1851 = vmatprep.subr.mxu0 0.0
  %1852 = vmatpush2.msra.mxu0 0.0
  %1853 = vmatprep.subr.mxu0 0.0
  %1854 = vmatpush2.msra.mxu0 0.0
  %1855 = vmatprep.subr.mxu0 0.0
  %1856 = vmatpush2.msra.mxu0 0.0
  %1857 = vmatprep.subr.mxu0 0.0
  %1858 = vmatpush2.msra.mxu0 0.0
  %1859 = vmatprep.subr.mxu0 0.0
  %1860 = vmatpush2.msra.mxu0 0.0
  %1861 = vmatprep.subr.mxu0 0.0
  %1862 = vmatpush2.msra.mxu0 0.0
  %1863 = vmatprep.mubr.f32.mxu0 0.0
  %1864 = vmatmul.mubr.f32.gmra.mxu0 %v1797
  %v1865 = vpop.f32.mrf.mxu0
  %v1866 = vadd.f32 %v86, %v1865
  %v1867 = vpop.f32.mrf.mxu0
  %v1868 = vadd.f32 %v90, %v1867
  %1869 = vdwg.mxu0
  %1870 = vmatprep.subr.mxu0 0.0
  %1871 = vmatpush1.msra.mxu0 0.0
  %1872 = vmatprep.subr.mxu0 0.0
  %1873 = vmatpush1.msra.mxu0 0.0
  %1874 = vmatprep.subr.mxu0 0.0
  %1875 = vmatpush1.msra.mxu0 0.0
  %1876 = vmatprep.subr.mxu0 0.0
  %1877 = vmatpush1.msra.mxu0 0.0
  %1878 = vmatprep.subr.mxu0 %v118
  %1879 = vmatpush1.msra.mxu0 %v115
  %1880 = vmatprep.subr.mxu0 %v75
  %1881 = vmatpush1.msra.mxu0 %v74
  %1882 = vmatprep.subr.mxu0 %v71
  %1883 = vmatpush1.msra.mxu0 %v70
  %1884 = vmatprep.subr.mxu0 %v67
  %1885 = vmatpush1.msra.mxu0 %v66
  %1886 = vmatprep.subr.mxu0 %v63
  %1887 = vmatpush1.msra.mxu0 %v62
  %1888 = vmatprep.subr.mxu0 %v59
  %1889 = vmatpush1.msra.mxu0 %v58
  %1890 = vmatprep.subr.mxu0 %v55
  %1891 = vmatpush1.msra.mxu0 %v54
  %1892 = vmatprep.subr.mxu0 %v51
  %1893 = vmatpush1.msra.mxu0 %v50
  %1894 = vmatprep.subr.mxu0 %v47
  %1895 = vmatpush1.msra.mxu0 %v46
  %1896 = vmatprep.subr.mxu0 %v43
  %1897 = vmatpush1.msra.mxu0 %v42
  %1898 = vmatprep.subr.mxu0 %v39
  %1899 = vmatpush1.msra.mxu0 %v38
  %1900 = vmatprep.subr.mxu0 %v35
  %1901 = vmatpush1.msra.mxu0 %v34
  %1902 = vmatprep.subr.mxu0 0.0
  %1903 = vmatpush2.msra.mxu0 0.0
  %1904 = vmatprep.subr.mxu0 0.0
  %1905 = vmatpush2.msra.mxu0 0.0
  %1906 = vmatprep.subr.mxu0 0.0
  %1907 = vmatpush2.msra.mxu0 0.0
  %1908 = vmatprep.subr.mxu0 0.0
  %1909 = vmatpush2.msra.mxu0 0.0
  %1910 = vmatprep.subr.mxu0 0.0
  %1911 = vmatpush2.msra.mxu0 0.0
  %1912 = vmatprep.subr.mxu0 0.0
  %1913 = vmatpush2.msra.mxu0 0.0
  %1914 = vmatprep.subr.mxu0 0.0
  %1915 = vmatpush2.msra.mxu0 0.0
  %1916 = vmatprep.subr.mxu0 0.0
  %1917 = vmatpush2.msra.mxu0 0.0
  %1918 = vmatprep.subr.mxu0 0.0
  %1919 = vmatpush2.msra.mxu0 0.0
  %1920 = vmatprep.subr.mxu0 0.0
  %1921 = vmatpush2.msra.mxu0 0.0
  %1922 = vmatprep.subr.mxu0 0.0
  %1923 = vmatpush2.msra.mxu0 0.0
  %1924 = vmatprep.subr.mxu0 0.0
  %1925 = vmatpush2.msra.mxu0 0.0
  %1926 = vmatprep.subr.mxu0 0.0
  %1927 = vmatpush2.msra.mxu0 0.0
  %1928 = vmatprep.subr.mxu0 0.0
  %1929 = vmatpush2.msra.mxu0 0.0
  %1930 = vmatprep.subr.mxu0 0.0
  %1931 = vmatpush2.msra.mxu0 0.0
  %1932 = vmatprep.subr.mxu0 0.0
  %1933 = vmatpush2.msra.mxu0 0.0
  %1934 = vmatprep.mubr.f32.mxu0 0.0
  %1935 = vmatmul.mubr.f32.gmra.mxu0 %v1797
  %v1936 = vpop.f32.mrf.mxu0
  %v1937 = vadd.f32 %v94, %v1936
  %v1938 = vpop.f32.mrf.mxu0
  %v1939 = vadd.f32 %v98, %v1938
  %1940 = vdwg.mxu0
  %s1941 = scalar_lea.vmem %s0, 72
  %v1942 = vld [vmem:[%s1941] sm:$0xff]
  %v1944 = vsel %vm103, %v1942, 0
  %1946 = vmatprep.subr.mxu0 0.0
  %1947 = vmatpush1.msra.mxu0 0.0
  %1948 = vmatprep.subr.mxu0 0.0
  %1949 = vmatpush1.msra.mxu0 0.0
  %1950 = vmatprep.subr.mxu0 0.0
  %1951 = vmatpush1.msra.mxu0 0.0
  %1952 = vmatprep.subr.mxu0 0.0
  %1953 = vmatpush1.msra.mxu0 0.0
  %1954 = vmatprep.subr.mxu0 %v112
  %1955 = vmatpush1.msra.mxu0 %v109
  %1956 = vmatprep.subr.mxu0 %v73
  %1957 = vmatpush1.msra.mxu0 %v72
  %1958 = vmatprep.subr.mxu0 %v69
  %1959 = vmatpush1.msra.mxu0 %v68
  %1960 = vmatprep.subr.mxu0 %v65
  %1961 = vmatpush1.msra.mxu0 %v64
  %1962 = vmatprep.subr.mxu0 %v61
  %1963 = vmatpush1.msra.mxu0 %v60
  %1964 = vmatprep.subr.mxu0 %v57
  %1965 = vmatpush1.msra.mxu0 %v56
  %1966 = vmatprep.subr.mxu0 %v53
  %1967 = vmatpush1.msra.mxu0 %v52
  %1968 = vmatprep.subr.mxu0 %v49
  %1969 = vmatpush1.msra.mxu0 %v48
  %1970 = vmatprep.subr.mxu0 %v45
  %1971 = vmatpush1.msra.mxu0 %v44
  %1972 = vmatprep.subr.mxu0 %v41
  %1973 = vmatpush1.msra.mxu0 %v40
  %1974 = vmatprep.subr.mxu0 %v37
  %1975 = vmatpush1.msra.mxu0 %v36
  %1976 = vmatprep.subr.mxu0 %v33
  %1977 = vmatpush1.msra.mxu0 %v32
  %1978 = vmatprep.subr.mxu0 0.0
  %1979 = vmatpush2.msra.mxu0 0.0
  %1980 = vmatprep.subr.mxu0 0.0
  %1981 = vmatpush2.msra.mxu0 0.0
  %1982 = vmatprep.subr.mxu0 0.0
  %1983 = vmatpush2.msra.mxu0 0.0
  %1984 = vmatprep.subr.mxu0 0.0
  %1985 = vmatpush2.msra.mxu0 0.0
  %1986 = vmatprep.subr.mxu0 0.0
  %1987 = vmatpush2.msra.mxu0 0.0
  %1988 = vmatprep.subr.mxu0 0.0
  %1989 = vmatpush2.msra.mxu0 0.0
  %1990 = vmatprep.subr.mxu0 0.0
  %1991 = vmatpush2.msra.mxu0 0.0
  %1992 = vmatprep.subr.mxu0 0.0
  %1993 = vmatpush2.msra.mxu0 0.0
  %1994 = vmatprep.subr.mxu0 0.0
  %1995 = vmatpush2.msra.mxu0 0.0
  %1996 = vmatprep.subr.mxu0 0.0
  %1997 = vmatpush2.msra.mxu0 0.0
  %1998 = vmatprep.subr.mxu0 0.0
  %1999 = vmatpush2.msra.mxu0 0.0
  %2000 = vmatprep.subr.mxu0 0.0
  %2001 = vmatpush2.msra.mxu0 0.0
  %2002 = vmatprep.subr.mxu0 0.0
  %2003 = vmatpush2.msra.mxu0 0.0
  %2004 = vmatprep.subr.mxu0 0.0
  %2005 = vmatpush2.msra.mxu0 0.0
  %2006 = vmatprep.subr.mxu0 0.0
  %2007 = vmatpush2.msra.mxu0 0.0
  %2008 = vmatprep.subr.mxu0 0.0
  %2009 = vmatpush2.msra.mxu0 0.0
  %2010 = vmatprep.mubr.f32.mxu0 0.0
  %2011 = vmatmul.mubr.f32.gmra.mxu0 %v1944
  %v2012 = vpop.f32.mrf.mxu0
  %v2013 = vadd.f32 %v86, %v2012
  %v2014 = vpop.f32.mrf.mxu0
  %v2015 = vadd.f32 %v90, %v2014
  %2016 = vdwg.mxu0
  %2017 = vmatprep.subr.mxu0 0.0
  %2018 = vmatpush1.msra.mxu0 0.0
  %2019 = vmatprep.subr.mxu0 0.0
  %2020 = vmatpush1.msra.mxu0 0.0
  %2021 = vmatprep.subr.mxu0 0.0
  %2022 = vmatpush1.msra.mxu0 0.0
  %2023 = vmatprep.subr.mxu0 0.0
  %2024 = vmatpush1.msra.mxu0 0.0
  %2025 = vmatprep.subr.mxu0 %v118
  %2026 = vmatpush1.msra.mxu0 %v115
  %2027 = vmatprep.subr.mxu0 %v75
  %2028 = vmatpush1.msra.mxu0 %v74
  %2029 = vmatprep.subr.mxu0 %v71
  %2030 = vmatpush1.msra.mxu0 %v70
  %2031 = vmatprep.subr.mxu0 %v67
  %2032 = vmatpush1.msra.mxu0 %v66
  %2033 = vmatprep.subr.mxu0 %v63
  %2034 = vmatpush1.msra.mxu0 %v62
  %2035 = vmatprep.subr.mxu0 %v59
  %2036 = vmatpush1.msra.mxu0 %v58
  %2037 = vmatprep.subr.mxu0 %v55
  %2038 = vmatpush1.msra.mxu0 %v54
  %2039 = vmatprep.subr.mxu0 %v51
  %2040 = vmatpush1.msra.mxu0 %v50
  %2041 = vmatprep.subr.mxu0 %v47
  %2042 = vmatpush1.msra.mxu0 %v46
  %2043 = vmatprep.subr.mxu0 %v43
  %2044 = vmatpush1.msra.mxu0 %v42
  %2045 = vmatprep.subr.mxu0 %v39
  %2046 = vmatpush1.msra.mxu0 %v38
  %2047 = vmatprep.subr.mxu0 %v35
  %2048 = vmatpush1.msra.mxu0 %v34
  %2049 = vmatprep.subr.mxu0 0.0
  %2050 = vmatpush2.msra.mxu0 0.0
  %2051 = vmatprep.subr.mxu0 0.0
  %2052 = vmatpush2.msra.mxu0 0.0
  %2053 = vmatprep.subr.mxu0 0.0
  %2054 = vmatpush2.msra.mxu0 0.0
  %2055 = vmatprep.subr.mxu0 0.0
  %2056 = vmatpush2.msra.mxu0 0.0
  %2057 = vmatprep.subr.mxu0 0.0
  %2058 = vmatpush2.msra.mxu0 0.0
  %2059 = vmatprep.subr.mxu0 0.0
  %2060 = vmatpush2.msra.mxu0 0.0
  %2061 = vmatprep.subr.mxu0 0.0
  %2062 = vmatpush2.msra.mxu0 0.0
  %2063 = vmatprep.subr.mxu0 0.0
  %2064 = vmatpush2.msra.mxu0 0.0
  %2065 = vmatprep.subr.mxu0 0.0
  %2066 = vmatpush2.msra.mxu0 0.0
  %2067 = vmatprep.subr.mxu0 0.0
  %2068 = vmatpush2.msra.mxu0 0.0
  %2069 = vmatprep.subr.mxu0 0.0
  %2070 = vmatpush2.msra.mxu0 0.0
  %2071 = vmatprep.subr.mxu0 0.0
  %2072 = vmatpush2.msra.mxu0 0.0
  %2073 = vmatprep.subr.mxu0 0.0
  %2074 = vmatpush2.msra.mxu0 0.0
  %2075 = vmatprep.subr.mxu0 0.0
  %2076 = vmatpush2.msra.mxu0 0.0
  %2077 = vmatprep.subr.mxu0 0.0
  %2078 = vmatpush2.msra.mxu0 0.0
  %2079 = vmatprep.subr.mxu0 0.0
  %2080 = vmatpush2.msra.mxu0 0.0
  %2081 = vmatprep.mubr.f32.mxu0 0.0
  %2082 = vmatmul.mubr.f32.gmra.mxu0 %v1944
  %v2083 = vpop.f32.mrf.mxu0
  %v2084 = vadd.f32 %v94, %v2083
  %v2085 = vpop.f32.mrf.mxu0
  %v2086 = vadd.f32 %v98, %v2085
  %2087 = vdwg.mxu0
  %v2088 = vmax.f32 %v1866, %v2013
  %v2089 = vmax.f32 %v1868, %v2015
  %v2090 = vmax.f32 %v1937, %v2084
  %v2091 = vmax.f32 %v1939, %v2086
  %v2092 = vmax.f32 %v2088, 0.0
  %v2093 = vmax.f32 %v2089, 0.0
  %v2094 = vmax.f32 %v2090, 0.0
  %v2095 = vmax.f32 %v2091, 0.0
  %2099 = vrot.lane.b32.xlu0 %v2093, 32
  %v2100 = vpop.permute.xlu0 %2099
  %2101 = vrot.lane.b32.xlu0 %v2094, 32
  %v2102 = vpop.permute.xlu0 %2101
  %2103 = vrot.lane.b32.xlu0 %v2095, 32
  %v2104 = vpop.permute.xlu0 %2103
  %v2105 = vsel %vm426, %v2100, %v2102
  %v2106 = vsel %vm426, %v2102, %v2104
  %v2109 = vmax.f32 %v2092, %v2105
  %v2110 = vmax.f32 %v2093, %v2106
  %s2111 = scalar_lea.vmem %s3, 896
  %v2112 = vld [vmem:[%s2111] sm:$0xff]
  %v2113 = vld [vmem:[%s2111 + $0x8] sm:$0xff]
  %v2114 = vld [vmem:[%s2111 + $0x10] sm:$0xff]
  %v2115 = vld [vmem:[%s2111 + $0x18] sm:$0xff]
  %v2116 = vld [vmem:[%s2111 + $0x20] sm:$0xff]
  %v2117 = vld [vmem:[%s2111 + $0x28] sm:$0xff]
  %v2118 = vld [vmem:[%s2111 + $0x30] sm:$0xff]
  %v2119 = vld [vmem:[%s2111 + $0x38] sm:$0xff]
  %v2120 = vld [vmem:[%s2111 + $0x40] sm:$0xff]
  %v2121 = vld [vmem:[%s2111 + $0x48] sm:$0xff]
  %v2122 = vld [vmem:[%s2111 + $0x50] sm:$0xff]
  %v2123 = vld [vmem:[%s2111 + $0x58] sm:$0xff]
  %v2124 = vld [vmem:[%s2111 + $0x60] sm:$0xff]
  %v2125 = vld [vmem:[%s2111 + $0x68] sm:$0xff]
  %v2126 = vld [vmem:[%s2111 + $0x70] sm:$0xff]
  %v2127 = vld [vmem:[%s2111 + $0x78] sm:$0xff]
  %v2128 = vld [vmem:[%s2111 + $0x80] sm:$0xff]
  %v2129 = vld [vmem:[%s2111 + $0x88] sm:$0xff]
  %v2130 = vld [vmem:[%s2111 + $0x90] sm:$0xff]
  %v2131 = vld [vmem:[%s2111 + $0x98] sm:$0xff]
  %v2132 = vld [vmem:[%s2111 + $0xa0] sm:$0xff]
  %v2133 = vld [vmem:[%s2111 + $0xa8] sm:$0xff]
  %v2134 = vld [vmem:[%s2111 + $0xb0] sm:$0xff]
  %v2135 = vld [vmem:[%s2111 + $0xb8] sm:$0xff]
  %v2136 = vld [vmem:[%s2111 + $0xc0] sm:$0xff]
  %v2137 = vld [vmem:[%s2111 + $0xc8] sm:$0xff]
  %v2138 = vld [vmem:[%s2111 + $0xd0] sm:$0xff]
  %v2139 = vld [vmem:[%s2111 + $0xd8] sm:$0xff]
  %v2141 = vsel %vm807, %v2110, 0
  %2143 = vmatprep.subr.mxu0 0.0
  %2144 = vmatpush1.msra.mxu0 %v2127
  %2145 = vmatprep.subr.mxu0 0.0
  %2146 = vmatpush1.msra.mxu0 %v2126
  %2147 = vmatprep.subr.mxu0 0.0
  %2148 = vmatpush1.msra.mxu0 %v2125
  %2149 = vmatprep.subr.mxu0 0.0
  %2150 = vmatpush1.msra.mxu0 %v2124
  %2151 = vmatprep.subr.mxu0 0.0
  %2152 = vmatpush1.msra.mxu0 %v2123
  %2153 = vmatprep.subr.mxu0 0.0
  %2154 = vmatpush1.msra.mxu0 %v2122
  %2155 = vmatprep.subr.mxu0 0.0
  %2156 = vmatpush1.msra.mxu0 %v2121
  %2157 = vmatprep.subr.mxu0 0.0
  %2158 = vmatpush1.msra.mxu0 %v2120
  %2159 = vmatprep.subr.mxu0 0.0
  %2160 = vmatpush1.msra.mxu0 %v2119
  %2161 = vmatprep.subr.mxu0 0.0
  %2162 = vmatpush1.msra.mxu0 %v2118
  %2163 = vmatprep.subr.mxu0 0.0
  %2164 = vmatpush1.msra.mxu0 %v2117
  %2165 = vmatprep.subr.mxu0 0.0
  %2166 = vmatpush1.msra.mxu0 %v2116
  %2167 = vmatprep.subr.mxu0 0.0
  %2168 = vmatpush1.msra.mxu0 %v2115
  %2169 = vmatprep.subr.mxu0 0.0
  %2170 = vmatpush1.msra.mxu0 %v2114
  %2171 = vmatprep.subr.mxu0 0.0
  %2172 = vmatpush1.msra.mxu0 %v2113
  %2173 = vmatprep.subr.mxu0 0.0
  %2174 = vmatpush1.msra.mxu0 %v2112
  %2175 = vmatprep.subr.mxu0 0.0
  %2176 = vmatpush2.msra.mxu0 0.0
  %2177 = vmatprep.subr.mxu0 0.0
  %2178 = vmatpush2.msra.mxu0 0.0
  %2179 = vmatprep.subr.mxu0 0.0
  %2180 = vmatpush2.msra.mxu0 0.0
  %2181 = vmatprep.subr.mxu0 0.0
  %2182 = vmatpush2.msra.mxu0 0.0
  %2183 = vmatprep.subr.mxu0 0.0
  %2184 = vmatpush2.msra.mxu0 %v2139
  %2185 = vmatprep.subr.mxu0 0.0
  %2186 = vmatpush2.msra.mxu0 %v2138
  %2187 = vmatprep.subr.mxu0 0.0
  %2188 = vmatpush2.msra.mxu0 %v2137
  %2189 = vmatprep.subr.mxu0 0.0
  %2190 = vmatpush2.msra.mxu0 %v2136
  %2191 = vmatprep.subr.mxu0 0.0
  %2192 = vmatpush2.msra.mxu0 %v2135
  %2193 = vmatprep.subr.mxu0 0.0
  %2194 = vmatpush2.msra.mxu0 %v2134
  %2195 = vmatprep.subr.mxu0 0.0
  %2196 = vmatpush2.msra.mxu0 %v2133
  %2197 = vmatprep.subr.mxu0 0.0
  %2198 = vmatpush2.msra.mxu0 %v2132
  %2199 = vmatprep.subr.mxu0 0.0
  %2200 = vmatpush2.msra.mxu0 %v2131
  %2201 = vmatprep.subr.mxu0 0.0
  %2202 = vmatpush2.msra.mxu0 %v2130
  %2203 = vmatprep.subr.mxu0 0.0
  %2204 = vmatpush2.msra.mxu0 %v2129
  %2205 = vmatprep.subr.mxu0 0.0
  %2206 = vmatpush2.msra.mxu0 %v2128
  %2207 = vmatprep.mubr.f32.mxu0 %v2141
  %2208 = vmatmul.mubr.f32.gmra.mxu0 %v2109
  %v2209 = vpop.f32.mrf.mxu0
  %v2210 = vadd.f32 0.0, %v2209
  %v2211 = vpop.f32.mrf.mxu0
  %2212 = vdwg.mxu0
  %v2213 = vadd.f32 %v1793, %v2210
  %s2214 = scalar_lea.vmem %s0, 80
  %v2215 = vld [vmem:[%s2214] sm:$0xff]
  %v2217 = vsel %vm103, %v2215, 0
  %2219 = vmatprep.subr.mxu0 0.0
  %2220 = vmatpush1.msra.mxu0 0.0
  %2221 = vmatprep.subr.mxu0 0.0
  %2222 = vmatpush1.msra.mxu0 0.0
  %2223 = vmatprep.subr.mxu0 0.0
  %2224 = vmatpush1.msra.mxu0 0.0
  %2225 = vmatprep.subr.mxu0 0.0
  %2226 = vmatpush1.msra.mxu0 0.0
  %2227 = vmatprep.subr.mxu0 %v112
  %2228 = vmatpush1.msra.mxu0 %v109
  %2229 = vmatprep.subr.mxu0 %v73
  %2230 = vmatpush1.msra.mxu0 %v72
  %2231 = vmatprep.subr.mxu0 %v69
  %2232 = vmatpush1.msra.mxu0 %v68
  %2233 = vmatprep.subr.mxu0 %v65
  %2234 = vmatpush1.msra.mxu0 %v64
  %2235 = vmatprep.subr.mxu0 %v61
  %2236 = vmatpush1.msra.mxu0 %v60
  %2237 = vmatprep.subr.mxu0 %v57
  %2238 = vmatpush1.msra.mxu0 %v56
  %2239 = vmatprep.subr.mxu0 %v53
  %2240 = vmatpush1.msra.mxu0 %v52
  %2241 = vmatprep.subr.mxu0 %v49
  %2242 = vmatpush1.msra.mxu0 %v48
  %2243 = vmatprep.subr.mxu0 %v45
  %2244 = vmatpush1.msra.mxu0 %v44
  %2245 = vmatprep.subr.mxu0 %v41
  %2246 = vmatpush1.msra.mxu0 %v40
  %2247 = vmatprep.subr.mxu0 %v37
  %2248 = vmatpush1.msra.mxu0 %v36
  %2249 = vmatprep.subr.mxu0 %v33
  %2250 = vmatpush1.msra.mxu0 %v32
  %2251 = vmatprep.subr.mxu0 0.0
  %2252 = vmatpush2.msra.mxu0 0.0
  %2253 = vmatprep.subr.mxu0 0.0
  %2254 = vmatpush2.msra.mxu0 0.0
  %2255 = vmatprep.subr.mxu0 0.0
  %2256 = vmatpush2.msra.mxu0 0.0
  %2257 = vmatprep.subr.mxu0 0.0
  %2258 = vmatpush2.msra.mxu0 0.0
  %2259 = vmatprep.subr.mxu0 0.0
  %2260 = vmatpush2.msra.mxu0 0.0
  %2261 = vmatprep.subr.mxu0 0.0
  %2262 = vmatpush2.msra.mxu0 0.0
  %2263 = vmatprep.subr.mxu0 0.0
  %2264 = vmatpush2.msra.mxu0 0.0
  %2265 = vmatprep.subr.mxu0 0.0
  %2266 = vmatpush2.msra.mxu0 0.0
  %2267 = vmatprep.subr.mxu0 0.0
  %2268 = vmatpush2.msra.mxu0 0.0
  %2269 = vmatprep.subr.mxu0 0.0
  %2270 = vmatpush2.msra.mxu0 0.0
  %2271 = vmatprep.subr.mxu0 0.0
  %2272 = vmatpush2.msra.mxu0 0.0
  %2273 = vmatprep.subr.mxu0 0.0
  %2274 = vmatpush2.msra.mxu0 0.0
  %2275 = vmatprep.subr.mxu0 0.0
  %2276 = vmatpush2.msra.mxu0 0.0
  %2277 = vmatprep.subr.mxu0 0.0
  %2278 = vmatpush2.msra.mxu0 0.0
  %2279 = vmatprep.subr.mxu0 0.0
  %2280 = vmatpush2.msra.mxu0 0.0
  %2281 = vmatprep.subr.mxu0 0.0
  %2282 = vmatpush2.msra.mxu0 0.0
  %2283 = vmatprep.mubr.f32.mxu0 0.0
  %2284 = vmatmul.mubr.f32.gmra.mxu0 %v2217
  %v2285 = vpop.f32.mrf.mxu0
  %v2286 = vadd.f32 %v86, %v2285
  %v2287 = vpop.f32.mrf.mxu0
  %v2288 = vadd.f32 %v90, %v2287
  %2289 = vdwg.mxu0
  %2290 = vmatprep.subr.mxu0 0.0
  %2291 = vmatpush1.msra.mxu0 0.0
  %2292 = vmatprep.subr.mxu0 0.0
  %2293 = vmatpush1.msra.mxu0 0.0
  %2294 = vmatprep.subr.mxu0 0.0
  %2295 = vmatpush1.msra.mxu0 0.0
  %2296 = vmatprep.subr.mxu0 0.0
  %2297 = vmatpush1.msra.mxu0 0.0
  %2298 = vmatprep.subr.mxu0 %v118
  %2299 = vmatpush1.msra.mxu0 %v115
  %2300 = vmatprep.subr.mxu0 %v75
  %2301 = vmatpush1.msra.mxu0 %v74
  %2302 = vmatprep.subr.mxu0 %v71
  %2303 = vmatpush1.msra.mxu0 %v70
  %2304 = vmatprep.subr.mxu0 %v67
  %2305 = vmatpush1.msra.mxu0 %v66
  %2306 = vmatprep.subr.mxu0 %v63
  %2307 = vmatpush1.msra.mxu0 %v62
  %2308 = vmatprep.subr.mxu0 %v59
  %2309 = vmatpush1.msra.mxu0 %v58
  %2310 = vmatprep.subr.mxu0 %v55
  %2311 = vmatpush1.msra.mxu0 %v54
  %2312 = vmatprep.subr.mxu0 %v51
  %2313 = vmatpush1.msra.mxu0 %v50
  %2314 = vmatprep.subr.mxu0 %v47
  %2315 = vmatpush1.msra.mxu0 %v46
  %2316 = vmatprep.subr.mxu0 %v43
  %2317 = vmatpush1.msra.mxu0 %v42
  %2318 = vmatprep.subr.mxu0 %v39
  %2319 = vmatpush1.msra.mxu0 %v38
  %2320 = vmatprep.subr.mxu0 %v35
  %2321 = vmatpush1.msra.mxu0 %v34
  %2322 = vmatprep.subr.mxu0 0.0
  %2323 = vmatpush2.msra.mxu0 0.0
  %2324 = vmatprep.subr.mxu0 0.0
  %2325 = vmatpush2.msra.mxu0 0.0
  %2326 = vmatprep.subr.mxu0 0.0
  %2327 = vmatpush2.msra.mxu0 0.0
  %2328 = vmatprep.subr.mxu0 0.0
  %2329 = vmatpush2.msra.mxu0 0.0
  %2330 = vmatprep.subr.mxu0 0.0
  %2331 = vmatpush2.msra.mxu0 0.0
  %2332 = vmatprep.subr.mxu0 0.0
  %2333 = vmatpush2.msra.mxu0 0.0
  %2334 = vmatprep.subr.mxu0 0.0
  %2335 = vmatpush2.msra.mxu0 0.0
  %2336 = vmatprep.subr.mxu0 0.0
  %2337 = vmatpush2.msra.mxu0 0.0
  %2338 = vmatprep.subr.mxu0 0.0
  %2339 = vmatpush2.msra.mxu0 0.0
  %2340 = vmatprep.subr.mxu0 0.0
  %2341 = vmatpush2.msra.mxu0 0.0
  %2342 = vmatprep.subr.mxu0 0.0
  %2343 = vmatpush2.msra.mxu0 0.0
  %2344 = vmatprep.subr.mxu0 0.0
  %2345 = vmatpush2.msra.mxu0 0.0
  %2346 = vmatprep.subr.mxu0 0.0
  %2347 = vmatpush2.msra.mxu0 0.0
  %2348 = vmatprep.subr.mxu0 0.0
  %2349 = vmatpush2.msra.mxu0 0.0
  %2350 = vmatprep.subr.mxu0 0.0
  %2351 = vmatpush2.msra.mxu0 0.0
  %2352 = vmatprep.subr.mxu0 0.0
  %2353 = vmatpush2.msra.mxu0 0.0
  %2354 = vmatprep.mubr.f32.mxu0 0.0
  %2355 = vmatmul.mubr.f32.gmra.mxu0 %v2217
  %v2356 = vpop.f32.mrf.mxu0
  %v2357 = vadd.f32 %v94, %v2356
  %v2358 = vpop.f32.mrf.mxu0
  %v2359 = vadd.f32 %v98, %v2358
  %2360 = vdwg.mxu0
  %s2361 = scalar_lea.vmem %s0, 88
  %v2362 = vld [vmem:[%s2361] sm:$0xff]
  %v2364 = vsel %vm103, %v2362, 0
  %2366 = vmatprep.subr.mxu0 0.0
  %2367 = vmatpush1.msra.mxu0 0.0
  %2368 = vmatprep.subr.mxu0 0.0
  %2369 = vmatpush1.msra.mxu0 0.0
  %2370 = vmatprep.subr.mxu0 0.0
  %2371 = vmatpush1.msra.mxu0 0.0
  %2372 = vmatprep.subr.mxu0 0.0
  %2373 = vmatpush1.msra.mxu0 0.0
  %2374 = vmatprep.subr.mxu0 %v112
  %2375 = vmatpush1.msra.mxu0 %v109
  %2376 = vmatprep.subr.mxu0 %v73
  %2377 = vmatpush1.msra.mxu0 %v72
  %2378 = vmatprep.subr.mxu0 %v69
  %2379 = vmatpush1.msra.mxu0 %v68
  %2380 = vmatprep.subr.mxu0 %v65
  %2381 = vmatpush1.msra.mxu0 %v64
  %2382 = vmatprep.subr.mxu0 %v61
  %2383 = vmatpush1.msra.mxu0 %v60
  %2384 = vmatprep.subr.mxu0 %v57
  %2385 = vmatpush1.msra.mxu0 %v56
  %2386 = vmatprep.subr.mxu0 %v53
  %2387 = vmatpush1.msra.mxu0 %v52
  %2388 = vmatprep.subr.mxu0 %v49
  %2389 = vmatpush1.msra.mxu0 %v48
  %2390 = vmatprep.subr.mxu0 %v45
  %2391 = vmatpush1.msra.mxu0 %v44
  %2392 = vmatprep.subr.mxu0 %v41
  %2393 = vmatpush1.msra.mxu0 %v40
  %2394 = vmatprep.subr.mxu0 %v37
  %2395 = vmatpush1.msra.mxu0 %v36
  %2396 = vmatprep.subr.mxu0 %v33
  %2397 = vmatpush1.msra.mxu0 %v32
  %2398 = vmatprep.subr.mxu0 0.0
  %2399 = vmatpush2.msra.mxu0 0.0
  %2400 = vmatprep.subr.mxu0 0.0
  %2401 = vmatpush2.msra.mxu0 0.0
  %2402 = vmatprep.subr.mxu0 0.0
  %2403 = vmatpush2.msra.mxu0 0.0
  %2404 = vmatprep.subr.mxu0 0.0
  %2405 = vmatpush2.msra.mxu0 0.0
  %2406 = vmatprep.subr.mxu0 0.0
  %2407 = vmatpush2.msra.mxu0 0.0
  %2408 = vmatprep.subr.mxu0 0.0
  %2409 = vmatpush2.msra.mxu0 0.0
  %2410 = vmatprep.subr.mxu0 0.0
  %2411 = vmatpush2.msra.mxu0 0.0
  %2412 = vmatprep.subr.mxu0 0.0
  %2413 = vmatpush2.msra.mxu0 0.0
  %2414 = vmatprep.subr.mxu0 0.0
  %2415 = vmatpush2.msra.mxu0 0.0
  %2416 = vmatprep.subr.mxu0 0.0
  %2417 = vmatpush2.msra.mxu0 0.0
  %2418 = vmatprep.subr.mxu0 0.0
  %2419 = vmatpush2.msra.mxu0 0.0
  %2420 = vmatprep.subr.mxu0 0.0
  %2421 = vmatpush2.msra.mxu0 0.0
  %2422 = vmatprep.subr.mxu0 0.0
  %2423 = vmatpush2.msra.mxu0 0.0
  %2424 = vmatprep.subr.mxu0 0.0
  %2425 = vmatpush2.msra.mxu0 0.0
  %2426 = vmatprep.subr.mxu0 0.0
  %2427 = vmatpush2.msra.mxu0 0.0
  %2428 = vmatprep.subr.mxu0 0.0
  %2429 = vmatpush2.msra.mxu0 0.0
  %2430 = vmatprep.mubr.f32.mxu0 0.0
  %2431 = vmatmul.mubr.f32.gmra.mxu0 %v2364
  %v2432 = vpop.f32.mrf.mxu0
  %v2433 = vadd.f32 %v86, %v2432
  %v2434 = vpop.f32.mrf.mxu0
  %v2435 = vadd.f32 %v90, %v2434
  %2436 = vdwg.mxu0
  %2437 = vmatprep.subr.mxu0 0.0
  %2438 = vmatpush1.msra.mxu0 0.0
  %2439 = vmatprep.subr.mxu0 0.0
  %2440 = vmatpush1.msra.mxu0 0.0
  %2441 = vmatprep.subr.mxu0 0.0
  %2442 = vmatpush1.msra.mxu0 0.0
  %2443 = vmatprep.subr.mxu0 0.0
  %2444 = vmatpush1.msra.mxu0 0.0
  %2445 = vmatprep.subr.mxu0 %v118
  %2446 = vmatpush1.msra.mxu0 %v115
  %2447 = vmatprep.subr.mxu0 %v75
  %2448 = vmatpush1.msra.mxu0 %v74
  %2449 = vmatprep.subr.mxu0 %v71
  %2450 = vmatpush1.msra.mxu0 %v70
  %2451 = vmatprep.subr.mxu0 %v67
  %2452 = vmatpush1.msra.mxu0 %v66
  %2453 = vmatprep.subr.mxu0 %v63
  %2454 = vmatpush1.msra.mxu0 %v62
  %2455 = vmatprep.subr.mxu0 %v59
  %2456 = vmatpush1.msra.mxu0 %v58
  %2457 = vmatprep.subr.mxu0 %v55
  %2458 = vmatpush1.msra.mxu0 %v54
  %2459 = vmatprep.subr.mxu0 %v51
  %2460 = vmatpush1.msra.mxu0 %v50
  %2461 = vmatprep.subr.mxu0 %v47
  %2462 = vmatpush1.msra.mxu0 %v46
  %2463 = vmatprep.subr.mxu0 %v43
  %2464 = vmatpush1.msra.mxu0 %v42
  %2465 = vmatprep.subr.mxu0 %v39
  %2466 = vmatpush1.msra.mxu0 %v38
  %2467 = vmatprep.subr.mxu0 %v35
  %2468 = vmatpush1.msra.mxu0 %v34
  %2469 = vmatprep.subr.mxu0 0.0
  %2470 = vmatpush2.msra.mxu0 0.0
  %2471 = vmatprep.subr.mxu0 0.0
  %2472 = vmatpush2.msra.mxu0 0.0
  %2473 = vmatprep.subr.mxu0 0.0
  %2474 = vmatpush2.msra.mxu0 0.0
  %2475 = vmatprep.subr.mxu0 0.0
  %2476 = vmatpush2.msra.mxu0 0.0
  %2477 = vmatprep.subr.mxu0 0.0
  %2478 = vmatpush2.msra.mxu0 0.0
  %2479 = vmatprep.subr.mxu0 0.0
  %2480 = vmatpush2.msra.mxu0 0.0
  %2481 = vmatprep.subr.mxu0 0.0
  %2482 = vmatpush2.msra.mxu0 0.0
  %2483 = vmatprep.subr.mxu0 0.0
  %2484 = vmatpush2.msra.mxu0 0.0
  %2485 = vmatprep.subr.mxu0 0.0
  %2486 = vmatpush2.msra.mxu0 0.0
  %2487 = vmatprep.subr.mxu0 0.0
  %2488 = vmatpush2.msra.mxu0 0.0
  %2489 = vmatprep.subr.mxu0 0.0
  %2490 = vmatpush2.msra.mxu0 0.0
  %2491 = vmatprep.subr.mxu0 0.0
  %2492 = vmatpush2.msra.mxu0 0.0
  %2493 = vmatprep.subr.mxu0 0.0
  %2494 = vmatpush2.msra.mxu0 0.0
  %2495 = vmatprep.subr.mxu0 0.0
  %2496 = vmatpush2.msra.mxu0 0.0
  %2497 = vmatprep.subr.mxu0 0.0
  %2498 = vmatpush2.msra.mxu0 0.0
  %2499 = vmatprep.subr.mxu0 0.0
  %2500 = vmatpush2.msra.mxu0 0.0
  %2501 = vmatprep.mubr.f32.mxu0 0.0
  %2502 = vmatmul.mubr.f32.gmra.mxu0 %v2364
  %v2503 = vpop.f32.mrf.mxu0
  %v2504 = vadd.f32 %v94, %v2503
  %v2505 = vpop.f32.mrf.mxu0
  %v2506 = vadd.f32 %v98, %v2505
  %2507 = vdwg.mxu0
  %v2508 = vmax.f32 %v2286, %v2433
  %v2509 = vmax.f32 %v2288, %v2435
  %v2510 = vmax.f32 %v2357, %v2504
  %v2511 = vmax.f32 %v2359, %v2506
  %v2512 = vmax.f32 %v2508, 0.0
  %v2513 = vmax.f32 %v2509, 0.0
  %v2514 = vmax.f32 %v2510, 0.0
  %v2515 = vmax.f32 %v2511, 0.0
  %2519 = vrot.lane.b32.xlu0 %v2513, 32
  %v2520 = vpop.permute.xlu0 %2519
  %2521 = vrot.lane.b32.xlu0 %v2514, 32
  %v2522 = vpop.permute.xlu0 %2521
  %2523 = vrot.lane.b32.xlu0 %v2515, 32
  %v2524 = vpop.permute.xlu0 %2523
  %v2525 = vsel %vm426, %v2520, %v2522
  %v2526 = vsel %vm426, %v2522, %v2524
  %v2529 = vmax.f32 %v2512, %v2525
  %v2530 = vmax.f32 %v2513, %v2526
  %s2531 = scalar_lea.vmem %s3, 1120
  %v2532 = vld [vmem:[%s2531] sm:$0xff]
  %v2533 = vld [vmem:[%s2531 + $0x8] sm:$0xff]
  %v2534 = vld [vmem:[%s2531 + $0x10] sm:$0xff]
  %v2535 = vld [vmem:[%s2531 + $0x18] sm:$0xff]
  %v2536 = vld [vmem:[%s2531 + $0x20] sm:$0xff]
  %v2537 = vld [vmem:[%s2531 + $0x28] sm:$0xff]
  %v2538 = vld [vmem:[%s2531 + $0x30] sm:$0xff]
  %v2539 = vld [vmem:[%s2531 + $0x38] sm:$0xff]
  %v2540 = vld [vmem:[%s2531 + $0x40] sm:$0xff]
  %v2541 = vld [vmem:[%s2531 + $0x48] sm:$0xff]
  %v2542 = vld [vmem:[%s2531 + $0x50] sm:$0xff]
  %v2543 = vld [vmem:[%s2531 + $0x58] sm:$0xff]
  %v2544 = vld [vmem:[%s2531 + $0x60] sm:$0xff]
  %v2545 = vld [vmem:[%s2531 + $0x68] sm:$0xff]
  %v2546 = vld [vmem:[%s2531 + $0x70] sm:$0xff]
  %v2547 = vld [vmem:[%s2531 + $0x78] sm:$0xff]
  %v2548 = vld [vmem:[%s2531 + $0x80] sm:$0xff]
  %v2549 = vld [vmem:[%s2531 + $0x88] sm:$0xff]
  %v2550 = vld [vmem:[%s2531 + $0x90] sm:$0xff]
  %v2551 = vld [vmem:[%s2531 + $0x98] sm:$0xff]
  %v2552 = vld [vmem:[%s2531 + $0xa0] sm:$0xff]
  %v2553 = vld [vmem:[%s2531 + $0xa8] sm:$0xff]
  %v2554 = vld [vmem:[%s2531 + $0xb0] sm:$0xff]
  %v2555 = vld [vmem:[%s2531 + $0xb8] sm:$0xff]
  %v2556 = vld [vmem:[%s2531 + $0xc0] sm:$0xff]
  %v2557 = vld [vmem:[%s2531 + $0xc8] sm:$0xff]
  %v2558 = vld [vmem:[%s2531 + $0xd0] sm:$0xff]
  %v2559 = vld [vmem:[%s2531 + $0xd8] sm:$0xff]
  %v2561 = vsel %vm807, %v2530, 0
  %2563 = vmatprep.subr.mxu0 0.0
  %2564 = vmatpush1.msra.mxu0 %v2547
  %2565 = vmatprep.subr.mxu0 0.0
  %2566 = vmatpush1.msra.mxu0 %v2546
  %2567 = vmatprep.subr.mxu0 0.0
  %2568 = vmatpush1.msra.mxu0 %v2545
  %2569 = vmatprep.subr.mxu0 0.0
  %2570 = vmatpush1.msra.mxu0 %v2544
  %2571 = vmatprep.subr.mxu0 0.0
  %2572 = vmatpush1.msra.mxu0 %v2543
  %2573 = vmatprep.subr.mxu0 0.0
  %2574 = vmatpush1.msra.mxu0 %v2542
  %2575 = vmatprep.subr.mxu0 0.0
  %2576 = vmatpush1.msra.mxu0 %v2541
  %2577 = vmatprep.subr.mxu0 0.0
  %2578 = vmatpush1.msra.mxu0 %v2540
  %2579 = vmatprep.subr.mxu0 0.0
  %2580 = vmatpush1.msra.mxu0 %v2539
  %2581 = vmatprep.subr.mxu0 0.0
  %2582 = vmatpush1.msra.mxu0 %v2538
  %2583 = vmatprep.subr.mxu0 0.0
  %2584 = vmatpush1.msra.mxu0 %v2537
  %2585 = vmatprep.subr.mxu0 0.0
  %2586 = vmatpush1.msra.mxu0 %v2536
  %2587 = vmatprep.subr.mxu0 0.0
  %2588 = vmatpush1.msra.mxu0 %v2535
  %2589 = vmatprep.subr.mxu0 0.0
  %2590 = vmatpush1.msra.mxu0 %v2534
  %2591 = vmatprep.subr.mxu0 0.0
  %2592 = vmatpush1.msra.mxu0 %v2533
  %2593 = vmatprep.subr.mxu0 0.0
  %2594 = vmatpush1.msra.mxu0 %v2532
  %2595 = vmatprep.subr.mxu0 0.0
  %2596 = vmatpush2.msra.mxu0 0.0
  %2597 = vmatprep.subr.mxu0 0.0
  %2598 = vmatpush2.msra.mxu0 0.0
  %2599 = vmatprep.subr.mxu0 0.0
  %2600 = vmatpush2.msra.mxu0 0.0
  %2601 = vmatprep.subr.mxu0 0.0
  %2602 = vmatpush2.msra.mxu0 0.0
  %2603 = vmatprep.subr.mxu0 0.0
  %2604 = vmatpush2.msra.mxu0 %v2559
  %2605 = vmatprep.subr.mxu0 0.0
  %2606 = vmatpush2.msra.mxu0 %v2558
  %2607 = vmatprep.subr.mxu0 0.0
  %2608 = vmatpush2.msra.mxu0 %v2557
  %2609 = vmatprep.subr.mxu0 0.0
  %2610 = vmatpush2.msra.mxu0 %v2556
  %2611 = vmatprep.subr.mxu0 0.0
  %2612 = vmatpush2.msra.mxu0 %v2555
  %2613 = vmatprep.subr.mxu0 0.0
  %2614 = vmatpush2.msra.mxu0 %v2554
  %2615 = vmatprep.subr.mxu0 0.0
  %2616 = vmatpush2.msra.mxu0 %v2553
  %2617 = vmatprep.subr.mxu0 0.0
  %2618 = vmatpush2.msra.mxu0 %v2552
  %2619 = vmatprep.subr.mxu0 0.0
  %2620 = vmatpush2.msra.mxu0 %v2551
  %2621 = vmatprep.subr.mxu0 0.0
  %2622 = vmatpush2.msra.mxu0 %v2550
  %2623 = vmatprep.subr.mxu0 0.0
  %2624 = vmatpush2.msra.mxu0 %v2549
  %2625 = vmatprep.subr.mxu0 0.0
  %2626 = vmatpush2.msra.mxu0 %v2548
  %2627 = vmatprep.mubr.f32.mxu0 %v2561
  %2628 = vmatmul.mubr.f32.gmra.mxu0 %v2529
  %v2629 = vpop.f32.mrf.mxu0
  %v2630 = vadd.f32 0.0, %v2629
  %v2631 = vpop.f32.mrf.mxu0
  %2632 = vdwg.mxu0
  %v2633 = vadd.f32 %v2213, %v2630
  %s2634 = scalar_lea.vmem %s0, 96
  %v2635 = vld [vmem:[%s2634] sm:$0xff]
  %v2637 = vsel %vm103, %v2635, 0
  %2639 = vmatprep.subr.mxu0 0.0
  %2640 = vmatpush1.msra.mxu0 0.0
  %2641 = vmatprep.subr.mxu0 0.0
  %2642 = vmatpush1.msra.mxu0 0.0
  %2643 = vmatprep.subr.mxu0 0.0
  %2644 = vmatpush1.msra.mxu0 0.0
  %2645 = vmatprep.subr.mxu0 0.0
  %2646 = vmatpush1.msra.mxu0 0.0
  %2647 = vmatprep.subr.mxu0 %v112
  %2648 = vmatpush1.msra.mxu0 %v109
  %2649 = vmatprep.subr.mxu0 %v73
  %2650 = vmatpush1.msra.mxu0 %v72
  %2651 = vmatprep.subr.mxu0 %v69
  %2652 = vmatpush1.msra.mxu0 %v68
  %2653 = vmatprep.subr.mxu0 %v65
  %2654 = vmatpush1.msra.mxu0 %v64
  %2655 = vmatprep.subr.mxu0 %v61
  %2656 = vmatpush1.msra.mxu0 %v60
  %2657 = vmatprep.subr.mxu0 %v57
  %2658 = vmatpush1.msra.mxu0 %v56
  %2659 = vmatprep.subr.mxu0 %v53
  %2660 = vmatpush1.msra.mxu0 %v52
  %2661 = vmatprep.subr.mxu0 %v49
  %2662 = vmatpush1.msra.mxu0 %v48
  %2663 = vmatprep.subr.mxu0 %v45
  %2664 = vmatpush1.msra.mxu0 %v44
  %2665 = vmatprep.subr.mxu0 %v41
  %2666 = vmatpush1.msra.mxu0 %v40
  %2667 = vmatprep.subr.mxu0 %v37
  %2668 = vmatpush1.msra.mxu0 %v36
  %2669 = vmatprep.subr.mxu0 %v33
  %2670 = vmatpush1.msra.mxu0 %v32
  %2671 = vmatprep.subr.mxu0 0.0
  %2672 = vmatpush2.msra.mxu0 0.0
  %2673 = vmatprep.subr.mxu0 0.0
  %2674 = vmatpush2.msra.mxu0 0.0
  %2675 = vmatprep.subr.mxu0 0.0
  %2676 = vmatpush2.msra.mxu0 0.0
  %2677 = vmatprep.subr.mxu0 0.0
  %2678 = vmatpush2.msra.mxu0 0.0
  %2679 = vmatprep.subr.mxu0 0.0
  %2680 = vmatpush2.msra.mxu0 0.0
  %2681 = vmatprep.subr.mxu0 0.0
  %2682 = vmatpush2.msra.mxu0 0.0
  %2683 = vmatprep.subr.mxu0 0.0
  %2684 = vmatpush2.msra.mxu0 0.0
  %2685 = vmatprep.subr.mxu0 0.0
  %2686 = vmatpush2.msra.mxu0 0.0
  %2687 = vmatprep.subr.mxu0 0.0
  %2688 = vmatpush2.msra.mxu0 0.0
  %2689 = vmatprep.subr.mxu0 0.0
  %2690 = vmatpush2.msra.mxu0 0.0
  %2691 = vmatprep.subr.mxu0 0.0
  %2692 = vmatpush2.msra.mxu0 0.0
  %2693 = vmatprep.subr.mxu0 0.0
  %2694 = vmatpush2.msra.mxu0 0.0
  %2695 = vmatprep.subr.mxu0 0.0
  %2696 = vmatpush2.msra.mxu0 0.0
  %2697 = vmatprep.subr.mxu0 0.0
  %2698 = vmatpush2.msra.mxu0 0.0
  %2699 = vmatprep.subr.mxu0 0.0
  %2700 = vmatpush2.msra.mxu0 0.0
  %2701 = vmatprep.subr.mxu0 0.0
  %2702 = vmatpush2.msra.mxu0 0.0
  %2703 = vmatprep.mubr.f32.mxu0 0.0
  %2704 = vmatmul.mubr.f32.gmra.mxu0 %v2637
  %v2705 = vpop.f32.mrf.mxu0
  %v2706 = vadd.f32 %v86, %v2705
  %v2707 = vpop.f32.mrf.mxu0
  %v2708 = vadd.f32 %v90, %v2707
  %2709 = vdwg.mxu0
  %2710 = vmatprep.subr.mxu0 0.0
  %2711 = vmatpush1.msra.mxu0 0.0
  %2712 = vmatprep.subr.mxu0 0.0
  %2713 = vmatpush1.msra.mxu0 0.0
  %2714 = vmatprep.subr.mxu0 0.0
  %2715 = vmatpush1.msra.mxu0 0.0
  %2716 = vmatprep.subr.mxu0 0.0
  %2717 = vmatpush1.msra.mxu0 0.0
  %2718 = vmatprep.subr.mxu0 %v118
  %2719 = vmatpush1.msra.mxu0 %v115
  %2720 = vmatprep.subr.mxu0 %v75
  %2721 = vmatpush1.msra.mxu0 %v74
  %2722 = vmatprep.subr.mxu0 %v71
  %2723 = vmatpush1.msra.mxu0 %v70
  %2724 = vmatprep.subr.mxu0 %v67
  %2725 = vmatpush1.msra.mxu0 %v66
  %2726 = vmatprep.subr.mxu0 %v63
  %2727 = vmatpush1.msra.mxu0 %v62
  %2728 = vmatprep.subr.mxu0 %v59
  %2729 = vmatpush1.msra.mxu0 %v58
  %2730 = vmatprep.subr.mxu0 %v55
  %2731 = vmatpush1.msra.mxu0 %v54
  %2732 = vmatprep.subr.mxu0 %v51
  %2733 = vmatpush1.msra.mxu0 %v50
  %2734 = vmatprep.subr.mxu0 %v47
  %2735 = vmatpush1.msra.mxu0 %v46
  %2736 = vmatprep.subr.mxu0 %v43
  %2737 = vmatpush1.msra.mxu0 %v42
  %2738 = vmatprep.subr.mxu0 %v39
  %2739 = vmatpush1.msra.mxu0 %v38
  %2740 = vmatprep.subr.mxu0 %v35
  %2741 = vmatpush1.msra.mxu0 %v34
  %2742 = vmatprep.subr.mxu0 0.0
  %2743 = vmatpush2.msra.mxu0 0.0
  %2744 = vmatprep.subr.mxu0 0.0
  %2745 = vmatpush2.msra.mxu0 0.0
  %2746 = vmatprep.subr.mxu0 0.0
  %2747 = vmatpush2.msra.mxu0 0.0
  %2748 = vmatprep.subr.mxu0 0.0
  %2749 = vmatpush2.msra.mxu0 0.0
  %2750 = vmatprep.subr.mxu0 0.0
  %2751 = vmatpush2.msra.mxu0 0.0
  %2752 = vmatprep.subr.mxu0 0.0
  %2753 = vmatpush2.msra.mxu0 0.0
  %2754 = vmatprep.subr.mxu0 0.0
  %2755 = vmatpush2.msra.mxu0 0.0
  %2756 = vmatprep.subr.mxu0 0.0
  %2757 = vmatpush2.msra.mxu0 0.0
  %2758 = vmatprep.subr.mxu0 0.0
  %2759 = vmatpush2.msra.mxu0 0.0
  %2760 = vmatprep.subr.mxu0 0.0
  %2761 = vmatpush2.msra.mxu0 0.0
  %2762 = vmatprep.subr.mxu0 0.0
  %2763 = vmatpush2.msra.mxu0 0.0
  %2764 = vmatprep.subr.mxu0 0.0
  %2765 = vmatpush2.msra.mxu0 0.0
  %2766 = vmatprep.subr.mxu0 0.0
  %2767 = vmatpush2.msra.mxu0 0.0
  %2768 = vmatprep.subr.mxu0 0.0
  %2769 = vmatpush2.msra.mxu0 0.0
  %2770 = vmatprep.subr.mxu0 0.0
  %2771 = vmatpush2.msra.mxu0 0.0
  %2772 = vmatprep.subr.mxu0 0.0
  %2773 = vmatpush2.msra.mxu0 0.0
  %2774 = vmatprep.mubr.f32.mxu0 0.0
  %2775 = vmatmul.mubr.f32.gmra.mxu0 %v2637
  %v2776 = vpop.f32.mrf.mxu0
  %v2777 = vadd.f32 %v94, %v2776
  %v2778 = vpop.f32.mrf.mxu0
  %v2779 = vadd.f32 %v98, %v2778
  %2780 = vdwg.mxu0
  %s2781 = scalar_lea.vmem %s0, 104
  %v2782 = vld [vmem:[%s2781] sm:$0xff]
  %v2784 = vsel %vm103, %v2782, 0
  %2786 = vmatprep.subr.mxu0 0.0
  %2787 = vmatpush1.msra.mxu0 0.0
  %2788 = vmatprep.subr.mxu0 0.0
  %2789 = vmatpush1.msra.mxu0 0.0
  %2790 = vmatprep.subr.mxu0 0.0
  %2791 = vmatpush1.msra.mxu0 0.0
  %2792 = vmatprep.subr.mxu0 0.0
  %2793 = vmatpush1.msra.mxu0 0.0
  %2794 = vmatprep.subr.mxu0 %v112
  %2795 = vmatpush1.msra.mxu0 %v109
  %2796 = vmatprep.subr.mxu0 %v73
  %2797 = vmatpush1.msra.mxu0 %v72
  %2798 = vmatprep.subr.mxu0 %v69
  %2799 = vmatpush1.msra.mxu0 %v68
  %2800 = vmatprep.subr.mxu0 %v65
  %2801 = vmatpush1.msra.mxu0 %v64
  %2802 = vmatprep.subr.mxu0 %v61
  %2803 = vmatpush1.msra.mxu0 %v60
  %2804 = vmatprep.subr.mxu0 %v57
  %2805 = vmatpush1.msra.mxu0 %v56
  %2806 = vmatprep.subr.mxu0 %v53
  %2807 = vmatpush1.msra.mxu0 %v52
  %2808 = vmatprep.subr.mxu0 %v49
  %2809 = vmatpush1.msra.mxu0 %v48
  %2810 = vmatprep.subr.mxu0 %v45
  %2811 = vmatpush1.msra.mxu0 %v44
  %2812 = vmatprep.subr.mxu0 %v41
  %2813 = vmatpush1.msra.mxu0 %v40
  %2814 = vmatprep.subr.mxu0 %v37
  %2815 = vmatpush1.msra.mxu0 %v36
  %2816 = vmatprep.subr.mxu0 %v33
  %2817 = vmatpush1.msra.mxu0 %v32
  %2818 = vmatprep.subr.mxu0 0.0
  %2819 = vmatpush2.msra.mxu0 0.0
  %2820 = vmatprep.subr.mxu0 0.0
  %2821 = vmatpush2.msra.mxu0 0.0
  %2822 = vmatprep.subr.mxu0 0.0
  %2823 = vmatpush2.msra.mxu0 0.0
  %2824 = vmatprep.subr.mxu0 0.0
  %2825 = vmatpush2.msra.mxu0 0.0
  %2826 = vmatprep.subr.mxu0 0.0
  %2827 = vmatpush2.msra.mxu0 0.0
  %2828 = vmatprep.subr.mxu0 0.0
  %2829 = vmatpush2.msra.mxu0 0.0
  %2830 = vmatprep.subr.mxu0 0.0
  %2831 = vmatpush2.msra.mxu0 0.0
  %2832 = vmatprep.subr.mxu0 0.0
  %2833 = vmatpush2.msra.mxu0 0.0
  %2834 = vmatprep.subr.mxu0 0.0
  %2835 = vmatpush2.msra.mxu0 0.0
  %2836 = vmatprep.subr.mxu0 0.0
  %2837 = vmatpush2.msra.mxu0 0.0
  %2838 = vmatprep.subr.mxu0 0.0
  %2839 = vmatpush2.msra.mxu0 0.0
  %2840 = vmatprep.subr.mxu0 0.0
  %2841 = vmatpush2.msra.mxu0 0.0
  %2842 = vmatprep.subr.mxu0 0.0
  %2843 = vmatpush2.msra.mxu0 0.0
  %2844 = vmatprep.subr.mxu0 0.0
  %2845 = vmatpush2.msra.mxu0 0.0
  %2846 = vmatprep.subr.mxu0 0.0
  %2847 = vmatpush2.msra.mxu0 0.0
  %2848 = vmatprep.subr.mxu0 0.0
  %2849 = vmatpush2.msra.mxu0 0.0
  %2850 = vmatprep.mubr.f32.mxu0 0.0
  %2851 = vmatmul.mubr.f32.gmra.mxu0 %v2784
  %v2852 = vpop.f32.mrf.mxu0
  %v2853 = vadd.f32 %v86, %v2852
  %v2854 = vpop.f32.mrf.mxu0
  %v2855 = vadd.f32 %v90, %v2854
  %2856 = vdwg.mxu0
  %2857 = vmatprep.subr.mxu0 0.0
  %2858 = vmatpush1.msra.mxu0 0.0
  %2859 = vmatprep.subr.mxu0 0.0
  %2860 = vmatpush1.msra.mxu0 0.0
  %2861 = vmatprep.subr.mxu0 0.0
  %2862 = vmatpush1.msra.mxu0 0.0
  %2863 = vmatprep.subr.mxu0 0.0
  %2864 = vmatpush1.msra.mxu0 0.0
  %2865 = vmatprep.subr.mxu0 %v118
  %2866 = vmatpush1.msra.mxu0 %v115
  %2867 = vmatprep.subr.mxu0 %v75
  %2868 = vmatpush1.msra.mxu0 %v74
  %2869 = vmatprep.subr.mxu0 %v71
  %2870 = vmatpush1.msra.mxu0 %v70
  %2871 = vmatprep.subr.mxu0 %v67
  %2872 = vmatpush1.msra.mxu0 %v66
  %2873 = vmatprep.subr.mxu0 %v63
  %2874 = vmatpush1.msra.mxu0 %v62
  %2875 = vmatprep.subr.mxu0 %v59
  %2876 = vmatpush1.msra.mxu0 %v58
  %2877 = vmatprep.subr.mxu0 %v55
  %2878 = vmatpush1.msra.mxu0 %v54
  %2879 = vmatprep.subr.mxu0 %v51
  %2880 = vmatpush1.msra.mxu0 %v50
  %2881 = vmatprep.subr.mxu0 %v47
  %2882 = vmatpush1.msra.mxu0 %v46
  %2883 = vmatprep.subr.mxu0 %v43
  %2884 = vmatpush1.msra.mxu0 %v42
  %2885 = vmatprep.subr.mxu0 %v39
  %2886 = vmatpush1.msra.mxu0 %v38
  %2887 = vmatprep.subr.mxu0 %v35
  %2888 = vmatpush1.msra.mxu0 %v34
  %2889 = vmatprep.subr.mxu0 0.0
  %2890 = vmatpush2.msra.mxu0 0.0
  %2891 = vmatprep.subr.mxu0 0.0
  %2892 = vmatpush2.msra.mxu0 0.0
  %2893 = vmatprep.subr.mxu0 0.0
  %2894 = vmatpush2.msra.mxu0 0.0
  %2895 = vmatprep.subr.mxu0 0.0
  %2896 = vmatpush2.msra.mxu0 0.0
  %2897 = vmatprep.subr.mxu0 0.0
  %2898 = vmatpush2.msra.mxu0 0.0
  %2899 = vmatprep.subr.mxu0 0.0
  %2900 = vmatpush2.msra.mxu0 0.0
  %2901 = vmatprep.subr.mxu0 0.0
  %2902 = vmatpush2.msra.mxu0 0.0
  %2903 = vmatprep.subr.mxu0 0.0
  %2904 = vmatpush2.msra.mxu0 0.0
  %2905 = vmatprep.subr.mxu0 0.0
  %2906 = vmatpush2.msra.mxu0 0.0
  %2907 = vmatprep.subr.mxu0 0.0
  %2908 = vmatpush2.msra.mxu0 0.0
  %2909 = vmatprep.subr.mxu0 0.0
  %2910 = vmatpush2.msra.mxu0 0.0
  %2911 = vmatprep.subr.mxu0 0.0
  %2912 = vmatpush2.msra.mxu0 0.0
  %2913 = vmatprep.subr.mxu0 0.0
  %2914 = vmatpush2.msra.mxu0 0.0
  %2915 = vmatprep.subr.mxu0 0.0
  %2916 = vmatpush2.msra.mxu0 0.0
  %2917 = vmatprep.subr.mxu0 0.0
  %2918 = vmatpush2.msra.mxu0 0.0
  %2919 = vmatprep.subr.mxu0 0.0
  %2920 = vmatpush2.msra.mxu0 0.0
  %2921 = vmatprep.mubr.f32.mxu0 0.0
  %2922 = vmatmul.mubr.f32.gmra.mxu0 %v2784
  %v2923 = vpop.f32.mrf.mxu0
  %v2924 = vadd.f32 %v94, %v2923
  %v2925 = vpop.f32.mrf.mxu0
  %v2926 = vadd.f32 %v98, %v2925
  %2927 = vdwg.mxu0
  %v2928 = vmax.f32 %v2706, %v2853
  %v2929 = vmax.f32 %v2708, %v2855
  %v2930 = vmax.f32 %v2777, %v2924
  %v2931 = vmax.f32 %v2779, %v2926
  %v2932 = vmax.f32 %v2928, 0.0
  %v2933 = vmax.f32 %v2929, 0.0
  %v2934 = vmax.f32 %v2930, 0.0
  %v2935 = vmax.f32 %v2931, 0.0
  %2939 = vrot.lane.b32.xlu0 %v2933, 32
  %v2940 = vpop.permute.xlu0 %2939
  %2941 = vrot.lane.b32.xlu0 %v2934, 32
  %v2942 = vpop.permute.xlu0 %2941
  %2943 = vrot.lane.b32.xlu0 %v2935, 32
  %v2944 = vpop.permute.xlu0 %2943
  %v2945 = vsel %vm426, %v2940, %v2942
  %v2946 = vsel %vm426, %v2942, %v2944
  %v2949 = vmax.f32 %v2932, %v2945
  %v2950 = vmax.f32 %v2933, %v2946
  %s2951 = scalar_lea.vmem %s3, 1344
  %v2952 = vld [vmem:[%s2951] sm:$0xff]
  %v2953 = vld [vmem:[%s2951 + $0x8] sm:$0xff]
  %v2954 = vld [vmem:[%s2951 + $0x10] sm:$0xff]
  %v2955 = vld [vmem:[%s2951 + $0x18] sm:$0xff]
  %v2956 = vld [vmem:[%s2951 + $0x20] sm:$0xff]
  %v2957 = vld [vmem:[%s2951 + $0x28] sm:$0xff]
  %v2958 = vld [vmem:[%s2951 + $0x30] sm:$0xff]
  %v2959 = vld [vmem:[%s2951 + $0x38] sm:$0xff]
  %v2960 = vld [vmem:[%s2951 + $0x40] sm:$0xff]
  %v2961 = vld [vmem:[%s2951 + $0x48] sm:$0xff]
  %v2962 = vld [vmem:[%s2951 + $0x50] sm:$0xff]
  %v2963 = vld [vmem:[%s2951 + $0x58] sm:$0xff]
  %v2964 = vld [vmem:[%s2951 + $0x60] sm:$0xff]
  %v2965 = vld [vmem:[%s2951 + $0x68] sm:$0xff]
  %v2966 = vld [vmem:[%s2951 + $0x70] sm:$0xff]
  %v2967 = vld [vmem:[%s2951 + $0x78] sm:$0xff]
  %v2968 = vld [vmem:[%s2951 + $0x80] sm:$0xff]
  %v2969 = vld [vmem:[%s2951 + $0x88] sm:$0xff]
  %v2970 = vld [vmem:[%s2951 + $0x90] sm:$0xff]
  %v2971 = vld [vmem:[%s2951 + $0x98] sm:$0xff]
  %v2972 = vld [vmem:[%s2951 + $0xa0] sm:$0xff]
  %v2973 = vld [vmem:[%s2951 + $0xa8] sm:$0xff]
  %v2974 = vld [vmem:[%s2951 + $0xb0] sm:$0xff]
  %v2975 = vld [vmem:[%s2951 + $0xb8] sm:$0xff]
  %v2976 = vld [vmem:[%s2951 + $0xc0] sm:$0xff]
  %v2977 = vld [vmem:[%s2951 + $0xc8] sm:$0xff]
  %v2978 = vld [vmem:[%s2951 + $0xd0] sm:$0xff]
  %v2979 = vld [vmem:[%s2951 + $0xd8] sm:$0xff]
  %v2981 = vsel %vm807, %v2950, 0
  %2983 = vmatprep.subr.mxu0 0.0
  %2984 = vmatpush1.msra.mxu0 %v2967
  %2985 = vmatprep.subr.mxu0 0.0
  %2986 = vmatpush1.msra.mxu0 %v2966
  %2987 = vmatprep.subr.mxu0 0.0
  %2988 = vmatpush1.msra.mxu0 %v2965
  %2989 = vmatprep.subr.mxu0 0.0
  %2990 = vmatpush1.msra.mxu0 %v2964
  %2991 = vmatprep.subr.mxu0 0.0
  %2992 = vmatpush1.msra.mxu0 %v2963
  %2993 = vmatprep.subr.mxu0 0.0
  %2994 = vmatpush1.msra.mxu0 %v2962
  %2995 = vmatprep.subr.mxu0 0.0
  %2996 = vmatpush1.msra.mxu0 %v2961
  %2997 = vmatprep.subr.mxu0 0.0
  %2998 = vmatpush1.msra.mxu0 %v2960
  %2999 = vmatprep.subr.mxu0 0.0
  %3000 = vmatpush1.msra.mxu0 %v2959
  %3001 = vmatprep.subr.mxu0 0.0
  %3002 = vmatpush1.msra.mxu0 %v2958
  %3003 = vmatprep.subr.mxu0 0.0
  %3004 = vmatpush1.msra.mxu0 %v2957
  %3005 = vmatprep.subr.mxu0 0.0
  %3006 = vmatpush1.msra.mxu0 %v2956
  %3007 = vmatprep.subr.mxu0 0.0
  %3008 = vmatpush1.msra.mxu0 %v2955
  %3009 = vmatprep.subr.mxu0 0.0
  %3010 = vmatpush1.msra.mxu0 %v2954
  %3011 = vmatprep.subr.mxu0 0.0
  %3012 = vmatpush1.msra.mxu0 %v2953
  %3013 = vmatprep.subr.mxu0 0.0
  %3014 = vmatpush1.msra.mxu0 %v2952
  %3015 = vmatprep.subr.mxu0 0.0
  %3016 = vmatpush2.msra.mxu0 0.0
  %3017 = vmatprep.subr.mxu0 0.0
  %3018 = vmatpush2.msra.mxu0 0.0
  %3019 = vmatprep.subr.mxu0 0.0
  %3020 = vmatpush2.msra.mxu0 0.0
  %3021 = vmatprep.subr.mxu0 0.0
  %3022 = vmatpush2.msra.mxu0 0.0
  %3023 = vmatprep.subr.mxu0 0.0
  %3024 = vmatpush2.msra.mxu0 %v2979
  %3025 = vmatprep.subr.mxu0 0.0
  %3026 = vmatpush2.msra.mxu0 %v2978
  %3027 = vmatprep.subr.mxu0 0.0
  %3028 = vmatpush2.msra.mxu0 %v2977
  %3029 = vmatprep.subr.mxu0 0.0
  %3030 = vmatpush2.msra.mxu0 %v2976
  %3031 = vmatprep.subr.mxu0 0.0
  %3032 = vmatpush2.msra.mxu0 %v2975
  %3033 = vmatprep.subr.mxu0 0.0
  %3034 = vmatpush2.msra.mxu0 %v2974
  %3035 = vmatprep.subr.mxu0 0.0
  %3036 = vmatpush2.msra.mxu0 %v2973
  %3037 = vmatprep.subr.mxu0 0.0
  %3038 = vmatpush2.msra.mxu0 %v2972
  %3039 = vmatprep.subr.mxu0 0.0
  %3040 = vmatpush2.msra.mxu0 %v2971
  %3041 = vmatprep.subr.mxu0 0.0
  %3042 = vmatpush2.msra.mxu0 %v2970
  %3043 = vmatprep.subr.mxu0 0.0
  %3044 = vmatpush2.msra.mxu0 %v2969
  %3045 = vmatprep.subr.mxu0 0.0
  %3046 = vmatpush2.msra.mxu0 %v2968
  %3047 = vmatprep.mubr.f32.mxu0 %v2981
  %3048 = vmatmul.mubr.f32.gmra.mxu0 %v2949
  %v3049 = vpop.f32.mrf.mxu0
  %v3050 = vadd.f32 0.0, %v3049
  %v3051 = vpop.f32.mrf.mxu0
  %3052 = vdwg.mxu0
  %v3053 = vadd.f32 %v2633, %v3050
  %s3054 = scalar_lea.vmem %s0, 112
  %v3055 = vld [vmem:[%s3054] sm:$0xff]
  %v3057 = vsel %vm103, %v3055, 0
  %3059 = vmatprep.subr.mxu0 0.0
  %3060 = vmatpush1.msra.mxu0 0.0
  %3061 = vmatprep.subr.mxu0 0.0
  %3062 = vmatpush1.msra.mxu0 0.0
  %3063 = vmatprep.subr.mxu0 0.0
  %3064 = vmatpush1.msra.mxu0 0.0
  %3065 = vmatprep.subr.mxu0 0.0
  %3066 = vmatpush1.msra.mxu0 0.0
  %3067 = vmatprep.subr.mxu0 %v112
  %3068 = vmatpush1.msra.mxu0 %v109
  %3069 = vmatprep.subr.mxu0 %v73
  %3070 = vmatpush1.msra.mxu0 %v72
  %3071 = vmatprep.subr.mxu0 %v69
  %3072 = vmatpush1.msra.mxu0 %v68
  %3073 = vmatprep.subr.mxu0 %v65
  %3074 = vmatpush1.msra.mxu0 %v64
  %3075 = vmatprep.subr.mxu0 %v61
  %3076 = vmatpush1.msra.mxu0 %v60
  %3077 = vmatprep.subr.mxu0 %v57
  %3078 = vmatpush1.msra.mxu0 %v56
  %3079 = vmatprep.subr.mxu0 %v53
  %3080 = vmatpush1.msra.mxu0 %v52
  %3081 = vmatprep.subr.mxu0 %v49
  %3082 = vmatpush1.msra.mxu0 %v48
  %3083 = vmatprep.subr.mxu0 %v45
  %3084 = vmatpush1.msra.mxu0 %v44
  %3085 = vmatprep.subr.mxu0 %v41
  %3086 = vmatpush1.msra.mxu0 %v40
  %3087 = vmatprep.subr.mxu0 %v37
  %3088 = vmatpush1.msra.mxu0 %v36
  %3089 = vmatprep.subr.mxu0 %v33
  %3090 = vmatpush1.msra.mxu0 %v32
  %3091 = vmatprep.subr.mxu0 0.0
  %3092 = vmatpush2.msra.mxu0 0.0
  %3093 = vmatprep.subr.mxu0 0.0
  %3094 = vmatpush2.msra.mxu0 0.0
  %3095 = vmatprep.subr.mxu0 0.0
  %3096 = vmatpush2.msra.mxu0 0.0
  %3097 = vmatprep.subr.mxu0 0.0
  %3098 = vmatpush2.msra.mxu0 0.0
  %3099 = vmatprep.subr.mxu0 0.0
  %3100 = vmatpush2.msra.mxu0 0.0
  %3101 = vmatprep.subr.mxu0 0.0
  %3102 = vmatpush2.msra.mxu0 0.0
  %3103 = vmatprep.subr.mxu0 0.0
  %3104 = vmatpush2.msra.mxu0 0.0
  %3105 = vmatprep.subr.mxu0 0.0
  %3106 = vmatpush2.msra.mxu0 0.0
  %3107 = vmatprep.subr.mxu0 0.0
  %3108 = vmatpush2.msra.mxu0 0.0
  %3109 = vmatprep.subr.mxu0 0.0
  %3110 = vmatpush2.msra.mxu0 0.0
  %3111 = vmatprep.subr.mxu0 0.0
  %3112 = vmatpush2.msra.mxu0 0.0
  %3113 = vmatprep.subr.mxu0 0.0
  %3114 = vmatpush2.msra.mxu0 0.0
  %3115 = vmatprep.subr.mxu0 0.0
  %3116 = vmatpush2.msra.mxu0 0.0
  %3117 = vmatprep.subr.mxu0 0.0
  %3118 = vmatpush2.msra.mxu0 0.0
  %3119 = vmatprep.subr.mxu0 0.0
  %3120 = vmatpush2.msra.mxu0 0.0
  %3121 = vmatprep.subr.mxu0 0.0
  %3122 = vmatpush2.msra.mxu0 0.0
  %3123 = vmatprep.mubr.f32.mxu0 0.0
  %3124 = vmatmul.mubr.f32.gmra.mxu0 %v3057
  %v3125 = vpop.f32.mrf.mxu0
  %v3126 = vadd.f32 %v86, %v3125
  %v3127 = vpop.f32.mrf.mxu0
  %v3128 = vadd.f32 %v90, %v3127
  %3129 = vdwg.mxu0
  %3130 = vmatprep.subr.mxu0 0.0
  %3131 = vmatpush1.msra.mxu0 0.0
  %3132 = vmatprep.subr.mxu0 0.0
  %3133 = vmatpush1.msra.mxu0 0.0
  %3134 = vmatprep.subr.mxu0 0.0
  %3135 = vmatpush1.msra.mxu0 0.0
  %3136 = vmatprep.subr.mxu0 0.0
  %3137 = vmatpush1.msra.mxu0 0.0
  %3138 = vmatprep.subr.mxu0 %v118
  %3139 = vmatpush1.msra.mxu0 %v115
  %3140 = vmatprep.subr.mxu0 %v75
  %3141 = vmatpush1.msra.mxu0 %v74
  %3142 = vmatprep.subr.mxu0 %v71
  %3143 = vmatpush1.msra.mxu0 %v70
  %3144 = vmatprep.subr.mxu0 %v67
  %3145 = vmatpush1.msra.mxu0 %v66
  %3146 = vmatprep.subr.mxu0 %v63
  %3147 = vmatpush1.msra.mxu0 %v62
  %3148 = vmatprep.subr.mxu0 %v59
  %3149 = vmatpush1.msra.mxu0 %v58
  %3150 = vmatprep.subr.mxu0 %v55
  %3151 = vmatpush1.msra.mxu0 %v54
  %3152 = vmatprep.subr.mxu0 %v51
  %3153 = vmatpush1.msra.mxu0 %v50
  %3154 = vmatprep.subr.mxu0 %v47
  %3155 = vmatpush1.msra.mxu0 %v46
  %3156 = vmatprep.subr.mxu0 %v43
  %3157 = vmatpush1.msra.mxu0 %v42
  %3158 = vmatprep.subr.mxu0 %v39
  %3159 = vmatpush1.msra.mxu0 %v38
  %3160 = vmatprep.subr.mxu0 %v35
  %3161 = vmatpush1.msra.mxu0 %v34
  %3162 = vmatprep.subr.mxu0 0.0
  %3163 = vmatpush2.msra.mxu0 0.0
  %3164 = vmatprep.subr.mxu0 0.0
  %3165 = vmatpush2.msra.mxu0 0.0
  %3166 = vmatprep.subr.mxu0 0.0
  %3167 = vmatpush2.msra.mxu0 0.0
  %3168 = vmatprep.subr.mxu0 0.0
  %3169 = vmatpush2.msra.mxu0 0.0
  %3170 = vmatprep.subr.mxu0 0.0
  %3171 = vmatpush2.msra.mxu0 0.0
  %3172 = vmatprep.subr.mxu0 0.0
  %3173 = vmatpush2.msra.mxu0 0.0
  %3174 = vmatprep.subr.mxu0 0.0
  %3175 = vmatpush2.msra.mxu0 0.0
  %3176 = vmatprep.subr.mxu0 0.0
  %3177 = vmatpush2.msra.mxu0 0.0
  %3178 = vmatprep.subr.mxu0 0.0
  %3179 = vmatpush2.msra.mxu0 0.0
  %3180 = vmatprep.subr.mxu0 0.0
  %3181 = vmatpush2.msra.mxu0 0.0
  %3182 = vmatprep.subr.mxu0 0.0
  %3183 = vmatpush2.msra.mxu0 0.0
  %3184 = vmatprep.subr.mxu0 0.0
  %3185 = vmatpush2.msra.mxu0 0.0
  %3186 = vmatprep.subr.mxu0 0.0
  %3187 = vmatpush2.msra.mxu0 0.0
  %3188 = vmatprep.subr.mxu0 0.0
  %3189 = vmatpush2.msra.mxu0 0.0
  %3190 = vmatprep.subr.mxu0 0.0
  %3191 = vmatpush2.msra.mxu0 0.0
  %3192 = vmatprep.subr.mxu0 0.0
  %3193 = vmatpush2.msra.mxu0 0.0
  %3194 = vmatprep.mubr.f32.mxu0 0.0
  %3195 = vmatmul.mubr.f32.gmra.mxu0 %v3057
  %v3196 = vpop.f32.mrf.mxu0
  %v3197 = vadd.f32 %v94, %v3196
  %v3198 = vpop.f32.mrf.mxu0
  %v3199 = vadd.f32 %v98, %v3198
  %3200 = vdwg.mxu0
  %s3201 = scalar_lea.vmem %s0, 120
  %v3202 = vld [vmem:[%s3201] sm:$0xff]
  %v3204 = vsel %vm103, %v3202, 0
  %3206 = vmatprep.subr.mxu0 0.0
  %3207 = vmatpush1.msra.mxu0 0.0
  %3208 = vmatprep.subr.mxu0 0.0
  %3209 = vmatpush1.msra.mxu0 0.0
  %3210 = vmatprep.subr.mxu0 0.0
  %3211 = vmatpush1.msra.mxu0 0.0
  %3212 = vmatprep.subr.mxu0 0.0
  %3213 = vmatpush1.msra.mxu0 0.0
  %3214 = vmatprep.subr.mxu0 %v112
  %3215 = vmatpush1.msra.mxu0 %v109
  %3216 = vmatprep.subr.mxu0 %v73
  %3217 = vmatpush1.msra.mxu0 %v72
  %3218 = vmatprep.subr.mxu0 %v69
  %3219 = vmatpush1.msra.mxu0 %v68
  %3220 = vmatprep.subr.mxu0 %v65
  %3221 = vmatpush1.msra.mxu0 %v64
  %3222 = vmatprep.subr.mxu0 %v61
  %3223 = vmatpush1.msra.mxu0 %v60
  %3224 = vmatprep.subr.mxu0 %v57
  %3225 = vmatpush1.msra.mxu0 %v56
  %3226 = vmatprep.subr.mxu0 %v53
  %3227 = vmatpush1.msra.mxu0 %v52
  %3228 = vmatprep.subr.mxu0 %v49
  %3229 = vmatpush1.msra.mxu0 %v48
  %3230 = vmatprep.subr.mxu0 %v45
  %3231 = vmatpush1.msra.mxu0 %v44
  %3232 = vmatprep.subr.mxu0 %v41
  %3233 = vmatpush1.msra.mxu0 %v40
  %3234 = vmatprep.subr.mxu0 %v37
  %3235 = vmatpush1.msra.mxu0 %v36
  %3236 = vmatprep.subr.mxu0 %v33
  %3237 = vmatpush1.msra.mxu0 %v32
  %3238 = vmatprep.subr.mxu0 0.0
  %3239 = vmatpush2.msra.mxu0 0.0
  %3240 = vmatprep.subr.mxu0 0.0
  %3241 = vmatpush2.msra.mxu0 0.0
  %3242 = vmatprep.subr.mxu0 0.0
  %3243 = vmatpush2.msra.mxu0 0.0
  %3244 = vmatprep.subr.mxu0 0.0
  %3245 = vmatpush2.msra.mxu0 0.0
  %3246 = vmatprep.subr.mxu0 0.0
  %3247 = vmatpush2.msra.mxu0 0.0
  %3248 = vmatprep.subr.mxu0 0.0
  %3249 = vmatpush2.msra.mxu0 0.0
  %3250 = vmatprep.subr.mxu0 0.0
  %3251 = vmatpush2.msra.mxu0 0.0
  %3252 = vmatprep.subr.mxu0 0.0
  %3253 = vmatpush2.msra.mxu0 0.0
  %3254 = vmatprep.subr.mxu0 0.0
  %3255 = vmatpush2.msra.mxu0 0.0
  %3256 = vmatprep.subr.mxu0 0.0
  %3257 = vmatpush2.msra.mxu0 0.0
  %3258 = vmatprep.subr.mxu0 0.0
  %3259 = vmatpush2.msra.mxu0 0.0
  %3260 = vmatprep.subr.mxu0 0.0
  %3261 = vmatpush2.msra.mxu0 0.0
  %3262 = vmatprep.subr.mxu0 0.0
  %3263 = vmatpush2.msra.mxu0 0.0
  %3264 = vmatprep.subr.mxu0 0.0
  %3265 = vmatpush2.msra.mxu0 0.0
  %3266 = vmatprep.subr.mxu0 0.0
  %3267 = vmatpush2.msra.mxu0 0.0
  %3268 = vmatprep.subr.mxu0 0.0
  %3269 = vmatpush2.msra.mxu0 0.0
  %3270 = vmatprep.mubr.f32.mxu0 0.0
  %3271 = vmatmul.mubr.f32.gmra.mxu0 %v3204
  %v3272 = vpop.f32.mrf.mxu0
  %v3273 = vadd.f32 %v86, %v3272
  %v3274 = vpop.f32.mrf.mxu0
  %v3275 = vadd.f32 %v90, %v3274
  %3276 = vdwg.mxu0
  %3277 = vmatprep.subr.mxu0 0.0
  %3278 = vmatpush1.msra.mxu0 0.0
  %3279 = vmatprep.subr.mxu0 0.0
  %3280 = vmatpush1.msra.mxu0 0.0
  %3281 = vmatprep.subr.mxu0 0.0
  %3282 = vmatpush1.msra.mxu0 0.0
  %3283 = vmatprep.subr.mxu0 0.0
  %3284 = vmatpush1.msra.mxu0 0.0
  %3285 = vmatprep.subr.mxu0 %v118
  %3286 = vmatpush1.msra.mxu0 %v115
  %3287 = vmatprep.subr.mxu0 %v75
  %3288 = vmatpush1.msra.mxu0 %v74
  %3289 = vmatprep.subr.mxu0 %v71
  %3290 = vmatpush1.msra.mxu0 %v70
  %3291 = vmatprep.subr.mxu0 %v67
  %3292 = vmatpush1.msra.mxu0 %v66
  %3293 = vmatprep.subr.mxu0 %v63
  %3294 = vmatpush1.msra.mxu0 %v62
  %3295 = vmatprep.subr.mxu0 %v59
  %3296 = vmatpush1.msra.mxu0 %v58
  %3297 = vmatprep.subr.mxu0 %v55
  %3298 = vmatpush1.msra.mxu0 %v54
  %3299 = vmatprep.subr.mxu0 %v51
  %3300 = vmatpush1.msra.mxu0 %v50
  %3301 = vmatprep.subr.mxu0 %v47
  %3302 = vmatpush1.msra.mxu0 %v46
  %3303 = vmatprep.subr.mxu0 %v43
  %3304 = vmatpush1.msra.mxu0 %v42
  %3305 = vmatprep.subr.mxu0 %v39
  %3306 = vmatpush1.msra.mxu0 %v38
  %3307 = vmatprep.subr.mxu0 %v35
  %3308 = vmatpush1.msra.mxu0 %v34
  %3309 = vmatprep.subr.mxu0 0.0
  %3310 = vmatpush2.msra.mxu0 0.0
  %3311 = vmatprep.subr.mxu0 0.0
  %3312 = vmatpush2.msra.mxu0 0.0
  %3313 = vmatprep.subr.mxu0 0.0
  %3314 = vmatpush2.msra.mxu0 0.0
  %3315 = vmatprep.subr.mxu0 0.0
  %3316 = vmatpush2.msra.mxu0 0.0
  %3317 = vmatprep.subr.mxu0 0.0
  %3318 = vmatpush2.msra.mxu0 0.0
  %3319 = vmatprep.subr.mxu0 0.0
  %3320 = vmatpush2.msra.mxu0 0.0
  %3321 = vmatprep.subr.mxu0 0.0
  %3322 = vmatpush2.msra.mxu0 0.0
  %3323 = vmatprep.subr.mxu0 0.0
  %3324 = vmatpush2.msra.mxu0 0.0
  %3325 = vmatprep.subr.mxu0 0.0
  %3326 = vmatpush2.msra.mxu0 0.0
  %3327 = vmatprep.subr.mxu0 0.0
  %3328 = vmatpush2.msra.mxu0 0.0
  %3329 = vmatprep.subr.mxu0 0.0
  %3330 = vmatpush2.msra.mxu0 0.0
  %3331 = vmatprep.subr.mxu0 0.0
  %3332 = vmatpush2.msra.mxu0 0.0
  %3333 = vmatprep.subr.mxu0 0.0
  %3334 = vmatpush2.msra.mxu0 0.0
  %3335 = vmatprep.subr.mxu0 0.0
  %3336 = vmatpush2.msra.mxu0 0.0
  %3337 = vmatprep.subr.mxu0 0.0
  %3338 = vmatpush2.msra.mxu0 0.0
  %3339 = vmatprep.subr.mxu0 0.0
  %3340 = vmatpush2.msra.mxu0 0.0
  %3341 = vmatprep.mubr.f32.mxu0 0.0
  %3342 = vmatmul.mubr.f32.gmra.mxu0 %v3204
  %v3343 = vpop.f32.mrf.mxu0
  %v3344 = vadd.f32 %v94, %v3343
  %v3345 = vpop.f32.mrf.mxu0
  %v3346 = vadd.f32 %v98, %v3345
  %3347 = vdwg.mxu0
  %v3348 = vmax.f32 %v3126, %v3273
  %v3349 = vmax.f32 %v3128, %v3275
  %v3350 = vmax.f32 %v3197, %v3344
  %v3351 = vmax.f32 %v3199, %v3346
  %v3352 = vmax.f32 %v3348, 0.0
  %v3353 = vmax.f32 %v3349, 0.0
  %v3354 = vmax.f32 %v3350, 0.0
  %v3355 = vmax.f32 %v3351, 0.0
  %3359 = vrot.lane.b32.xlu0 %v3353, 32
  %v3360 = vpop.permute.xlu0 %3359
  %3361 = vrot.lane.b32.xlu0 %v3354, 32
  %v3362 = vpop.permute.xlu0 %3361
  %3363 = vrot.lane.b32.xlu0 %v3355, 32
  %v3364 = vpop.permute.xlu0 %3363
  %v3365 = vsel %vm426, %v3360, %v3362
  %v3366 = vsel %vm426, %v3362, %v3364
  %v3369 = vmax.f32 %v3352, %v3365
  %v3370 = vmax.f32 %v3353, %v3366
  %s3371 = scalar_lea.vmem %s3, 1568
  %v3372 = vld [vmem:[%s3371] sm:$0xff]
  %v3373 = vld [vmem:[%s3371 + $0x8] sm:$0xff]
  %v3374 = vld [vmem:[%s3371 + $0x10] sm:$0xff]
  %v3375 = vld [vmem:[%s3371 + $0x18] sm:$0xff]
  %v3376 = vld [vmem:[%s3371 + $0x20] sm:$0xff]
  %v3377 = vld [vmem:[%s3371 + $0x28] sm:$0xff]
  %v3378 = vld [vmem:[%s3371 + $0x30] sm:$0xff]
  %v3379 = vld [vmem:[%s3371 + $0x38] sm:$0xff]
  %v3380 = vld [vmem:[%s3371 + $0x40] sm:$0xff]
  %v3381 = vld [vmem:[%s3371 + $0x48] sm:$0xff]
  %v3382 = vld [vmem:[%s3371 + $0x50] sm:$0xff]
  %v3383 = vld [vmem:[%s3371 + $0x58] sm:$0xff]
  %v3384 = vld [vmem:[%s3371 + $0x60] sm:$0xff]
  %v3385 = vld [vmem:[%s3371 + $0x68] sm:$0xff]
  %v3386 = vld [vmem:[%s3371 + $0x70] sm:$0xff]
  %v3387 = vld [vmem:[%s3371 + $0x78] sm:$0xff]
  %v3388 = vld [vmem:[%s3371 + $0x80] sm:$0xff]
  %v3389 = vld [vmem:[%s3371 + $0x88] sm:$0xff]
  %v3390 = vld [vmem:[%s3371 + $0x90] sm:$0xff]
  %v3391 = vld [vmem:[%s3371 + $0x98] sm:$0xff]
  %v3392 = vld [vmem:[%s3371 + $0xa0] sm:$0xff]
  %v3393 = vld [vmem:[%s3371 + $0xa8] sm:$0xff]
  %v3394 = vld [vmem:[%s3371 + $0xb0] sm:$0xff]
  %v3395 = vld [vmem:[%s3371 + $0xb8] sm:$0xff]
  %v3396 = vld [vmem:[%s3371 + $0xc0] sm:$0xff]
  %v3397 = vld [vmem:[%s3371 + $0xc8] sm:$0xff]
  %v3398 = vld [vmem:[%s3371 + $0xd0] sm:$0xff]
  %v3399 = vld [vmem:[%s3371 + $0xd8] sm:$0xff]
  %v3401 = vsel %vm807, %v3370, 0
  %3403 = vmatprep.subr.mxu0 0.0
  %3404 = vmatpush1.msra.mxu0 %v3387
  %3405 = vmatprep.subr.mxu0 0.0
  %3406 = vmatpush1.msra.mxu0 %v3386
  %3407 = vmatprep.subr.mxu0 0.0
  %3408 = vmatpush1.msra.mxu0 %v3385
  %3409 = vmatprep.subr.mxu0 0.0
  %3410 = vmatpush1.msra.mxu0 %v3384
  %3411 = vmatprep.subr.mxu0 0.0
  %3412 = vmatpush1.msra.mxu0 %v3383
  %3413 = vmatprep.subr.mxu0 0.0
  %3414 = vmatpush1.msra.mxu0 %v3382
  %3415 = vmatprep.subr.mxu0 0.0
  %3416 = vmatpush1.msra.mxu0 %v3381
  %3417 = vmatprep.subr.mxu0 0.0
  %3418 = vmatpush1.msra.mxu0 %v3380
  %3419 = vmatprep.subr.mxu0 0.0
  %3420 = vmatpush1.msra.mxu0 %v3379
  %3421 = vmatprep.subr.mxu0 0.0
  %3422 = vmatpush1.msra.mxu0 %v3378
  %3423 = vmatprep.subr.mxu0 0.0
  %3424 = vmatpush1.msra.mxu0 %v3377
  %3425 = vmatprep.subr.mxu0 0.0
  %3426 = vmatpush1.msra.mxu0 %v3376
  %3427 = vmatprep.subr.mxu0 0.0
  %3428 = vmatpush1.msra.mxu0 %v3375
  %3429 = vmatprep.subr.mxu0 0.0
  %3430 = vmatpush1.msra.mxu0 %v3374
  %3431 = vmatprep.subr.mxu0 0.0
  %3432 = vmatpush1.msra.mxu0 %v3373
  %3433 = vmatprep.subr.mxu0 0.0
  %3434 = vmatpush1.msra.mxu0 %v3372
  %3435 = vmatprep.subr.mxu0 0.0
  %3436 = vmatpush2.msra.mxu0 0.0
  %3437 = vmatprep.subr.mxu0 0.0
  %3438 = vmatpush2.msra.mxu0 0.0
  %3439 = vmatprep.subr.mxu0 0.0
  %3440 = vmatpush2.msra.mxu0 0.0
  %3441 = vmatprep.subr.mxu0 0.0
  %3442 = vmatpush2.msra.mxu0 0.0
  %3443 = vmatprep.subr.mxu0 0.0
  %3444 = vmatpush2.msra.mxu0 %v3399
  %3445 = vmatprep.subr.mxu0 0.0
  %3446 = vmatpush2.msra.mxu0 %v3398
  %3447 = vmatprep.subr.mxu0 0.0
  %3448 = vmatpush2.msra.mxu0 %v3397
  %3449 = vmatprep.subr.mxu0 0.0
  %3450 = vmatpush2.msra.mxu0 %v3396
  %3451 = vmatprep.subr.mxu0 0.0
  %3452 = vmatpush2.msra.mxu0 %v3395
  %3453 = vmatprep.subr.mxu0 0.0
  %3454 = vmatpush2.msra.mxu0 %v3394
  %3455 = vmatprep.subr.mxu0 0.0
  %3456 = vmatpush2.msra.mxu0 %v3393
  %3457 = vmatprep.subr.mxu0 0.0
  %3458 = vmatpush2.msra.mxu0 %v3392
  %3459 = vmatprep.subr.mxu0 0.0
  %3460 = vmatpush2.msra.mxu0 %v3391
  %3461 = vmatprep.subr.mxu0 0.0
  %3462 = vmatpush2.msra.mxu0 %v3390
  %3463 = vmatprep.subr.mxu0 0.0
  %3464 = vmatpush2.msra.mxu0 %v3389
  %3465 = vmatprep.subr.mxu0 0.0
  %3466 = vmatpush2.msra.mxu0 %v3388
  %3467 = vmatprep.mubr.f32.mxu0 %v3401
  %3468 = vmatmul.mubr.f32.gmra.mxu0 %v3369
  %v3469 = vpop.f32.mrf.mxu0
  %v3470 = vadd.f32 0.0, %v3469
  %v3471 = vpop.f32.mrf.mxu0
  %3472 = vdwg.mxu0
  %v3473 = vadd.f32 %v3053, %v3470
  %s3474 = scalar_lea.vmem %s0, 128
  %v3475 = vld [vmem:[%s3474] sm:$0xff]
  %v3477 = vsel %vm103, %v3475, 0
  %3479 = vmatprep.subr.mxu0 0.0
  %3480 = vmatpush1.msra.mxu0 0.0
  %3481 = vmatprep.subr.mxu0 0.0
  %3482 = vmatpush1.msra.mxu0 0.0
  %3483 = vmatprep.subr.mxu0 0.0
  %3484 = vmatpush1.msra.mxu0 0.0
  %3485 = vmatprep.subr.mxu0 0.0
  %3486 = vmatpush1.msra.mxu0 0.0
  %3487 = vmatprep.subr.mxu0 %v112
  %3488 = vmatpush1.msra.mxu0 %v109
  %3489 = vmatprep.subr.mxu0 %v73
  %3490 = vmatpush1.msra.mxu0 %v72
  %3491 = vmatprep.subr.mxu0 %v69
  %3492 = vmatpush1.msra.mxu0 %v68
  %3493 = vmatprep.subr.mxu0 %v65
  %3494 = vmatpush1.msra.mxu0 %v64
  %3495 = vmatprep.subr.mxu0 %v61
  %3496 = vmatpush1.msra.mxu0 %v60
  %3497 = vmatprep.subr.mxu0 %v57
  %3498 = vmatpush1.msra.mxu0 %v56
  %3499 = vmatprep.subr.mxu0 %v53
  %3500 = vmatpush1.msra.mxu0 %v52
  %3501 = vmatprep.subr.mxu0 %v49
  %3502 = vmatpush1.msra.mxu0 %v48
  %3503 = vmatprep.subr.mxu0 %v45
  %3504 = vmatpush1.msra.mxu0 %v44
  %3505 = vmatprep.subr.mxu0 %v41
  %3506 = vmatpush1.msra.mxu0 %v40
  %3507 = vmatprep.subr.mxu0 %v37
  %3508 = vmatpush1.msra.mxu0 %v36
  %3509 = vmatprep.subr.mxu0 %v33
  %3510 = vmatpush1.msra.mxu0 %v32
  %3511 = vmatprep.subr.mxu0 0.0
  %3512 = vmatpush2.msra.mxu0 0.0
  %3513 = vmatprep.subr.mxu0 0.0
  %3514 = vmatpush2.msra.mxu0 0.0
  %3515 = vmatprep.subr.mxu0 0.0
  %3516 = vmatpush2.msra.mxu0 0.0
  %3517 = vmatprep.subr.mxu0 0.0
  %3518 = vmatpush2.msra.mxu0 0.0
  %3519 = vmatprep.subr.mxu0 0.0
  %3520 = vmatpush2.msra.mxu0 0.0
  %3521 = vmatprep.subr.mxu0 0.0
  %3522 = vmatpush2.msra.mxu0 0.0
  %3523 = vmatprep.subr.mxu0 0.0
  %3524 = vmatpush2.msra.mxu0 0.0
  %3525 = vmatprep.subr.mxu0 0.0
  %3526 = vmatpush2.msra.mxu0 0.0
  %3527 = vmatprep.subr.mxu0 0.0
  %3528 = vmatpush2.msra.mxu0 0.0
  %3529 = vmatprep.subr.mxu0 0.0
  %3530 = vmatpush2.msra.mxu0 0.0
  %3531 = vmatprep.subr.mxu0 0.0
  %3532 = vmatpush2.msra.mxu0 0.0
  %3533 = vmatprep.subr.mxu0 0.0
  %3534 = vmatpush2.msra.mxu0 0.0
  %3535 = vmatprep.subr.mxu0 0.0
  %3536 = vmatpush2.msra.mxu0 0.0
  %3537 = vmatprep.subr.mxu0 0.0
  %3538 = vmatpush2.msra.mxu0 0.0
  %3539 = vmatprep.subr.mxu0 0.0
  %3540 = vmatpush2.msra.mxu0 0.0
  %3541 = vmatprep.subr.mxu0 0.0
  %3542 = vmatpush2.msra.mxu0 0.0
  %3543 = vmatprep.mubr.f32.mxu0 0.0
  %3544 = vmatmul.mubr.f32.gmra.mxu0 %v3477
  %v3545 = vpop.f32.mrf.mxu0
  %v3546 = vadd.f32 %v86, %v3545
  %v3547 = vpop.f32.mrf.mxu0
  %v3548 = vadd.f32 %v90, %v3547
  %3549 = vdwg.mxu0
  %3550 = vmatprep.subr.mxu0 0.0
  %3551 = vmatpush1.msra.mxu0 0.0
  %3552 = vmatprep.subr.mxu0 0.0
  %3553 = vmatpush1.msra.mxu0 0.0
  %3554 = vmatprep.subr.mxu0 0.0
  %3555 = vmatpush1.msra.mxu0 0.0
  %3556 = vmatprep.subr.mxu0 0.0
  %3557 = vmatpush1.msra.mxu0 0.0
  %3558 = vmatprep.subr.mxu0 %v118
  %3559 = vmatpush1.msra.mxu0 %v115
  %3560 = vmatprep.subr.mxu0 %v75
  %3561 = vmatpush1.msra.mxu0 %v74
  %3562 = vmatprep.subr.mxu0 %v71
  %3563 = vmatpush1.msra.mxu0 %v70
  %3564 = vmatprep.subr.mxu0 %v67
  %3565 = vmatpush1.msra.mxu0 %v66
  %3566 = vmatprep.subr.mxu0 %v63
  %3567 = vmatpush1.msra.mxu0 %v62
  %3568 = vmatprep.subr.mxu0 %v59
  %3569 = vmatpush1.msra.mxu0 %v58
  %3570 = vmatprep.subr.mxu0 %v55
  %3571 = vmatpush1.msra.mxu0 %v54
  %3572 = vmatprep.subr.mxu0 %v51
  %3573 = vmatpush1.msra.mxu0 %v50
  %3574 = vmatprep.subr.mxu0 %v47
  %3575 = vmatpush1.msra.mxu0 %v46
  %3576 = vmatprep.subr.mxu0 %v43
  %3577 = vmatpush1.msra.mxu0 %v42
  %3578 = vmatprep.subr.mxu0 %v39
  %3579 = vmatpush1.msra.mxu0 %v38
  %3580 = vmatprep.subr.mxu0 %v35
  %3581 = vmatpush1.msra.mxu0 %v34
  %3582 = vmatprep.subr.mxu0 0.0
  %3583 = vmatpush2.msra.mxu0 0.0
  %3584 = vmatprep.subr.mxu0 0.0
  %3585 = vmatpush2.msra.mxu0 0.0
  %3586 = vmatprep.subr.mxu0 0.0
  %3587 = vmatpush2.msra.mxu0 0.0
  %3588 = vmatprep.subr.mxu0 0.0
  %3589 = vmatpush2.msra.mxu0 0.0
  %3590 = vmatprep.subr.mxu0 0.0
  %3591 = vmatpush2.msra.mxu0 0.0
  %3592 = vmatprep.subr.mxu0 0.0
  %3593 = vmatpush2.msra.mxu0 0.0
  %3594 = vmatprep.subr.mxu0 0.0
  %3595 = vmatpush2.msra.mxu0 0.0
  %3596 = vmatprep.subr.mxu0 0.0
  %3597 = vmatpush2.msra.mxu0 0.0
  %3598 = vmatprep.subr.mxu0 0.0
  %3599 = vmatpush2.msra.mxu0 0.0
  %3600 = vmatprep.subr.mxu0 0.0
  %3601 = vmatpush2.msra.mxu0 0.0
  %3602 = vmatprep.subr.mxu0 0.0
  %3603 = vmatpush2.msra.mxu0 0.0
  %3604 = vmatprep.subr.mxu0 0.0
  %3605 = vmatpush2.msra.mxu0 0.0
  %3606 = vmatprep.subr.mxu0 0.0
  %3607 = vmatpush2.msra.mxu0 0.0
  %3608 = vmatprep.subr.mxu0 0.0
  %3609 = vmatpush2.msra.mxu0 0.0
  %3610 = vmatprep.subr.mxu0 0.0
  %3611 = vmatpush2.msra.mxu0 0.0
  %3612 = vmatprep.subr.mxu0 0.0
  %3613 = vmatpush2.msra.mxu0 0.0
  %3614 = vmatprep.mubr.f32.mxu0 0.0
  %3615 = vmatmul.mubr.f32.gmra.mxu0 %v3477
  %v3616 = vpop.f32.mrf.mxu0
  %v3617 = vadd.f32 %v94, %v3616
  %v3618 = vpop.f32.mrf.mxu0
  %v3619 = vadd.f32 %v98, %v3618
  %3620 = vdwg.mxu0
  %s3621 = scalar_lea.vmem %s0, 136
  %v3622 = vld [vmem:[%s3621] sm:$0xff]
  %v3624 = vsel %vm103, %v3622, 0
  %3626 = vmatprep.subr.mxu0 0.0
  %3627 = vmatpush1.msra.mxu0 0.0
  %3628 = vmatprep.subr.mxu0 0.0
  %3629 = vmatpush1.msra.mxu0 0.0
  %3630 = vmatprep.subr.mxu0 0.0
  %3631 = vmatpush1.msra.mxu0 0.0
  %3632 = vmatprep.subr.mxu0 0.0
  %3633 = vmatpush1.msra.mxu0 0.0
  %3634 = vmatprep.subr.mxu0 %v112
  %3635 = vmatpush1.msra.mxu0 %v109
  %3636 = vmatprep.subr.mxu0 %v73
  %3637 = vmatpush1.msra.mxu0 %v72
  %3638 = vmatprep.subr.mxu0 %v69
  %3639 = vmatpush1.msra.mxu0 %v68
  %3640 = vmatprep.subr.mxu0 %v65
  %3641 = vmatpush1.msra.mxu0 %v64
  %3642 = vmatprep.subr.mxu0 %v61
  %3643 = vmatpush1.msra.mxu0 %v60
  %3644 = vmatprep.subr.mxu0 %v57
  %3645 = vmatpush1.msra.mxu0 %v56
  %3646 = vmatprep.subr.mxu0 %v53
  %3647 = vmatpush1.msra.mxu0 %v52
  %3648 = vmatprep.subr.mxu0 %v49
  %3649 = vmatpush1.msra.mxu0 %v48
  %3650 = vmatprep.subr.mxu0 %v45
  %3651 = vmatpush1.msra.mxu0 %v44
  %3652 = vmatprep.subr.mxu0 %v41
  %3653 = vmatpush1.msra.mxu0 %v40
  %3654 = vmatprep.subr.mxu0 %v37
  %3655 = vmatpush1.msra.mxu0 %v36
  %3656 = vmatprep.subr.mxu0 %v33
  %3657 = vmatpush1.msra.mxu0 %v32
  %3658 = vmatprep.subr.mxu0 0.0
  %3659 = vmatpush2.msra.mxu0 0.0
  %3660 = vmatprep.subr.mxu0 0.0
  %3661 = vmatpush2.msra.mxu0 0.0
  %3662 = vmatprep.subr.mxu0 0.0
  %3663 = vmatpush2.msra.mxu0 0.0
  %3664 = vmatprep.subr.mxu0 0.0
  %3665 = vmatpush2.msra.mxu0 0.0
  %3666 = vmatprep.subr.mxu0 0.0
  %3667 = vmatpush2.msra.mxu0 0.0
  %3668 = vmatprep.subr.mxu0 0.0
  %3669 = vmatpush2.msra.mxu0 0.0
  %3670 = vmatprep.subr.mxu0 0.0
  %3671 = vmatpush2.msra.mxu0 0.0
  %3672 = vmatprep.subr.mxu0 0.0
  %3673 = vmatpush2.msra.mxu0 0.0
  %3674 = vmatprep.subr.mxu0 0.0
  %3675 = vmatpush2.msra.mxu0 0.0
  %3676 = vmatprep.subr.mxu0 0.0
  %3677 = vmatpush2.msra.mxu0 0.0
  %3678 = vmatprep.subr.mxu0 0.0
  %3679 = vmatpush2.msra.mxu0 0.0
  %3680 = vmatprep.subr.mxu0 0.0
  %3681 = vmatpush2.msra.mxu0 0.0
  %3682 = vmatprep.subr.mxu0 0.0
  %3683 = vmatpush2.msra.mxu0 0.0
  %3684 = vmatprep.subr.mxu0 0.0
  %3685 = vmatpush2.msra.mxu0 0.0
  %3686 = vmatprep.subr.mxu0 0.0
  %3687 = vmatpush2.msra.mxu0 0.0
  %3688 = vmatprep.subr.mxu0 0.0
  %3689 = vmatpush2.msra.mxu0 0.0
  %3690 = vmatprep.mubr.f32.mxu0 0.0
  %3691 = vmatmul.mubr.f32.gmra.mxu0 %v3624
  %v3692 = vpop.f32.mrf.mxu0
  %v3693 = vadd.f32 %v86, %v3692
  %v3694 = vpop.f32.mrf.mxu0
  %v3695 = vadd.f32 %v90, %v3694
  %3696 = vdwg.mxu0
  %3697 = vmatprep.subr.mxu0 0.0
  %3698 = vmatpush1.msra.mxu0 0.0
  %3699 = vmatprep.subr.mxu0 0.0
  %3700 = vmatpush1.msra.mxu0 0.0
  %3701 = vmatprep.subr.mxu0 0.0
  %3702 = vmatpush1.msra.mxu0 0.0
  %3703 = vmatprep.subr.mxu0 0.0
  %3704 = vmatpush1.msra.mxu0 0.0
  %3705 = vmatprep.subr.mxu0 %v118
  %3706 = vmatpush1.msra.mxu0 %v115
  %3707 = vmatprep.subr.mxu0 %v75
  %3708 = vmatpush1.msra.mxu0 %v74
  %3709 = vmatprep.subr.mxu0 %v71
  %3710 = vmatpush1.msra.mxu0 %v70
  %3711 = vmatprep.subr.mxu0 %v67
  %3712 = vmatpush1.msra.mxu0 %v66
  %3713 = vmatprep.subr.mxu0 %v63
  %3714 = vmatpush1.msra.mxu0 %v62
  %3715 = vmatprep.subr.mxu0 %v59
  %3716 = vmatpush1.msra.mxu0 %v58
  %3717 = vmatprep.subr.mxu0 %v55
  %3718 = vmatpush1.msra.mxu0 %v54
  %3719 = vmatprep.subr.mxu0 %v51
  %3720 = vmatpush1.msra.mxu0 %v50
  %3721 = vmatprep.subr.mxu0 %v47
  %3722 = vmatpush1.msra.mxu0 %v46
  %3723 = vmatprep.subr.mxu0 %v43
  %3724 = vmatpush1.msra.mxu0 %v42
  %3725 = vmatprep.subr.mxu0 %v39
  %3726 = vmatpush1.msra.mxu0 %v38
  %3727 = vmatprep.subr.mxu0 %v35
  %3728 = vmatpush1.msra.mxu0 %v34
  %3729 = vmatprep.subr.mxu0 0.0
  %3730 = vmatpush2.msra.mxu0 0.0
  %3731 = vmatprep.subr.mxu0 0.0
  %3732 = vmatpush2.msra.mxu0 0.0
  %3733 = vmatprep.subr.mxu0 0.0
  %3734 = vmatpush2.msra.mxu0 0.0
  %3735 = vmatprep.subr.mxu0 0.0
  %3736 = vmatpush2.msra.mxu0 0.0
  %3737 = vmatprep.subr.mxu0 0.0
  %3738 = vmatpush2.msra.mxu0 0.0
  %3739 = vmatprep.subr.mxu0 0.0
  %3740 = vmatpush2.msra.mxu0 0.0
  %3741 = vmatprep.subr.mxu0 0.0
  %3742 = vmatpush2.msra.mxu0 0.0
  %3743 = vmatprep.subr.mxu0 0.0
  %3744 = vmatpush2.msra.mxu0 0.0
  %3745 = vmatprep.subr.mxu0 0.0
  %3746 = vmatpush2.msra.mxu0 0.0
  %3747 = vmatprep.subr.mxu0 0.0
  %3748 = vmatpush2.msra.mxu0 0.0
  %3749 = vmatprep.subr.mxu0 0.0
  %3750 = vmatpush2.msra.mxu0 0.0
  %3751 = vmatprep.subr.mxu0 0.0
  %3752 = vmatpush2.msra.mxu0 0.0
  %3753 = vmatprep.subr.mxu0 0.0
  %3754 = vmatpush2.msra.mxu0 0.0
  %3755 = vmatprep.subr.mxu0 0.0
  %3756 = vmatpush2.msra.mxu0 0.0
  %3757 = vmatprep.subr.mxu0 0.0
  %3758 = vmatpush2.msra.mxu0 0.0
  %3759 = vmatprep.subr.mxu0 0.0
  %3760 = vmatpush2.msra.mxu0 0.0
  %3761 = vmatprep.mubr.f32.mxu0 0.0
  %3762 = vmatmul.mubr.f32.gmra.mxu0 %v3624
  %v3763 = vpop.f32.mrf.mxu0
  %v3764 = vadd.f32 %v94, %v3763
  %v3765 = vpop.f32.mrf.mxu0
  %v3766 = vadd.f32 %v98, %v3765
  %3767 = vdwg.mxu0
  %v3768 = vmax.f32 %v3546, %v3693
  %v3769 = vmax.f32 %v3548, %v3695
  %v3770 = vmax.f32 %v3617, %v3764
  %v3771 = vmax.f32 %v3619, %v3766
  %v3772 = vmax.f32 %v3768, 0.0
  %v3773 = vmax.f32 %v3769, 0.0
  %v3774 = vmax.f32 %v3770, 0.0
  %v3775 = vmax.f32 %v3771, 0.0
  %3779 = vrot.lane.b32.xlu0 %v3773, 32
  %v3780 = vpop.permute.xlu0 %3779
  %3781 = vrot.lane.b32.xlu0 %v3774, 32
  %v3782 = vpop.permute.xlu0 %3781
  %3783 = vrot.lane.b32.xlu0 %v3775, 32
  %v3784 = vpop.permute.xlu0 %3783
  %v3785 = vsel %vm426, %v3780, %v3782
  %v3786 = vsel %vm426, %v3782, %v3784
  %v3789 = vmax.f32 %v3772, %v3785
  %v3790 = vmax.f32 %v3773, %v3786
  %s3791 = scalar_lea.vmem %s3, 1792
  %v3792 = vld [vmem:[%s3791] sm:$0xff]
  %v3793 = vld [vmem:[%s3791 + $0x8] sm:$0xff]
  %v3794 = vld [vmem:[%s3791 + $0x10] sm:$0xff]
  %v3795 = vld [vmem:[%s3791 + $0x18] sm:$0xff]
  %v3796 = vld [vmem:[%s3791 + $0x20] sm:$0xff]
  %v3797 = vld [vmem:[%s3791 + $0x28] sm:$0xff]
  %v3798 = vld [vmem:[%s3791 + $0x30] sm:$0xff]
  %v3799 = vld [vmem:[%s3791 + $0x38] sm:$0xff]
  %v3800 = vld [vmem:[%s3791 + $0x40] sm:$0xff]
  %v3801 = vld [vmem:[%s3791 + $0x48] sm:$0xff]
  %v3802 = vld [vmem:[%s3791 + $0x50] sm:$0xff]
  %v3803 = vld [vmem:[%s3791 + $0x58] sm:$0xff]
  %v3804 = vld [vmem:[%s3791 + $0x60] sm:$0xff]
  %v3805 = vld [vmem:[%s3791 + $0x68] sm:$0xff]
  %v3806 = vld [vmem:[%s3791 + $0x70] sm:$0xff]
  %v3807 = vld [vmem:[%s3791 + $0x78] sm:$0xff]
  %v3808 = vld [vmem:[%s3791 + $0x80] sm:$0xff]
  %v3809 = vld [vmem:[%s3791 + $0x88] sm:$0xff]
  %v3810 = vld [vmem:[%s3791 + $0x90] sm:$0xff]
  %v3811 = vld [vmem:[%s3791 + $0x98] sm:$0xff]
  %v3812 = vld [vmem:[%s3791 + $0xa0] sm:$0xff]
  %v3813 = vld [vmem:[%s3791 + $0xa8] sm:$0xff]
  %v3814 = vld [vmem:[%s3791 + $0xb0] sm:$0xff]
  %v3815 = vld [vmem:[%s3791 + $0xb8] sm:$0xff]
  %v3816 = vld [vmem:[%s3791 + $0xc0] sm:$0xff]
  %v3817 = vld [vmem:[%s3791 + $0xc8] sm:$0xff]
  %v3818 = vld [vmem:[%s3791 + $0xd0] sm:$0xff]
  %v3819 = vld [vmem:[%s3791 + $0xd8] sm:$0xff]
  %v3821 = vsel %vm807, %v3790, 0
  %3823 = vmatprep.subr.mxu0 0.0
  %3824 = vmatpush1.msra.mxu0 %v3807
  %3825 = vmatprep.subr.mxu0 0.0
  %3826 = vmatpush1.msra.mxu0 %v3806
  %3827 = vmatprep.subr.mxu0 0.0
  %3828 = vmatpush1.msra.mxu0 %v3805
  %3829 = vmatprep.subr.mxu0 0.0
  %3830 = vmatpush1.msra.mxu0 %v3804
  %3831 = vmatprep.subr.mxu0 0.0
  %3832 = vmatpush1.msra.mxu0 %v3803
  %3833 = vmatprep.subr.mxu0 0.0
  %3834 = vmatpush1.msra.mxu0 %v3802
  %3835 = vmatprep.subr.mxu0 0.0
  %3836 = vmatpush1.msra.mxu0 %v3801
  %3837 = vmatprep.subr.mxu0 0.0
  %3838 = vmatpush1.msra.mxu0 %v3800
  %3839 = vmatprep.subr.mxu0 0.0
  %3840 = vmatpush1.msra.mxu0 %v3799
  %3841 = vmatprep.subr.mxu0 0.0
  %3842 = vmatpush1.msra.mxu0 %v3798
  %3843 = vmatprep.subr.mxu0 0.0
  %3844 = vmatpush1.msra.mxu0 %v3797
  %3845 = vmatprep.subr.mxu0 0.0
  %3846 = vmatpush1.msra.mxu0 %v3796
  %3847 = vmatprep.subr.mxu0 0.0
  %3848 = vmatpush1.msra.mxu0 %v3795
  %3849 = vmatprep.subr.mxu0 0.0
  %3850 = vmatpush1.msra.mxu0 %v3794
  %3851 = vmatprep.subr.mxu0 0.0
  %3852 = vmatpush1.msra.mxu0 %v3793
  %3853 = vmatprep.subr.mxu0 0.0
  %3854 = vmatpush1.msra.mxu0 %v3792
  %3855 = vmatprep.subr.mxu0 0.0
  %3856 = vmatpush2.msra.mxu0 0.0
  %3857 = vmatprep.subr.mxu0 0.0
  %3858 = vmatpush2.msra.mxu0 0.0
  %3859 = vmatprep.subr.mxu0 0.0
  %3860 = vmatpush2.msra.mxu0 0.0
  %3861 = vmatprep.subr.mxu0 0.0
  %3862 = vmatpush2.msra.mxu0 0.0
  %3863 = vmatprep.subr.mxu0 0.0
  %3864 = vmatpush2.msra.mxu0 %v3819
  %3865 = vmatprep.subr.mxu0 0.0
  %3866 = vmatpush2.msra.mxu0 %v3818
  %3867 = vmatprep.subr.mxu0 0.0
  %3868 = vmatpush2.msra.mxu0 %v3817
  %3869 = vmatprep.subr.mxu0 0.0
  %3870 = vmatpush2.msra.mxu0 %v3816
  %3871 = vmatprep.subr.mxu0 0.0
  %3872 = vmatpush2.msra.mxu0 %v3815
  %3873 = vmatprep.subr.mxu0 0.0
  %3874 = vmatpush2.msra.mxu0 %v3814
  %3875 = vmatprep.subr.mxu0 0.0
  %3876 = vmatpush2.msra.mxu0 %v3813
  %3877 = vmatprep.subr.mxu0 0.0
  %3878 = vmatpush2.msra.mxu0 %v3812
  %3879 = vmatprep.subr.mxu0 0.0
  %3880 = vmatpush2.msra.mxu0 %v3811
  %3881 = vmatprep.subr.mxu0 0.0
  %3882 = vmatpush2.msra.mxu0 %v3810
  %3883 = vmatprep.subr.mxu0 0.0
  %3884 = vmatpush2.msra.mxu0 %v3809
  %3885 = vmatprep.subr.mxu0 0.0
  %3886 = vmatpush2.msra.mxu0 %v3808
  %3887 = vmatprep.mubr.f32.mxu0 %v3821
  %3888 = vmatmul.mubr.f32.gmra.mxu0 %v3789
  %v3889 = vpop.f32.mrf.mxu0
  %v3890 = vadd.f32 0.0, %v3889
  %v3891 = vpop.f32.mrf.mxu0
  %3892 = vdwg.mxu0
  %v3893 = vadd.f32 %v3473, %v3890
  %s3894 = scalar_lea.vmem %s0, 144
  %v3895 = vld [vmem:[%s3894] sm:$0xff]
  %v3897 = vsel %vm103, %v3895, 0
  %3899 = vmatprep.subr.mxu0 0.0
  %3900 = vmatpush1.msra.mxu0 0.0
  %3901 = vmatprep.subr.mxu0 0.0
  %3902 = vmatpush1.msra.mxu0 0.0
  %3903 = vmatprep.subr.mxu0 0.0
  %3904 = vmatpush1.msra.mxu0 0.0
  %3905 = vmatprep.subr.mxu0 0.0
  %3906 = vmatpush1.msra.mxu0 0.0
  %3907 = vmatprep.subr.mxu0 %v112
  %3908 = vmatpush1.msra.mxu0 %v109
  %3909 = vmatprep.subr.mxu0 %v73
  %3910 = vmatpush1.msra.mxu0 %v72
  %3911 = vmatprep.subr.mxu0 %v69
  %3912 = vmatpush1.msra.mxu0 %v68
  %3913 = vmatprep.subr.mxu0 %v65
  %3914 = vmatpush1.msra.mxu0 %v64
  %3915 = vmatprep.subr.mxu0 %v61
  %3916 = vmatpush1.msra.mxu0 %v60
  %3917 = vmatprep.subr.mxu0 %v57
  %3918 = vmatpush1.msra.mxu0 %v56
  %3919 = vmatprep.subr.mxu0 %v53
  %3920 = vmatpush1.msra.mxu0 %v52
  %3921 = vmatprep.subr.mxu0 %v49
  %3922 = vmatpush1.msra.mxu0 %v48
  %3923 = vmatprep.subr.mxu0 %v45
  %3924 = vmatpush1.msra.mxu0 %v44
  %3925 = vmatprep.subr.mxu0 %v41
  %3926 = vmatpush1.msra.mxu0 %v40
  %3927 = vmatprep.subr.mxu0 %v37
  %3928 = vmatpush1.msra.mxu0 %v36
  %3929 = vmatprep.subr.mxu0 %v33
  %3930 = vmatpush1.msra.mxu0 %v32
  %3931 = vmatprep.subr.mxu0 0.0
  %3932 = vmatpush2.msra.mxu0 0.0
  %3933 = vmatprep.subr.mxu0 0.0
  %3934 = vmatpush2.msra.mxu0 0.0
  %3935 = vmatprep.subr.mxu0 0.0
  %3936 = vmatpush2.msra.mxu0 0.0
  %3937 = vmatprep.subr.mxu0 0.0
  %3938 = vmatpush2.msra.mxu0 0.0
  %3939 = vmatprep.subr.mxu0 0.0
  %3940 = vmatpush2.msra.mxu0 0.0
  %3941 = vmatprep.subr.mxu0 0.0
  %3942 = vmatpush2.msra.mxu0 0.0
  %3943 = vmatprep.subr.mxu0 0.0
  %3944 = vmatpush2.msra.mxu0 0.0
  %3945 = vmatprep.subr.mxu0 0.0
  %3946 = vmatpush2.msra.mxu0 0.0
  %3947 = vmatprep.subr.mxu0 0.0
  %3948 = vmatpush2.msra.mxu0 0.0
  %3949 = vmatprep.subr.mxu0 0.0
  %3950 = vmatpush2.msra.mxu0 0.0
  %3951 = vmatprep.subr.mxu0 0.0
  %3952 = vmatpush2.msra.mxu0 0.0
  %3953 = vmatprep.subr.mxu0 0.0
  %3954 = vmatpush2.msra.mxu0 0.0
  %3955 = vmatprep.subr.mxu0 0.0
  %3956 = vmatpush2.msra.mxu0 0.0
  %3957 = vmatprep.subr.mxu0 0.0
  %3958 = vmatpush2.msra.mxu0 0.0
  %3959 = vmatprep.subr.mxu0 0.0
  %3960 = vmatpush2.msra.mxu0 0.0
  %3961 = vmatprep.subr.mxu0 0.0
  %3962 = vmatpush2.msra.mxu0 0.0
  %3963 = vmatprep.mubr.f32.mxu0 0.0
  %3964 = vmatmul.mubr.f32.gmra.mxu0 %v3897
  %v3965 = vpop.f32.mrf.mxu0
  %v3966 = vadd.f32 %v86, %v3965
  %v3967 = vpop.f32.mrf.mxu0
  %v3968 = vadd.f32 %v90, %v3967
  %3969 = vdwg.mxu0
  %3970 = vmatprep.subr.mxu0 0.0
  %3971 = vmatpush1.msra.mxu0 0.0
  %3972 = vmatprep.subr.mxu0 0.0
  %3973 = vmatpush1.msra.mxu0 0.0
  %3974 = vmatprep.subr.mxu0 0.0
  %3975 = vmatpush1.msra.mxu0 0.0
  %3976 = vmatprep.subr.mxu0 0.0
  %3977 = vmatpush1.msra.mxu0 0.0
  %3978 = vmatprep.subr.mxu0 %v118
  %3979 = vmatpush1.msra.mxu0 %v115
  %3980 = vmatprep.subr.mxu0 %v75
  %3981 = vmatpush1.msra.mxu0 %v74
  %3982 = vmatprep.subr.mxu0 %v71
  %3983 = vmatpush1.msra.mxu0 %v70
  %3984 = vmatprep.subr.mxu0 %v67
  %3985 = vmatpush1.msra.mxu0 %v66
  %3986 = vmatprep.subr.mxu0 %v63
  %3987 = vmatpush1.msra.mxu0 %v62
  %3988 = vmatprep.subr.mxu0 %v59
  %3989 = vmatpush1.msra.mxu0 %v58
  %3990 = vmatprep.subr.mxu0 %v55
  %3991 = vmatpush1.msra.mxu0 %v54
  %3992 = vmatprep.subr.mxu0 %v51
  %3993 = vmatpush1.msra.mxu0 %v50
  %3994 = vmatprep.subr.mxu0 %v47
  %3995 = vmatpush1.msra.mxu0 %v46
  %3996 = vmatprep.subr.mxu0 %v43
  %3997 = vmatpush1.msra.mxu0 %v42
  %3998 = vmatprep.subr.mxu0 %v39
  %3999 = vmatpush1.msra.mxu0 %v38
  %4000 = vmatprep.subr.mxu0 %v35
  %4001 = vmatpush1.msra.mxu0 %v34
  %4002 = vmatprep.subr.mxu0 0.0
  %4003 = vmatpush2.msra.mxu0 0.0
  %4004 = vmatprep.subr.mxu0 0.0
  %4005 = vmatpush2.msra.mxu0 0.0
  %4006 = vmatprep.subr.mxu0 0.0
  %4007 = vmatpush2.msra.mxu0 0.0
  %4008 = vmatprep.subr.mxu0 0.0
  %4009 = vmatpush2.msra.mxu0 0.0
  %4010 = vmatprep.subr.mxu0 0.0
  %4011 = vmatpush2.msra.mxu0 0.0
  %4012 = vmatprep.subr.mxu0 0.0
  %4013 = vmatpush2.msra.mxu0 0.0
  %4014 = vmatprep.subr.mxu0 0.0
  %4015 = vmatpush2.msra.mxu0 0.0
  %4016 = vmatprep.subr.mxu0 0.0
  %4017 = vmatpush2.msra.mxu0 0.0
  %4018 = vmatprep.subr.mxu0 0.0
  %4019 = vmatpush2.msra.mxu0 0.0
  %4020 = vmatprep.subr.mxu0 0.0
  %4021 = vmatpush2.msra.mxu0 0.0
  %4022 = vmatprep.subr.mxu0 0.0
  %4023 = vmatpush2.msra.mxu0 0.0
  %4024 = vmatprep.subr.mxu0 0.0
  %4025 = vmatpush2.msra.mxu0 0.0
  %4026 = vmatprep.subr.mxu0 0.0
  %4027 = vmatpush2.msra.mxu0 0.0
  %4028 = vmatprep.subr.mxu0 0.0
  %4029 = vmatpush2.msra.mxu0 0.0
  %4030 = vmatprep.subr.mxu0 0.0
  %4031 = vmatpush2.msra.mxu0 0.0
  %4032 = vmatprep.subr.mxu0 0.0
  %4033 = vmatpush2.msra.mxu0 0.0
  %4034 = vmatprep.mubr.f32.mxu0 0.0
  %4035 = vmatmul.mubr.f32.gmra.mxu0 %v3897
  %v4036 = vpop.f32.mrf.mxu0
  %v4037 = vadd.f32 %v94, %v4036
  %v4038 = vpop.f32.mrf.mxu0
  %v4039 = vadd.f32 %v98, %v4038
  %4040 = vdwg.mxu0
  %s4041 = scalar_lea.vmem %s0, 152
  %v4042 = vld [vmem:[%s4041] sm:$0xff]
  %v4044 = vsel %vm103, %v4042, 0
  %4046 = vmatprep.subr.mxu0 0.0
  %4047 = vmatpush1.msra.mxu0 0.0
  %4048 = vmatprep.subr.mxu0 0.0
  %4049 = vmatpush1.msra.mxu0 0.0
  %4050 = vmatprep.subr.mxu0 0.0
  %4051 = vmatpush1.msra.mxu0 0.0
  %4052 = vmatprep.subr.mxu0 0.0
  %4053 = vmatpush1.msra.mxu0 0.0
  %4054 = vmatprep.subr.mxu0 %v112
  %4055 = vmatpush1.msra.mxu0 %v109
  %4056 = vmatprep.subr.mxu0 %v73
  %4057 = vmatpush1.msra.mxu0 %v72
  %4058 = vmatprep.subr.mxu0 %v69
  %4059 = vmatpush1.msra.mxu0 %v68
  %4060 = vmatprep.subr.mxu0 %v65
  %4061 = vmatpush1.msra.mxu0 %v64
  %4062 = vmatprep.subr.mxu0 %v61
  %4063 = vmatpush1.msra.mxu0 %v60
  %4064 = vmatprep.subr.mxu0 %v57
  %4065 = vmatpush1.msra.mxu0 %v56
  %4066 = vmatprep.subr.mxu0 %v53
  %4067 = vmatpush1.msra.mxu0 %v52
  %4068 = vmatprep.subr.mxu0 %v49
  %4069 = vmatpush1.msra.mxu0 %v48
  %4070 = vmatprep.subr.mxu0 %v45
  %4071 = vmatpush1.msra.mxu0 %v44
  %4072 = vmatprep.subr.mxu0 %v41
  %4073 = vmatpush1.msra.mxu0 %v40
  %4074 = vmatprep.subr.mxu0 %v37
  %4075 = vmatpush1.msra.mxu0 %v36
  %4076 = vmatprep.subr.mxu0 %v33
  %4077 = vmatpush1.msra.mxu0 %v32
  %4078 = vmatprep.subr.mxu0 0.0
  %4079 = vmatpush2.msra.mxu0 0.0
  %4080 = vmatprep.subr.mxu0 0.0
  %4081 = vmatpush2.msra.mxu0 0.0
  %4082 = vmatprep.subr.mxu0 0.0
  %4083 = vmatpush2.msra.mxu0 0.0
  %4084 = vmatprep.subr.mxu0 0.0
  %4085 = vmatpush2.msra.mxu0 0.0
  %4086 = vmatprep.subr.mxu0 0.0
  %4087 = vmatpush2.msra.mxu0 0.0
  %4088 = vmatprep.subr.mxu0 0.0
  %4089 = vmatpush2.msra.mxu0 0.0
  %4090 = vmatprep.subr.mxu0 0.0
  %4091 = vmatpush2.msra.mxu0 0.0
  %4092 = vmatprep.subr.mxu0 0.0
  %4093 = vmatpush2.msra.mxu0 0.0
  %4094 = vmatprep.subr.mxu0 0.0
  %4095 = vmatpush2.msra.mxu0 0.0
  %4096 = vmatprep.subr.mxu0 0.0
  %4097 = vmatpush2.msra.mxu0 0.0
  %4098 = vmatprep.subr.mxu0 0.0
  %4099 = vmatpush2.msra.mxu0 0.0
  %4100 = vmatprep.subr.mxu0 0.0
  %4101 = vmatpush2.msra.mxu0 0.0
  %4102 = vmatprep.subr.mxu0 0.0
  %4103 = vmatpush2.msra.mxu0 0.0
  %4104 = vmatprep.subr.mxu0 0.0
  %4105 = vmatpush2.msra.mxu0 0.0
  %4106 = vmatprep.subr.mxu0 0.0
  %4107 = vmatpush2.msra.mxu0 0.0
  %4108 = vmatprep.subr.mxu0 0.0
  %4109 = vmatpush2.msra.mxu0 0.0
  %4110 = vmatprep.mubr.f32.mxu0 0.0
  %4111 = vmatmul.mubr.f32.gmra.mxu0 %v4044
  %v4112 = vpop.f32.mrf.mxu0
  %v4113 = vadd.f32 %v86, %v4112
  %v4114 = vpop.f32.mrf.mxu0
  %v4115 = vadd.f32 %v90, %v4114
  %4116 = vdwg.mxu0
  %4117 = vmatprep.subr.mxu0 0.0
  %4118 = vmatpush1.msra.mxu0 0.0
  %4119 = vmatprep.subr.mxu0 0.0
  %4120 = vmatpush1.msra.mxu0 0.0
  %4121 = vmatprep.subr.mxu0 0.0
  %4122 = vmatpush1.msra.mxu0 0.0
  %4123 = vmatprep.subr.mxu0 0.0
  %4124 = vmatpush1.msra.mxu0 0.0
  %4125 = vmatprep.subr.mxu0 %v118
  %4126 = vmatpush1.msra.mxu0 %v115
  %4127 = vmatprep.subr.mxu0 %v75
  %4128 = vmatpush1.msra.mxu0 %v74
  %4129 = vmatprep.subr.mxu0 %v71
  %4130 = vmatpush1.msra.mxu0 %v70
  %4131 = vmatprep.subr.mxu0 %v67
  %4132 = vmatpush1.msra.mxu0 %v66
  %4133 = vmatprep.subr.mxu0 %v63
  %4134 = vmatpush1.msra.mxu0 %v62
  %4135 = vmatprep.subr.mxu0 %v59
  %4136 = vmatpush1.msra.mxu0 %v58
  %4137 = vmatprep.subr.mxu0 %v55
  %4138 = vmatpush1.msra.mxu0 %v54
  %4139 = vmatprep.subr.mxu0 %v51
  %4140 = vmatpush1.msra.mxu0 %v50
  %4141 = vmatprep.subr.mxu0 %v47
  %4142 = vmatpush1.msra.mxu0 %v46
  %4143 = vmatprep.subr.mxu0 %v43
  %4144 = vmatpush1.msra.mxu0 %v42
  %4145 = vmatprep.subr.mxu0 %v39
  %4146 = vmatpush1.msra.mxu0 %v38
  %4147 = vmatprep.subr.mxu0 %v35
  %4148 = vmatpush1.msra.mxu0 %v34
  %4149 = vmatprep.subr.mxu0 0.0
  %4150 = vmatpush2.msra.mxu0 0.0
  %4151 = vmatprep.subr.mxu0 0.0
  %4152 = vmatpush2.msra.mxu0 0.0
  %4153 = vmatprep.subr.mxu0 0.0
  %4154 = vmatpush2.msra.mxu0 0.0
  %4155 = vmatprep.subr.mxu0 0.0
  %4156 = vmatpush2.msra.mxu0 0.0
  %4157 = vmatprep.subr.mxu0 0.0
  %4158 = vmatpush2.msra.mxu0 0.0
  %4159 = vmatprep.subr.mxu0 0.0
  %4160 = vmatpush2.msra.mxu0 0.0
  %4161 = vmatprep.subr.mxu0 0.0
  %4162 = vmatpush2.msra.mxu0 0.0
  %4163 = vmatprep.subr.mxu0 0.0
  %4164 = vmatpush2.msra.mxu0 0.0
  %4165 = vmatprep.subr.mxu0 0.0
  %4166 = vmatpush2.msra.mxu0 0.0
  %4167 = vmatprep.subr.mxu0 0.0
  %4168 = vmatpush2.msra.mxu0 0.0
  %4169 = vmatprep.subr.mxu0 0.0
  %4170 = vmatpush2.msra.mxu0 0.0
  %4171 = vmatprep.subr.mxu0 0.0
  %4172 = vmatpush2.msra.mxu0 0.0
  %4173 = vmatprep.subr.mxu0 0.0
  %4174 = vmatpush2.msra.mxu0 0.0
  %4175 = vmatprep.subr.mxu0 0.0
  %4176 = vmatpush2.msra.mxu0 0.0
  %4177 = vmatprep.subr.mxu0 0.0
  %4178 = vmatpush2.msra.mxu0 0.0
  %4179 = vmatprep.subr.mxu0 0.0
  %4180 = vmatpush2.msra.mxu0 0.0
  %4181 = vmatprep.mubr.f32.mxu0 0.0
  %4182 = vmatmul.mubr.f32.gmra.mxu0 %v4044
  %v4183 = vpop.f32.mrf.mxu0
  %v4184 = vadd.f32 %v94, %v4183
  %v4185 = vpop.f32.mrf.mxu0
  %v4186 = vadd.f32 %v98, %v4185
  %4187 = vdwg.mxu0
  %v4188 = vmax.f32 %v3966, %v4113
  %v4189 = vmax.f32 %v3968, %v4115
  %v4190 = vmax.f32 %v4037, %v4184
  %v4191 = vmax.f32 %v4039, %v4186
  %v4192 = vmax.f32 %v4188, 0.0
  %v4193 = vmax.f32 %v4189, 0.0
  %v4194 = vmax.f32 %v4190, 0.0
  %v4195 = vmax.f32 %v4191, 0.0
  %4199 = vrot.lane.b32.xlu0 %v4193, 32
  %v4200 = vpop.permute.xlu0 %4199
  %4201 = vrot.lane.b32.xlu0 %v4194, 32
  %v4202 = vpop.permute.xlu0 %4201
  %4203 = vrot.lane.b32.xlu0 %v4195, 32
  %v4204 = vpop.permute.xlu0 %4203
  %v4205 = vsel %vm426, %v4200, %v4202
  %v4206 = vsel %vm426, %v4202, %v4204
  %v4209 = vmax.f32 %v4192, %v4205
  %v4210 = vmax.f32 %v4193, %v4206
  %s4211 = scalar_lea.vmem %s3, 2016
  %v4212 = vld [vmem:[%s4211] sm:$0xff]
  %v4213 = vld [vmem:[%s4211 + $0x8] sm:$0xff]
  %v4214 = vld [vmem:[%s4211 + $0x10] sm:$0xff]
  %v4215 = vld [vmem:[%s4211 + $0x18] sm:$0xff]
  %v4216 = vld [vmem:[%s4211 + $0x20] sm:$0xff]
  %v4217 = vld [vmem:[%s4211 + $0x28] sm:$0xff]
  %v4218 = vld [vmem:[%s4211 + $0x30] sm:$0xff]
  %v4219 = vld [vmem:[%s4211 + $0x38] sm:$0xff]
  %v4220 = vld [vmem:[%s4211 + $0x40] sm:$0xff]
  %v4221 = vld [vmem:[%s4211 + $0x48] sm:$0xff]
  %v4222 = vld [vmem:[%s4211 + $0x50] sm:$0xff]
  %v4223 = vld [vmem:[%s4211 + $0x58] sm:$0xff]
  %v4224 = vld [vmem:[%s4211 + $0x60] sm:$0xff]
  %v4225 = vld [vmem:[%s4211 + $0x68] sm:$0xff]
  %v4226 = vld [vmem:[%s4211 + $0x70] sm:$0xff]
  %v4227 = vld [vmem:[%s4211 + $0x78] sm:$0xff]
  %v4228 = vld [vmem:[%s4211 + $0x80] sm:$0xff]
  %v4229 = vld [vmem:[%s4211 + $0x88] sm:$0xff]
  %v4230 = vld [vmem:[%s4211 + $0x90] sm:$0xff]
  %v4231 = vld [vmem:[%s4211 + $0x98] sm:$0xff]
  %v4232 = vld [vmem:[%s4211 + $0xa0] sm:$0xff]
  %v4233 = vld [vmem:[%s4211 + $0xa8] sm:$0xff]
  %v4234 = vld [vmem:[%s4211 + $0xb0] sm:$0xff]
  %v4235 = vld [vmem:[%s4211 + $0xb8] sm:$0xff]
  %v4236 = vld [vmem:[%s4211 + $0xc0] sm:$0xff]
  %v4237 = vld [vmem:[%s4211 + $0xc8] sm:$0xff]
  %v4238 = vld [vmem:[%s4211 + $0xd0] sm:$0xff]
  %v4239 = vld [vmem:[%s4211 + $0xd8] sm:$0xff]
  %v4241 = vsel %vm807, %v4210, 0
  %4243 = vmatprep.subr.mxu0 0.0
  %4244 = vmatpush1.msra.mxu0 %v4227
  %4245 = vmatprep.subr.mxu0 0.0
  %4246 = vmatpush1.msra.mxu0 %v4226
  %4247 = vmatprep.subr.mxu0 0.0
  %4248 = vmatpush1.msra.mxu0 %v4225
  %4249 = vmatprep.subr.mxu0 0.0
  %4250 = vmatpush1.msra.mxu0 %v4224
  %4251 = vmatprep.subr.mxu0 0.0
  %4252 = vmatpush1.msra.mxu0 %v4223
  %4253 = vmatprep.subr.mxu0 0.0
  %4254 = vmatpush1.msra.mxu0 %v4222
  %4255 = vmatprep.subr.mxu0 0.0
  %4256 = vmatpush1.msra.mxu0 %v4221
  %4257 = vmatprep.subr.mxu0 0.0
  %4258 = vmatpush1.msra.mxu0 %v4220
  %4259 = vmatprep.subr.mxu0 0.0
  %4260 = vmatpush1.msra.mxu0 %v4219
  %4261 = vmatprep.subr.mxu0 0.0
  %4262 = vmatpush1.msra.mxu0 %v4218
  %4263 = vmatprep.subr.mxu0 0.0
  %4264 = vmatpush1.msra.mxu0 %v4217
  %4265 = vmatprep.subr.mxu0 0.0
  %4266 = vmatpush1.msra.mxu0 %v4216
  %4267 = vmatprep.subr.mxu0 0.0
  %4268 = vmatpush1.msra.mxu0 %v4215
  %4269 = vmatprep.subr.mxu0 0.0
  %4270 = vmatpush1.msra.mxu0 %v4214
  %4271 = vmatprep.subr.mxu0 0.0
  %4272 = vmatpush1.msra.mxu0 %v4213
  %4273 = vmatprep.subr.mxu0 0.0
  %4274 = vmatpush1.msra.mxu0 %v4212
  %4275 = vmatprep.subr.mxu0 0.0
  %4276 = vmatpush2.msra.mxu0 0.0
  %4277 = vmatprep.subr.mxu0 0.0
  %4278 = vmatpush2.msra.mxu0 0.0
  %4279 = vmatprep.subr.mxu0 0.0
  %4280 = vmatpush2.msra.mxu0 0.0
  %4281 = vmatprep.subr.mxu0 0.0
  %4282 = vmatpush2.msra.mxu0 0.0
  %4283 = vmatprep.subr.mxu0 0.0
  %4284 = vmatpush2.msra.mxu0 %v4239
  %4285 = vmatprep.subr.mxu0 0.0
  %4286 = vmatpush2.msra.mxu0 %v4238
  %4287 = vmatprep.subr.mxu0 0.0
  %4288 = vmatpush2.msra.mxu0 %v4237
  %4289 = vmatprep.subr.mxu0 0.0
  %4290 = vmatpush2.msra.mxu0 %v4236
  %4291 = vmatprep.subr.mxu0 0.0
  %4292 = vmatpush2.msra.mxu0 %v4235
  %4293 = vmatprep.subr.mxu0 0.0
  %4294 = vmatpush2.msra.mxu0 %v4234
  %4295 = vmatprep.subr.mxu0 0.0
  %4296 = vmatpush2.msra.mxu0 %v4233
  %4297 = vmatprep.subr.mxu0 0.0
  %4298 = vmatpush2.msra.mxu0 %v4232
  %4299 = vmatprep.subr.mxu0 0.0
  %4300 = vmatpush2.msra.mxu0 %v4231
  %4301 = vmatprep.subr.mxu0 0.0
  %4302 = vmatpush2.msra.mxu0 %v4230
  %4303 = vmatprep.subr.mxu0 0.0
  %4304 = vmatpush2.msra.mxu0 %v4229
  %4305 = vmatprep.subr.mxu0 0.0
  %4306 = vmatpush2.msra.mxu0 %v4228
  %4307 = vmatprep.mubr.f32.mxu0 %v4241
  %4308 = vmatmul.mubr.f32.gmra.mxu0 %v4209
  %v4309 = vpop.f32.mrf.mxu0
  %v4310 = vadd.f32 0.0, %v4309
  %v4311 = vpop.f32.mrf.mxu0
  %4312 = vdwg.mxu0
  %v4313 = vadd.f32 %v3893, %v4310
  %s4314 = scalar_lea.vmem %s0, 160
  %v4315 = vld [vmem:[%s4314] sm:$0xff]
  %v4317 = vsel %vm103, %v4315, 0
  %4319 = vmatprep.subr.mxu0 0.0
  %4320 = vmatpush1.msra.mxu0 0.0
  %4321 = vmatprep.subr.mxu0 0.0
  %4322 = vmatpush1.msra.mxu0 0.0
  %4323 = vmatprep.subr.mxu0 0.0
  %4324 = vmatpush1.msra.mxu0 0.0
  %4325 = vmatprep.subr.mxu0 0.0
  %4326 = vmatpush1.msra.mxu0 0.0
  %4327 = vmatprep.subr.mxu0 %v112
  %4328 = vmatpush1.msra.mxu0 %v109
  %4329 = vmatprep.subr.mxu0 %v73
  %4330 = vmatpush1.msra.mxu0 %v72
  %4331 = vmatprep.subr.mxu0 %v69
  %4332 = vmatpush1.msra.mxu0 %v68
  %4333 = vmatprep.subr.mxu0 %v65
  %4334 = vmatpush1.msra.mxu0 %v64
  %4335 = vmatprep.subr.mxu0 %v61
  %4336 = vmatpush1.msra.mxu0 %v60
  %4337 = vmatprep.subr.mxu0 %v57
  %4338 = vmatpush1.msra.mxu0 %v56
  %4339 = vmatprep.subr.mxu0 %v53
  %4340 = vmatpush1.msra.mxu0 %v52
  %4341 = vmatprep.subr.mxu0 %v49
  %4342 = vmatpush1.msra.mxu0 %v48
  %4343 = vmatprep.subr.mxu0 %v45
  %4344 = vmatpush1.msra.mxu0 %v44
  %4345 = vmatprep.subr.mxu0 %v41
  %4346 = vmatpush1.msra.mxu0 %v40
  %4347 = vmatprep.subr.mxu0 %v37
  %4348 = vmatpush1.msra.mxu0 %v36
  %4349 = vmatprep.subr.mxu0 %v33
  %4350 = vmatpush1.msra.mxu0 %v32
  %4351 = vmatprep.subr.mxu0 0.0
  %4352 = vmatpush2.msra.mxu0 0.0
  %4353 = vmatprep.subr.mxu0 0.0
  %4354 = vmatpush2.msra.mxu0 0.0
  %4355 = vmatprep.subr.mxu0 0.0
  %4356 = vmatpush2.msra.mxu0 0.0
  %4357 = vmatprep.subr.mxu0 0.0
  %4358 = vmatpush2.msra.mxu0 0.0
  %4359 = vmatprep.subr.mxu0 0.0
  %4360 = vmatpush2.msra.mxu0 0.0
  %4361 = vmatprep.subr.mxu0 0.0
  %4362 = vmatpush2.msra.mxu0 0.0
  %4363 = vmatprep.subr.mxu0 0.0
  %4364 = vmatpush2.msra.mxu0 0.0
  %4365 = vmatprep.subr.mxu0 0.0
  %4366 = vmatpush2.msra.mxu0 0.0
  %4367 = vmatprep.subr.mxu0 0.0
  %4368 = vmatpush2.msra.mxu0 0.0
  %4369 = vmatprep.subr.mxu0 0.0
  %4370 = vmatpush2.msra.mxu0 0.0
  %4371 = vmatprep.subr.mxu0 0.0
  %4372 = vmatpush2.msra.mxu0 0.0
  %4373 = vmatprep.subr.mxu0 0.0
  %4374 = vmatpush2.msra.mxu0 0.0
  %4375 = vmatprep.subr.mxu0 0.0
  %4376 = vmatpush2.msra.mxu0 0.0
  %4377 = vmatprep.subr.mxu0 0.0
  %4378 = vmatpush2.msra.mxu0 0.0
  %4379 = vmatprep.subr.mxu0 0.0
  %4380 = vmatpush2.msra.mxu0 0.0
  %4381 = vmatprep.subr.mxu0 0.0
  %4382 = vmatpush2.msra.mxu0 0.0
  %4383 = vmatprep.mubr.f32.mxu0 0.0
  %4384 = vmatmul.mubr.f32.gmra.mxu0 %v4317
  %v4385 = vpop.f32.mrf.mxu0
  %v4386 = vadd.f32 %v86, %v4385
  %v4387 = vpop.f32.mrf.mxu0
  %v4388 = vadd.f32 %v90, %v4387
  %4389 = vdwg.mxu0
  %4390 = vmatprep.subr.mxu0 0.0
  %4391 = vmatpush1.msra.mxu0 0.0
  %4392 = vmatprep.subr.mxu0 0.0
  %4393 = vmatpush1.msra.mxu0 0.0
  %4394 = vmatprep.subr.mxu0 0.0
  %4395 = vmatpush1.msra.mxu0 0.0
  %4396 = vmatprep.subr.mxu0 0.0
  %4397 = vmatpush1.msra.mxu0 0.0
  %4398 = vmatprep.subr.mxu0 %v118
  %4399 = vmatpush1.msra.mxu0 %v115
  %4400 = vmatprep.subr.mxu0 %v75
  %4401 = vmatpush1.msra.mxu0 %v74
  %4402 = vmatprep.subr.mxu0 %v71
  %4403 = vmatpush1.msra.mxu0 %v70
  %4404 = vmatprep.subr.mxu0 %v67
  %4405 = vmatpush1.msra.mxu0 %v66
  %4406 = vmatprep.subr.mxu0 %v63
  %4407 = vmatpush1.msra.mxu0 %v62
  %4408 = vmatprep.subr.mxu0 %v59
  %4409 = vmatpush1.msra.mxu0 %v58
  %4410 = vmatprep.subr.mxu0 %v55
  %4411 = vmatpush1.msra.mxu0 %v54
  %4412 = vmatprep.subr.mxu0 %v51
  %4413 = vmatpush1.msra.mxu0 %v50
  %4414 = vmatprep.subr.mxu0 %v47
  %4415 = vmatpush1.msra.mxu0 %v46
  %4416 = vmatprep.subr.mxu0 %v43
  %4417 = vmatpush1.msra.mxu0 %v42
  %4418 = vmatprep.subr.mxu0 %v39
  %4419 = vmatpush1.msra.mxu0 %v38
  %4420 = vmatprep.subr.mxu0 %v35
  %4421 = vmatpush1.msra.mxu0 %v34
  %4422 = vmatprep.subr.mxu0 0.0
  %4423 = vmatpush2.msra.mxu0 0.0
  %4424 = vmatprep.subr.mxu0 0.0
  %4425 = vmatpush2.msra.mxu0 0.0
  %4426 = vmatprep.subr.mxu0 0.0
  %4427 = vmatpush2.msra.mxu0 0.0
  %4428 = vmatprep.subr.mxu0 0.0
  %4429 = vmatpush2.msra.mxu0 0.0
  %4430 = vmatprep.subr.mxu0 0.0
  %4431 = vmatpush2.msra.mxu0 0.0
  %4432 = vmatprep.subr.mxu0 0.0
  %4433 = vmatpush2.msra.mxu0 0.0
  %4434 = vmatprep.subr.mxu0 0.0
  %4435 = vmatpush2.msra.mxu0 0.0
  %4436 = vmatprep.subr.mxu0 0.0
  %4437 = vmatpush2.msra.mxu0 0.0
  %4438 = vmatprep.subr.mxu0 0.0
  %4439 = vmatpush2.msra.mxu0 0.0
  %4440 = vmatprep.subr.mxu0 0.0
  %4441 = vmatpush2.msra.mxu0 0.0
  %4442 = vmatprep.subr.mxu0 0.0
  %4443 = vmatpush2.msra.mxu0 0.0
  %4444 = vmatprep.subr.mxu0 0.0
  %4445 = vmatpush2.msra.mxu0 0.0
  %4446 = vmatprep.subr.mxu0 0.0
  %4447 = vmatpush2.msra.mxu0 0.0
  %4448 = vmatprep.subr.mxu0 0.0
  %4449 = vmatpush2.msra.mxu0 0.0
  %4450 = vmatprep.subr.mxu0 0.0
  %4451 = vmatpush2.msra.mxu0 0.0
  %4452 = vmatprep.subr.mxu0 0.0
  %4453 = vmatpush2.msra.mxu0 0.0
  %4454 = vmatprep.mubr.f32.mxu0 0.0
  %4455 = vmatmul.mubr.f32.gmra.mxu0 %v4317
  %v4456 = vpop.f32.mrf.mxu0
  %v4457 = vadd.f32 %v94, %v4456
  %v4458 = vpop.f32.mrf.mxu0
  %v4459 = vadd.f32 %v98, %v4458
  %4460 = vdwg.mxu0
  %s4461 = scalar_lea.vmem %s0, 168
  %v4462 = vld [vmem:[%s4461] sm:$0xff]
  %v4464 = vsel %vm103, %v4462, 0
  %4466 = vmatprep.subr.mxu0 0.0
  %4467 = vmatpush1.msra.mxu0 0.0
  %4468 = vmatprep.subr.mxu0 0.0
  %4469 = vmatpush1.msra.mxu0 0.0
  %4470 = vmatprep.subr.mxu0 0.0
  %4471 = vmatpush1.msra.mxu0 0.0
  %4472 = vmatprep.subr.mxu0 0.0
  %4473 = vmatpush1.msra.mxu0 0.0
  %4474 = vmatprep.subr.mxu0 %v112
  %4475 = vmatpush1.msra.mxu0 %v109
  %4476 = vmatprep.subr.mxu0 %v73
  %4477 = vmatpush1.msra.mxu0 %v72
  %4478 = vmatprep.subr.mxu0 %v69
  %4479 = vmatpush1.msra.mxu0 %v68
  %4480 = vmatprep.subr.mxu0 %v65
  %4481 = vmatpush1.msra.mxu0 %v64
  %4482 = vmatprep.subr.mxu0 %v61
  %4483 = vmatpush1.msra.mxu0 %v60
  %4484 = vmatprep.subr.mxu0 %v57
  %4485 = vmatpush1.msra.mxu0 %v56
  %4486 = vmatprep.subr.mxu0 %v53
  %4487 = vmatpush1.msra.mxu0 %v52
  %4488 = vmatprep.subr.mxu0 %v49
  %4489 = vmatpush1.msra.mxu0 %v48
  %4490 = vmatprep.subr.mxu0 %v45
  %4491 = vmatpush1.msra.mxu0 %v44
  %4492 = vmatprep.subr.mxu0 %v41
  %4493 = vmatpush1.msra.mxu0 %v40
  %4494 = vmatprep.subr.mxu0 %v37
  %4495 = vmatpush1.msra.mxu0 %v36
  %4496 = vmatprep.subr.mxu0 %v33
  %4497 = vmatpush1.msra.mxu0 %v32
  %4498 = vmatprep.subr.mxu0 0.0
  %4499 = vmatpush2.msra.mxu0 0.0
  %4500 = vmatprep.subr.mxu0 0.0
  %4501 = vmatpush2.msra.mxu0 0.0
  %4502 = vmatprep.subr.mxu0 0.0
  %4503 = vmatpush2.msra.mxu0 0.0
  %4504 = vmatprep.subr.mxu0 0.0
  %4505 = vmatpush2.msra.mxu0 0.0
  %4506 = vmatprep.subr.mxu0 0.0
  %4507 = vmatpush2.msra.mxu0 0.0
  %4508 = vmatprep.subr.mxu0 0.0
  %4509 = vmatpush2.msra.mxu0 0.0
  %4510 = vmatprep.subr.mxu0 0.0
  %4511 = vmatpush2.msra.mxu0 0.0
  %4512 = vmatprep.subr.mxu0 0.0
  %4513 = vmatpush2.msra.mxu0 0.0
  %4514 = vmatprep.subr.mxu0 0.0
  %4515 = vmatpush2.msra.mxu0 0.0
  %4516 = vmatprep.subr.mxu0 0.0
  %4517 = vmatpush2.msra.mxu0 0.0
  %4518 = vmatprep.subr.mxu0 0.0
  %4519 = vmatpush2.msra.mxu0 0.0
  %4520 = vmatprep.subr.mxu0 0.0
  %4521 = vmatpush2.msra.mxu0 0.0
  %4522 = vmatprep.subr.mxu0 0.0
  %4523 = vmatpush2.msra.mxu0 0.0
  %4524 = vmatprep.subr.mxu0 0.0
  %4525 = vmatpush2.msra.mxu0 0.0
  %4526 = vmatprep.subr.mxu0 0.0
  %4527 = vmatpush2.msra.mxu0 0.0
  %4528 = vmatprep.subr.mxu0 0.0
  %4529 = vmatpush2.msra.mxu0 0.0
  %4530 = vmatprep.mubr.f32.mxu0 0.0
  %4531 = vmatmul.mubr.f32.gmra.mxu0 %v4464
  %v4532 = vpop.f32.mrf.mxu0
  %v4533 = vadd.f32 %v86, %v4532
  %v4534 = vpop.f32.mrf.mxu0
  %v4535 = vadd.f32 %v90, %v4534
  %4536 = vdwg.mxu0
  %4537 = vmatprep.subr.mxu0 0.0
  %4538 = vmatpush1.msra.mxu0 0.0
  %4539 = vmatprep.subr.mxu0 0.0
  %4540 = vmatpush1.msra.mxu0 0.0
  %4541 = vmatprep.subr.mxu0 0.0
  %4542 = vmatpush1.msra.mxu0 0.0
  %4543 = vmatprep.subr.mxu0 0.0
  %4544 = vmatpush1.msra.mxu0 0.0
  %4545 = vmatprep.subr.mxu0 %v118
  %4546 = vmatpush1.msra.mxu0 %v115
  %4547 = vmatprep.subr.mxu0 %v75
  %4548 = vmatpush1.msra.mxu0 %v74
  %4549 = vmatprep.subr.mxu0 %v71
  %4550 = vmatpush1.msra.mxu0 %v70
  %4551 = vmatprep.subr.mxu0 %v67
  %4552 = vmatpush1.msra.mxu0 %v66
  %4553 = vmatprep.subr.mxu0 %v63
  %4554 = vmatpush1.msra.mxu0 %v62
  %4555 = vmatprep.subr.mxu0 %v59
  %4556 = vmatpush1.msra.mxu0 %v58
  %4557 = vmatprep.subr.mxu0 %v55
  %4558 = vmatpush1.msra.mxu0 %v54
  %4559 = vmatprep.subr.mxu0 %v51
  %4560 = vmatpush1.msra.mxu0 %v50
  %4561 = vmatprep.subr.mxu0 %v47
  %4562 = vmatpush1.msra.mxu0 %v46
  %4563 = vmatprep.subr.mxu0 %v43
  %4564 = vmatpush1.msra.mxu0 %v42
  %4565 = vmatprep.subr.mxu0 %v39
  %4566 = vmatpush1.msra.mxu0 %v38
  %4567 = vmatprep.subr.mxu0 %v35
  %4568 = vmatpush1.msra.mxu0 %v34
  %4569 = vmatprep.subr.mxu0 0.0
  %4570 = vmatpush2.msra.mxu0 0.0
  %4571 = vmatprep.subr.mxu0 0.0
  %4572 = vmatpush2.msra.mxu0 0.0
  %4573 = vmatprep.subr.mxu0 0.0
  %4574 = vmatpush2.msra.mxu0 0.0
  %4575 = vmatprep.subr.mxu0 0.0
  %4576 = vmatpush2.msra.mxu0 0.0
  %4577 = vmatprep.subr.mxu0 0.0
  %4578 = vmatpush2.msra.mxu0 0.0
  %4579 = vmatprep.subr.mxu0 0.0
  %4580 = vmatpush2.msra.mxu0 0.0
  %4581 = vmatprep.subr.mxu0 0.0
  %4582 = vmatpush2.msra.mxu0 0.0
  %4583 = vmatprep.subr.mxu0 0.0
  %4584 = vmatpush2.msra.mxu0 0.0
  %4585 = vmatprep.subr.mxu0 0.0
  %4586 = vmatpush2.msra.mxu0 0.0
  %4587 = vmatprep.subr.mxu0 0.0
  %4588 = vmatpush2.msra.mxu0 0.0
  %4589 = vmatprep.subr.mxu0 0.0
  %4590 = vmatpush2.msra.mxu0 0.0
  %4591 = vmatprep.subr.mxu0 0.0
  %4592 = vmatpush2.msra.mxu0 0.0
  %4593 = vmatprep.subr.mxu0 0.0
  %4594 = vmatpush2.msra.mxu0 0.0
  %4595 = vmatprep.subr.mxu0 0.0
  %4596 = vmatpush2.msra.mxu0 0.0
  %4597 = vmatprep.subr.mxu0 0.0
  %4598 = vmatpush2.msra.mxu0 0.0
  %4599 = vmatprep.subr.mxu0 0.0
  %4600 = vmatpush2.msra.mxu0 0.0
  %4601 = vmatprep.mubr.f32.mxu0 0.0
  %4602 = vmatmul.mubr.f32.gmra.mxu0 %v4464
  %v4603 = vpop.f32.mrf.mxu0
  %v4604 = vadd.f32 %v94, %v4603
  %v4605 = vpop.f32.mrf.mxu0
  %v4606 = vadd.f32 %v98, %v4605
  %4607 = vdwg.mxu0
  %v4608 = vmax.f32 %v4386, %v4533
  %v4609 = vmax.f32 %v4388, %v4535
  %v4610 = vmax.f32 %v4457, %v4604
  %v4611 = vmax.f32 %v4459, %v4606
  %v4612 = vmax.f32 %v4608, 0.0
  %v4613 = vmax.f32 %v4609, 0.0
  %v4614 = vmax.f32 %v4610, 0.0
  %v4615 = vmax.f32 %v4611, 0.0
  %4619 = vrot.lane.b32.xlu0 %v4613, 32
  %v4620 = vpop.permute.xlu0 %4619
  %4621 = vrot.lane.b32.xlu0 %v4614, 32
  %v4622 = vpop.permute.xlu0 %4621
  %4623 = vrot.lane.b32.xlu0 %v4615, 32
  %v4624 = vpop.permute.xlu0 %4623
  %v4625 = vsel %vm426, %v4620, %v4622
  %v4626 = vsel %vm426, %v4622, %v4624
  %v4629 = vmax.f32 %v4612, %v4625
  %v4630 = vmax.f32 %v4613, %v4626
  %s4631 = scalar_lea.vmem %s3, 2240
  %v4632 = vld [vmem:[%s4631] sm:$0xff]
  %v4633 = vld [vmem:[%s4631 + $0x8] sm:$0xff]
  %v4634 = vld [vmem:[%s4631 + $0x10] sm:$0xff]
  %v4635 = vld [vmem:[%s4631 + $0x18] sm:$0xff]
  %v4636 = vld [vmem:[%s4631 + $0x20] sm:$0xff]
  %v4637 = vld [vmem:[%s4631 + $0x28] sm:$0xff]
  %v4638 = vld [vmem:[%s4631 + $0x30] sm:$0xff]
  %v4639 = vld [vmem:[%s4631 + $0x38] sm:$0xff]
  %v4640 = vld [vmem:[%s4631 + $0x40] sm:$0xff]
  %v4641 = vld [vmem:[%s4631 + $0x48] sm:$0xff]
  %v4642 = vld [vmem:[%s4631 + $0x50] sm:$0xff]
  %v4643 = vld [vmem:[%s4631 + $0x58] sm:$0xff]
  %v4644 = vld [vmem:[%s4631 + $0x60] sm:$0xff]
  %v4645 = vld [vmem:[%s4631 + $0x68] sm:$0xff]
  %v4646 = vld [vmem:[%s4631 + $0x70] sm:$0xff]
  %v4647 = vld [vmem:[%s4631 + $0x78] sm:$0xff]
  %v4648 = vld [vmem:[%s4631 + $0x80] sm:$0xff]
  %v4649 = vld [vmem:[%s4631 + $0x88] sm:$0xff]
  %v4650 = vld [vmem:[%s4631 + $0x90] sm:$0xff]
  %v4651 = vld [vmem:[%s4631 + $0x98] sm:$0xff]
  %v4652 = vld [vmem:[%s4631 + $0xa0] sm:$0xff]
  %v4653 = vld [vmem:[%s4631 + $0xa8] sm:$0xff]
  %v4654 = vld [vmem:[%s4631 + $0xb0] sm:$0xff]
  %v4655 = vld [vmem:[%s4631 + $0xb8] sm:$0xff]
  %v4656 = vld [vmem:[%s4631 + $0xc0] sm:$0xff]
  %v4657 = vld [vmem:[%s4631 + $0xc8] sm:$0xff]
  %v4658 = vld [vmem:[%s4631 + $0xd0] sm:$0xff]
  %v4659 = vld [vmem:[%s4631 + $0xd8] sm:$0xff]
  %v4661 = vsel %vm807, %v4630, 0
  %4663 = vmatprep.subr.mxu0 0.0
  %4664 = vmatpush1.msra.mxu0 %v4647
  %4665 = vmatprep.subr.mxu0 0.0
  %4666 = vmatpush1.msra.mxu0 %v4646
  %4667 = vmatprep.subr.mxu0 0.0
  %4668 = vmatpush1.msra.mxu0 %v4645
  %4669 = vmatprep.subr.mxu0 0.0
  %4670 = vmatpush1.msra.mxu0 %v4644
  %4671 = vmatprep.subr.mxu0 0.0
  %4672 = vmatpush1.msra.mxu0 %v4643
  %4673 = vmatprep.subr.mxu0 0.0
  %4674 = vmatpush1.msra.mxu0 %v4642
  %4675 = vmatprep.subr.mxu0 0.0
  %4676 = vmatpush1.msra.mxu0 %v4641
  %4677 = vmatprep.subr.mxu0 0.0
  %4678 = vmatpush1.msra.mxu0 %v4640
  %4679 = vmatprep.subr.mxu0 0.0
  %4680 = vmatpush1.msra.mxu0 %v4639
  %4681 = vmatprep.subr.mxu0 0.0
  %4682 = vmatpush1.msra.mxu0 %v4638
  %4683 = vmatprep.subr.mxu0 0.0
  %4684 = vmatpush1.msra.mxu0 %v4637
  %4685 = vmatprep.subr.mxu0 0.0
  %4686 = vmatpush1.msra.mxu0 %v4636
  %4687 = vmatprep.subr.mxu0 0.0
  %4688 = vmatpush1.msra.mxu0 %v4635
  %4689 = vmatprep.subr.mxu0 0.0
  %4690 = vmatpush1.msra.mxu0 %v4634
  %4691 = vmatprep.subr.mxu0 0.0
  %4692 = vmatpush1.msra.mxu0 %v4633
  %4693 = vmatprep.subr.mxu0 0.0
  %4694 = vmatpush1.msra.mxu0 %v4632
  %4695 = vmatprep.subr.mxu0 0.0
  %4696 = vmatpush2.msra.mxu0 0.0
  %4697 = vmatprep.subr.mxu0 0.0
  %4698 = vmatpush2.msra.mxu0 0.0
  %4699 = vmatprep.subr.mxu0 0.0
  %4700 = vmatpush2.msra.mxu0 0.0
  %4701 = vmatprep.subr.mxu0 0.0
  %4702 = vmatpush2.msra.mxu0 0.0
  %4703 = vmatprep.subr.mxu0 0.0
  %4704 = vmatpush2.msra.mxu0 %v4659
  %4705 = vmatprep.subr.mxu0 0.0
  %4706 = vmatpush2.msra.mxu0 %v4658
  %4707 = vmatprep.subr.mxu0 0.0
  %4708 = vmatpush2.msra.mxu0 %v4657
  %4709 = vmatprep.subr.mxu0 0.0
  %4710 = vmatpush2.msra.mxu0 %v4656
  %4711 = vmatprep.subr.mxu0 0.0
  %4712 = vmatpush2.msra.mxu0 %v4655
  %4713 = vmatprep.subr.mxu0 0.0
  %4714 = vmatpush2.msra.mxu0 %v4654
  %4715 = vmatprep.subr.mxu0 0.0
  %4716 = vmatpush2.msra.mxu0 %v4653
  %4717 = vmatprep.subr.mxu0 0.0
  %4718 = vmatpush2.msra.mxu0 %v4652
  %4719 = vmatprep.subr.mxu0 0.0
  %4720 = vmatpush2.msra.mxu0 %v4651
  %4721 = vmatprep.subr.mxu0 0.0
  %4722 = vmatpush2.msra.mxu0 %v4650
  %4723 = vmatprep.subr.mxu0 0.0
  %4724 = vmatpush2.msra.mxu0 %v4649
  %4725 = vmatprep.subr.mxu0 0.0
  %4726 = vmatpush2.msra.mxu0 %v4648
  %4727 = vmatprep.mubr.f32.mxu0 %v4661
  %4728 = vmatmul.mubr.f32.gmra.mxu0 %v4629
  %v4729 = vpop.f32.mrf.mxu0
  %v4730 = vadd.f32 0.0, %v4729
  %v4731 = vpop.f32.mrf.mxu0
  %4732 = vdwg.mxu0
  %v4733 = vadd.f32 %v4313, %v4730
  %s4734 = scalar_lea.vmem %s0, 176
  %v4735 = vld [vmem:[%s4734] sm:$0xff]
  %v4737 = vsel %vm103, %v4735, 0
  %4739 = vmatprep.subr.mxu0 0.0
  %4740 = vmatpush1.msra.mxu0 0.0
  %4741 = vmatprep.subr.mxu0 0.0
  %4742 = vmatpush1.msra.mxu0 0.0
  %4743 = vmatprep.subr.mxu0 0.0
  %4744 = vmatpush1.msra.mxu0 0.0
  %4745 = vmatprep.subr.mxu0 0.0
  %4746 = vmatpush1.msra.mxu0 0.0
  %4747 = vmatprep.subr.mxu0 %v112
  %4748 = vmatpush1.msra.mxu0 %v109
  %4749 = vmatprep.subr.mxu0 %v73
  %4750 = vmatpush1.msra.mxu0 %v72
  %4751 = vmatprep.subr.mxu0 %v69
  %4752 = vmatpush1.msra.mxu0 %v68
  %4753 = vmatprep.subr.mxu0 %v65
  %4754 = vmatpush1.msra.mxu0 %v64
  %4755 = vmatprep.subr.mxu0 %v61
  %4756 = vmatpush1.msra.mxu0 %v60
  %4757 = vmatprep.subr.mxu0 %v57
  %4758 = vmatpush1.msra.mxu0 %v56
  %4759 = vmatprep.subr.mxu0 %v53
  %4760 = vmatpush1.msra.mxu0 %v52
  %4761 = vmatprep.subr.mxu0 %v49
  %4762 = vmatpush1.msra.mxu0 %v48
  %4763 = vmatprep.subr.mxu0 %v45
  %4764 = vmatpush1.msra.mxu0 %v44
  %4765 = vmatprep.subr.mxu0 %v41
  %4766 = vmatpush1.msra.mxu0 %v40
  %4767 = vmatprep.subr.mxu0 %v37
  %4768 = vmatpush1.msra.mxu0 %v36
  %4769 = vmatprep.subr.mxu0 %v33
  %4770 = vmatpush1.msra.mxu0 %v32
  %4771 = vmatprep.subr.mxu0 0.0
  %4772 = vmatpush2.msra.mxu0 0.0
  %4773 = vmatprep.subr.mxu0 0.0
  %4774 = vmatpush2.msra.mxu0 0.0
  %4775 = vmatprep.subr.mxu0 0.0
  %4776 = vmatpush2.msra.mxu0 0.0
  %4777 = vmatprep.subr.mxu0 0.0
  %4778 = vmatpush2.msra.mxu0 0.0
  %4779 = vmatprep.subr.mxu0 0.0
  %4780 = vmatpush2.msra.mxu0 0.0
  %4781 = vmatprep.subr.mxu0 0.0
  %4782 = vmatpush2.msra.mxu0 0.0
  %4783 = vmatprep.subr.mxu0 0.0
  %4784 = vmatpush2.msra.mxu0 0.0
  %4785 = vmatprep.subr.mxu0 0.0
  %4786 = vmatpush2.msra.mxu0 0.0
  %4787 = vmatprep.subr.mxu0 0.0
  %4788 = vmatpush2.msra.mxu0 0.0
  %4789 = vmatprep.subr.mxu0 0.0
  %4790 = vmatpush2.msra.mxu0 0.0
  %4791 = vmatprep.subr.mxu0 0.0
  %4792 = vmatpush2.msra.mxu0 0.0
  %4793 = vmatprep.subr.mxu0 0.0
  %4794 = vmatpush2.msra.mxu0 0.0
  %4795 = vmatprep.subr.mxu0 0.0
  %4796 = vmatpush2.msra.mxu0 0.0
  %4797 = vmatprep.subr.mxu0 0.0
  %4798 = vmatpush2.msra.mxu0 0.0
  %4799 = vmatprep.subr.mxu0 0.0
  %4800 = vmatpush2.msra.mxu0 0.0
  %4801 = vmatprep.subr.mxu0 0.0
  %4802 = vmatpush2.msra.mxu0 0.0
  %4803 = vmatprep.mubr.f32.mxu0 0.0
  %4804 = vmatmul.mubr.f32.gmra.mxu0 %v4737
  %v4805 = vpop.f32.mrf.mxu0
  %v4806 = vadd.f32 %v86, %v4805
  %v4807 = vpop.f32.mrf.mxu0
  %v4808 = vadd.f32 %v90, %v4807
  %4809 = vdwg.mxu0
  %4810 = vmatprep.subr.mxu0 0.0
  %4811 = vmatpush1.msra.mxu0 0.0
  %4812 = vmatprep.subr.mxu0 0.0
  %4813 = vmatpush1.msra.mxu0 0.0
  %4814 = vmatprep.subr.mxu0 0.0
  %4815 = vmatpush1.msra.mxu0 0.0
  %4816 = vmatprep.subr.mxu0 0.0
  %4817 = vmatpush1.msra.mxu0 0.0
  %4818 = vmatprep.subr.mxu0 %v118
  %4819 = vmatpush1.msra.mxu0 %v115
  %4820 = vmatprep.subr.mxu0 %v75
  %4821 = vmatpush1.msra.mxu0 %v74
  %4822 = vmatprep.subr.mxu0 %v71
  %4823 = vmatpush1.msra.mxu0 %v70
  %4824 = vmatprep.subr.mxu0 %v67
  %4825 = vmatpush1.msra.mxu0 %v66
  %4826 = vmatprep.subr.mxu0 %v63
  %4827 = vmatpush1.msra.mxu0 %v62
  %4828 = vmatprep.subr.mxu0 %v59
  %4829 = vmatpush1.msra.mxu0 %v58
  %4830 = vmatprep.subr.mxu0 %v55
  %4831 = vmatpush1.msra.mxu0 %v54
  %4832 = vmatprep.subr.mxu0 %v51
  %4833 = vmatpush1.msra.mxu0 %v50
  %4834 = vmatprep.subr.mxu0 %v47
  %4835 = vmatpush1.msra.mxu0 %v46
  %4836 = vmatprep.subr.mxu0 %v43
  %4837 = vmatpush1.msra.mxu0 %v42
  %4838 = vmatprep.subr.mxu0 %v39
  %4839 = vmatpush1.msra.mxu0 %v38
  %4840 = vmatprep.subr.mxu0 %v35
  %4841 = vmatpush1.msra.mxu0 %v34
  %4842 = vmatprep.subr.mxu0 0.0
  %4843 = vmatpush2.msra.mxu0 0.0
  %4844 = vmatprep.subr.mxu0 0.0
  %4845 = vmatpush2.msra.mxu0 0.0
  %4846 = vmatprep.subr.mxu0 0.0
  %4847 = vmatpush2.msra.mxu0 0.0
  %4848 = vmatprep.subr.mxu0 0.0
  %4849 = vmatpush2.msra.mxu0 0.0
  %4850 = vmatprep.subr.mxu0 0.0
  %4851 = vmatpush2.msra.mxu0 0.0
  %4852 = vmatprep.subr.mxu0 0.0
  %4853 = vmatpush2.msra.mxu0 0.0
  %4854 = vmatprep.subr.mxu0 0.0
  %4855 = vmatpush2.msra.mxu0 0.0
  %4856 = vmatprep.subr.mxu0 0.0
  %4857 = vmatpush2.msra.mxu0 0.0
  %4858 = vmatprep.subr.mxu0 0.0
  %4859 = vmatpush2.msra.mxu0 0.0
  %4860 = vmatprep.subr.mxu0 0.0
  %4861 = vmatpush2.msra.mxu0 0.0
  %4862 = vmatprep.subr.mxu0 0.0
  %4863 = vmatpush2.msra.mxu0 0.0
  %4864 = vmatprep.subr.mxu0 0.0
  %4865 = vmatpush2.msra.mxu0 0.0
  %4866 = vmatprep.subr.mxu0 0.0
  %4867 = vmatpush2.msra.mxu0 0.0
  %4868 = vmatprep.subr.mxu0 0.0
  %4869 = vmatpush2.msra.mxu0 0.0
  %4870 = vmatprep.subr.mxu0 0.0
  %4871 = vmatpush2.msra.mxu0 0.0
  %4872 = vmatprep.subr.mxu0 0.0
  %4873 = vmatpush2.msra.mxu0 0.0
  %4874 = vmatprep.mubr.f32.mxu0 0.0
  %4875 = vmatmul.mubr.f32.gmra.mxu0 %v4737
  %v4876 = vpop.f32.mrf.mxu0
  %v4877 = vadd.f32 %v94, %v4876
  %v4878 = vpop.f32.mrf.mxu0
  %v4879 = vadd.f32 %v98, %v4878
  %4880 = vdwg.mxu0
  %s4881 = scalar_lea.vmem %s0, 184
  %v4882 = vld [vmem:[%s4881] sm:$0xff]
  %v4884 = vsel %vm103, %v4882, 0
  %4886 = vmatprep.subr.mxu0 0.0
  %4887 = vmatpush1.msra.mxu0 0.0
  %4888 = vmatprep.subr.mxu0 0.0
  %4889 = vmatpush1.msra.mxu0 0.0
  %4890 = vmatprep.subr.mxu0 0.0
  %4891 = vmatpush1.msra.mxu0 0.0
  %4892 = vmatprep.subr.mxu0 0.0
  %4893 = vmatpush1.msra.mxu0 0.0
  %4894 = vmatprep.subr.mxu0 %v112
  %4895 = vmatpush1.msra.mxu0 %v109
  %4896 = vmatprep.subr.mxu0 %v73
  %4897 = vmatpush1.msra.mxu0 %v72
  %4898 = vmatprep.subr.mxu0 %v69
  %4899 = vmatpush1.msra.mxu0 %v68
  %4900 = vmatprep.subr.mxu0 %v65
  %4901 = vmatpush1.msra.mxu0 %v64
  %4902 = vmatprep.subr.mxu0 %v61
  %4903 = vmatpush1.msra.mxu0 %v60
  %4904 = vmatprep.subr.mxu0 %v57
  %4905 = vmatpush1.msra.mxu0 %v56
  %4906 = vmatprep.subr.mxu0 %v53
  %4907 = vmatpush1.msra.mxu0 %v52
  %4908 = vmatprep.subr.mxu0 %v49
  %4909 = vmatpush1.msra.mxu0 %v48
  %4910 = vmatprep.subr.mxu0 %v45
  %4911 = vmatpush1.msra.mxu0 %v44
  %4912 = vmatprep.subr.mxu0 %v41
  %4913 = vmatpush1.msra.mxu0 %v40
  %4914 = vmatprep.subr.mxu0 %v37
  %4915 = vmatpush1.msra.mxu0 %v36
  %4916 = vmatprep.subr.mxu0 %v33
  %4917 = vmatpush1.msra.mxu0 %v32
  %4918 = vmatprep.subr.mxu0 0.0
  %4919 = vmatpush2.msra.mxu0 0.0
  %4920 = vmatprep.subr.mxu0 0.0
  %4921 = vmatpush2.msra.mxu0 0.0
  %4922 = vmatprep.subr.mxu0 0.0
  %4923 = vmatpush2.msra.mxu0 0.0
  %4924 = vmatprep.subr.mxu0 0.0
  %4925 = vmatpush2.msra.mxu0 0.0
  %4926 = vmatprep.subr.mxu0 0.0
  %4927 = vmatpush2.msra.mxu0 0.0
  %4928 = vmatprep.subr.mxu0 0.0
  %4929 = vmatpush2.msra.mxu0 0.0
  %4930 = vmatprep.subr.mxu0 0.0
  %4931 = vmatpush2.msra.mxu0 0.0
  %4932 = vmatprep.subr.mxu0 0.0
  %4933 = vmatpush2.msra.mxu0 0.0
  %4934 = vmatprep.subr.mxu0 0.0
  %4935 = vmatpush2.msra.mxu0 0.0
  %4936 = vmatprep.subr.mxu0 0.0
  %4937 = vmatpush2.msra.mxu0 0.0
  %4938 = vmatprep.subr.mxu0 0.0
  %4939 = vmatpush2.msra.mxu0 0.0
  %4940 = vmatprep.subr.mxu0 0.0
  %4941 = vmatpush2.msra.mxu0 0.0
  %4942 = vmatprep.subr.mxu0 0.0
  %4943 = vmatpush2.msra.mxu0 0.0
  %4944 = vmatprep.subr.mxu0 0.0
  %4945 = vmatpush2.msra.mxu0 0.0
  %4946 = vmatprep.subr.mxu0 0.0
  %4947 = vmatpush2.msra.mxu0 0.0
  %4948 = vmatprep.subr.mxu0 0.0
  %4949 = vmatpush2.msra.mxu0 0.0
  %4950 = vmatprep.mubr.f32.mxu0 0.0
  %4951 = vmatmul.mubr.f32.gmra.mxu0 %v4884
  %v4952 = vpop.f32.mrf.mxu0
  %v4953 = vadd.f32 %v86, %v4952
  %v4954 = vpop.f32.mrf.mxu0
  %v4955 = vadd.f32 %v90, %v4954
  %4956 = vdwg.mxu0
  %4957 = vmatprep.subr.mxu0 0.0
  %4958 = vmatpush1.msra.mxu0 0.0
  %4959 = vmatprep.subr.mxu0 0.0
  %4960 = vmatpush1.msra.mxu0 0.0
  %4961 = vmatprep.subr.mxu0 0.0
  %4962 = vmatpush1.msra.mxu0 0.0
  %4963 = vmatprep.subr.mxu0 0.0
  %4964 = vmatpush1.msra.mxu0 0.0
  %4965 = vmatprep.subr.mxu0 %v118
  %4966 = vmatpush1.msra.mxu0 %v115
  %4967 = vmatprep.subr.mxu0 %v75
  %4968 = vmatpush1.msra.mxu0 %v74
  %4969 = vmatprep.subr.mxu0 %v71
  %4970 = vmatpush1.msra.mxu0 %v70
  %4971 = vmatprep.subr.mxu0 %v67
  %4972 = vmatpush1.msra.mxu0 %v66
  %4973 = vmatprep.subr.mxu0 %v63
  %4974 = vmatpush1.msra.mxu0 %v62
  %4975 = vmatprep.subr.mxu0 %v59
  %4976 = vmatpush1.msra.mxu0 %v58
  %4977 = vmatprep.subr.mxu0 %v55
  %4978 = vmatpush1.msra.mxu0 %v54
  %4979 = vmatprep.subr.mxu0 %v51
  %4980 = vmatpush1.msra.mxu0 %v50
  %4981 = vmatprep.subr.mxu0 %v47
  %4982 = vmatpush1.msra.mxu0 %v46
  %4983 = vmatprep.subr.mxu0 %v43
  %4984 = vmatpush1.msra.mxu0 %v42
  %4985 = vmatprep.subr.mxu0 %v39
  %4986 = vmatpush1.msra.mxu0 %v38
  %4987 = vmatprep.subr.mxu0 %v35
  %4988 = vmatpush1.msra.mxu0 %v34
  %4989 = vmatprep.subr.mxu0 0.0
  %4990 = vmatpush2.msra.mxu0 0.0
  %4991 = vmatprep.subr.mxu0 0.0
  %4992 = vmatpush2.msra.mxu0 0.0
  %4993 = vmatprep.subr.mxu0 0.0
  %4994 = vmatpush2.msra.mxu0 0.0
  %4995 = vmatprep.subr.mxu0 0.0
  %4996 = vmatpush2.msra.mxu0 0.0
  %4997 = vmatprep.subr.mxu0 0.0
  %4998 = vmatpush2.msra.mxu0 0.0
  %4999 = vmatprep.subr.mxu0 0.0
  %5000 = vmatpush2.msra.mxu0 0.0
  %5001 = vmatprep.subr.mxu0 0.0
  %5002 = vmatpush2.msra.mxu0 0.0
  %5003 = vmatprep.subr.mxu0 0.0
  %5004 = vmatpush2.msra.mxu0 0.0
  %5005 = vmatprep.subr.mxu0 0.0
  %5006 = vmatpush2.msra.mxu0 0.0
  %5007 = vmatprep.subr.mxu0 0.0
  %5008 = vmatpush2.msra.mxu0 0.0
  %5009 = vmatprep.subr.mxu0 0.0
  %5010 = vmatpush2.msra.mxu0 0.0
  %5011 = vmatprep.subr.mxu0 0.0
  %5012 = vmatpush2.msra.mxu0 0.0
  %5013 = vmatprep.subr.mxu0 0.0
  %5014 = vmatpush2.msra.mxu0 0.0
  %5015 = vmatprep.subr.mxu0 0.0
  %5016 = vmatpush2.msra.mxu0 0.0
  %5017 = vmatprep.subr.mxu0 0.0
  %5018 = vmatpush2.msra.mxu0 0.0
  %5019 = vmatprep.subr.mxu0 0.0
  %5020 = vmatpush2.msra.mxu0 0.0
  %5021 = vmatprep.mubr.f32.mxu0 0.0
  %5022 = vmatmul.mubr.f32.gmra.mxu0 %v4884
  %v5023 = vpop.f32.mrf.mxu0
  %v5024 = vadd.f32 %v94, %v5023
  %v5025 = vpop.f32.mrf.mxu0
  %v5026 = vadd.f32 %v98, %v5025
  %5027 = vdwg.mxu0
  %v5028 = vmax.f32 %v4806, %v4953
  %v5029 = vmax.f32 %v4808, %v4955
  %v5030 = vmax.f32 %v4877, %v5024
  %v5031 = vmax.f32 %v4879, %v5026
  %v5032 = vmax.f32 %v5028, 0.0
  %v5033 = vmax.f32 %v5029, 0.0
  %v5034 = vmax.f32 %v5030, 0.0
  %v5035 = vmax.f32 %v5031, 0.0
  %5039 = vrot.lane.b32.xlu0 %v5033, 32
  %v5040 = vpop.permute.xlu0 %5039
  %5041 = vrot.lane.b32.xlu0 %v5034, 32
  %v5042 = vpop.permute.xlu0 %5041
  %5043 = vrot.lane.b32.xlu0 %v5035, 32
  %v5044 = vpop.permute.xlu0 %5043
  %v5045 = vsel %vm426, %v5040, %v5042
  %v5046 = vsel %vm426, %v5042, %v5044
  %v5049 = vmax.f32 %v5032, %v5045
  %v5050 = vmax.f32 %v5033, %v5046
  %s5051 = scalar_lea.vmem %s3, 2464
  %v5052 = vld [vmem:[%s5051] sm:$0xff]
  %v5053 = vld [vmem:[%s5051 + $0x8] sm:$0xff]
  %v5054 = vld [vmem:[%s5051 + $0x10] sm:$0xff]
  %v5055 = vld [vmem:[%s5051 + $0x18] sm:$0xff]
  %v5056 = vld [vmem:[%s5051 + $0x20] sm:$0xff]
  %v5057 = vld [vmem:[%s5051 + $0x28] sm:$0xff]
  %v5058 = vld [vmem:[%s5051 + $0x30] sm:$0xff]
  %v5059 = vld [vmem:[%s5051 + $0x38] sm:$0xff]
  %v5060 = vld [vmem:[%s5051 + $0x40] sm:$0xff]
  %v5061 = vld [vmem:[%s5051 + $0x48] sm:$0xff]
  %v5062 = vld [vmem:[%s5051 + $0x50] sm:$0xff]
  %v5063 = vld [vmem:[%s5051 + $0x58] sm:$0xff]
  %v5064 = vld [vmem:[%s5051 + $0x60] sm:$0xff]
  %v5065 = vld [vmem:[%s5051 + $0x68] sm:$0xff]
  %v5066 = vld [vmem:[%s5051 + $0x70] sm:$0xff]
  %v5067 = vld [vmem:[%s5051 + $0x78] sm:$0xff]
  %v5068 = vld [vmem:[%s5051 + $0x80] sm:$0xff]
  %v5069 = vld [vmem:[%s5051 + $0x88] sm:$0xff]
  %v5070 = vld [vmem:[%s5051 + $0x90] sm:$0xff]
  %v5071 = vld [vmem:[%s5051 + $0x98] sm:$0xff]
  %v5072 = vld [vmem:[%s5051 + $0xa0] sm:$0xff]
  %v5073 = vld [vmem:[%s5051 + $0xa8] sm:$0xff]
  %v5074 = vld [vmem:[%s5051 + $0xb0] sm:$0xff]
  %v5075 = vld [vmem:[%s5051 + $0xb8] sm:$0xff]
  %v5076 = vld [vmem:[%s5051 + $0xc0] sm:$0xff]
  %v5077 = vld [vmem:[%s5051 + $0xc8] sm:$0xff]
  %v5078 = vld [vmem:[%s5051 + $0xd0] sm:$0xff]
  %v5079 = vld [vmem:[%s5051 + $0xd8] sm:$0xff]
  %v5081 = vsel %vm807, %v5050, 0
  %5083 = vmatprep.subr.mxu0 0.0
  %5084 = vmatpush1.msra.mxu0 %v5067
  %5085 = vmatprep.subr.mxu0 0.0
  %5086 = vmatpush1.msra.mxu0 %v5066
  %5087 = vmatprep.subr.mxu0 0.0
  %5088 = vmatpush1.msra.mxu0 %v5065
  %5089 = vmatprep.subr.mxu0 0.0
  %5090 = vmatpush1.msra.mxu0 %v5064
  %5091 = vmatprep.subr.mxu0 0.0
  %5092 = vmatpush1.msra.mxu0 %v5063
  %5093 = vmatprep.subr.mxu0 0.0
  %5094 = vmatpush1.msra.mxu0 %v5062
  %5095 = vmatprep.subr.mxu0 0.0
  %5096 = vmatpush1.msra.mxu0 %v5061
  %5097 = vmatprep.subr.mxu0 0.0
  %5098 = vmatpush1.msra.mxu0 %v5060
  %5099 = vmatprep.subr.mxu0 0.0
  %5100 = vmatpush1.msra.mxu0 %v5059
  %5101 = vmatprep.subr.mxu0 0.0
  %5102 = vmatpush1.msra.mxu0 %v5058
  %5103 = vmatprep.subr.mxu0 0.0
  %5104 = vmatpush1.msra.mxu0 %v5057
  %5105 = vmatprep.subr.mxu0 0.0
  %5106 = vmatpush1.msra.mxu0 %v5056
  %5107 = vmatprep.subr.mxu0 0.0
  %5108 = vmatpush1.msra.mxu0 %v5055
  %5109 = vmatprep.subr.mxu0 0.0
  %5110 = vmatpush1.msra.mxu0 %v5054
  %5111 = vmatprep.subr.mxu0 0.0
  %5112 = vmatpush1.msra.mxu0 %v5053
  %5113 = vmatprep.subr.mxu0 0.0
  %5114 = vmatpush1.msra.mxu0 %v5052
  %5115 = vmatprep.subr.mxu0 0.0
  %5116 = vmatpush2.msra.mxu0 0.0
  %5117 = vmatprep.subr.mxu0 0.0
  %5118 = vmatpush2.msra.mxu0 0.0
  %5119 = vmatprep.subr.mxu0 0.0
  %5120 = vmatpush2.msra.mxu0 0.0
  %5121 = vmatprep.subr.mxu0 0.0
  %5122 = vmatpush2.msra.mxu0 0.0
  %5123 = vmatprep.subr.mxu0 0.0
  %5124 = vmatpush2.msra.mxu0 %v5079
  %5125 = vmatprep.subr.mxu0 0.0
  %5126 = vmatpush2.msra.mxu0 %v5078
  %5127 = vmatprep.subr.mxu0 0.0
  %5128 = vmatpush2.msra.mxu0 %v5077
  %5129 = vmatprep.subr.mxu0 0.0
  %5130 = vmatpush2.msra.mxu0 %v5076
  %5131 = vmatprep.subr.mxu0 0.0
  %5132 = vmatpush2.msra.mxu0 %v5075
  %5133 = vmatprep.subr.mxu0 0.0
  %5134 = vmatpush2.msra.mxu0 %v5074
  %5135 = vmatprep.subr.mxu0 0.0
  %5136 = vmatpush2.msra.mxu0 %v5073
  %5137 = vmatprep.subr.mxu0 0.0
  %5138 = vmatpush2.msra.mxu0 %v5072
  %5139 = vmatprep.subr.mxu0 0.0
  %5140 = vmatpush2.msra.mxu0 %v5071
  %5141 = vmatprep.subr.mxu0 0.0
  %5142 = vmatpush2.msra.mxu0 %v5070
  %5143 = vmatprep.subr.mxu0 0.0
  %5144 = vmatpush2.msra.mxu0 %v5069
  %5145 = vmatprep.subr.mxu0 0.0
  %5146 = vmatpush2.msra.mxu0 %v5068
  %5147 = vmatprep.mubr.f32.mxu0 %v5081
  %5148 = vmatmul.mubr.f32.gmra.mxu0 %v5049
  %v5149 = vpop.f32.mrf.mxu0
  %v5150 = vadd.f32 0.0, %v5149
  %v5151 = vpop.f32.mrf.mxu0
  %5152 = vdwg.mxu0
  %v5153 = vadd.f32 %v4733, %v5150
  %s5154 = scalar_lea.vmem %s0, 192
  %v5155 = vld [vmem:[%s5154] sm:$0xff]
  %v5157 = vsel %vm103, %v5155, 0
  %5159 = vmatprep.subr.mxu0 0.0
  %5160 = vmatpush1.msra.mxu0 0.0
  %5161 = vmatprep.subr.mxu0 0.0
  %5162 = vmatpush1.msra.mxu0 0.0
  %5163 = vmatprep.subr.mxu0 0.0
  %5164 = vmatpush1.msra.mxu0 0.0
  %5165 = vmatprep.subr.mxu0 0.0
  %5166 = vmatpush1.msra.mxu0 0.0
  %5167 = vmatprep.subr.mxu0 %v112
  %5168 = vmatpush1.msra.mxu0 %v109
  %5169 = vmatprep.subr.mxu0 %v73
  %5170 = vmatpush1.msra.mxu0 %v72
  %5171 = vmatprep.subr.mxu0 %v69
  %5172 = vmatpush1.msra.mxu0 %v68
  %5173 = vmatprep.subr.mxu0 %v65
  %5174 = vmatpush1.msra.mxu0 %v64
  %5175 = vmatprep.subr.mxu0 %v61
  %5176 = vmatpush1.msra.mxu0 %v60
  %5177 = vmatprep.subr.mxu0 %v57
  %5178 = vmatpush1.msra.mxu0 %v56
  %5179 = vmatprep.subr.mxu0 %v53
  %5180 = vmatpush1.msra.mxu0 %v52
  %5181 = vmatprep.subr.mxu0 %v49
  %5182 = vmatpush1.msra.mxu0 %v48
  %5183 = vmatprep.subr.mxu0 %v45
  %5184 = vmatpush1.msra.mxu0 %v44
  %5185 = vmatprep.subr.mxu0 %v41
  %5186 = vmatpush1.msra.mxu0 %v40
  %5187 = vmatprep.subr.mxu0 %v37
  %5188 = vmatpush1.msra.mxu0 %v36
  %5189 = vmatprep.subr.mxu0 %v33
  %5190 = vmatpush1.msra.mxu0 %v32
  %5191 = vmatprep.subr.mxu0 0.0
  %5192 = vmatpush2.msra.mxu0 0.0
  %5193 = vmatprep.subr.mxu0 0.0
  %5194 = vmatpush2.msra.mxu0 0.0
  %5195 = vmatprep.subr.mxu0 0.0
  %5196 = vmatpush2.msra.mxu0 0.0
  %5197 = vmatprep.subr.mxu0 0.0
  %5198 = vmatpush2.msra.mxu0 0.0
  %5199 = vmatprep.subr.mxu0 0.0
  %5200 = vmatpush2.msra.mxu0 0.0
  %5201 = vmatprep.subr.mxu0 0.0
  %5202 = vmatpush2.msra.mxu0 0.0
  %5203 = vmatprep.subr.mxu0 0.0
  %5204 = vmatpush2.msra.mxu0 0.0
  %5205 = vmatprep.subr.mxu0 0.0
  %5206 = vmatpush2.msra.mxu0 0.0
  %5207 = vmatprep.subr.mxu0 0.0
  %5208 = vmatpush2.msra.mxu0 0.0
  %5209 = vmatprep.subr.mxu0 0.0
  %5210 = vmatpush2.msra.mxu0 0.0
  %5211 = vmatprep.subr.mxu0 0.0
  %5212 = vmatpush2.msra.mxu0 0.0
  %5213 = vmatprep.subr.mxu0 0.0
  %5214 = vmatpush2.msra.mxu0 0.0
  %5215 = vmatprep.subr.mxu0 0.0
  %5216 = vmatpush2.msra.mxu0 0.0
  %5217 = vmatprep.subr.mxu0 0.0
  %5218 = vmatpush2.msra.mxu0 0.0
  %5219 = vmatprep.subr.mxu0 0.0
  %5220 = vmatpush2.msra.mxu0 0.0
  %5221 = vmatprep.subr.mxu0 0.0
  %5222 = vmatpush2.msra.mxu0 0.0
  %5223 = vmatprep.mubr.f32.mxu0 0.0
  %5224 = vmatmul.mubr.f32.gmra.mxu0 %v5157
  %v5225 = vpop.f32.mrf.mxu0
  %v5226 = vadd.f32 %v86, %v5225
  %v5227 = vpop.f32.mrf.mxu0
  %v5228 = vadd.f32 %v90, %v5227
  %5229 = vdwg.mxu0
  %5230 = vmatprep.subr.mxu0 0.0
  %5231 = vmatpush1.msra.mxu0 0.0
  %5232 = vmatprep.subr.mxu0 0.0
  %5233 = vmatpush1.msra.mxu0 0.0
  %5234 = vmatprep.subr.mxu0 0.0
  %5235 = vmatpush1.msra.mxu0 0.0
  %5236 = vmatprep.subr.mxu0 0.0
  %5237 = vmatpush1.msra.mxu0 0.0
  %5238 = vmatprep.subr.mxu0 %v118
  %5239 = vmatpush1.msra.mxu0 %v115
  %5240 = vmatprep.subr.mxu0 %v75
  %5241 = vmatpush1.msra.mxu0 %v74
  %5242 = vmatprep.subr.mxu0 %v71
  %5243 = vmatpush1.msra.mxu0 %v70
  %5244 = vmatprep.subr.mxu0 %v67
  %5245 = vmatpush1.msra.mxu0 %v66
  %5246 = vmatprep.subr.mxu0 %v63
  %5247 = vmatpush1.msra.mxu0 %v62
  %5248 = vmatprep.subr.mxu0 %v59
  %5249 = vmatpush1.msra.mxu0 %v58
  %5250 = vmatprep.subr.mxu0 %v55
  %5251 = vmatpush1.msra.mxu0 %v54
  %5252 = vmatprep.subr.mxu0 %v51
  %5253 = vmatpush1.msra.mxu0 %v50
  %5254 = vmatprep.subr.mxu0 %v47
  %5255 = vmatpush1.msra.mxu0 %v46
  %5256 = vmatprep.subr.mxu0 %v43
  %5257 = vmatpush1.msra.mxu0 %v42
  %5258 = vmatprep.subr.mxu0 %v39
  %5259 = vmatpush1.msra.mxu0 %v38
  %5260 = vmatprep.subr.mxu0 %v35
  %5261 = vmatpush1.msra.mxu0 %v34
  %5262 = vmatprep.subr.mxu0 0.0
  %5263 = vmatpush2.msra.mxu0 0.0
  %5264 = vmatprep.subr.mxu0 0.0
  %5265 = vmatpush2.msra.mxu0 0.0
  %5266 = vmatprep.subr.mxu0 0.0
  %5267 = vmatpush2.msra.mxu0 0.0
  %5268 = vmatprep.subr.mxu0 0.0
  %5269 = vmatpush2.msra.mxu0 0.0
  %5270 = vmatprep.subr.mxu0 0.0
  %5271 = vmatpush2.msra.mxu0 0.0
  %5272 = vmatprep.subr.mxu0 0.0
  %5273 = vmatpush2.msra.mxu0 0.0
  %5274 = vmatprep.subr.mxu0 0.0
  %5275 = vmatpush2.msra.mxu0 0.0
  %5276 = vmatprep.subr.mxu0 0.0
  %5277 = vmatpush2.msra.mxu0 0.0
  %5278 = vmatprep.subr.mxu0 0.0
  %5279 = vmatpush2.msra.mxu0 0.0
  %5280 = vmatprep.subr.mxu0 0.0
  %5281 = vmatpush2.msra.mxu0 0.0
  %5282 = vmatprep.subr.mxu0 0.0
  %5283 = vmatpush2.msra.mxu0 0.0
  %5284 = vmatprep.subr.mxu0 0.0
  %5285 = vmatpush2.msra.mxu0 0.0
  %5286 = vmatprep.subr.mxu0 0.0
  %5287 = vmatpush2.msra.mxu0 0.0
  %5288 = vmatprep.subr.mxu0 0.0
  %5289 = vmatpush2.msra.mxu0 0.0
  %5290 = vmatprep.subr.mxu0 0.0
  %5291 = vmatpush2.msra.mxu0 0.0
  %5292 = vmatprep.subr.mxu0 0.0
  %5293 = vmatpush2.msra.mxu0 0.0
  %5294 = vmatprep.mubr.f32.mxu0 0.0
  %5295 = vmatmul.mubr.f32.gmra.mxu0 %v5157
  %v5296 = vpop.f32.mrf.mxu0
  %v5297 = vadd.f32 %v94, %v5296
  %v5298 = vpop.f32.mrf.mxu0
  %v5299 = vadd.f32 %v98, %v5298
  %5300 = vdwg.mxu0
  %s5301 = scalar_lea.vmem %s0, 200
  %v5302 = vld [vmem:[%s5301] sm:$0xff]
  %v5304 = vsel %vm103, %v5302, 0
  %5306 = vmatprep.subr.mxu0 0.0
  %5307 = vmatpush1.msra.mxu0 0.0
  %5308 = vmatprep.subr.mxu0 0.0
  %5309 = vmatpush1.msra.mxu0 0.0
  %5310 = vmatprep.subr.mxu0 0.0
  %5311 = vmatpush1.msra.mxu0 0.0
  %5312 = vmatprep.subr.mxu0 0.0
  %5313 = vmatpush1.msra.mxu0 0.0
  %5314 = vmatprep.subr.mxu0 %v112
  %5315 = vmatpush1.msra.mxu0 %v109
  %5316 = vmatprep.subr.mxu0 %v73
  %5317 = vmatpush1.msra.mxu0 %v72
  %5318 = vmatprep.subr.mxu0 %v69
  %5319 = vmatpush1.msra.mxu0 %v68
  %5320 = vmatprep.subr.mxu0 %v65
  %5321 = vmatpush1.msra.mxu0 %v64
  %5322 = vmatprep.subr.mxu0 %v61
  %5323 = vmatpush1.msra.mxu0 %v60
  %5324 = vmatprep.subr.mxu0 %v57
  %5325 = vmatpush1.msra.mxu0 %v56
  %5326 = vmatprep.subr.mxu0 %v53
  %5327 = vmatpush1.msra.mxu0 %v52
  %5328 = vmatprep.subr.mxu0 %v49
  %5329 = vmatpush1.msra.mxu0 %v48
  %5330 = vmatprep.subr.mxu0 %v45
  %5331 = vmatpush1.msra.mxu0 %v44
  %5332 = vmatprep.subr.mxu0 %v41
  %5333 = vmatpush1.msra.mxu0 %v40
  %5334 = vmatprep.subr.mxu0 %v37
  %5335 = vmatpush1.msra.mxu0 %v36
  %5336 = vmatprep.subr.mxu0 %v33
  %5337 = vmatpush1.msra.mxu0 %v32
  %5338 = vmatprep.subr.mxu0 0.0
  %5339 = vmatpush2.msra.mxu0 0.0
  %5340 = vmatprep.subr.mxu0 0.0
  %5341 = vmatpush2.msra.mxu0 0.0
  %5342 = vmatprep.subr.mxu0 0.0
  %5343 = vmatpush2.msra.mxu0 0.0
  %5344 = vmatprep.subr.mxu0 0.0
  %5345 = vmatpush2.msra.mxu0 0.0
  %5346 = vmatprep.subr.mxu0 0.0
  %5347 = vmatpush2.msra.mxu0 0.0
  %5348 = vmatprep.subr.mxu0 0.0
  %5349 = vmatpush2.msra.mxu0 0.0
  %5350 = vmatprep.subr.mxu0 0.0
  %5351 = vmatpush2.msra.mxu0 0.0
  %5352 = vmatprep.subr.mxu0 0.0
  %5353 = vmatpush2.msra.mxu0 0.0
  %5354 = vmatprep.subr.mxu0 0.0
  %5355 = vmatpush2.msra.mxu0 0.0
  %5356 = vmatprep.subr.mxu0 0.0
  %5357 = vmatpush2.msra.mxu0 0.0
  %5358 = vmatprep.subr.mxu0 0.0
  %5359 = vmatpush2.msra.mxu0 0.0
  %5360 = vmatprep.subr.mxu0 0.0
  %5361 = vmatpush2.msra.mxu0 0.0
  %5362 = vmatprep.subr.mxu0 0.0
  %5363 = vmatpush2.msra.mxu0 0.0
  %5364 = vmatprep.subr.mxu0 0.0
  %5365 = vmatpush2.msra.mxu0 0.0
  %5366 = vmatprep.subr.mxu0 0.0
  %5367 = vmatpush2.msra.mxu0 0.0
  %5368 = vmatprep.subr.mxu0 0.0
  %5369 = vmatpush2.msra.mxu0 0.0
  %5370 = vmatprep.mubr.f32.mxu0 0.0
  %5371 = vmatmul.mubr.f32.gmra.mxu0 %v5304
  %v5372 = vpop.f32.mrf.mxu0
  %v5373 = vadd.f32 %v86, %v5372
  %v5374 = vpop.f32.mrf.mxu0
  %v5375 = vadd.f32 %v90, %v5374
  %5376 = vdwg.mxu0
  %5377 = vmatprep.subr.mxu0 0.0
  %5378 = vmatpush1.msra.mxu0 0.0
  %5379 = vmatprep.subr.mxu0 0.0
  %5380 = vmatpush1.msra.mxu0 0.0
  %5381 = vmatprep.subr.mxu0 0.0
  %5382 = vmatpush1.msra.mxu0 0.0
  %5383 = vmatprep.subr.mxu0 0.0
  %5384 = vmatpush1.msra.mxu0 0.0
  %5385 = vmatprep.subr.mxu0 %v118
  %5386 = vmatpush1.msra.mxu0 %v115
  %5387 = vmatprep.subr.mxu0 %v75
  %5388 = vmatpush1.msra.mxu0 %v74
  %5389 = vmatprep.subr.mxu0 %v71
  %5390 = vmatpush1.msra.mxu0 %v70
  %5391 = vmatprep.subr.mxu0 %v67
  %5392 = vmatpush1.msra.mxu0 %v66
  %5393 = vmatprep.subr.mxu0 %v63
  %5394 = vmatpush1.msra.mxu0 %v62
  %5395 = vmatprep.subr.mxu0 %v59
  %5396 = vmatpush1.msra.mxu0 %v58
  %5397 = vmatprep.subr.mxu0 %v55
  %5398 = vmatpush1.msra.mxu0 %v54
  %5399 = vmatprep.subr.mxu0 %v51
  %5400 = vmatpush1.msra.mxu0 %v50
  %5401 = vmatprep.subr.mxu0 %v47
  %5402 = vmatpush1.msra.mxu0 %v46
  %5403 = vmatprep.subr.mxu0 %v43
  %5404 = vmatpush1.msra.mxu0 %v42
  %5405 = vmatprep.subr.mxu0 %v39
  %5406 = vmatpush1.msra.mxu0 %v38
  %5407 = vmatprep.subr.mxu0 %v35
  %5408 = vmatpush1.msra.mxu0 %v34
  %5409 = vmatprep.subr.mxu0 0.0
  %5410 = vmatpush2.msra.mxu0 0.0
  %5411 = vmatprep.subr.mxu0 0.0
  %5412 = vmatpush2.msra.mxu0 0.0
  %5413 = vmatprep.subr.mxu0 0.0
  %5414 = vmatpush2.msra.mxu0 0.0
  %5415 = vmatprep.subr.mxu0 0.0
  %5416 = vmatpush2.msra.mxu0 0.0
  %5417 = vmatprep.subr.mxu0 0.0
  %5418 = vmatpush2.msra.mxu0 0.0
  %5419 = vmatprep.subr.mxu0 0.0
  %5420 = vmatpush2.msra.mxu0 0.0
  %5421 = vmatprep.subr.mxu0 0.0
  %5422 = vmatpush2.msra.mxu0 0.0
  %5423 = vmatprep.subr.mxu0 0.0
  %5424 = vmatpush2.msra.mxu0 0.0
  %5425 = vmatprep.subr.mxu0 0.0
  %5426 = vmatpush2.msra.mxu0 0.0
  %5427 = vmatprep.subr.mxu0 0.0
  %5428 = vmatpush2.msra.mxu0 0.0
  %5429 = vmatprep.subr.mxu0 0.0
  %5430 = vmatpush2.msra.mxu0 0.0
  %5431 = vmatprep.subr.mxu0 0.0
  %5432 = vmatpush2.msra.mxu0 0.0
  %5433 = vmatprep.subr.mxu0 0.0
  %5434 = vmatpush2.msra.mxu0 0.0
  %5435 = vmatprep.subr.mxu0 0.0
  %5436 = vmatpush2.msra.mxu0 0.0
  %5437 = vmatprep.subr.mxu0 0.0
  %5438 = vmatpush2.msra.mxu0 0.0
  %5439 = vmatprep.subr.mxu0 0.0
  %5440 = vmatpush2.msra.mxu0 0.0
  %5441 = vmatprep.mubr.f32.mxu0 0.0
  %5442 = vmatmul.mubr.f32.gmra.mxu0 %v5304
  %v5443 = vpop.f32.mrf.mxu0
  %v5444 = vadd.f32 %v94, %v5443
  %v5445 = vpop.f32.mrf.mxu0
  %v5446 = vadd.f32 %v98, %v5445
  %5447 = vdwg.mxu0
  %v5448 = vmax.f32 %v5226, %v5373
  %v5449 = vmax.f32 %v5228, %v5375
  %v5450 = vmax.f32 %v5297, %v5444
  %v5451 = vmax.f32 %v5299, %v5446
  %v5452 = vmax.f32 %v5448, 0.0
  %v5453 = vmax.f32 %v5449, 0.0
  %v5454 = vmax.f32 %v5450, 0.0
  %v5455 = vmax.f32 %v5451, 0.0
  %5459 = vrot.lane.b32.xlu0 %v5453, 32
  %v5460 = vpop.permute.xlu0 %5459
  %5461 = vrot.lane.b32.xlu0 %v5454, 32
  %v5462 = vpop.permute.xlu0 %5461
  %5463 = vrot.lane.b32.xlu0 %v5455, 32
  %v5464 = vpop.permute.xlu0 %5463
  %v5465 = vsel %vm426, %v5460, %v5462
  %v5466 = vsel %vm426, %v5462, %v5464
  %v5469 = vmax.f32 %v5452, %v5465
  %v5470 = vmax.f32 %v5453, %v5466
  %s5471 = scalar_lea.vmem %s3, 2688
  %v5472 = vld [vmem:[%s5471] sm:$0xff]
  %v5473 = vld [vmem:[%s5471 + $0x8] sm:$0xff]
  %v5474 = vld [vmem:[%s5471 + $0x10] sm:$0xff]
  %v5475 = vld [vmem:[%s5471 + $0x18] sm:$0xff]
  %v5476 = vld [vmem:[%s5471 + $0x20] sm:$0xff]
  %v5477 = vld [vmem:[%s5471 + $0x28] sm:$0xff]
  %v5478 = vld [vmem:[%s5471 + $0x30] sm:$0xff]
  %v5479 = vld [vmem:[%s5471 + $0x38] sm:$0xff]
  %v5480 = vld [vmem:[%s5471 + $0x40] sm:$0xff]
  %v5481 = vld [vmem:[%s5471 + $0x48] sm:$0xff]
  %v5482 = vld [vmem:[%s5471 + $0x50] sm:$0xff]
  %v5483 = vld [vmem:[%s5471 + $0x58] sm:$0xff]
  %v5484 = vld [vmem:[%s5471 + $0x60] sm:$0xff]
  %v5485 = vld [vmem:[%s5471 + $0x68] sm:$0xff]
  %v5486 = vld [vmem:[%s5471 + $0x70] sm:$0xff]
  %v5487 = vld [vmem:[%s5471 + $0x78] sm:$0xff]
  %v5488 = vld [vmem:[%s5471 + $0x80] sm:$0xff]
  %v5489 = vld [vmem:[%s5471 + $0x88] sm:$0xff]
  %v5490 = vld [vmem:[%s5471 + $0x90] sm:$0xff]
  %v5491 = vld [vmem:[%s5471 + $0x98] sm:$0xff]
  %v5492 = vld [vmem:[%s5471 + $0xa0] sm:$0xff]
  %v5493 = vld [vmem:[%s5471 + $0xa8] sm:$0xff]
  %v5494 = vld [vmem:[%s5471 + $0xb0] sm:$0xff]
  %v5495 = vld [vmem:[%s5471 + $0xb8] sm:$0xff]
  %v5496 = vld [vmem:[%s5471 + $0xc0] sm:$0xff]
  %v5497 = vld [vmem:[%s5471 + $0xc8] sm:$0xff]
  %v5498 = vld [vmem:[%s5471 + $0xd0] sm:$0xff]
  %v5499 = vld [vmem:[%s5471 + $0xd8] sm:$0xff]
  %v5501 = vsel %vm807, %v5470, 0
  %5503 = vmatprep.subr.mxu0 0.0
  %5504 = vmatpush1.msra.mxu0 %v5487
  %5505 = vmatprep.subr.mxu0 0.0
  %5506 = vmatpush1.msra.mxu0 %v5486
  %5507 = vmatprep.subr.mxu0 0.0
  %5508 = vmatpush1.msra.mxu0 %v5485
  %5509 = vmatprep.subr.mxu0 0.0
  %5510 = vmatpush1.msra.mxu0 %v5484
  %5511 = vmatprep.subr.mxu0 0.0
  %5512 = vmatpush1.msra.mxu0 %v5483
  %5513 = vmatprep.subr.mxu0 0.0
  %5514 = vmatpush1.msra.mxu0 %v5482
  %5515 = vmatprep.subr.mxu0 0.0
  %5516 = vmatpush1.msra.mxu0 %v5481
  %5517 = vmatprep.subr.mxu0 0.0
  %5518 = vmatpush1.msra.mxu0 %v5480
  %5519 = vmatprep.subr.mxu0 0.0
  %5520 = vmatpush1.msra.mxu0 %v5479
  %5521 = vmatprep.subr.mxu0 0.0
  %5522 = vmatpush1.msra.mxu0 %v5478
  %5523 = vmatprep.subr.mxu0 0.0
  %5524 = vmatpush1.msra.mxu0 %v5477
  %5525 = vmatprep.subr.mxu0 0.0
  %5526 = vmatpush1.msra.mxu0 %v5476
  %5527 = vmatprep.subr.mxu0 0.0
  %5528 = vmatpush1.msra.mxu0 %v5475
  %5529 = vmatprep.subr.mxu0 0.0
  %5530 = vmatpush1.msra.mxu0 %v5474
  %5531 = vmatprep.subr.mxu0 0.0
  %5532 = vmatpush1.msra.mxu0 %v5473
  %5533 = vmatprep.subr.mxu0 0.0
  %5534 = vmatpush1.msra.mxu0 %v5472
  %5535 = vmatprep.subr.mxu0 0.0
  %5536 = vmatpush2.msra.mxu0 0.0
  %5537 = vmatprep.subr.mxu0 0.0
  %5538 = vmatpush2.msra.mxu0 0.0
  %5539 = vmatprep.subr.mxu0 0.0
  %5540 = vmatpush2.msra.mxu0 0.0
  %5541 = vmatprep.subr.mxu0 0.0
  %5542 = vmatpush2.msra.mxu0 0.0
  %5543 = vmatprep.subr.mxu0 0.0
  %5544 = vmatpush2.msra.mxu0 %v5499
  %5545 = vmatprep.subr.mxu0 0.0
  %5546 = vmatpush2.msra.mxu0 %v5498
  %5547 = vmatprep.subr.mxu0 0.0
  %5548 = vmatpush2.msra.mxu0 %v5497
  %5549 = vmatprep.subr.mxu0 0.0
  %5550 = vmatpush2.msra.mxu0 %v5496
  %5551 = vmatprep.subr.mxu0 0.0
  %5552 = vmatpush2.msra.mxu0 %v5495
  %5553 = vmatprep.subr.mxu0 0.0
  %5554 = vmatpush2.msra.mxu0 %v5494
  %5555 = vmatprep.subr.mxu0 0.0
  %5556 = vmatpush2.msra.mxu0 %v5493
  %5557 = vmatprep.subr.mxu0 0.0
  %5558 = vmatpush2.msra.mxu0 %v5492
  %5559 = vmatprep.subr.mxu0 0.0
  %5560 = vmatpush2.msra.mxu0 %v5491
  %5561 = vmatprep.subr.mxu0 0.0
  %5562 = vmatpush2.msra.mxu0 %v5490
  %5563 = vmatprep.subr.mxu0 0.0
  %5564 = vmatpush2.msra.mxu0 %v5489
  %5565 = vmatprep.subr.mxu0 0.0
  %5566 = vmatpush2.msra.mxu0 %v5488
  %5567 = vmatprep.mubr.f32.mxu0 %v5501
  %5568 = vmatmul.mubr.f32.gmra.mxu0 %v5469
  %v5569 = vpop.f32.mrf.mxu0
  %v5570 = vadd.f32 0.0, %v5569
  %v5571 = vpop.f32.mrf.mxu0
  %5572 = vdwg.mxu0
  %v5573 = vadd.f32 %v5153, %v5570
  %s5574 = scalar_lea.vmem %s0, 208
  %v5575 = vld [vmem:[%s5574] sm:$0xff]
  %v5577 = vsel %vm103, %v5575, 0
  %5579 = vmatprep.subr.mxu0 0.0
  %5580 = vmatpush1.msra.mxu0 0.0
  %5581 = vmatprep.subr.mxu0 0.0
  %5582 = vmatpush1.msra.mxu0 0.0
  %5583 = vmatprep.subr.mxu0 0.0
  %5584 = vmatpush1.msra.mxu0 0.0
  %5585 = vmatprep.subr.mxu0 0.0
  %5586 = vmatpush1.msra.mxu0 0.0
  %5587 = vmatprep.subr.mxu0 %v112
  %5588 = vmatpush1.msra.mxu0 %v109
  %5589 = vmatprep.subr.mxu0 %v73
  %5590 = vmatpush1.msra.mxu0 %v72
  %5591 = vmatprep.subr.mxu0 %v69
  %5592 = vmatpush1.msra.mxu0 %v68
  %5593 = vmatprep.subr.mxu0 %v65
  %5594 = vmatpush1.msra.mxu0 %v64
  %5595 = vmatprep.subr.mxu0 %v61
  %5596 = vmatpush1.msra.mxu0 %v60
  %5597 = vmatprep.subr.mxu0 %v57
  %5598 = vmatpush1.msra.mxu0 %v56
  %5599 = vmatprep.subr.mxu0 %v53
  %5600 = vmatpush1.msra.mxu0 %v52
  %5601 = vmatprep.subr.mxu0 %v49
  %5602 = vmatpush1.msra.mxu0 %v48
  %5603 = vmatprep.subr.mxu0 %v45
  %5604 = vmatpush1.msra.mxu0 %v44
  %5605 = vmatprep.subr.mxu0 %v41
  %5606 = vmatpush1.msra.mxu0 %v40
  %5607 = vmatprep.subr.mxu0 %v37
  %5608 = vmatpush1.msra.mxu0 %v36
  %5609 = vmatprep.subr.mxu0 %v33
  %5610 = vmatpush1.msra.mxu0 %v32
  %5611 = vmatprep.subr.mxu0 0.0
  %5612 = vmatpush2.msra.mxu0 0.0
  %5613 = vmatprep.subr.mxu0 0.0
  %5614 = vmatpush2.msra.mxu0 0.0
  %5615 = vmatprep.subr.mxu0 0.0
  %5616 = vmatpush2.msra.mxu0 0.0
  %5617 = vmatprep.subr.mxu0 0.0
  %5618 = vmatpush2.msra.mxu0 0.0
  %5619 = vmatprep.subr.mxu0 0.0
  %5620 = vmatpush2.msra.mxu0 0.0
  %5621 = vmatprep.subr.mxu0 0.0
  %5622 = vmatpush2.msra.mxu0 0.0
  %5623 = vmatprep.subr.mxu0 0.0
  %5624 = vmatpush2.msra.mxu0 0.0
  %5625 = vmatprep.subr.mxu0 0.0
  %5626 = vmatpush2.msra.mxu0 0.0
  %5627 = vmatprep.subr.mxu0 0.0
  %5628 = vmatpush2.msra.mxu0 0.0
  %5629 = vmatprep.subr.mxu0 0.0
  %5630 = vmatpush2.msra.mxu0 0.0
  %5631 = vmatprep.subr.mxu0 0.0
  %5632 = vmatpush2.msra.mxu0 0.0
  %5633 = vmatprep.subr.mxu0 0.0
  %5634 = vmatpush2.msra.mxu0 0.0
  %5635 = vmatprep.subr.mxu0 0.0
  %5636 = vmatpush2.msra.mxu0 0.0
  %5637 = vmatprep.subr.mxu0 0.0
  %5638 = vmatpush2.msra.mxu0 0.0
  %5639 = vmatprep.subr.mxu0 0.0
  %5640 = vmatpush2.msra.mxu0 0.0
  %5641 = vmatprep.subr.mxu0 0.0
  %5642 = vmatpush2.msra.mxu0 0.0
  %5643 = vmatprep.mubr.f32.mxu0 0.0
  %5644 = vmatmul.mubr.f32.gmra.mxu0 %v5577
  %v5645 = vpop.f32.mrf.mxu0
  %v5646 = vadd.f32 %v86, %v5645
  %v5647 = vpop.f32.mrf.mxu0
  %v5648 = vadd.f32 %v90, %v5647
  %5649 = vdwg.mxu0
  %5650 = vmatprep.subr.mxu0 0.0
  %5651 = vmatpush1.msra.mxu0 0.0
  %5652 = vmatprep.subr.mxu0 0.0
  %5653 = vmatpush1.msra.mxu0 0.0
  %5654 = vmatprep.subr.mxu0 0.0
  %5655 = vmatpush1.msra.mxu0 0.0
  %5656 = vmatprep.subr.mxu0 0.0
  %5657 = vmatpush1.msra.mxu0 0.0
  %5658 = vmatprep.subr.mxu0 %v118
  %5659 = vmatpush1.msra.mxu0 %v115
  %5660 = vmatprep.subr.mxu0 %v75
  %5661 = vmatpush1.msra.mxu0 %v74
  %5662 = vmatprep.subr.mxu0 %v71
  %5663 = vmatpush1.msra.mxu0 %v70
  %5664 = vmatprep.subr.mxu0 %v67
  %5665 = vmatpush1.msra.mxu0 %v66
  %5666 = vmatprep.subr.mxu0 %v63
  %5667 = vmatpush1.msra.mxu0 %v62
  %5668 = vmatprep.subr.mxu0 %v59
  %5669 = vmatpush1.msra.mxu0 %v58
  %5670 = vmatprep.subr.mxu0 %v55
  %5671 = vmatpush1.msra.mxu0 %v54
  %5672 = vmatprep.subr.mxu0 %v51
  %5673 = vmatpush1.msra.mxu0 %v50
  %5674 = vmatprep.subr.mxu0 %v47
  %5675 = vmatpush1.msra.mxu0 %v46
  %5676 = vmatprep.subr.mxu0 %v43
  %5677 = vmatpush1.msra.mxu0 %v42
  %5678 = vmatprep.subr.mxu0 %v39
  %5679 = vmatpush1.msra.mxu0 %v38
  %5680 = vmatprep.subr.mxu0 %v35
  %5681 = vmatpush1.msra.mxu0 %v34
  %5682 = vmatprep.subr.mxu0 0.0
  %5683 = vmatpush2.msra.mxu0 0.0
  %5684 = vmatprep.subr.mxu0 0.0
  %5685 = vmatpush2.msra.mxu0 0.0
  %5686 = vmatprep.subr.mxu0 0.0
  %5687 = vmatpush2.msra.mxu0 0.0
  %5688 = vmatprep.subr.mxu0 0.0
  %5689 = vmatpush2.msra.mxu0 0.0
  %5690 = vmatprep.subr.mxu0 0.0
  %5691 = vmatpush2.msra.mxu0 0.0
  %5692 = vmatprep.subr.mxu0 0.0
  %5693 = vmatpush2.msra.mxu0 0.0
  %5694 = vmatprep.subr.mxu0 0.0
  %5695 = vmatpush2.msra.mxu0 0.0
  %5696 = vmatprep.subr.mxu0 0.0
  %5697 = vmatpush2.msra.mxu0 0.0
  %5698 = vmatprep.subr.mxu0 0.0
  %5699 = vmatpush2.msra.mxu0 0.0
  %5700 = vmatprep.subr.mxu0 0.0
  %5701 = vmatpush2.msra.mxu0 0.0
  %5702 = vmatprep.subr.mxu0 0.0
  %5703 = vmatpush2.msra.mxu0 0.0
  %5704 = vmatprep.subr.mxu0 0.0
  %5705 = vmatpush2.msra.mxu0 0.0
  %5706 = vmatprep.subr.mxu0 0.0
  %5707 = vmatpush2.msra.mxu0 0.0
  %5708 = vmatprep.subr.mxu0 0.0
  %5709 = vmatpush2.msra.mxu0 0.0
  %5710 = vmatprep.subr.mxu0 0.0
  %5711 = vmatpush2.msra.mxu0 0.0
  %5712 = vmatprep.subr.mxu0 0.0
  %5713 = vmatpush2.msra.mxu0 0.0
  %5714 = vmatprep.mubr.f32.mxu0 0.0
  %5715 = vmatmul.mubr.f32.gmra.mxu0 %v5577
  %v5716 = vpop.f32.mrf.mxu0
  %v5717 = vadd.f32 %v94, %v5716
  %v5718 = vpop.f32.mrf.mxu0
  %v5719 = vadd.f32 %v98, %v5718
  %5720 = vdwg.mxu0
  %s5721 = scalar_lea.vmem %s0, 216
  %v5722 = vld [vmem:[%s5721] sm:$0xff]
  %v5724 = vsel %vm103, %v5722, 0
  %5726 = vmatprep.subr.mxu0 0.0
  %5727 = vmatpush1.msra.mxu0 0.0
  %5728 = vmatprep.subr.mxu0 0.0
  %5729 = vmatpush1.msra.mxu0 0.0
  %5730 = vmatprep.subr.mxu0 0.0
  %5731 = vmatpush1.msra.mxu0 0.0
  %5732 = vmatprep.subr.mxu0 0.0
  %5733 = vmatpush1.msra.mxu0 0.0
  %5734 = vmatprep.subr.mxu0 %v112
  %5735 = vmatpush1.msra.mxu0 %v109
  %5736 = vmatprep.subr.mxu0 %v73
  %5737 = vmatpush1.msra.mxu0 %v72
  %5738 = vmatprep.subr.mxu0 %v69
  %5739 = vmatpush1.msra.mxu0 %v68
  %5740 = vmatprep.subr.mxu0 %v65
  %5741 = vmatpush1.msra.mxu0 %v64
  %5742 = vmatprep.subr.mxu0 %v61
  %5743 = vmatpush1.msra.mxu0 %v60
  %5744 = vmatprep.subr.mxu0 %v57
  %5745 = vmatpush1.msra.mxu0 %v56
  %5746 = vmatprep.subr.mxu0 %v53
  %5747 = vmatpush1.msra.mxu0 %v52
  %5748 = vmatprep.subr.mxu0 %v49
  %5749 = vmatpush1.msra.mxu0 %v48
  %5750 = vmatprep.subr.mxu0 %v45
  %5751 = vmatpush1.msra.mxu0 %v44
  %5752 = vmatprep.subr.mxu0 %v41
  %5753 = vmatpush1.msra.mxu0 %v40
  %5754 = vmatprep.subr.mxu0 %v37
  %5755 = vmatpush1.msra.mxu0 %v36
  %5756 = vmatprep.subr.mxu0 %v33
  %5757 = vmatpush1.msra.mxu0 %v32
  %5758 = vmatprep.subr.mxu0 0.0
  %5759 = vmatpush2.msra.mxu0 0.0
  %5760 = vmatprep.subr.mxu0 0.0
  %5761 = vmatpush2.msra.mxu0 0.0
  %5762 = vmatprep.subr.mxu0 0.0
  %5763 = vmatpush2.msra.mxu0 0.0
  %5764 = vmatprep.subr.mxu0 0.0
  %5765 = vmatpush2.msra.mxu0 0.0
  %5766 = vmatprep.subr.mxu0 0.0
  %5767 = vmatpush2.msra.mxu0 0.0
  %5768 = vmatprep.subr.mxu0 0.0
  %5769 = vmatpush2.msra.mxu0 0.0
  %5770 = vmatprep.subr.mxu0 0.0
  %5771 = vmatpush2.msra.mxu0 0.0
  %5772 = vmatprep.subr.mxu0 0.0
  %5773 = vmatpush2.msra.mxu0 0.0
  %5774 = vmatprep.subr.mxu0 0.0
  %5775 = vmatpush2.msra.mxu0 0.0
  %5776 = vmatprep.subr.mxu0 0.0
  %5777 = vmatpush2.msra.mxu0 0.0
  %5778 = vmatprep.subr.mxu0 0.0
  %5779 = vmatpush2.msra.mxu0 0.0
  %5780 = vmatprep.subr.mxu0 0.0
  %5781 = vmatpush2.msra.mxu0 0.0
  %5782 = vmatprep.subr.mxu0 0.0
  %5783 = vmatpush2.msra.mxu0 0.0
  %5784 = vmatprep.subr.mxu0 0.0
  %5785 = vmatpush2.msra.mxu0 0.0
  %5786 = vmatprep.subr.mxu0 0.0
  %5787 = vmatpush2.msra.mxu0 0.0
  %5788 = vmatprep.subr.mxu0 0.0
  %5789 = vmatpush2.msra.mxu0 0.0
  %5790 = vmatprep.mubr.f32.mxu0 0.0
  %5791 = vmatmul.mubr.f32.gmra.mxu0 %v5724
  %v5792 = vpop.f32.mrf.mxu0
  %v5793 = vadd.f32 %v86, %v5792
  %v5794 = vpop.f32.mrf.mxu0
  %v5795 = vadd.f32 %v90, %v5794
  %5796 = vdwg.mxu0
  %5797 = vmatprep.subr.mxu0 0.0
  %5798 = vmatpush1.msra.mxu0 0.0
  %5799 = vmatprep.subr.mxu0 0.0
  %5800 = vmatpush1.msra.mxu0 0.0
  %5801 = vmatprep.subr.mxu0 0.0
  %5802 = vmatpush1.msra.mxu0 0.0
  %5803 = vmatprep.subr.mxu0 0.0
  %5804 = vmatpush1.msra.mxu0 0.0
  %5805 = vmatprep.subr.mxu0 %v118
  %5806 = vmatpush1.msra.mxu0 %v115
  %5807 = vmatprep.subr.mxu0 %v75
  %5808 = vmatpush1.msra.mxu0 %v74
  %5809 = vmatprep.subr.mxu0 %v71
  %5810 = vmatpush1.msra.mxu0 %v70
  %5811 = vmatprep.subr.mxu0 %v67
  %5812 = vmatpush1.msra.mxu0 %v66
  %5813 = vmatprep.subr.mxu0 %v63
  %5814 = vmatpush1.msra.mxu0 %v62
  %5815 = vmatprep.subr.mxu0 %v59
  %5816 = vmatpush1.msra.mxu0 %v58
  %5817 = vmatprep.subr.mxu0 %v55
  %5818 = vmatpush1.msra.mxu0 %v54
  %5819 = vmatprep.subr.mxu0 %v51
  %5820 = vmatpush1.msra.mxu0 %v50
  %5821 = vmatprep.subr.mxu0 %v47
  %5822 = vmatpush1.msra.mxu0 %v46
  %5823 = vmatprep.subr.mxu0 %v43
  %5824 = vmatpush1.msra.mxu0 %v42
  %5825 = vmatprep.subr.mxu0 %v39
  %5826 = vmatpush1.msra.mxu0 %v38
  %5827 = vmatprep.subr.mxu0 %v35
  %5828 = vmatpush1.msra.mxu0 %v34
  %5829 = vmatprep.subr.mxu0 0.0
  %5830 = vmatpush2.msra.mxu0 0.0
  %5831 = vmatprep.subr.mxu0 0.0
  %5832 = vmatpush2.msra.mxu0 0.0
  %5833 = vmatprep.subr.mxu0 0.0
  %5834 = vmatpush2.msra.mxu0 0.0
  %5835 = vmatprep.subr.mxu0 0.0
  %5836 = vmatpush2.msra.mxu0 0.0
  %5837 = vmatprep.subr.mxu0 0.0
  %5838 = vmatpush2.msra.mxu0 0.0
  %5839 = vmatprep.subr.mxu0 0.0
  %5840 = vmatpush2.msra.mxu0 0.0
  %5841 = vmatprep.subr.mxu0 0.0
  %5842 = vmatpush2.msra.mxu0 0.0
  %5843 = vmatprep.subr.mxu0 0.0
  %5844 = vmatpush2.msra.mxu0 0.0
  %5845 = vmatprep.subr.mxu0 0.0
  %5846 = vmatpush2.msra.mxu0 0.0
  %5847 = vmatprep.subr.mxu0 0.0
  %5848 = vmatpush2.msra.mxu0 0.0
  %5849 = vmatprep.subr.mxu0 0.0
  %5850 = vmatpush2.msra.mxu0 0.0
  %5851 = vmatprep.subr.mxu0 0.0
  %5852 = vmatpush2.msra.mxu0 0.0
  %5853 = vmatprep.subr.mxu0 0.0
  %5854 = vmatpush2.msra.mxu0 0.0
  %5855 = vmatprep.subr.mxu0 0.0
  %5856 = vmatpush2.msra.mxu0 0.0
  %5857 = vmatprep.subr.mxu0 0.0
  %5858 = vmatpush2.msra.mxu0 0.0
  %5859 = vmatprep.subr.mxu0 0.0
  %5860 = vmatpush2.msra.mxu0 0.0
  %5861 = vmatprep.mubr.f32.mxu0 0.0
  %5862 = vmatmul.mubr.f32.gmra.mxu0 %v5724
  %v5863 = vpop.f32.mrf.mxu0
  %v5864 = vadd.f32 %v94, %v5863
  %v5865 = vpop.f32.mrf.mxu0
  %v5866 = vadd.f32 %v98, %v5865
  %5867 = vdwg.mxu0
  %v5868 = vmax.f32 %v5646, %v5793
  %v5869 = vmax.f32 %v5648, %v5795
  %v5870 = vmax.f32 %v5717, %v5864
  %v5871 = vmax.f32 %v5719, %v5866
  %v5872 = vmax.f32 %v5868, 0.0
  %v5873 = vmax.f32 %v5869, 0.0
  %v5874 = vmax.f32 %v5870, 0.0
  %v5875 = vmax.f32 %v5871, 0.0
  %5879 = vrot.lane.b32.xlu0 %v5873, 32
  %v5880 = vpop.permute.xlu0 %5879
  %5881 = vrot.lane.b32.xlu0 %v5874, 32
  %v5882 = vpop.permute.xlu0 %5881
  %5883 = vrot.lane.b32.xlu0 %v5875, 32
  %v5884 = vpop.permute.xlu0 %5883
  %v5885 = vsel %vm426, %v5880, %v5882
  %v5886 = vsel %vm426, %v5882, %v5884
  %v5889 = vmax.f32 %v5872, %v5885
  %v5890 = vmax.f32 %v5873, %v5886
  %s5891 = scalar_lea.vmem %s3, 2912
  %v5892 = vld [vmem:[%s5891] sm:$0xff]
  %v5893 = vld [vmem:[%s5891 + $0x8] sm:$0xff]
  %v5894 = vld [vmem:[%s5891 + $0x10] sm:$0xff]
  %v5895 = vld [vmem:[%s5891 + $0x18] sm:$0xff]
  %v5896 = vld [vmem:[%s5891 + $0x20] sm:$0xff]
  %v5897 = vld [vmem:[%s5891 + $0x28] sm:$0xff]
  %v5898 = vld [vmem:[%s5891 + $0x30] sm:$0xff]
  %v5899 = vld [vmem:[%s5891 + $0x38] sm:$0xff]
  %v5900 = vld [vmem:[%s5891 + $0x40] sm:$0xff]
  %v5901 = vld [vmem:[%s5891 + $0x48] sm:$0xff]
  %v5902 = vld [vmem:[%s5891 + $0x50] sm:$0xff]
  %v5903 = vld [vmem:[%s5891 + $0x58] sm:$0xff]
  %v5904 = vld [vmem:[%s5891 + $0x60] sm:$0xff]
  %v5905 = vld [vmem:[%s5891 + $0x68] sm:$0xff]
  %v5906 = vld [vmem:[%s5891 + $0x70] sm:$0xff]
  %v5907 = vld [vmem:[%s5891 + $0x78] sm:$0xff]
  %v5908 = vld [vmem:[%s5891 + $0x80] sm:$0xff]
  %v5909 = vld [vmem:[%s5891 + $0x88] sm:$0xff]
  %v5910 = vld [vmem:[%s5891 + $0x90] sm:$0xff]
  %v5911 = vld [vmem:[%s5891 + $0x98] sm:$0xff]
  %v5912 = vld [vmem:[%s5891 + $0xa0] sm:$0xff]
  %v5913 = vld [vmem:[%s5891 + $0xa8] sm:$0xff]
  %v5914 = vld [vmem:[%s5891 + $0xb0] sm:$0xff]
  %v5915 = vld [vmem:[%s5891 + $0xb8] sm:$0xff]
  %v5916 = vld [vmem:[%s5891 + $0xc0] sm:$0xff]
  %v5917 = vld [vmem:[%s5891 + $0xc8] sm:$0xff]
  %v5918 = vld [vmem:[%s5891 + $0xd0] sm:$0xff]
  %v5919 = vld [vmem:[%s5891 + $0xd8] sm:$0xff]
  %v5921 = vsel %vm807, %v5890, 0
  %5923 = vmatprep.subr.mxu0 0.0
  %5924 = vmatpush1.msra.mxu0 %v5907
  %5925 = vmatprep.subr.mxu0 0.0
  %5926 = vmatpush1.msra.mxu0 %v5906
  %5927 = vmatprep.subr.mxu0 0.0
  %5928 = vmatpush1.msra.mxu0 %v5905
  %5929 = vmatprep.subr.mxu0 0.0
  %5930 = vmatpush1.msra.mxu0 %v5904
  %5931 = vmatprep.subr.mxu0 0.0
  %5932 = vmatpush1.msra.mxu0 %v5903
  %5933 = vmatprep.subr.mxu0 0.0
  %5934 = vmatpush1.msra.mxu0 %v5902
  %5935 = vmatprep.subr.mxu0 0.0
  %5936 = vmatpush1.msra.mxu0 %v5901
  %5937 = vmatprep.subr.mxu0 0.0
  %5938 = vmatpush1.msra.mxu0 %v5900
  %5939 = vmatprep.subr.mxu0 0.0
  %5940 = vmatpush1.msra.mxu0 %v5899
  %5941 = vmatprep.subr.mxu0 0.0
  %5942 = vmatpush1.msra.mxu0 %v5898
  %5943 = vmatprep.subr.mxu0 0.0
  %5944 = vmatpush1.msra.mxu0 %v5897
  %5945 = vmatprep.subr.mxu0 0.0
  %5946 = vmatpush1.msra.mxu0 %v5896
  %5947 = vmatprep.subr.mxu0 0.0
  %5948 = vmatpush1.msra.mxu0 %v5895
  %5949 = vmatprep.subr.mxu0 0.0
  %5950 = vmatpush1.msra.mxu0 %v5894
  %5951 = vmatprep.subr.mxu0 0.0
  %5952 = vmatpush1.msra.mxu0 %v5893
  %5953 = vmatprep.subr.mxu0 0.0
  %5954 = vmatpush1.msra.mxu0 %v5892
  %5955 = vmatprep.subr.mxu0 0.0
  %5956 = vmatpush2.msra.mxu0 0.0
  %5957 = vmatprep.subr.mxu0 0.0
  %5958 = vmatpush2.msra.mxu0 0.0
  %5959 = vmatprep.subr.mxu0 0.0
  %5960 = vmatpush2.msra.mxu0 0.0
  %5961 = vmatprep.subr.mxu0 0.0
  %5962 = vmatpush2.msra.mxu0 0.0
  %5963 = vmatprep.subr.mxu0 0.0
  %5964 = vmatpush2.msra.mxu0 %v5919
  %5965 = vmatprep.subr.mxu0 0.0
  %5966 = vmatpush2.msra.mxu0 %v5918
  %5967 = vmatprep.subr.mxu0 0.0
  %5968 = vmatpush2.msra.mxu0 %v5917
  %5969 = vmatprep.subr.mxu0 0.0
  %5970 = vmatpush2.msra.mxu0 %v5916
  %5971 = vmatprep.subr.mxu0 0.0
  %5972 = vmatpush2.msra.mxu0 %v5915
  %5973 = vmatprep.subr.mxu0 0.0
  %5974 = vmatpush2.msra.mxu0 %v5914
  %5975 = vmatprep.subr.mxu0 0.0
  %5976 = vmatpush2.msra.mxu0 %v5913
  %5977 = vmatprep.subr.mxu0 0.0
  %5978 = vmatpush2.msra.mxu0 %v5912
  %5979 = vmatprep.subr.mxu0 0.0
  %5980 = vmatpush2.msra.mxu0 %v5911
  %5981 = vmatprep.subr.mxu0 0.0
  %5982 = vmatpush2.msra.mxu0 %v5910
  %5983 = vmatprep.subr.mxu0 0.0
  %5984 = vmatpush2.msra.mxu0 %v5909
  %5985 = vmatprep.subr.mxu0 0.0
  %5986 = vmatpush2.msra.mxu0 %v5908
  %5987 = vmatprep.mubr.f32.mxu0 %v5921
  %5988 = vmatmul.mubr.f32.gmra.mxu0 %v5889
  %v5989 = vpop.f32.mrf.mxu0
  %v5990 = vadd.f32 0.0, %v5989
  %v5991 = vpop.f32.mrf.mxu0
  %5992 = vdwg.mxu0
  %v5993 = vadd.f32 %v5573, %v5990
  %v5994 = vld [vmem:[%s4] sm:$0x1]
  %v5996 = vlaneseq
  %v5997 = vshrl.u32 %v5996, 7
  %v5998 = vsub.s32 0, %v5997
  %v5999 = vrot.slane %v5994, %v5998
  %v6001 = vadd.f32 %v5993, %v5999
  %v6002 = vmax.f32 %v6001, 0.0
  %v6003 = vld [vmem:[%s5] sm:$0xff]
  %v6004 = vld [vmem:[%s5 + $0x8] sm:$0xff]
  %v6005 = vld [vmem:[%s5 + $0x10] sm:$0xff]
  %v6006 = vld [vmem:[%s5 + $0x18] sm:$0xff]
  %v6007 = vld [vmem:[%s5 + $0x20] sm:$0xff]
  %v6008 = vld [vmem:[%s5 + $0x28] sm:$0xff]
  %v6009 = vld [vmem:[%s5 + $0x30] sm:$0xff]
  %v6010 = vld [vmem:[%s5 + $0x38] sm:$0xff]
  %v6011 = vld [vmem:[%s5 + $0x40] sm:$0xff]
  %v6012 = vld [vmem:[%s5 + $0x48] sm:$0xff]
  %v6013 = vld [vmem:[%s5 + $0x50] sm:$0xff]
  %v6014 = vld [vmem:[%s5 + $0x58] sm:$0xff]
  %v6015 = vld [vmem:[%s5 + $0x60] sm:$0xff]
  %v6016 = vld [vmem:[%s5 + $0x68] sm:$0xff]
  %v6017 = vld [vmem:[%s5 + $0x70] sm:$0xff]
  %v6018 = vld [vmem:[%s5 + $0x78] sm:$0xff]
  %v6019 = vld [vmem:[%s6] sm:$0x1]
  %v6021 = vlaneseq
  %v6022 = vshrl.u32 %v6021, 7
  %v6023 = vsub.s32 0, %v6022
  %v6024 = vrot.slane %v6019, %v6023
  %6026 = vmatprep.subr.mxu0 0.0
  %6027 = vmatpush1.msra.mxu0 %v6018
  %6028 = vmatprep.subr.mxu0 0.0
  %6029 = vmatpush1.msra.mxu0 %v6017
  %6030 = vmatprep.subr.mxu0 0.0
  %6031 = vmatpush1.msra.mxu0 %v6016
  %6032 = vmatprep.subr.mxu0 0.0
  %6033 = vmatpush1.msra.mxu0 %v6015
  %6034 = vmatprep.subr.mxu0 0.0
  %6035 = vmatpush1.msra.mxu0 %v6014
  %6036 = vmatprep.subr.mxu0 0.0
  %6037 = vmatpush1.msra.mxu0 %v6013
  %6038 = vmatprep.subr.mxu0 0.0
  %6039 = vmatpush1.msra.mxu0 %v6012
  %6040 = vmatprep.subr.mxu0 0.0
  %6041 = vmatpush1.msra.mxu0 %v6011
  %6042 = vmatprep.subr.mxu0 0.0
  %6043 = vmatpush1.msra.mxu0 %v6010
  %6044 = vmatprep.subr.mxu0 0.0
  %6045 = vmatpush1.msra.mxu0 %v6009
  %6046 = vmatprep.subr.mxu0 0.0
  %6047 = vmatpush1.msra.mxu0 %v6008
  %6048 = vmatprep.subr.mxu0 0.0
  %6049 = vmatpush1.msra.mxu0 %v6007
  %6050 = vmatprep.subr.mxu0 0.0
  %6051 = vmatpush1.msra.mxu0 %v6006
  %6052 = vmatprep.subr.mxu0 0.0
  %6053 = vmatpush1.msra.mxu0 %v6005
  %6054 = vmatprep.subr.mxu0 0.0
  %6055 = vmatpush1.msra.mxu0 %v6004
  %6056 = vmatprep.subr.mxu0 0.0
  %6057 = vmatpush1.msra.mxu0 %v6003
  %6058 = vmatprep.subr.mxu0 0.0
  %6059 = vmatpush2.msra.mxu0 0.0
  %6060 = vmatprep.subr.mxu0 0.0
  %6061 = vmatpush2.msra.mxu0 0.0
  %6062 = vmatprep.subr.mxu0 0.0
  %6063 = vmatpush2.msra.mxu0 0.0
  %6064 = vmatprep.subr.mxu0 0.0
  %6065 = vmatpush2.msra.mxu0 0.0
  %6066 = vmatprep.subr.mxu0 0.0
  %6067 = vmatpush2.msra.mxu0 0.0
  %6068 = vmatprep.subr.mxu0 0.0
  %6069 = vmatpush2.msra.mxu0 0.0
  %6070 = vmatprep.subr.mxu0 0.0
  %6071 = vmatpush2.msra.mxu0 0.0
  %6072 = vmatprep.subr.mxu0 0.0
  %6073 = vmatpush2.msra.mxu0 0.0
  %6074 = vmatprep.subr.mxu0 0.0
  %6075 = vmatpush2.msra.mxu0 0.0
  %6076 = vmatprep.subr.mxu0 0.0
  %6077 = vmatpush2.msra.mxu0 0.0
  %6078 = vmatprep.subr.mxu0 0.0
  %6079 = vmatpush2.msra.mxu0 0.0
  %6080 = vmatprep.subr.mxu0 0.0
  %6081 = vmatpush2.msra.mxu0 0.0
  %6082 = vmatprep.subr.mxu0 0.0
  %6083 = vmatpush2.msra.mxu0 0.0
  %6084 = vmatprep.subr.mxu0 0.0
  %6085 = vmatpush2.msra.mxu0 0.0
  %6086 = vmatprep.subr.mxu0 0.0
  %6087 = vmatpush2.msra.mxu0 0.0
  %6088 = vmatprep.subr.mxu0 0.0
  %6089 = vmatpush2.msra.mxu0 0.0
  %6090 = vmatprep.mubr.f32.mxu0 0.0
  %6091 = vmatmul.mubr.f32.gmra.mxu0 %v6002
  %v6092 = vpop.f32.mrf.mxu0
  %v6093 = vadd.f32 %v6024, %v6092
  %v6094 = vpop.f32.mrf.mxu0
  %6095 = vdwg.mxu0
  %v6096 = vmax.f32 %v6093, 0.0
  %v6097 = vld [vmem:[%s7] sm:$0xff]
  %v6098 = vld [vmem:[%s7 + $0x8] sm:$0xff]
  %v6099 = vld [vmem:[%s7 + $0x10] sm:$0xff]
  %v6100 = vld [vmem:[%s7 + $0x18] sm:$0xff]
  %v6101 = vld [vmem:[%s7 + $0x20] sm:$0xff]
  %v6102 = vld [vmem:[%s7 + $0x28] sm:$0xff]
  %v6103 = vld [vmem:[%s7 + $0x30] sm:$0xff]
  %v6104 = vld [vmem:[%s7 + $0x38] sm:$0xff]
  %v6105 = vld [vmem:[%s7 + $0x40] sm:$0xff]
  %v6106 = vld [vmem:[%s7 + $0x48] sm:$0xff]
  %v6107 = vld [vmem:[%s7 + $0x50] sm:$0xff]
  %v6108 = vld [vmem:[%s7 + $0x58] sm:$0xff]
  %v6109 = vld [vmem:[%s7 + $0x60] sm:$0xff]
  %v6110 = vld [vmem:[%s7 + $0x68] sm:$0xff]
  %v6111 = vld [vmem:[%s7 + $0x70] sm:$0xff]
  %v6112 = vld [vmem:[%s7 + $0x78] sm:$0xff]
  %v6113 = vld [vmem:[%s8] sm:$0x1]
  %v6115 = vlaneseq
  %v6116 = vshrl.u32 %v6115, 7
  %v6117 = vsub.s32 0, %v6116
  %v6118 = vrot.slane %v6113, %v6117
  %6120 = vmatprep.subr.mxu0 0.0
  %6121 = vmatpush1.msra.mxu0 %v6112
  %6122 = vmatprep.subr.mxu0 0.0
  %6123 = vmatpush1.msra.mxu0 %v6111
  %6124 = vmatprep.subr.mxu0 0.0
  %6125 = vmatpush1.msra.mxu0 %v6110
  %6126 = vmatprep.subr.mxu0 0.0
  %6127 = vmatpush1.msra.mxu0 %v6109
  %6128 = vmatprep.subr.mxu0 0.0
  %6129 = vmatpush1.msra.mxu0 %v6108
  %6130 = vmatprep.subr.mxu0 0.0
  %6131 = vmatpush1.msra.mxu0 %v6107
  %6132 = vmatprep.subr.mxu0 0.0
  %6133 = vmatpush1.msra.mxu0 %v6106
  %6134 = vmatprep.subr.mxu0 0.0
  %6135 = vmatpush1.msra.mxu0 %v6105
  %6136 = vmatprep.subr.mxu0 0.0
  %6137 = vmatpush1.msra.mxu0 %v6104
  %6138 = vmatprep.subr.mxu0 0.0
  %6139 = vmatpush1.msra.mxu0 %v6103
  %6140 = vmatprep.subr.mxu0 0.0
  %6141 = vmatpush1.msra.mxu0 %v6102
  %6142 = vmatprep.subr.mxu0 0.0
  %6143 = vmatpush1.msra.mxu0 %v6101
  %6144 = vmatprep.subr.mxu0 0.0
  %6145 = vmatpush1.msra.mxu0 %v6100
  %6146 = vmatprep.subr.mxu0 0.0
  %6147 = vmatpush1.msra.mxu0 %v6099
  %6148 = vmatprep.subr.mxu0 0.0
  %6149 = vmatpush1.msra.mxu0 %v6098
  %6150 = vmatprep.subr.mxu0 0.0
  %6151 = vmatpush1.msra.mxu0 %v6097
  %6152 = vmatprep.subr.mxu0 0.0
  %6153 = vmatpush2.msra.mxu0 0.0
  %6154 = vmatprep.subr.mxu0 0.0
  %6155 = vmatpush2.msra.mxu0 0.0
  %6156 = vmatprep.subr.mxu0 0.0
  %6157 = vmatpush2.msra.mxu0 0.0
  %6158 = vmatprep.subr.mxu0 0.0
  %6159 = vmatpush2.msra.mxu0 0.0
  %6160 = vmatprep.subr.mxu0 0.0
  %6161 = vmatpush2.msra.mxu0 0.0
  %6162 = vmatprep.subr.mxu0 0.0
  %6163 = vmatpush2.msra.mxu0 0.0
  %6164 = vmatprep.subr.mxu0 0.0
  %6165 = vmatpush2.msra.mxu0 0.0
  %6166 = vmatprep.subr.mxu0 0.0
  %6167 = vmatpush2.msra.mxu0 0.0
  %6168 = vmatprep.subr.mxu0 0.0
  %6169 = vmatpush2.msra.mxu0 0.0
  %6170 = vmatprep.subr.mxu0 0.0
  %6171 = vmatpush2.msra.mxu0 0.0
  %6172 = vmatprep.subr.mxu0 0.0
  %6173 = vmatpush2.msra.mxu0 0.0
  %6174 = vmatprep.subr.mxu0 0.0
  %6175 = vmatpush2.msra.mxu0 0.0
  %6176 = vmatprep.subr.mxu0 0.0
  %6177 = vmatpush2.msra.mxu0 0.0
  %6178 = vmatprep.subr.mxu0 0.0
  %6179 = vmatpush2.msra.mxu0 0.0
  %6180 = vmatprep.subr.mxu0 0.0
  %6181 = vmatpush2.msra.mxu0 0.0
  %6182 = vmatprep.subr.mxu0 0.0
  %6183 = vmatpush2.msra.mxu0 0.0
  %6184 = vmatprep.mubr.f32.mxu0 0.0
  %6185 = vmatmul.mubr.f32.gmra.mxu0 %v6096
  %v6186 = vpop.f32.mrf.mxu0
  %v6187 = vadd.f32 %v6118, %v6186
  %v6188 = vpop.f32.mrf.mxu0
  %6189 = vdwg.mxu0
  %vm6190 = vcmask 80896
  %6191 = vst.msk [vmem:[%s9] sm:$0xff] %vm6190, %v6187
  // Predicated region
  $region38: #{neural_net_forward.1} parent=0 // pred_check
    _
  $region39: #{neural_net_forward.1} parent=0 // pred_check_branch
    %6193 = sbr.rel (0) target = $region41
  $region40: #{neural_net_forward.1} parent=0 // pred_region
    _
  $region41: #{neural_net_forward.1} parent=0 // pred_fallthru
    _
  // Predicated region
  $region42: #{neural_net_forward.1} parent=0 // pred_check
    _
  $region43: #{neural_net_forward.1} parent=0 // pred_check_branch
    %6195 = sbr.rel (0) target = $region45
  $region44: #{neural_net_forward.1} parent=0 // pred_region
    _
  $region45: #{neural_net_forward.1} parent=0 // pred_fallthru
    _

</llo_original>
